<compile_context>
chip_gen: v6e
topology: v6e:2x2x1
jax: 0.10.0
libtpu: 0.0.40
codegen_flags: <defaults>
</compile_context>

<pallas_src>
import jax
import jax.numpy as jnp
from jax import lax
from jax.experimental import pallas as pl
from jax.experimental.pallas import tpu as pltpu

# ----------------------------- model config (small) -----------------------------
IMAGE_SIZE = 16
PATCH_SIZE = 4
CHANNELS = 1
NUM_CLASSES = 10
DIM = 32
DEPTH = 2
HEADS = 4
MLP_DIM = 64
BATCH = 2

NUM_PATCHES = (IMAGE_SIZE // PATCH_SIZE) ** 2          # 16
SEQ = NUM_PATCHES + 1                                  # 17 (cls token + patches)
SEQ_PAD = 24                                           # padded to a multiple of 8
PATCH_DIM = CHANNELS * PATCH_SIZE ** 2                 # 16
D_HEAD = DIM // HEADS                                  # 8
SCALE = D_HEAD ** -0.5
M = BATCH * SEQ_PAD                                    # 48 rows (8-aligned)


# --------------------------------- fused kernel ----------------------------------
def fused_vit_kernel(*refs):
    (x_patch_ref, cls_ref, w_pe_ref, b_pe_ref,
     fr_ref, fi_ref, bias_ref) = refs[:7]
    layer_refs = refs[7:7 + 8 * DEPTH]
    w_head_ref = refs[7 + 8 * DEPTH]
    b_head_ref = refs[8 + 8 * DEPTH]
    out_ref = refs[9 + 8 * DEPTH]
    attn_scratch = refs[10 + 8 * DEPTH]                # VMEM (M, 2*DIM)

    # ---- patch embedding: real input -> complex, one stacked matmul ----
    emb = jnp.dot(x_patch_ref[...], w_pe_ref[...],
                  preferred_element_type=jnp.float32) + b_pe_ref[...]
    # overwrite row b*SEQ_PAD of each batch element with the cls token
    row = lax.broadcasted_iota(jnp.int32, (M, 2 * DIM), 0)
    is_cls = row == 0
    for b in range(1, BATCH):
        is_cls = jnp.logical_or(is_cls, row == b * SEQ_PAD)
    x = jnp.where(is_cls, jnp.broadcast_to(cls_ref[...], (M, 2 * DIM)), emb)

    fr = fr_ref[...]                                   # (M, DIM) tiled RoPE cos
    fi = fi_ref[...]                                   # (M, DIM) tiled RoPE sin
    bias = bias_ref[...]                               # (M, M) 0 / -1e30 mask
    dn_t = (((1,), (1,)), ((), ()))                    # A @ B^T (contract last dims)

    for li in range(DEPTH):
        (w_qkv, b_qkv, w_o, b_o, w_f1, b_f1, w_f2, b_f2) = \
            layer_refs[8 * li: 8 * li + 8]

        # qkv projection: one stacked real matmul for the complex linear
        y = jnp.dot(x, w_qkv[...], preferred_element_type=jnp.float32) + b_qkv[...]
        q_r = y[:, 0 * DIM:1 * DIM]
        k_r = y[:, 1 * DIM:2 * DIM]
        v_r = y[:, 2 * DIM:3 * DIM]
        q_i = y[:, 3 * DIM:4 * DIM]
        k_i = y[:, 4 * DIM:5 * DIM]
        v_i = y[:, 5 * DIM:6 * DIM]

        # rotary embedding (complex elementwise multiply), all heads/batches at once
        qr2 = q_r * fr - q_i * fi
        qi2 = q_r * fi + q_i * fr
        kr2 = k_r * fr - k_i * fi
        ki2 = k_r * fi + k_i * fr

        for h in range(HEADS):
            s0, s1 = h * D_HEAD, (h + 1) * D_HEAD
            qr_h, qi_h = qr2[:, s0:s1], qi2[:, s0:s1]
            kr_h, ki_h = kr2[:, s0:s1], ki2[:, s0:s1]
            # dots = q @ conj(k)^T over all (batch, position) rows at once;
            # cross-batch and padded-key entries are killed by the additive bias.
            d_re = (lax.dot_general(qr_h, kr_h, dn_t, preferred_element_type=jnp.float32)
                    + lax.dot_general(qi_h, ki_h, dn_t, preferred_element_type=jnp.float32))
            d_im = (lax.dot_general(qi_h, kr_h, dn_t, preferred_element_type=jnp.float32)
                    - lax.dot_general(qr_h, ki_h, dn_t, preferred_element_type=jnp.float32))
            logits = jnp.sqrt(d_re * d_re + d_im * d_im) * SCALE + bias
            logits = logits - jnp.max(logits, axis=-1, keepdims=True)
            e = jnp.exp(logits)
            attn = e * pl.reciprocal(jnp.sum(e, axis=-1, keepdims=True), approx=True)
            # out = attn @ v (attn real, v complex); write per-head slabs
            attn_scratch[:, s0:s1] = jnp.dot(
                attn, v_r[:, s0:s1], preferred_element_type=jnp.float32)
            attn_scratch[:, DIM + s0:DIM + s1] = jnp.dot(
                attn, v_i[:, s0:s1], preferred_element_type=jnp.float32)

        attn_out = attn_scratch[...]
        # to_out -> ff1 -> ff2 (reference has no activation / residual / norm)
        x = jnp.dot(attn_out, w_o[...], preferred_element_type=jnp.float32) + b_o[...]
        x = jnp.dot(x, w_f1[...], preferred_element_type=jnp.float32) + b_f1[...]
        x = jnp.dot(x, w_f2[...], preferred_element_type=jnp.float32) + b_f2[...]

    # classifier head; only the cls row of each batch element is emitted
    head = jnp.dot(x, w_head_ref[...], preferred_element_type=jnp.float32) + b_head_ref[...]
    for b in range(BATCH):
        out_ref[b:b + 1, :] = head[b * SEQ_PAD:b * SEQ_PAD + 1, :]


# ------------------------------- parameter init ----------------------------------
def init_complex_linear_stacked(key, in_f, out_f):
    """Complex linear as one real matmul: x_stack(M,2in) @ W(2in,2out) + b(1,2out)."""
    k1, k2 = jax.random.split(key)
    wr = jax.random.normal(k1, (out_f, in_f), jnp.float32) / jnp.sqrt(in_f)
    wi = jax.random.normal(k2, (out_f, in_f), jnp.float32) / jnp.sqrt(in_f)
    w = jnp.concatenate(
        [jnp.concatenate([wr.T, wi.T], axis=1),
         jnp.concatenate([-wi.T, wr.T], axis=1)], axis=0)       # (2*in, 2*out)
    b = jnp.zeros((1, 2 * out_f), jnp.float32)
    return w, b


def init_complex_linear_real_input(key, in_f, out_f):
    """Variant for a purely-real input (patch embedding): only [wr^T | wi^T]."""
    k1, k2 = jax.random.split(key)
    wr = jax.random.normal(k1, (out_f, in_f), jnp.float32) / jnp.sqrt(in_f)
    wi = jax.random.normal(k2, (out_f, in_f), jnp.float32) / jnp.sqrt(in_f)
    return jnp.concatenate([wr.T, wi.T], axis=1), jnp.zeros((1, 2 * out_f), jnp.float32)


def get_rope_freqs_tiled(base=10000.0):
    inv = jnp.float32(base) ** (-jnp.arange(0, D_HEAD, 2, dtype=jnp.float32) / D_HEAD)
    t = jnp.arange(SEQ_PAD, dtype=jnp.float32)
    ang = jnp.outer(t, inv)                                     # (SEQ_PAD, D_HEAD//2)
    # TODO(synk): the PyTorch reference builds freqs of shape (n, d_head//2) which does
    # not broadcast against q/k of last dim d_head; we resolve that shape bug by
    # repeating each frequency twice (standard RoPE channel pairing) to get (n, d_head).
    fr = jnp.repeat(jnp.cos(ang), 2, axis=-1)                   # (SEQ_PAD, D_HEAD)
    fi = jnp.repeat(jnp.sin(ang), 2, axis=-1)
    # tile over batch (rows) and heads (lanes) so RoPE is a single elementwise op
    return jnp.tile(fr, (BATCH, HEADS)), jnp.tile(fi, (BATCH, HEADS))   # (M, DIM)


def make_attn_bias():
    r = jnp.arange(M)
    same_batch = (r[:, None] // SEQ_PAD) == (r[None, :] // SEQ_PAD)
    valid_key = (r[None, :] % SEQ_PAD) < SEQ
    return jnp.where(same_batch & valid_key, 0.0, -1e30).astype(jnp.float32)


def init_params(key):
    keys = jax.random.split(key, 4 + DEPTH)
    params = {"patch_emb": init_complex_linear_real_input(keys[0], PATCH_DIM, DIM)}
    cls_r = jax.random.normal(keys[1], (1, DIM), jnp.float32)
    cls_i = jax.random.normal(keys[2], (1, DIM), jnp.float32)
    params["cls"] = jnp.concatenate([cls_r, cls_i], axis=1)     # (1, 2*DIM)

    kh1, kh2 = jax.random.split(keys[3])
    w_head = jax.random.normal(kh1, (NUM_CLASSES, 2 * DIM), jnp.float32) / jnp.sqrt(2 * DIM)
    params["head_w"] = w_head.T                                 # (2*DIM, NUM_CLASSES)
    params["head_b"] = (jax.random.normal(kh2, (NUM_CLASSES,), jnp.float32) * 0.01
                        ).reshape(1, NUM_CLASSES)

    layers = []
    for li in range(DEPTH):
        k = jax.random.split(keys[4 + li], 4)
        layers.append({
            "qkv": init_complex_linear_stacked(k[0], DIM, 3 * DIM),
            "out": init_complex_linear_stacked(k[1], DIM, DIM),
            "ff1": init_complex_linear_stacked(k[2], DIM, MLP_DIM),
            "ff2": init_complex_linear_stacked(k[3], MLP_DIM, DIM),
        })
    params["layers"] = layers

    fr, fi = get_rope_freqs_tiled()
    params["freqs_r"] = fr
    params["freqs_i"] = fi
    params["attn_bias"] = make_attn_bias()
    return params


# ---------------------------------- forward ---------------------------------------
def vit_forward(img, params):
    b, c, H, W = img.shape
    assert b == BATCH and c == CHANNELS and H == IMAGE_SIZE and W == IMAGE_SIZE
    p = PATCH_SIZE
    # rearrange 'b c (h p1) (w p2) -> b (h w) (p1 p2 c)'
    x = img.reshape(b, c, H // p, p, W // p, p)
    x = x.transpose(0, 2, 4, 3, 5, 1).reshape(b, NUM_PATCHES, PATCH_DIM)
    x = x.astype(jnp.float32)
    # pad to SEQ_PAD rows per batch: row 0 = cls slot, rows 1..16 = patches, rest pad
    x = jnp.pad(x, ((0, 0), (1, SEQ_PAD - 1 - NUM_PATCHES), (0, 0)))
    x = x.reshape(M, PATCH_DIM)

    args = [x, params["cls"], *params["patch_emb"],
            params["freqs_r"], params["freqs_i"], params["attn_bias"]]
    for layer in params["layers"]:
        args += [*layer["qkv"], *layer["out"], *layer["ff1"], *layer["ff2"]]
    args += [params["head_w"], params["head_b"]]

    return pl.pallas_call(
        fused_vit_kernel,
        out_shape=jax.ShapeDtypeStruct((BATCH, NUM_CLASSES), jnp.float32),
        scratch_shapes=[pltpu.VMEM((M, 2 * DIM), jnp.float32)],
    )(*args)


# ------------------------------------ main -----------------------------------------
if __name__ == "__main__":
    root = jax.random.PRNGKey(0)
    k_param, k_img = jax.random.split(root)
    params = init_params(k_param)
    img = jax.random.normal(k_img, (BATCH, CHANNELS, IMAGE_SIZE, IMAGE_SIZE), jnp.float32)

    logits = jax.jit(vit_forward)(img, params)
    logits = jax.block_until_ready(logits)
    assert logits.shape == (BATCH, NUM_CLASSES)
    assert bool(jnp.all(jnp.isfinite(logits)))
    print("KERNEL_OK")
</pallas_src>

<mosaic_0001>
module attributes {stable_mosaic.version = 11 : i64} {
  func.func @fused_vit_kernel(%arg0: memref<48x16xf32, #tpu.memory_space<vmem>>, %arg1: memref<1x64xf32, #tpu.memory_space<vmem>>, %arg2: memref<16x64xf32, #tpu.memory_space<vmem>>, %arg3: memref<1x64xf32, #tpu.memory_space<vmem>>, %arg4: memref<48x32xf32, #tpu.memory_space<vmem>>, %arg5: memref<48x32xf32, #tpu.memory_space<vmem>>, %arg6: memref<48x48xf32, #tpu.memory_space<vmem>>, %arg7: memref<64x192xf32, #tpu.memory_space<vmem>>, %arg8: memref<1x192xf32, #tpu.memory_space<vmem>>, %arg9: memref<64x64xf32, #tpu.memory_space<vmem>>, %arg10: memref<1x64xf32, #tpu.memory_space<vmem>>, %arg11: memref<64x128xf32, #tpu.memory_space<vmem>>, %arg12: memref<1x128xf32, #tpu.memory_space<vmem>>, %arg13: memref<128x64xf32, #tpu.memory_space<vmem>>, %arg14: memref<1x64xf32, #tpu.memory_space<vmem>>, %arg15: memref<64x192xf32, #tpu.memory_space<vmem>>, %arg16: memref<1x192xf32, #tpu.memory_space<vmem>>, %arg17: memref<64x64xf32, #tpu.memory_space<vmem>>, %arg18: memref<1x64xf32, #tpu.memory_space<vmem>>, %arg19: memref<64x128xf32, #tpu.memory_space<vmem>>, %arg20: memref<1x128xf32, #tpu.memory_space<vmem>>, %arg21: memref<128x64xf32, #tpu.memory_space<vmem>>, %arg22: memref<1x64xf32, #tpu.memory_space<vmem>>, %arg23: memref<64x10xf32, #tpu.memory_space<vmem>>, %arg24: memref<1x10xf32, #tpu.memory_space<vmem>>, %arg25: memref<2x10xf32, #tpu.memory_space<vmem>>, %arg26: memref<48x64xf32, #tpu.memory_space<vmem>>) attributes {dimension_semantics = [], scalar_prefetch = 0 : i64, scratch_operands = 1 : i64, tpu.core_type = #tpu.core_type<tc>} {
    %c0 = arith.constant 0 : index
    %c0_0 = arith.constant 0 : index
    %0 = vector.load %arg0[%c0, %c0_0] : memref<48x16xf32, #tpu.memory_space<vmem>>, vector<48x16xf32>
    %c0_1 = arith.constant 0 : index
    %c0_2 = arith.constant 0 : index
    %1 = vector.load %arg2[%c0_1, %c0_2] : memref<16x64xf32, #tpu.memory_space<vmem>>, vector<16x64xf32>
    %cst = arith.constant dense<0.000000e+00> : vector<48x64xf32>
    %2 = tpu.matmul %0, %1, %cst {dimension_numbers = #tpu.dot_dimension_numbers<[1], [0], [0], [1], [0, 0, 1, 1], [], []>} : vector<48x16xf32>, vector<16x64xf32>, vector<48x64xf32> -> vector<48x64xf32>
    %c0_3 = arith.constant 0 : index
    %c0_4 = arith.constant 0 : index
    %3 = vector.load %arg3[%c0_3, %c0_4] : memref<1x64xf32, #tpu.memory_space<vmem>>, vector<1x64xf32>
    %4 = vector.broadcast %3 : vector<1x64xf32> to vector<48x64xf32>
    %5 = arith.addf %2, %4 : vector<48x64xf32>
    %6 = tpu.iota {dimensions = array<i32: 0>} : vector<48x64xi32>
    %c0_i32 = arith.constant 0 : i32
    %7 = vector.broadcast %c0_i32 : i32 to vector<48x64xi32>
    %8 = arith.cmpi eq, %6, %7 : vector<48x64xi32>
    %c24_i32 = arith.constant 24 : i32
    %9 = vector.broadcast %c24_i32 : i32 to vector<48x64xi32>
    %10 = arith.cmpi eq, %6, %9 : vector<48x64xi32>
    %11 = arith.ori %8, %10 : vector<48x64xi1>
    %c0_5 = arith.constant 0 : index
    %c0_6 = arith.constant 0 : index
    %12 = vector.load %arg1[%c0_5, %c0_6] : memref<1x64xf32, #tpu.memory_space<vmem>>, vector<1x64xf32>
    %13 = vector.shape_cast %12 : vector<1x64xf32> to vector<1x64xf32>
    %14 = vector.broadcast %13 : vector<1x64xf32> to vector<48x64xf32>
    %15 = arith.select %11, %14, %5 : vector<48x64xi1>, vector<48x64xf32>
    %c0_7 = arith.constant 0 : index
    %c0_8 = arith.constant 0 : index
    %16 = vector.load %arg4[%c0_7, %c0_8] : memref<48x32xf32, #tpu.memory_space<vmem>>, vector<48x32xf32>
    %c0_9 = arith.constant 0 : index
    %c0_10 = arith.constant 0 : index
    %17 = vector.load %arg5[%c0_9, %c0_10] : memref<48x32xf32, #tpu.memory_space<vmem>>, vector<48x32xf32>
    %c0_11 = arith.constant 0 : index
    %c0_12 = arith.constant 0 : index
    %18 = vector.load %arg6[%c0_11, %c0_12] : memref<48x48xf32, #tpu.memory_space<vmem>>, vector<48x48xf32>
    %c0_13 = arith.constant 0 : index
    %c0_14 = arith.constant 0 : index
    %19 = vector.load %arg7[%c0_13, %c0_14] : memref<64x192xf32, #tpu.memory_space<vmem>>, vector<64x192xf32>
    %cst_15 = arith.constant dense<0.000000e+00> : vector<48x192xf32>
    %20 = tpu.matmul %15, %19, %cst_15 {dimension_numbers = #tpu.dot_dimension_numbers<[1], [0], [0], [1], [0, 0, 1, 1], [], []>} : vector<48x64xf32>, vector<64x192xf32>, vector<48x192xf32> -> vector<48x192xf32>
    %c0_16 = arith.constant 0 : index
    %c0_17 = arith.constant 0 : index
    %21 = vector.load %arg8[%c0_16, %c0_17] : memref<1x192xf32, #tpu.memory_space<vmem>>, vector<1x192xf32>
    %22 = vector.broadcast %21 : vector<1x192xf32> to vector<48x192xf32>
    %23 = arith.addf %20, %22 : vector<48x192xf32>
    %24 = vector.extract_strided_slice %23 {offsets = [0, 0], sizes = [48, 32], strides = [1, 1]} : vector<48x192xf32> to vector<48x32xf32>
    %25 = vector.extract_strided_slice %23 {offsets = [0, 32], sizes = [48, 32], strides = [1, 1]} : vector<48x192xf32> to vector<48x32xf32>
    %26 = vector.extract_strided_slice %23 {offsets = [0, 64], sizes = [48, 32], strides = [1, 1]} : vector<48x192xf32> to vector<48x32xf32>
    %27 = vector.extract_strided_slice %23 {offsets = [0, 96], sizes = [48, 32], strides = [1, 1]} : vector<48x192xf32> to vector<48x32xf32>
    %28 = vector.extract_strided_slice %23 {offsets = [0, 128], sizes = [48, 32], strides = [1, 1]} : vector<48x192xf32> to vector<48x32xf32>
    %29 = vector.extract_strided_slice %23 {offsets = [0, 160], sizes = [48, 32], strides = [1, 1]} : vector<48x192xf32> to vector<48x32xf32>
    %30 = arith.mulf %24, %16 : vector<48x32xf32>
    %31 = arith.mulf %27, %17 : vector<48x32xf32>
    %32 = arith.subf %30, %31 : vector<48x32xf32>
    %33 = arith.mulf %24, %17 : vector<48x32xf32>
    %34 = arith.mulf %27, %16 : vector<48x32xf32>
    %35 = arith.addf %33, %34 : vector<48x32xf32>
    %36 = arith.mulf %25, %16 : vector<48x32xf32>
    %37 = arith.mulf %28, %17 : vector<48x32xf32>
    %38 = arith.subf %36, %37 : vector<48x32xf32>
    %39 = arith.mulf %25, %17 : vector<48x32xf32>
    %40 = arith.mulf %28, %16 : vector<48x32xf32>
    %41 = arith.addf %39, %40 : vector<48x32xf32>
    %42 = vector.extract_strided_slice %32 {offsets = [0, 0], sizes = [48, 8], strides = [1, 1]} : vector<48x32xf32> to vector<48x8xf32>
    %43 = vector.extract_strided_slice %35 {offsets = [0, 0], sizes = [48, 8], strides = [1, 1]} : vector<48x32xf32> to vector<48x8xf32>
    %44 = vector.extract_strided_slice %38 {offsets = [0, 0], sizes = [48, 8], strides = [1, 1]} : vector<48x32xf32> to vector<48x8xf32>
    %45 = vector.extract_strided_slice %41 {offsets = [0, 0], sizes = [48, 8], strides = [1, 1]} : vector<48x32xf32> to vector<48x8xf32>
    %cst_18 = arith.constant dense<0.000000e+00> : vector<48x48xf32>
    %46 = tpu.matmul %42, %44, %cst_18 {dimension_numbers = #tpu.dot_dimension_numbers<[1], [1], [0], [0], [0, 0, 1, 0], [], []>} : vector<48x8xf32>, vector<48x8xf32>, vector<48x48xf32> -> vector<48x48xf32>
    %cst_19 = arith.constant dense<0.000000e+00> : vector<48x48xf32>
    %47 = tpu.matmul %43, %45, %cst_19 {dimension_numbers = #tpu.dot_dimension_numbers<[1], [1], [0], [0], [0, 0, 1, 0], [], []>} : vector<48x8xf32>, vector<48x8xf32>, vector<48x48xf32> -> vector<48x48xf32>
    %48 = arith.addf %46, %47 : vector<48x48xf32>
    %cst_20 = arith.constant dense<0.000000e+00> : vector<48x48xf32>
    %49 = tpu.matmul %43, %44, %cst_20 {dimension_numbers = #tpu.dot_dimension_numbers<[1], [1], [0], [0], [0, 0, 1, 0], [], []>} : vector<48x8xf32>, vector<48x8xf32>, vector<48x48xf32> -> vector<48x48xf32>
    %cst_21 = arith.constant dense<0.000000e+00> : vector<48x48xf32>
    %50 = tpu.matmul %42, %45, %cst_21 {dimension_numbers = #tpu.dot_dimension_numbers<[1], [1], [0], [0], [0, 0, 1, 0], [], []>} : vector<48x8xf32>, vector<48x8xf32>, vector<48x48xf32> -> vector<48x48xf32>
    %51 = arith.subf %49, %50 : vector<48x48xf32>
    %52 = arith.mulf %48, %48 : vector<48x48xf32>
    %53 = arith.mulf %51, %51 : vector<48x48xf32>
    %54 = arith.addf %52, %53 : vector<48x48xf32>
    %55 = math.sqrt %54 : vector<48x48xf32>
    %cst_22 = arith.constant 0.353553385 : f32
    %56 = vector.broadcast %cst_22 : f32 to vector<48x48xf32>
    %57 = arith.mulf %55, %56 : vector<48x48xf32>
    %58 = arith.addf %57, %18 : vector<48x48xf32>
    %cst_23 = arith.constant dense<0xFF800000> : vector<48xf32>
    %59 = vector.multi_reduction <maximumf>, %58, %cst_23 [1] : vector<48x48xf32> to vector<48xf32>
    %60 = vector.shape_cast %59 : vector<48xf32> to vector<48x1xf32>
    %61 = vector.broadcast %60 : vector<48x1xf32> to vector<48x48xf32>
    %62 = arith.subf %58, %61 : vector<48x48xf32>
    %63 = math.exp %62 : vector<48x48xf32>
    %cst_24 = arith.constant dense<0.000000e+00> : vector<48xf32>
    %64 = vector.multi_reduction <add>, %63, %cst_24 [1] : vector<48x48xf32> to vector<48xf32>
    %65 = vector.shape_cast %64 : vector<48xf32> to vector<48x1xf32>
    %66 = tpu.reciprocal %65 {approx = true} : vector<48x1xf32> -> vector<48x1xf32>
    %67 = vector.broadcast %66 : vector<48x1xf32> to vector<48x48xf32>
    %68 = arith.mulf %63, %67 : vector<48x48xf32>
    %69 = vector.extract_strided_slice %26 {offsets = [0, 0], sizes = [48, 8], strides = [1, 1]} : vector<48x32xf32> to vector<48x8xf32>
    %cst_25 = arith.constant dense<0.000000e+00> : vector<48x8xf32>
    %70 = tpu.matmul %68, %69, %cst_25 {dimension_numbers = #tpu.dot_dimension_numbers<[1], [0], [0], [1], [0, 0, 1, 1], [], []>} : vector<48x48xf32>, vector<48x8xf32>, vector<48x8xf32> -> vector<48x8xf32>
    %c0_26 = arith.constant 0 : index
    %c0_27 = arith.constant 0 : index
    %71 = vector.load %arg26[%c0_26, %c0_27] : memref<48x64xf32, #tpu.memory_space<vmem>>, vector<48x8xf32>
    tpu.vector_store %arg26[%c0_26, %c0_27], %70 {strides = array<i32>} : memref<48x64xf32, #tpu.memory_space<vmem>>, vector<48x8xf32>,
    %72 = vector.extract_strided_slice %29 {offsets = [0, 0], sizes = [48, 8], strides = [1, 1]} : vector<48x32xf32> to vector<48x8xf32>
    %cst_28 = arith.constant dense<0.000000e+00> : vector<48x8xf32>
    %73 = tpu.matmul %68, %72, %cst_28 {dimension_numbers = #tpu.dot_dimension_numbers<[1], [0], [0], [1], [0, 0, 1, 1], [], []>} : vector<48x48xf32>, vector<48x8xf32>, vector<48x8xf32> -> vector<48x8xf32>
    %c0_29 = arith.constant 0 : index
    %c32 = arith.constant 32 : index
    %74 = vector.load %arg26[%c0_29, %c32] : memref<48x64xf32, #tpu.memory_space<vmem>>, vector<48x8xf32>
    tpu.vector_store %arg26[%c0_29, %c32], %73 {strides = array<i32>} : memref<48x64xf32, #tpu.memory_space<vmem>>, vector<48x8xf32>,
    %75 = vector.extract_strided_slice %32 {offsets = [0, 8], sizes = [48, 8], strides = [1, 1]} : vector<48x32xf32> to vector<48x8xf32>
    %76 = vector.extract_strided_slice %35 {offsets = [0, 8], sizes = [48, 8], strides = [1, 1]} : vector<48x32xf32> to vector<48x8xf32>
    %77 = vector.extract_strided_slice %38 {offsets = [0, 8], sizes = [48, 8], strides = [1, 1]} : vector<48x32xf32> to vector<48x8xf32>
    %78 = vector.extract_strided_slice %41 {offsets = [0, 8], sizes = [48, 8], strides = [1, 1]} : vector<48x32xf32> to vector<48x8xf32>
    %cst_30 = arith.constant dense<0.000000e+00> : vector<48x48xf32>
    %79 = tpu.matmul %75, %77, %cst_30 {dimension_numbers = #tpu.dot_dimension_numbers<[1], [1], [0], [0], [0, 0, 1, 0], [], []>} : vector<48x8xf32>, vector<48x8xf32>, vector<48x48xf32> -> vector<48x48xf32>
    %cst_31 = arith.constant dense<0.000000e+00> : vector<48x48xf32>
    %80 = tpu.matmul %76, %78, %cst_31 {dimension_numbers = #tpu.dot_dimension_numbers<[1], [1], [0], [0], [0, 0, 1, 0], [], []>} : vector<48x8xf32>, vector<48x8xf32>, vector<48x48xf32> -> vector<48x48xf32>
    %81 = arith.addf %79, %80 : vector<48x48xf32>
    %cst_32 = arith.constant dense<0.000000e+00> : vector<48x48xf32>
    %82 = tpu.matmul %76, %77, %cst_32 {dimension_numbers = #tpu.dot_dimension_numbers<[1], [1], [0], [0], [0, 0, 1, 0], [], []>} : vector<48x8xf32>, vector<48x8xf32>, vector<48x48xf32> -> vector<48x48xf32>
    %cst_33 = arith.constant dense<0.000000e+00> : vector<48x48xf32>
    %83 = tpu.matmul %75, %78, %cst_33 {dimension_numbers = #tpu.dot_dimension_numbers<[1], [1], [0], [0], [0, 0, 1, 0], [], []>} : vector<48x8xf32>, vector<48x8xf32>, vector<48x48xf32> -> vector<48x48xf32>
    %84 = arith.subf %82, %83 : vector<48x48xf32>
    %85 = arith.mulf %81, %81 : vector<48x48xf32>
    %86 = arith.mulf %84, %84 : vector<48x48xf32>
    %87 = arith.addf %85, %86 : vector<48x48xf32>
    %88 = math.sqrt %87 : vector<48x48xf32>
    %cst_34 = arith.constant 0.353553385 : f32
    %89 = vector.broadcast %cst_34 : f32 to vector<48x48xf32>
    %90 = arith.mulf %88, %89 : vector<48x48xf32>
    %91 = arith.addf %90, %18 : vector<48x48xf32>
    %cst_35 = arith.constant dense<0xFF800000> : vector<48xf32>
    %92 = vector.multi_reduction <maximumf>, %91, %cst_35 [1] : vector<48x48xf32> to vector<48xf32>
    %93 = vector.shape_cast %92 : vector<48xf32> to vector<48x1xf32>
    %94 = vector.broadcast %93 : vector<48x1xf32> to vector<48x48xf32>
    %95 = arith.subf %91, %94 : vector<48x48xf32>
    %96 = math.exp %95 : vector<48x48xf32>
    %cst_36 = arith.constant dense<0.000000e+00> : vector<48xf32>
    %97 = vector.multi_reduction <add>, %96, %cst_36 [1] : vector<48x48xf32> to vector<48xf32>
    %98 = vector.shape_cast %97 : vector<48xf32> to vector<48x1xf32>
    %99 = tpu.reciprocal %98 {approx = true} : vector<48x1xf32> -> vector<48x1xf32>
    %100 = vector.broadcast %99 : vector<48x1xf32> to vector<48x48xf32>
    %101 = arith.mulf %96, %100 : vector<48x48xf32>
    %102 = vector.extract_strided_slice %26 {offsets = [0, 8], sizes = [48, 8], strides = [1, 1]} : vector<48x32xf32> to vector<48x8xf32>
    %cst_37 = arith.constant dense<0.000000e+00> : vector<48x8xf32>
    %103 = tpu.matmul %101, %102, %cst_37 {dimension_numbers = #tpu.dot_dimension_numbers<[1], [0], [0], [1], [0, 0, 1, 1], [], []>} : vector<48x48xf32>, vector<48x8xf32>, vector<48x8xf32> -> vector<48x8xf32>
    %c0_38 = arith.constant 0 : index
    %c8 = arith.constant 8 : index
    %104 = vector.load %arg26[%c0_38, %c8] : memref<48x64xf32, #tpu.memory_space<vmem>>, vector<48x8xf32>
    tpu.vector_store %arg26[%c0_38, %c8], %103 {strides = array<i32>} : memref<48x64xf32, #tpu.memory_space<vmem>>, vector<48x8xf32>,
    %105 = vector.extract_strided_slice %29 {offsets = [0, 8], sizes = [48, 8], strides = [1, 1]} : vector<48x32xf32> to vector<48x8xf32>
    %cst_39 = arith.constant dense<0.000000e+00> : vector<48x8xf32>
    %106 = tpu.matmul %101, %105, %cst_39 {dimension_numbers = #tpu.dot_dimension_numbers<[1], [0], [0], [1], [0, 0, 1, 1], [], []>} : vector<48x48xf32>, vector<48x8xf32>, vector<48x8xf32> -> vector<48x8xf32>
    %c0_40 = arith.constant 0 : index
    %c40 = arith.constant 40 : index
    %107 = vector.load %arg26[%c0_40, %c40] : memref<48x64xf32, #tpu.memory_space<vmem>>, vector<48x8xf32>
    tpu.vector_store %arg26[%c0_40, %c40], %106 {strides = array<i32>} : memref<48x64xf32, #tpu.memory_space<vmem>>, vector<48x8xf32>,
    %108 = vector.extract_strided_slice %32 {offsets = [0, 16], sizes = [48, 8], strides = [1, 1]} : vector<48x32xf32> to vector<48x8xf32>
    %109 = vector.extract_strided_slice %35 {offsets = [0, 16], sizes = [48, 8], strides = [1, 1]} : vector<48x32xf32> to vector<48x8xf32>
    %110 = vector.extract_strided_slice %38 {offsets = [0, 16], sizes = [48, 8], strides = [1, 1]} : vector<48x32xf32> to vector<48x8xf32>
    %111 = vector.extract_strided_slice %41 {offsets = [0, 16], sizes = [48, 8], strides = [1, 1]} : vector<48x32xf32> to vector<48x8xf32>
    %cst_41 = arith.constant dense<0.000000e+00> : vector<48x48xf32>
    %112 = tpu.matmul %108, %110, %cst_41 {dimension_numbers = #tpu.dot_dimension_numbers<[1], [1], [0], [0], [0, 0, 1, 0], [], []>} : vector<48x8xf32>, vector<48x8xf32>, vector<48x48xf32> -> vector<48x48xf32>
    %cst_42 = arith.constant dense<0.000000e+00> : vector<48x48xf32>
    %113 = tpu.matmul %109, %111, %cst_42 {dimension_numbers = #tpu.dot_dimension_numbers<[1], [1], [0], [0], [0, 0, 1, 0], [], []>} : vector<48x8xf32>, vector<48x8xf32>, vector<48x48xf32> -> vector<48x48xf32>
    %114 = arith.addf %112, %113 : vector<48x48xf32>
    %cst_43 = arith.constant dense<0.000000e+00> : vector<48x48xf32>
    %115 = tpu.matmul %109, %110, %cst_43 {dimension_numbers = #tpu.dot_dimension_numbers<[1], [1], [0], [0], [0, 0, 1, 0], [], []>} : vector<48x8xf32>, vector<48x8xf32>, vector<48x48xf32> -> vector<48x48xf32>
    %cst_44 = arith.constant dense<0.000000e+00> : vector<48x48xf32>
    %116 = tpu.matmul %108, %111, %cst_44 {dimension_numbers = #tpu.dot_dimension_numbers<[1], [1], [0], [0], [0, 0, 1, 0], [], []>} : vector<48x8xf32>, vector<48x8xf32>, vector<48x48xf32> -> vector<48x48xf32>
    %117 = arith.subf %115, %116 : vector<48x48xf32>
    %118 = arith.mulf %114, %114 : vector<48x48xf32>
    %119 = arith.mulf %117, %117 : vector<48x48xf32>
    %120 = arith.addf %118, %119 : vector<48x48xf32>
    %121 = math.sqrt %120 : vector<48x48xf32>
    %cst_45 = arith.constant 0.353553385 : f32
    %122 = vector.broadcast %cst_45 : f32 to vector<48x48xf32>
    %123 = arith.mulf %121, %122 : vector<48x48xf32>
    %124 = arith.addf %123, %18 : vector<48x48xf32>
    %cst_46 = arith.constant dense<0xFF800000> : vector<48xf32>
    %125 = vector.multi_reduction <maximumf>, %124, %cst_46 [1] : vector<48x48xf32> to vector<48xf32>
    %126 = vector.shape_cast %125 : vector<48xf32> to vector<48x1xf32>
    %127 = vector.broadcast %126 : vector<48x1xf32> to vector<48x48xf32>
    %128 = arith.subf %124, %127 : vector<48x48xf32>
    %129 = math.exp %128 : vector<48x48xf32>
    %cst_47 = arith.constant dense<0.000000e+00> : vector<48xf32>
    %130 = vector.multi_reduction <add>, %129, %cst_47 [1] : vector<48x48xf32> to vector<48xf32>
    %131 = vector.shape_cast %130 : vector<48xf32> to vector<48x1xf32>
    %132 = tpu.reciprocal %131 {approx = true} : vector<48x1xf32> -> vector<48x1xf32>
    %133 = vector.broadcast %132 : vector<48x1xf32> to vector<48x48xf32>
    %134 = arith.mulf %129, %133 : vector<48x48xf32>
    %135 = vector.extract_strided_slice %26 {offsets = [0, 16], sizes = [48, 8], strides = [1, 1]} : vector<48x32xf32> to vector<48x8xf32>
    %cst_48 = arith.constant dense<0.000000e+00> : vector<48x8xf32>
    %136 = tpu.matmul %134, %135, %cst_48 {dimension_numbers = #tpu.dot_dimension_numbers<[1], [0], [0], [1], [0, 0, 1, 1], [], []>} : vector<48x48xf32>, vector<48x8xf32>, vector<48x8xf32> -> vector<48x8xf32>
    %c0_49 = arith.constant 0 : index
    %c16 = arith.constant 16 : index
    %137 = vector.load %arg26[%c0_49, %c16] : memref<48x64xf32, #tpu.memory_space<vmem>>, vector<48x8xf32>
    tpu.vector_store %arg26[%c0_49, %c16], %136 {strides = array<i32>} : memref<48x64xf32, #tpu.memory_space<vmem>>, vector<48x8xf32>,
    %138 = vector.extract_strided_slice %29 {offsets = [0, 16], sizes = [48, 8], strides = [1, 1]} : vector<48x32xf32> to vector<48x8xf32>
    %cst_50 = arith.constant dense<0.000000e+00> : vector<48x8xf32>
    %139 = tpu.matmul %134, %138, %cst_50 {dimension_numbers = #tpu.dot_dimension_numbers<[1], [0], [0], [1], [0, 0, 1, 1], [], []>} : vector<48x48xf32>, vector<48x8xf32>, vector<48x8xf32> -> vector<48x8xf32>
    %c0_51 = arith.constant 0 : index
    %c48 = arith.constant 48 : index
    %140 = vector.load %arg26[%c0_51, %c48] : memref<48x64xf32, #tpu.memory_space<vmem>>, vector<48x8xf32>
    tpu.vector_store %arg26[%c0_51, %c48], %139 {strides = array<i32>} : memref<48x64xf32, #tpu.memory_space<vmem>>, vector<48x8xf32>,
    %141 = vector.extract_strided_slice %32 {offsets = [0, 24], sizes = [48, 8], strides = [1, 1]} : vector<48x32xf32> to vector<48x8xf32>
    %142 = vector.extract_strided_slice %35 {offsets = [0, 24], sizes = [48, 8], strides = [1, 1]} : vector<48x32xf32> to vector<48x8xf32>
    %143 = vector.extract_strided_slice %38 {offsets = [0, 24], sizes = [48, 8], strides = [1, 1]} : vector<48x32xf32> to vector<48x8xf32>
    %144 = vector.extract_strided_slice %41 {offsets = [0, 24], sizes = [48, 8], strides = [1, 1]} : vector<48x32xf32> to vector<48x8xf32>
    %cst_52 = arith.constant dense<0.000000e+00> : vector<48x48xf32>
    %145 = tpu.matmul %141, %143, %cst_52 {dimension_numbers = #tpu.dot_dimension_numbers<[1], [1], [0], [0], [0, 0, 1, 0], [], []>} : vector<48x8xf32>, vector<48x8xf32>, vector<48x48xf32> -> vector<48x48xf32>
    %cst_53 = arith.constant dense<0.000000e+00> : vector<48x48xf32>
    %146 = tpu.matmul %142, %144, %cst_53 {dimension_numbers = #tpu.dot_dimension_numbers<[1], [1], [0], [0], [0, 0, 1, 0], [], []>} : vector<48x8xf32>, vector<48x8xf32>, vector<48x48xf32> -> vector<48x48xf32>
    %147 = arith.addf %145, %146 : vector<48x48xf32>
    %cst_54 = arith.constant dense<0.000000e+00> : vector<48x48xf32>
    %148 = tpu.matmul %142, %143, %cst_54 {dimension_numbers = #tpu.dot_dimension_numbers<[1], [1], [0], [0], [0, 0, 1, 0], [], []>} : vector<48x8xf32>, vector<48x8xf32>, vector<48x48xf32> -> vector<48x48xf32>
    %cst_55 = arith.constant dense<0.000000e+00> : vector<48x48xf32>
    %149 = tpu.matmul %141, %144, %cst_55 {dimension_numbers = #tpu.dot_dimension_numbers<[1], [1], [0], [0], [0, 0, 1, 0], [], []>} : vector<48x8xf32>, vector<48x8xf32>, vector<48x48xf32> -> vector<48x48xf32>
    %150 = arith.subf %148, %149 : vector<48x48xf32>
    %151 = arith.mulf %147, %147 : vector<48x48xf32>
    %152 = arith.mulf %150, %150 : vector<48x48xf32>
    %153 = arith.addf %151, %152 : vector<48x48xf32>
    %154 = math.sqrt %153 : vector<48x48xf32>
    %cst_56 = arith.constant 0.353553385 : f32
    %155 = vector.broadcast %cst_56 : f32 to vector<48x48xf32>
    %156 = arith.mulf %154, %155 : vector<48x48xf32>
    %157 = arith.addf %156, %18 : vector<48x48xf32>
    %cst_57 = arith.constant dense<0xFF800000> : vector<48xf32>
    %158 = vector.multi_reduction <maximumf>, %157, %cst_57 [1] : vector<48x48xf32> to vector<48xf32>
    %159 = vector.shape_cast %158 : vector<48xf32> to vector<48x1xf32>
    %160 = vector.broadcast %159 : vector<48x1xf32> to vector<48x48xf32>
    %161 = arith.subf %157, %160 : vector<48x48xf32>
    %162 = math.exp %161 : vector<48x48xf32>
    %cst_58 = arith.constant dense<0.000000e+00> : vector<48xf32>
    %163 = vector.multi_reduction <add>, %162, %cst_58 [1] : vector<48x48xf32> to vector<48xf32>
    %164 = vector.shape_cast %163 : vector<48xf32> to vector<48x1xf32>
    %165 = tpu.reciprocal %164 {approx = true} : vector<48x1xf32> -> vector<48x1xf32>
    %166 = vector.broadcast %165 : vector<48x1xf32> to vector<48x48xf32>
    %167 = arith.mulf %162, %166 : vector<48x48xf32>
    %168 = vector.extract_strided_slice %26 {offsets = [0, 24], sizes = [48, 8], strides = [1, 1]} : vector<48x32xf32> to vector<48x8xf32>
    %cst_59 = arith.constant dense<0.000000e+00> : vector<48x8xf32>
    %169 = tpu.matmul %167, %168, %cst_59 {dimension_numbers = #tpu.dot_dimension_numbers<[1], [0], [0], [1], [0, 0, 1, 1], [], []>} : vector<48x48xf32>, vector<48x8xf32>, vector<48x8xf32> -> vector<48x8xf32>
    %c0_60 = arith.constant 0 : index
    %c24 = arith.constant 24 : index
    %170 = vector.load %arg26[%c0_60, %c24] : memref<48x64xf32, #tpu.memory_space<vmem>>, vector<48x8xf32>
    tpu.vector_store %arg26[%c0_60, %c24], %169 {strides = array<i32>} : memref<48x64xf32, #tpu.memory_space<vmem>>, vector<48x8xf32>,
    %171 = vector.extract_strided_slice %29 {offsets = [0, 24], sizes = [48, 8], strides = [1, 1]} : vector<48x32xf32> to vector<48x8xf32>
    %cst_61 = arith.constant dense<0.000000e+00> : vector<48x8xf32>
    %172 = tpu.matmul %167, %171, %cst_61 {dimension_numbers = #tpu.dot_dimension_numbers<[1], [0], [0], [1], [0, 0, 1, 1], [], []>} : vector<48x48xf32>, vector<48x8xf32>, vector<48x8xf32> -> vector<48x8xf32>
    %c0_62 = arith.constant 0 : index
    %c56 = arith.constant 56 : index
    %173 = vector.load %arg26[%c0_62, %c56] : memref<48x64xf32, #tpu.memory_space<vmem>>, vector<48x8xf32>
    tpu.vector_store %arg26[%c0_62, %c56], %172 {strides = array<i32>} : memref<48x64xf32, #tpu.memory_space<vmem>>, vector<48x8xf32>,
    %c0_63 = arith.constant 0 : index
    %c0_64 = arith.constant 0 : index
    %174 = vector.load %arg26[%c0_63, %c0_64] : memref<48x64xf32, #tpu.memory_space<vmem>>, vector<48x64xf32>
    %c0_65 = arith.constant 0 : index
    %c0_66 = arith.constant 0 : index
    %175 = vector.load %arg9[%c0_65, %c0_66] : memref<64x64xf32, #tpu.memory_space<vmem>>, vector<64x64xf32>
    %cst_67 = arith.constant dense<0.000000e+00> : vector<48x64xf32>
    %176 = tpu.matmul %174, %175, %cst_67 {dimension_numbers = #tpu.dot_dimension_numbers<[1], [0], [0], [1], [0, 0, 1, 1], [], []>} : vector<48x64xf32>, vector<64x64xf32>, vector<48x64xf32> -> vector<48x64xf32>
    %c0_68 = arith.constant 0 : index
    %c0_69 = arith.constant 0 : index
    %177 = vector.load %arg10[%c0_68, %c0_69] : memref<1x64xf32, #tpu.memory_space<vmem>>, vector<1x64xf32>
    %178 = vector.broadcast %177 : vector<1x64xf32> to vector<48x64xf32>
    %179 = arith.addf %176, %178 : vector<48x64xf32>
    %c0_70 = arith.constant 0 : index
    %c0_71 = arith.constant 0 : index
    %180 = vector.load %arg11[%c0_70, %c0_71] : memref<64x128xf32, #tpu.memory_space<vmem>>, vector<64x128xf32>
    %cst_72 = arith.constant dense<0.000000e+00> : vector<48x128xf32>
    %181 = tpu.matmul %179, %180, %cst_72 {dimension_numbers = #tpu.dot_dimension_numbers<[1], [0], [0], [1], [0, 0, 1, 1], [], []>} : vector<48x64xf32>, vector<64x128xf32>, vector<48x128xf32> -> vector<48x128xf32>
    %c0_73 = arith.constant 0 : index
    %c0_74 = arith.constant 0 : index
    %182 = vector.load %arg12[%c0_73, %c0_74] : memref<1x128xf32, #tpu.memory_space<vmem>>, vector<1x128xf32>
    %183 = vector.broadcast %182 : vector<1x128xf32> to vector<48x128xf32>
    %184 = arith.addf %181, %183 : vector<48x128xf32>
    %c0_75 = arith.constant 0 : index
    %c0_76 = arith.constant 0 : index
    %185 = vector.load %arg13[%c0_75, %c0_76] : memref<128x64xf32, #tpu.memory_space<vmem>>, vector<128x64xf32>
    %cst_77 = arith.constant dense<0.000000e+00> : vector<48x64xf32>
    %186 = tpu.matmul %184, %185, %cst_77 {dimension_numbers = #tpu.dot_dimension_numbers<[1], [0], [0], [1], [0, 0, 1, 1], [], []>} : vector<48x128xf32>, vector<128x64xf32>, vector<48x64xf32> -> vector<48x64xf32>
    %c0_78 = arith.constant 0 : index
    %c0_79 = arith.constant 0 : index
    %187 = vector.load %arg14[%c0_78, %c0_79] : memref<1x64xf32, #tpu.memory_space<vmem>>, vector<1x64xf32>
    %188 = vector.broadcast %187 : vector<1x64xf32> to vector<48x64xf32>
    %189 = arith.addf %186, %188 : vector<48x64xf32>
    %c0_80 = arith.constant 0 : index
    %c0_81 = arith.constant 0 : index
    %190 = vector.load %arg15[%c0_80, %c0_81] : memref<64x192xf32, #tpu.memory_space<vmem>>, vector<64x192xf32>
    %cst_82 = arith.constant dense<0.000000e+00> : vector<48x192xf32>
    %191 = tpu.matmul %189, %190, %cst_82 {dimension_numbers = #tpu.dot_dimension_numbers<[1], [0], [0], [1], [0, 0, 1, 1], [], []>} : vector<48x64xf32>, vector<64x192xf32>, vector<48x192xf32> -> vector<48x192xf32>
    %c0_83 = arith.constant 0 : index
    %c0_84 = arith.constant 0 : index
    %192 = vector.load %arg16[%c0_83, %c0_84] : memref<1x192xf32, #tpu.memory_space<vmem>>, vector<1x192xf32>
    %193 = vector.broadcast %192 : vector<1x192xf32> to vector<48x192xf32>
    %194 = arith.addf %191, %193 : vector<48x192xf32>
    %195 = vector.extract_strided_slice %194 {offsets = [0, 0], sizes = [48, 32], strides = [1, 1]} : vector<48x192xf32> to vector<48x32xf32>
    %196 = vector.extract_strided_slice %194 {offsets = [0, 32], sizes = [48, 32], strides = [1, 1]} : vector<48x192xf32> to vector<48x32xf32>
    %197 = vector.extract_strided_slice %194 {offsets = [0, 64], sizes = [48, 32], strides = [1, 1]} : vector<48x192xf32> to vector<48x32xf32>
    %198 = vector.extract_strided_slice %194 {offsets = [0, 96], sizes = [48, 32], strides = [1, 1]} : vector<48x192xf32> to vector<48x32xf32>
    %199 = vector.extract_strided_slice %194 {offsets = [0, 128], sizes = [48, 32], strides = [1, 1]} : vector<48x192xf32> to vector<48x32xf32>
    %200 = vector.extract_strided_slice %194 {offsets = [0, 160], sizes = [48, 32], strides = [1, 1]} : vector<48x192xf32> to vector<48x32xf32>
    %201 = arith.mulf %195, %16 : vector<48x32xf32>
    %202 = arith.mulf %198, %17 : vector<48x32xf32>
    %203 = arith.subf %201, %202 : vector<48x32xf32>
    %204 = arith.mulf %195, %17 : vector<48x32xf32>
    %205 = arith.mulf %198, %16 : vector<48x32xf32>
    %206 = arith.addf %204, %205 : vector<48x32xf32>
    %207 = arith.mulf %196, %16 : vector<48x32xf32>
    %208 = arith.mulf %199, %17 : vector<48x32xf32>
    %209 = arith.subf %207, %208 : vector<48x32xf32>
    %210 = arith.mulf %196, %17 : vector<48x32xf32>
    %211 = arith.mulf %199, %16 : vector<48x32xf32>
    %212 = arith.addf %210, %211 : vector<48x32xf32>
    %213 = vector.extract_strided_slice %203 {offsets = [0, 0], sizes = [48, 8], strides = [1, 1]} : vector<48x32xf32> to vector<48x8xf32>
    %214 = vector.extract_strided_slice %206 {offsets = [0, 0], sizes = [48, 8], strides = [1, 1]} : vector<48x32xf32> to vector<48x8xf32>
    %215 = vector.extract_strided_slice %209 {offsets = [0, 0], sizes = [48, 8], strides = [1, 1]} : vector<48x32xf32> to vector<48x8xf32>
    %216 = vector.extract_strided_slice %212 {offsets = [0, 0], sizes = [48, 8], strides = [1, 1]} : vector<48x32xf32> to vector<48x8xf32>
    %cst_85 = arith.constant dense<0.000000e+00> : vector<48x48xf32>
    %217 = tpu.matmul %213, %215, %cst_85 {dimension_numbers = #tpu.dot_dimension_numbers<[1], [1], [0], [0], [0, 0, 1, 0], [], []>} : vector<48x8xf32>, vector<48x8xf32>, vector<48x48xf32> -> vector<48x48xf32>
    %cst_86 = arith.constant dense<0.000000e+00> : vector<48x48xf32>
    %218 = tpu.matmul %214, %216, %cst_86 {dimension_numbers = #tpu.dot_dimension_numbers<[1], [1], [0], [0], [0, 0, 1, 0], [], []>} : vector<48x8xf32>, vector<48x8xf32>, vector<48x48xf32> -> vector<48x48xf32>
    %219 = arith.addf %217, %218 : vector<48x48xf32>
    %cst_87 = arith.constant dense<0.000000e+00> : vector<48x48xf32>
    %220 = tpu.matmul %214, %215, %cst_87 {dimension_numbers = #tpu.dot_dimension_numbers<[1], [1], [0], [0], [0, 0, 1, 0], [], []>} : vector<48x8xf32>, vector<48x8xf32>, vector<48x48xf32> -> vector<48x48xf32>
    %cst_88 = arith.constant dense<0.000000e+00> : vector<48x48xf32>
    %221 = tpu.matmul %213, %216, %cst_88 {dimension_numbers = #tpu.dot_dimension_numbers<[1], [1], [0], [0], [0, 0, 1, 0], [], []>} : vector<48x8xf32>, vector<48x8xf32>, vector<48x48xf32> -> vector<48x48xf32>
    %222 = arith.subf %220, %221 : vector<48x48xf32>
    %223 = arith.mulf %219, %219 : vector<48x48xf32>
    %224 = arith.mulf %222, %222 : vector<48x48xf32>
    %225 = arith.addf %223, %224 : vector<48x48xf32>
    %226 = math.sqrt %225 : vector<48x48xf32>
    %cst_89 = arith.constant 0.353553385 : f32
    %227 = vector.broadcast %cst_89 : f32 to vector<48x48xf32>
    %228 = arith.mulf %226, %227 : vector<48x48xf32>
    %229 = arith.addf %228, %18 : vector<48x48xf32>
    %cst_90 = arith.constant dense<0xFF800000> : vector<48xf32>
    %230 = vector.multi_reduction <maximumf>, %229, %cst_90 [1] : vector<48x48xf32> to vector<48xf32>
    %231 = vector.shape_cast %230 : vector<48xf32> to vector<48x1xf32>
    %232 = vector.broadcast %231 : vector<48x1xf32> to vector<48x48xf32>
    %233 = arith.subf %229, %232 : vector<48x48xf32>
    %234 = math.exp %233 : vector<48x48xf32>
    %cst_91 = arith.constant dense<0.000000e+00> : vector<48xf32>
    %235 = vector.multi_reduction <add>, %234, %cst_91 [1] : vector<48x48xf32> to vector<48xf32>
    %236 = vector.shape_cast %235 : vector<48xf32> to vector<48x1xf32>
    %237 = tpu.reciprocal %236 {approx = true} : vector<48x1xf32> -> vector<48x1xf32>
    %238 = vector.broadcast %237 : vector<48x1xf32> to vector<48x48xf32>
    %239 = arith.mulf %234, %238 : vector<48x48xf32>
    %240 = vector.extract_strided_slice %197 {offsets = [0, 0], sizes = [48, 8], strides = [1, 1]} : vector<48x32xf32> to vector<48x8xf32>
    %cst_92 = arith.constant dense<0.000000e+00> : vector<48x8xf32>
    %241 = tpu.matmul %239, %240, %cst_92 {dimension_numbers = #tpu.dot_dimension_numbers<[1], [0], [0], [1], [0, 0, 1, 1], [], []>} : vector<48x48xf32>, vector<48x8xf32>, vector<48x8xf32> -> vector<48x8xf32>
    %c0_93 = arith.constant 0 : index
    %c0_94 = arith.constant 0 : index
    %242 = vector.load %arg26[%c0_93, %c0_94] : memref<48x64xf32, #tpu.memory_space<vmem>>, vector<48x8xf32>
    tpu.vector_store %arg26[%c0_93, %c0_94], %241 {strides = array<i32>} : memref<48x64xf32, #tpu.memory_space<vmem>>, vector<48x8xf32>,
    %243 = vector.extract_strided_slice %200 {offsets = [0, 0], sizes = [48, 8], strides = [1, 1]} : vector<48x32xf32> to vector<48x8xf32>
    %cst_95 = arith.constant dense<0.000000e+00> : vector<48x8xf32>
    %244 = tpu.matmul %239, %243, %cst_95 {dimension_numbers = #tpu.dot_dimension_numbers<[1], [0], [0], [1], [0, 0, 1, 1], [], []>} : vector<48x48xf32>, vector<48x8xf32>, vector<48x8xf32> -> vector<48x8xf32>
    %c0_96 = arith.constant 0 : index
    %c32_97 = arith.constant 32 : index
    %245 = vector.load %arg26[%c0_96, %c32_97] : memref<48x64xf32, #tpu.memory_space<vmem>>, vector<48x8xf32>
    tpu.vector_store %arg26[%c0_96, %c32_97], %244 {strides = array<i32>} : memref<48x64xf32, #tpu.memory_space<vmem>>, vector<48x8xf32>,
    %246 = vector.extract_strided_slice %203 {offsets = [0, 8], sizes = [48, 8], strides = [1, 1]} : vector<48x32xf32> to vector<48x8xf32>
    %247 = vector.extract_strided_slice %206 {offsets = [0, 8], sizes = [48, 8], strides = [1, 1]} : vector<48x32xf32> to vector<48x8xf32>
    %248 = vector.extract_strided_slice %209 {offsets = [0, 8], sizes = [48, 8], strides = [1, 1]} : vector<48x32xf32> to vector<48x8xf32>
    %249 = vector.extract_strided_slice %212 {offsets = [0, 8], sizes = [48, 8], strides = [1, 1]} : vector<48x32xf32> to vector<48x8xf32>
    %cst_98 = arith.constant dense<0.000000e+00> : vector<48x48xf32>
    %250 = tpu.matmul %246, %248, %cst_98 {dimension_numbers = #tpu.dot_dimension_numbers<[1], [1], [0], [0], [0, 0, 1, 0], [], []>} : vector<48x8xf32>, vector<48x8xf32>, vector<48x48xf32> -> vector<48x48xf32>
    %cst_99 = arith.constant dense<0.000000e+00> : vector<48x48xf32>
    %251 = tpu.matmul %247, %249, %cst_99 {dimension_numbers = #tpu.dot_dimension_numbers<[1], [1], [0], [0], [0, 0, 1, 0], [], []>} : vector<48x8xf32>, vector<48x8xf32>, vector<48x48xf32> -> vector<48x48xf32>
    %252 = arith.addf %250, %251 : vector<48x48xf32>
    %cst_100 = arith.constant dense<0.000000e+00> : vector<48x48xf32>
    %253 = tpu.matmul %247, %248, %cst_100 {dimension_numbers = #tpu.dot_dimension_numbers<[1], [1], [0], [0], [0, 0, 1, 0], [], []>} : vector<48x8xf32>, vector<48x8xf32>, vector<48x48xf32> -> vector<48x48xf32>
    %cst_101 = arith.constant dense<0.000000e+00> : vector<48x48xf32>
    %254 = tpu.matmul %246, %249, %cst_101 {dimension_numbers = #tpu.dot_dimension_numbers<[1], [1], [0], [0], [0, 0, 1, 0], [], []>} : vector<48x8xf32>, vector<48x8xf32>, vector<48x48xf32> -> vector<48x48xf32>
    %255 = arith.subf %253, %254 : vector<48x48xf32>
    %256 = arith.mulf %252, %252 : vector<48x48xf32>
    %257 = arith.mulf %255, %255 : vector<48x48xf32>
    %258 = arith.addf %256, %257 : vector<48x48xf32>
    %259 = math.sqrt %258 : vector<48x48xf32>
    %cst_102 = arith.constant 0.353553385 : f32
    %260 = vector.broadcast %cst_102 : f32 to vector<48x48xf32>
    %261 = arith.mulf %259, %260 : vector<48x48xf32>
    %262 = arith.addf %261, %18 : vector<48x48xf32>
    %cst_103 = arith.constant dense<0xFF800000> : vector<48xf32>
    %263 = vector.multi_reduction <maximumf>, %262, %cst_103 [1] : vector<48x48xf32> to vector<48xf32>
    %264 = vector.shape_cast %263 : vector<48xf32> to vector<48x1xf32>
    %265 = vector.broadcast %264 : vector<48x1xf32> to vector<48x48xf32>
    %266 = arith.subf %262, %265 : vector<48x48xf32>
    %267 = math.exp %266 : vector<48x48xf32>
    %cst_104 = arith.constant dense<0.000000e+00> : vector<48xf32>
    %268 = vector.multi_reduction <add>, %267, %cst_104 [1] : vector<48x48xf32> to vector<48xf32>
    %269 = vector.shape_cast %268 : vector<48xf32> to vector<48x1xf32>
    %270 = tpu.reciprocal %269 {approx = true} : vector<48x1xf32> -> vector<48x1xf32>
    %271 = vector.broadcast %270 : vector<48x1xf32> to vector<48x48xf32>
    %272 = arith.mulf %267, %271 : vector<48x48xf32>
    %273 = vector.extract_strided_slice %197 {offsets = [0, 8], sizes = [48, 8], strides = [1, 1]} : vector<48x32xf32> to vector<48x8xf32>
    %cst_105 = arith.constant dense<0.000000e+00> : vector<48x8xf32>
    %274 = tpu.matmul %272, %273, %cst_105 {dimension_numbers = #tpu.dot_dimension_numbers<[1], [0], [0], [1], [0, 0, 1, 1], [], []>} : vector<48x48xf32>, vector<48x8xf32>, vector<48x8xf32> -> vector<48x8xf32>
    %c0_106 = arith.constant 0 : index
    %c8_107 = arith.constant 8 : index
    %275 = vector.load %arg26[%c0_106, %c8_107] : memref<48x64xf32, #tpu.memory_space<vmem>>, vector<48x8xf32>
    tpu.vector_store %arg26[%c0_106, %c8_107], %274 {strides = array<i32>} : memref<48x64xf32, #tpu.memory_space<vmem>>, vector<48x8xf32>,
    %276 = vector.extract_strided_slice %200 {offsets = [0, 8], sizes = [48, 8], strides = [1, 1]} : vector<48x32xf32> to vector<48x8xf32>
    %cst_108 = arith.constant dense<0.000000e+00> : vector<48x8xf32>
    %277 = tpu.matmul %272, %276, %cst_108 {dimension_numbers = #tpu.dot_dimension_numbers<[1], [0], [0], [1], [0, 0, 1, 1], [], []>} : vector<48x48xf32>, vector<48x8xf32>, vector<48x8xf32> -> vector<48x8xf32>
    %c0_109 = arith.constant 0 : index
    %c40_110 = arith.constant 40 : index
    %278 = vector.load %arg26[%c0_109, %c40_110] : memref<48x64xf32, #tpu.memory_space<vmem>>, vector<48x8xf32>
    tpu.vector_store %arg26[%c0_109, %c40_110], %277 {strides = array<i32>} : memref<48x64xf32, #tpu.memory_space<vmem>>, vector<48x8xf32>,
    %279 = vector.extract_strided_slice %203 {offsets = [0, 16], sizes = [48, 8], strides = [1, 1]} : vector<48x32xf32> to vector<48x8xf32>
    %280 = vector.extract_strided_slice %206 {offsets = [0, 16], sizes = [48, 8], strides = [1, 1]} : vector<48x32xf32> to vector<48x8xf32>
    %281 = vector.extract_strided_slice %209 {offsets = [0, 16], sizes = [48, 8], strides = [1, 1]} : vector<48x32xf32> to vector<48x8xf32>
    %282 = vector.extract_strided_slice %212 {offsets = [0, 16], sizes = [48, 8], strides = [1, 1]} : vector<48x32xf32> to vector<48x8xf32>
    %cst_111 = arith.constant dense<0.000000e+00> : vector<48x48xf32>
    %283 = tpu.matmul %279, %281, %cst_111 {dimension_numbers = #tpu.dot_dimension_numbers<[1], [1], [0], [0], [0, 0, 1, 0], [], []>} : vector<48x8xf32>, vector<48x8xf32>, vector<48x48xf32> -> vector<48x48xf32>
    %cst_112 = arith.constant dense<0.000000e+00> : vector<48x48xf32>
    %284 = tpu.matmul %280, %282, %cst_112 {dimension_numbers = #tpu.dot_dimension_numbers<[1], [1], [0], [0], [0, 0, 1, 0], [], []>} : vector<48x8xf32>, vector<48x8xf32>, vector<48x48xf32> -> vector<48x48xf32>
    %285 = arith.addf %283, %284 : vector<48x48xf32>
    %cst_113 = arith.constant dense<0.000000e+00> : vector<48x48xf32>
    %286 = tpu.matmul %280, %281, %cst_113 {dimension_numbers = #tpu.dot_dimension_numbers<[1], [1], [0], [0], [0, 0, 1, 0], [], []>} : vector<48x8xf32>, vector<48x8xf32>, vector<48x48xf32> -> vector<48x48xf32>
    %cst_114 = arith.constant dense<0.000000e+00> : vector<48x48xf32>
    %287 = tpu.matmul %279, %282, %cst_114 {dimension_numbers = #tpu.dot_dimension_numbers<[1], [1], [0], [0], [0, 0, 1, 0], [], []>} : vector<48x8xf32>, vector<48x8xf32>, vector<48x48xf32> -> vector<48x48xf32>
    %288 = arith.subf %286, %287 : vector<48x48xf32>
    %289 = arith.mulf %285, %285 : vector<48x48xf32>
    %290 = arith.mulf %288, %288 : vector<48x48xf32>
    %291 = arith.addf %289, %290 : vector<48x48xf32>
    %292 = math.sqrt %291 : vector<48x48xf32>
    %cst_115 = arith.constant 0.353553385 : f32
    %293 = vector.broadcast %cst_115 : f32 to vector<48x48xf32>
    %294 = arith.mulf %292, %293 : vector<48x48xf32>
    %295 = arith.addf %294, %18 : vector<48x48xf32>
    %cst_116 = arith.constant dense<0xFF800000> : vector<48xf32>
    %296 = vector.multi_reduction <maximumf>, %295, %cst_116 [1] : vector<48x48xf32> to vector<48xf32>
    %297 = vector.shape_cast %296 : vector<48xf32> to vector<48x1xf32>
    %298 = vector.broadcast %297 : vector<48x1xf32> to vector<48x48xf32>
    %299 = arith.subf %295, %298 : vector<48x48xf32>
    %300 = math.exp %299 : vector<48x48xf32>
    %cst_117 = arith.constant dense<0.000000e+00> : vector<48xf32>
    %301 = vector.multi_reduction <add>, %300, %cst_117 [1] : vector<48x48xf32> to vector<48xf32>
    %302 = vector.shape_cast %301 : vector<48xf32> to vector<48x1xf32>
    %303 = tpu.reciprocal %302 {approx = true} : vector<48x1xf32> -> vector<48x1xf32>
    %304 = vector.broadcast %303 : vector<48x1xf32> to vector<48x48xf32>
    %305 = arith.mulf %300, %304 : vector<48x48xf32>
    %306 = vector.extract_strided_slice %197 {offsets = [0, 16], sizes = [48, 8], strides = [1, 1]} : vector<48x32xf32> to vector<48x8xf32>
    %cst_118 = arith.constant dense<0.000000e+00> : vector<48x8xf32>
    %307 = tpu.matmul %305, %306, %cst_118 {dimension_numbers = #tpu.dot_dimension_numbers<[1], [0], [0], [1], [0, 0, 1, 1], [], []>} : vector<48x48xf32>, vector<48x8xf32>, vector<48x8xf32> -> vector<48x8xf32>
    %c0_119 = arith.constant 0 : index
    %c16_120 = arith.constant 16 : index
    %308 = vector.load %arg26[%c0_119, %c16_120] : memref<48x64xf32, #tpu.memory_space<vmem>>, vector<48x8xf32>
    tpu.vector_store %arg26[%c0_119, %c16_120], %307 {strides = array<i32>} : memref<48x64xf32, #tpu.memory_space<vmem>>, vector<48x8xf32>,
    %309 = vector.extract_strided_slice %200 {offsets = [0, 16], sizes = [48, 8], strides = [1, 1]} : vector<48x32xf32> to vector<48x8xf32>
    %cst_121 = arith.constant dense<0.000000e+00> : vector<48x8xf32>
    %310 = tpu.matmul %305, %309, %cst_121 {dimension_numbers = #tpu.dot_dimension_numbers<[1], [0], [0], [1], [0, 0, 1, 1], [], []>} : vector<48x48xf32>, vector<48x8xf32>, vector<48x8xf32> -> vector<48x8xf32>
    %c0_122 = arith.constant 0 : index
    %c48_123 = arith.constant 48 : index
    %311 = vector.load %arg26[%c0_122, %c48_123] : memref<48x64xf32, #tpu.memory_space<vmem>>, vector<48x8xf32>
    tpu.vector_store %arg26[%c0_122, %c48_123], %310 {strides = array<i32>} : memref<48x64xf32, #tpu.memory_space<vmem>>, vector<48x8xf32>,
    %312 = vector.extract_strided_slice %203 {offsets = [0, 24], sizes = [48, 8], strides = [1, 1]} : vector<48x32xf32> to vector<48x8xf32>
    %313 = vector.extract_strided_slice %206 {offsets = [0, 24], sizes = [48, 8], strides = [1, 1]} : vector<48x32xf32> to vector<48x8xf32>
    %314 = vector.extract_strided_slice %209 {offsets = [0, 24], sizes = [48, 8], strides = [1, 1]} : vector<48x32xf32> to vector<48x8xf32>
    %315 = vector.extract_strided_slice %212 {offsets = [0, 24], sizes = [48, 8], strides = [1, 1]} : vector<48x32xf32> to vector<48x8xf32>
    %cst_124 = arith.constant dense<0.000000e+00> : vector<48x48xf32>
    %316 = tpu.matmul %312, %314, %cst_124 {dimension_numbers = #tpu.dot_dimension_numbers<[1], [1], [0], [0], [0, 0, 1, 0], [], []>} : vector<48x8xf32>, vector<48x8xf32>, vector<48x48xf32> -> vector<48x48xf32>
    %cst_125 = arith.constant dense<0.000000e+00> : vector<48x48xf32>
    %317 = tpu.matmul %313, %315, %cst_125 {dimension_numbers = #tpu.dot_dimension_numbers<[1], [1], [0], [0], [0, 0, 1, 0], [], []>} : vector<48x8xf32>, vector<48x8xf32>, vector<48x48xf32> -> vector<48x48xf32>
    %318 = arith.addf %316, %317 : vector<48x48xf32>
    %cst_126 = arith.constant dense<0.000000e+00> : vector<48x48xf32>
    %319 = tpu.matmul %313, %314, %cst_126 {dimension_numbers = #tpu.dot_dimension_numbers<[1], [1], [0], [0], [0, 0, 1, 0], [], []>} : vector<48x8xf32>, vector<48x8xf32>, vector<48x48xf32> -> vector<48x48xf32>
    %cst_127 = arith.constant dense<0.000000e+00> : vector<48x48xf32>
    %320 = tpu.matmul %312, %315, %cst_127 {dimension_numbers = #tpu.dot_dimension_numbers<[1], [1], [0], [0], [0, 0, 1, 0], [], []>} : vector<48x8xf32>, vector<48x8xf32>, vector<48x48xf32> -> vector<48x48xf32>
    %321 = arith.subf %319, %320 : vector<48x48xf32>
    %322 = arith.mulf %318, %318 : vector<48x48xf32>
    %323 = arith.mulf %321, %321 : vector<48x48xf32>
    %324 = arith.addf %322, %323 : vector<48x48xf32>
    %325 = math.sqrt %324 : vector<48x48xf32>
    %cst_128 = arith.constant 0.353553385 : f32
    %326 = vector.broadcast %cst_128 : f32 to vector<48x48xf32>
    %327 = arith.mulf %325, %326 : vector<48x48xf32>
    %328 = arith.addf %327, %18 : vector<48x48xf32>
    %cst_129 = arith.constant dense<0xFF800000> : vector<48xf32>
    %329 = vector.multi_reduction <maximumf>, %328, %cst_129 [1] : vector<48x48xf32> to vector<48xf32>
    %330 = vector.shape_cast %329 : vector<48xf32> to vector<48x1xf32>
    %331 = vector.broadcast %330 : vector<48x1xf32> to vector<48x48xf32>
    %332 = arith.subf %328, %331 : vector<48x48xf32>
    %333 = math.exp %332 : vector<48x48xf32>
    %cst_130 = arith.constant dense<0.000000e+00> : vector<48xf32>
    %334 = vector.multi_reduction <add>, %333, %cst_130 [1] : vector<48x48xf32> to vector<48xf32>
    %335 = vector.shape_cast %334 : vector<48xf32> to vector<48x1xf32>
    %336 = tpu.reciprocal %335 {approx = true} : vector<48x1xf32> -> vector<48x1xf32>
    %337 = vector.broadcast %336 : vector<48x1xf32> to vector<48x48xf32>
    %338 = arith.mulf %333, %337 : vector<48x48xf32>
    %339 = vector.extract_strided_slice %197 {offsets = [0, 24], sizes = [48, 8], strides = [1, 1]} : vector<48x32xf32> to vector<48x8xf32>
    %cst_131 = arith.constant dense<0.000000e+00> : vector<48x8xf32>
    %340 = tpu.matmul %338, %339, %cst_131 {dimension_numbers = #tpu.dot_dimension_numbers<[1], [0], [0], [1], [0, 0, 1, 1], [], []>} : vector<48x48xf32>, vector<48x8xf32>, vector<48x8xf32> -> vector<48x8xf32>
    %c0_132 = arith.constant 0 : index
    %c24_133 = arith.constant 24 : index
    %341 = vector.load %arg26[%c0_132, %c24_133] : memref<48x64xf32, #tpu.memory_space<vmem>>, vector<48x8xf32>
    tpu.vector_store %arg26[%c0_132, %c24_133], %340 {strides = array<i32>} : memref<48x64xf32, #tpu.memory_space<vmem>>, vector<48x8xf32>,
    %342 = vector.extract_strided_slice %200 {offsets = [0, 24], sizes = [48, 8], strides = [1, 1]} : vector<48x32xf32> to vector<48x8xf32>
    %cst_134 = arith.constant dense<0.000000e+00> : vector<48x8xf32>
    %343 = tpu.matmul %338, %342, %cst_134 {dimension_numbers = #tpu.dot_dimension_numbers<[1], [0], [0], [1], [0, 0, 1, 1], [], []>} : vector<48x48xf32>, vector<48x8xf32>, vector<48x8xf32> -> vector<48x8xf32>
    %c0_135 = arith.constant 0 : index
    %c56_136 = arith.constant 56 : index
    %344 = vector.load %arg26[%c0_135, %c56_136] : memref<48x64xf32, #tpu.memory_space<vmem>>, vector<48x8xf32>
    tpu.vector_store %arg26[%c0_135, %c56_136], %343 {strides = array<i32>} : memref<48x64xf32, #tpu.memory_space<vmem>>, vector<48x8xf32>,
    %c0_137 = arith.constant 0 : index
    %c0_138 = arith.constant 0 : index
    %345 = vector.load %arg26[%c0_137, %c0_138] : memref<48x64xf32, #tpu.memory_space<vmem>>, vector<48x64xf32>
    %c0_139 = arith.constant 0 : index
    %c0_140 = arith.constant 0 : index
    %346 = vector.load %arg17[%c0_139, %c0_140] : memref<64x64xf32, #tpu.memory_space<vmem>>, vector<64x64xf32>
    %cst_141 = arith.constant dense<0.000000e+00> : vector<48x64xf32>
    %347 = tpu.matmul %345, %346, %cst_141 {dimension_numbers = #tpu.dot_dimension_numbers<[1], [0], [0], [1], [0, 0, 1, 1], [], []>} : vector<48x64xf32>, vector<64x64xf32>, vector<48x64xf32> -> vector<48x64xf32>
    %c0_142 = arith.constant 0 : index
    %c0_143 = arith.constant 0 : index
    %348 = vector.load %arg18[%c0_142, %c0_143] : memref<1x64xf32, #tpu.memory_space<vmem>>, vector<1x64xf32>
    %349 = vector.broadcast %348 : vector<1x64xf32> to vector<48x64xf32>
    %350 = arith.addf %347, %349 : vector<48x64xf32>
    %c0_144 = arith.constant 0 : index
    %c0_145 = arith.constant 0 : index
    %351 = vector.load %arg19[%c0_144, %c0_145] : memref<64x128xf32, #tpu.memory_space<vmem>>, vector<64x128xf32>
    %cst_146 = arith.constant dense<0.000000e+00> : vector<48x128xf32>
    %352 = tpu.matmul %350, %351, %cst_146 {dimension_numbers = #tpu.dot_dimension_numbers<[1], [0], [0], [1], [0, 0, 1, 1], [], []>} : vector<48x64xf32>, vector<64x128xf32>, vector<48x128xf32> -> vector<48x128xf32>
    %c0_147 = arith.constant 0 : index
    %c0_148 = arith.constant 0 : index
    %353 = vector.load %arg20[%c0_147, %c0_148] : memref<1x128xf32, #tpu.memory_space<vmem>>, vector<1x128xf32>
    %354 = vector.broadcast %353 : vector<1x128xf32> to vector<48x128xf32>
    %355 = arith.addf %352, %354 : vector<48x128xf32>
    %c0_149 = arith.constant 0 : index
    %c0_150 = arith.constant 0 : index
    %356 = vector.load %arg21[%c0_149, %c0_150] : memref<128x64xf32, #tpu.memory_space<vmem>>, vector<128x64xf32>
    %cst_151 = arith.constant dense<0.000000e+00> : vector<48x64xf32>
    %357 = tpu.matmul %355, %356, %cst_151 {dimension_numbers = #tpu.dot_dimension_numbers<[1], [0], [0], [1], [0, 0, 1, 1], [], []>} : vector<48x128xf32>, vector<128x64xf32>, vector<48x64xf32> -> vector<48x64xf32>
    %c0_152 = arith.constant 0 : index
    %c0_153 = arith.constant 0 : index
    %358 = vector.load %arg22[%c0_152, %c0_153] : memref<1x64xf32, #tpu.memory_space<vmem>>, vector<1x64xf32>
    %359 = vector.broadcast %358 : vector<1x64xf32> to vector<48x64xf32>
    %360 = arith.addf %357, %359 : vector<48x64xf32>
    %c0_154 = arith.constant 0 : index
    %c0_155 = arith.constant 0 : index
    %361 = vector.load %arg23[%c0_154, %c0_155] : memref<64x10xf32, #tpu.memory_space<vmem>>, vector<64x10xf32>
    %cst_156 = arith.constant dense<0.000000e+00> : vector<48x10xf32>
    %362 = tpu.matmul %360, %361, %cst_156 {dimension_numbers = #tpu.dot_dimension_numbers<[1], [0], [0], [1], [0, 0, 1, 1], [], []>} : vector<48x64xf32>, vector<64x10xf32>, vector<48x10xf32> -> vector<48x10xf32>
    %c0_157 = arith.constant 0 : index
    %c0_158 = arith.constant 0 : index
    %363 = vector.load %arg24[%c0_157, %c0_158] : memref<1x10xf32, #tpu.memory_space<vmem>>, vector<1x10xf32>
    %364 = vector.broadcast %363 : vector<1x10xf32> to vector<48x10xf32>
    %365 = arith.addf %362, %364 : vector<48x10xf32>
    %366 = vector.extract_strided_slice %365 {offsets = [0, 0], sizes = [1, 10], strides = [1, 1]} : vector<48x10xf32> to vector<1x10xf32>
    %c0_159 = arith.constant 0 : index
    %c0_160 = arith.constant 0 : index
    %367 = vector.load %arg25[%c0_159, %c0_160] : memref<2x10xf32, #tpu.memory_space<vmem>>, vector<1x10xf32>
    tpu.vector_store %arg25[%c0_159, %c0_160], %366 {strides = array<i32>} : memref<2x10xf32, #tpu.memory_space<vmem>>, vector<1x10xf32>,
    %368 = vector.extract_strided_slice %365 {offsets = [24, 0], sizes = [1, 10], strides = [1, 1]} : vector<48x10xf32> to vector<1x10xf32>
    %c1 = arith.constant 1 : index
    %c0_161 = arith.constant 0 : index
    %369 = vector.load %arg25[%c1, %c0_161] : memref<2x10xf32, #tpu.memory_space<vmem>>, vector<1x10xf32>
    tpu.vector_store %arg25[%c1, %c0_161], %368 {strides = array<i32>} : memref<2x10xf32, #tpu.memory_space<vmem>>, vector<1x10xf32>,
    return
  }
}

</mosaic_0001>

<llo_original>
// kernel: vit_forward.1
$region0: #{vit_forward.1}
  #allocation0 [shape = 'u32[]', space=smem, size = 0x4, offset = 0x4, fixed_abs, tag = 'smem constant byte address 0x4 - core index']
  #allocation1 [shape = 'u32[144,128]{1,0:T(1,128)}', space=vmem, size = 0x12000, scoped, tag = 'internal scratch']
  #allocation2 [shape = 'f32[48,64]{1,0:T(8,128)}', space=vmem, size = 0x6000, scoped, tag = 'scratch operand']
  %s0 = inlined_call_operand.vmem [shape: f32[48,16], index: 0, kind: input, shape index: {}]
  %s1 = inlined_call_operand.vmem [shape: f32[1,64], index: 1, kind: input, shape index: {}]
  %s2 = inlined_call_operand.vmem [shape: f32[16,64], index: 2, kind: input, shape index: {}]
  %s3 = inlined_call_operand.vmem [shape: f32[1,64], index: 3, kind: input, shape index: {}]
  %s4 = inlined_call_operand.vmem [shape: f32[48,32], index: 4, kind: input, shape index: {}]
  %s5 = inlined_call_operand.vmem [shape: f32[48,32], index: 5, kind: input, shape index: {}]
  %s6 = inlined_call_operand.vmem [shape: f32[48,48], index: 6, kind: input, shape index: {}]
  %s7 = inlined_call_operand.vmem [shape: f32[64,192], index: 7, kind: input, shape index: {}]
  %s8 = inlined_call_operand.vmem [shape: f32[1,192], index: 8, kind: input, shape index: {}]
  %s9 = inlined_call_operand.vmem [shape: f32[64,64], index: 9, kind: input, shape index: {}]
  %s10 = inlined_call_operand.vmem [shape: f32[1,64], index: 10, kind: input, shape index: {}]
  %s11 = inlined_call_operand.vmem [shape: f32[64,128], index: 11, kind: input, shape index: {}]
  %s12 = inlined_call_operand.vmem [shape: f32[1,128], index: 12, kind: input, shape index: {}]
  %s13 = inlined_call_operand.vmem [shape: f32[128,64], index: 13, kind: input, shape index: {}]
  %s14 = inlined_call_operand.vmem [shape: f32[1,64], index: 14, kind: input, shape index: {}]
  %s15 = inlined_call_operand.vmem [shape: f32[64,192], index: 15, kind: input, shape index: {}]
  %s16 = inlined_call_operand.vmem [shape: f32[1,192], index: 16, kind: input, shape index: {}]
  %s17 = inlined_call_operand.vmem [shape: f32[64,64], index: 17, kind: input, shape index: {}]
  %s18 = inlined_call_operand.vmem [shape: f32[1,64], index: 18, kind: input, shape index: {}]
  %s19 = inlined_call_operand.vmem [shape: f32[64,128], index: 19, kind: input, shape index: {}]
  %s20 = inlined_call_operand.vmem [shape: f32[1,128], index: 20, kind: input, shape index: {}]
  %s21 = inlined_call_operand.vmem [shape: f32[128,64], index: 21, kind: input, shape index: {}]
  %s22 = inlined_call_operand.vmem [shape: f32[1,64], index: 22, kind: input, shape index: {}]
  %s23 = inlined_call_operand.vmem [shape: f32[64,10], index: 23, kind: input, shape index: {}]
  %s24 = inlined_call_operand.vmem [shape: f32[1,10], index: 24, kind: input, shape index: {}]
  %s25 = inlined_call_operand.hbm [shape: f32[2,10], index: 25, kind: output, shape index: {}]
  %s26 = sld [smem:[#allocation0]]
  $region110: #{vit_forward.1} parent=0
    _
  %s28 = ssub.s32 1, %s26
  %s29 = scalar_select 0, %s28, %s26
  $region1: #{vit_forward.1} parent=0
    #allocation3 [shape = 'u8[1024]{0}', space=vmem, size = 0x400, scoped, tag = 'output window, operand 0, single buffered']
    #allocation4 [shape = 's32[1]{0}', space=sflag, size = 0x4, scoped, tag = 'scoped memory for vit_forward.1']
    %30 = vsyncpa [#allocation4], 0
    // Predicated region
    $region2: #{vit_forward.1} parent=1 // pred_check
      _
    $region3: #{vit_forward.1} parent=1 // pred_check_branch
      %32 = sbr.rel (0) target = $region5
    $region4: #{vit_forward.1} parent=1 // pred_region
      _
    $region5: #{vit_forward.1} parent=1 // pred_fallthru
      _
    // Predicated region
    $region6: #{vit_forward.1} parent=1 // pred_check
      _
    $region7: #{vit_forward.1} parent=1 // pred_check_branch
      %34 = sbr.rel (0) target = $region9
    $region8: #{vit_forward.1} parent=1 // pred_region
      _
    $region9: #{vit_forward.1} parent=1 // pred_fallthru
      _
    // Predicated region
    $region10: #{vit_forward.1} parent=1 // pred_check
      _
    $region11: #{vit_forward.1} parent=1 // pred_check_branch
      %36 = sbr.rel (0) target = $region13
    $region12: #{vit_forward.1} parent=1 // pred_region
      _
    $region13: #{vit_forward.1} parent=1 // pred_fallthru
      _
    // Predicated region
    $region14: #{vit_forward.1} parent=1 // pred_check
      _
    $region15: #{vit_forward.1} parent=1 // pred_check_branch
      %38 = sbr.rel (0) target = $region17
    $region16: #{vit_forward.1} parent=1 // pred_region
      _
    $region17: #{vit_forward.1} parent=1 // pred_fallthru
      _
    // Predicated region
    $region18: #{vit_forward.1} parent=1 // pred_check
      _
    $region19: #{vit_forward.1} parent=1 // pred_check_branch
      %40 = sbr.rel (0) target = $region21
    $region20: #{vit_forward.1} parent=1 // pred_region
      _
    $region21: #{vit_forward.1} parent=1 // pred_fallthru
      _
    // Predicated region
    $region22: #{vit_forward.1} parent=1 // pred_check
      _
    $region23: #{vit_forward.1} parent=1 // pred_check_branch
      %42 = sbr.rel (0) target = $region25
    $region24: #{vit_forward.1} parent=1 // pred_region
      _
    $region25: #{vit_forward.1} parent=1 // pred_fallthru
      _
    // Predicated region
    $region26: #{vit_forward.1} parent=1 // pred_check
      _
    $region27: #{vit_forward.1} parent=1 // pred_check_branch
      %44 = sbr.rel (0) target = $region29
    $region28: #{vit_forward.1} parent=1 // pred_region
      _
    $region29: #{vit_forward.1} parent=1 // pred_fallthru
      _
    // Predicated region
    $region30: #{vit_forward.1} parent=1 // pred_check
      _
    $region31: #{vit_forward.1} parent=1 // pred_check_branch
      %46 = sbr.rel (0) target = $region33
    $region32: #{vit_forward.1} parent=1 // pred_region
      _
    $region33: #{vit_forward.1} parent=1 // pred_fallthru
      _
    // Predicated region
    $region34: #{vit_forward.1} parent=1 // pred_check
      _
    $region35: #{vit_forward.1} parent=1 // pred_check_branch
      %48 = sbr.rel (0) target = $region37
    $region36: #{vit_forward.1} parent=1 // pred_region
      _
    $region37: #{vit_forward.1} parent=1 // pred_fallthru
      _
    // Predicated region
    $region38: #{vit_forward.1} parent=1 // pred_check
      _
    $region39: #{vit_forward.1} parent=1 // pred_check_branch
      %50 = sbr.rel (0) target = $region41
    $region40: #{vit_forward.1} parent=1 // pred_region
      _
    $region41: #{vit_forward.1} parent=1 // pred_fallthru
      _
    // Predicated region
    $region42: #{vit_forward.1} parent=1 // pred_check
      _
    $region43: #{vit_forward.1} parent=1 // pred_check_branch
      %52 = sbr.rel (0) target = $region45
    $region44: #{vit_forward.1} parent=1 // pred_region
      _
    $region45: #{vit_forward.1} parent=1 // pred_fallthru
      _
    // Predicated region
    $region46: #{vit_forward.1} parent=1 // pred_check
      _
    $region47: #{vit_forward.1} parent=1 // pred_check_branch
      %54 = sbr.rel (0) target = $region49
    $region48: #{vit_forward.1} parent=1 // pred_region
      _
    $region49: #{vit_forward.1} parent=1 // pred_fallthru
      _
    // Predicated region
    $region50: #{vit_forward.1} parent=1 // pred_check
      _
    $region51: #{vit_forward.1} parent=1 // pred_check_branch
      %56 = sbr.rel (0) target = $region53
    $region52: #{vit_forward.1} parent=1 // pred_region
      _
    $region53: #{vit_forward.1} parent=1 // pred_fallthru
      _
    // Predicated region
    $region54: #{vit_forward.1} parent=1 // pred_check
      _
    $region55: #{vit_forward.1} parent=1 // pred_check_branch
      %58 = sbr.rel (0) target = $region57
    $region56: #{vit_forward.1} parent=1 // pred_region
      _
    $region57: #{vit_forward.1} parent=1 // pred_fallthru
      _
    // Predicated region
    $region58: #{vit_forward.1} parent=1 // pred_check
      _
    $region59: #{vit_forward.1} parent=1 // pred_check_branch
      %60 = sbr.rel (0) target = $region61
    $region60: #{vit_forward.1} parent=1 // pred_region
      _
    $region61: #{vit_forward.1} parent=1 // pred_fallthru
      _
    // Predicated region
    $region62: #{vit_forward.1} parent=1 // pred_check
      _
    $region63: #{vit_forward.1} parent=1 // pred_check_branch
      %62 = sbr.rel (0) target = $region65
    $region64: #{vit_forward.1} parent=1 // pred_region
      _
    $region65: #{vit_forward.1} parent=1 // pred_fallthru
      _
    // Predicated region
    $region66: #{vit_forward.1} parent=1 // pred_check
      _
    $region67: #{vit_forward.1} parent=1 // pred_check_branch
      %64 = sbr.rel (0) target = $region69
    $region68: #{vit_forward.1} parent=1 // pred_region
      _
    $region69: #{vit_forward.1} parent=1 // pred_fallthru
      _
    // Predicated region
    $region70: #{vit_forward.1} parent=1 // pred_check
      _
    $region71: #{vit_forward.1} parent=1 // pred_check_branch
      %66 = sbr.rel (0) target = $region73
    $region72: #{vit_forward.1} parent=1 // pred_region
      _
    $region73: #{vit_forward.1} parent=1 // pred_fallthru
      _
    // Predicated region
    $region74: #{vit_forward.1} parent=1 // pred_check
      _
    $region75: #{vit_forward.1} parent=1 // pred_check_branch
      %68 = sbr.rel (0) target = $region77
    $region76: #{vit_forward.1} parent=1 // pred_region
      _
    $region77: #{vit_forward.1} parent=1 // pred_fallthru
      _
    // Predicated region
    $region78: #{vit_forward.1} parent=1 // pred_check
      _
    $region79: #{vit_forward.1} parent=1 // pred_check_branch
      %70 = sbr.rel (0) target = $region81
    $region80: #{vit_forward.1} parent=1 // pred_region
      _
    $region81: #{vit_forward.1} parent=1 // pred_fallthru
      _
    // Predicated region
    $region82: #{vit_forward.1} parent=1 // pred_check
      _
    $region83: #{vit_forward.1} parent=1 // pred_check_branch
      %72 = sbr.rel (0) target = $region85
    $region84: #{vit_forward.1} parent=1 // pred_region
      _
    $region85: #{vit_forward.1} parent=1 // pred_fallthru
      _
    // Predicated region
    $region86: #{vit_forward.1} parent=1 // pred_check
      _
    $region87: #{vit_forward.1} parent=1 // pred_check_branch
      %74 = sbr.rel (0) target = $region89
    $region88: #{vit_forward.1} parent=1 // pred_region
      _
    $region89: #{vit_forward.1} parent=1 // pred_fallthru
      _
    // Predicated region
    $region90: #{vit_forward.1} parent=1 // pred_check
      _
    $region91: #{vit_forward.1} parent=1 // pred_check_branch
      %76 = sbr.rel (0) target = $region93
    $region92: #{vit_forward.1} parent=1 // pred_region
      _
    $region93: #{vit_forward.1} parent=1 // pred_fallthru
      _
    // Predicated region
    $region94: #{vit_forward.1} parent=1 // pred_check
      _
    $region95: #{vit_forward.1} parent=1 // pred_check_branch
      %78 = sbr.rel (0) target = $region97
    $region96: #{vit_forward.1} parent=1 // pred_region
      _
    $region97: #{vit_forward.1} parent=1 // pred_fallthru
      _
    // Predicated region
    $region98: #{vit_forward.1} parent=1 // pred_check
      _
    $region99: #{vit_forward.1} parent=1 // pred_check_branch
      %80 = sbr.rel (0) target = $region101
    $region100: #{vit_forward.1} parent=1 // pred_region
      _
    $region101: #{vit_forward.1} parent=1 // pred_fallthru
      _
    %v81 = vld [vmem:[%s0] sm:$0xff]
    %v82 = vld [vmem:[%s0 + $0x8] sm:$0xff]
    %v83 = vld [vmem:[%s0 + $0x10] sm:$0xff]
    %v84 = vld [vmem:[%s0 + $0x18] sm:$0xff]
    %v85 = vld [vmem:[%s0 + $0x20] sm:$0xff]
    %v86 = vld [vmem:[%s0 + $0x28] sm:$0xff]
    %v87 = vld [vmem:[%s2] sm:$0xff]
    %v88 = vld [vmem:[%s2 + $0x8] sm:$0xff]
    %v89 = vld [vmem:[%s3] sm:$0x1]
    %v91 = vlaneseq
    %v92 = vshrl.u32 %v91, 7
    %v93 = vsub.s32 0, %v92
    %v94 = vrot.slane %v89, %v93
    %vm96 = vcmask 130048
    %v98 = vsel %vm96, %v81, 0
    %v101 = vsel %vm96, %v82, 0
    %v104 = vsel %vm96, %v83, 0
    %v107 = vsel %vm96, %v84, 0
    %v110 = vsel %vm96, %v85, 0
    %v113 = vsel %vm96, %v86, 0
    %115 = vmatprep.subr.mxu0 0.0
    %116 = vmatpush1.msra.mxu0 0.0
    %117 = vmatprep.subr.mxu0 0.0
    %118 = vmatpush1.msra.mxu0 0.0
    %119 = vmatprep.subr.mxu0 0.0
    %120 = vmatpush1.msra.mxu0 0.0
    %121 = vmatprep.subr.mxu0 0.0
    %122 = vmatpush1.msra.mxu0 0.0
    %123 = vmatprep.subr.mxu0 0.0
    %124 = vmatpush1.msra.mxu0 0.0
    %125 = vmatprep.subr.mxu0 0.0
    %126 = vmatpush1.msra.mxu0 0.0
    %127 = vmatprep.subr.mxu0 0.0
    %128 = vmatpush1.msra.mxu0 0.0
    %129 = vmatprep.subr.mxu0 0.0
    %130 = vmatpush1.msra.mxu0 0.0
    %131 = vmatprep.subr.mxu0 0.0
    %132 = vmatpush1.msra.mxu0 0.0
    %133 = vmatprep.subr.mxu0 0.0
    %134 = vmatpush1.msra.mxu0 0.0
    %135 = vmatprep.subr.mxu0 0.0
    %136 = vmatpush1.msra.mxu0 0.0
    %137 = vmatprep.subr.mxu0 0.0
    %138 = vmatpush1.msra.mxu0 0.0
    %139 = vmatprep.subr.mxu0 0.0
    %140 = vmatpush1.msra.mxu0 0.0
    %141 = vmatprep.subr.mxu0 0.0
    %142 = vmatpush1.msra.mxu0 0.0
    %143 = vmatprep.subr.mxu0 0.0
    %144 = vmatpush1.msra.mxu0 %v88
    %145 = vmatprep.subr.mxu0 0.0
    %146 = vmatpush1.msra.mxu0 %v87
    %147 = vmatprep.subr.mxu0 0.0
    %148 = vmatpush2.msra.mxu0 0.0
    %149 = vmatprep.subr.mxu0 0.0
    %150 = vmatpush2.msra.mxu0 0.0
    %151 = vmatprep.subr.mxu0 0.0
    %152 = vmatpush2.msra.mxu0 0.0
    %153 = vmatprep.subr.mxu0 0.0
    %154 = vmatpush2.msra.mxu0 0.0
    %155 = vmatprep.subr.mxu0 0.0
    %156 = vmatpush2.msra.mxu0 0.0
    %157 = vmatprep.subr.mxu0 0.0
    %158 = vmatpush2.msra.mxu0 0.0
    %159 = vmatprep.subr.mxu0 0.0
    %160 = vmatpush2.msra.mxu0 0.0
    %161 = vmatprep.subr.mxu0 0.0
    %162 = vmatpush2.msra.mxu0 0.0
    %163 = vmatprep.subr.mxu0 0.0
    %164 = vmatpush2.msra.mxu0 0.0
    %165 = vmatprep.subr.mxu0 0.0
    %166 = vmatpush2.msra.mxu0 0.0
    %167 = vmatprep.subr.mxu0 0.0
    %168 = vmatpush2.msra.mxu0 0.0
    %169 = vmatprep.subr.mxu0 0.0
    %170 = vmatpush2.msra.mxu0 0.0
    %171 = vmatprep.subr.mxu0 0.0
    %172 = vmatpush2.msra.mxu0 0.0
    %173 = vmatprep.subr.mxu0 0.0
    %174 = vmatpush2.msra.mxu0 0.0
    %175 = vmatprep.subr.mxu0 0.0
    %176 = vmatpush2.msra.mxu0 0.0
    %177 = vmatprep.subr.mxu0 0.0
    %178 = vmatpush2.msra.mxu0 0.0
    %179 = vmatprep.mubr.f32.mxu0 0.0
    %180 = vmatmul.mubr.f32.gmra.mxu0 %v98
    %v181 = vpop.f32.mrf.mxu0
    %v182 = vadd.f32 %v94, %v181
    %v183 = vpop.f32.mrf.mxu0
    %184 = vmatprep.mubr.f32.mxu0 0.0
    %185 = vmatmul.mubr.f32.gmra.mxu0 %v101
    %v186 = vpop.f32.mrf.mxu0
    %v187 = vadd.f32 %v94, %v186
    %v188 = vpop.f32.mrf.mxu0
    %189 = vmatprep.mubr.f32.mxu0 0.0
    %190 = vmatmul.mubr.f32.gmra.mxu0 %v104
    %v191 = vpop.f32.mrf.mxu0
    %v192 = vadd.f32 %v94, %v191
    %v193 = vpop.f32.mrf.mxu0
    %194 = vmatprep.mubr.f32.mxu0 0.0
    %195 = vmatmul.mubr.f32.gmra.mxu0 %v107
    %v196 = vpop.f32.mrf.mxu0
    %v197 = vadd.f32 %v94, %v196
    %v198 = vpop.f32.mrf.mxu0
    %199 = vmatprep.mubr.f32.mxu0 0.0
    %200 = vmatmul.mubr.f32.gmra.mxu0 %v110
    %v201 = vpop.f32.mrf.mxu0
    %v202 = vadd.f32 %v94, %v201
    %v203 = vpop.f32.mrf.mxu0
    %204 = vmatprep.mubr.f32.mxu0 0.0
    %205 = vmatmul.mubr.f32.gmra.mxu0 %v113
    %v206 = vpop.f32.mrf.mxu0
    %v207 = vadd.f32 %v94, %v206
    %v208 = vpop.f32.mrf.mxu0
    %209 = vdwg.mxu0
    %v210 = vlaneseq
    %v211 = vshrl.u32 %v210, 7
    %v212 = vadd.s32 %v211, 8
    %v213 = vadd.s32 %v211, 16
    %v214 = vadd.s32 %v211, 24
    %v215 = vadd.s32 %v211, 32
    %v216 = vadd.s32 %v211, 40
    %vm217 = vcmp.eq.s32.totalorder %v211, 0
    %vm218 = vcmp.eq.s32.totalorder %v212, 0
    %vm219 = vcmp.eq.s32.totalorder %v213, 0
    %vm220 = vcmp.eq.s32.totalorder %v214, 0
    %vm221 = vcmp.eq.s32.totalorder %v215, 0
    %vm222 = vcmp.eq.s32.totalorder %v216, 0
    %vm223 = vcmp.eq.s32.totalorder %v211, 24
    %vm224 = vcmp.eq.s32.totalorder %v212, 24
    %vm225 = vcmp.eq.s32.totalorder %v213, 24
    %vm226 = vcmp.eq.s32.totalorder %v214, 24
    %vm227 = vcmp.eq.s32.totalorder %v215, 24
    %vm228 = vcmp.eq.s32.totalorder %v216, 24
    %vm229 = vmor %vm217, %vm223
    %vm230 = vmor %vm218, %vm224
    %vm231 = vmor %vm219, %vm225
    %vm232 = vmor %vm220, %vm226
    %vm233 = vmor %vm221, %vm227
    %vm234 = vmor %vm222, %vm228
    %v235 = vld [vmem:[%s1] sm:$0x1]
    %v237 = vlaneseq
    %v238 = vshrl.u32 %v237, 7
    %v239 = vsub.s32 0, %v238
    %v240 = vrot.slane %v235, %v239
    %v242 = vsel %vm229, %v240, %v182
    %v243 = vsel %vm230, %v240, %v187
    %v244 = vsel %vm231, %v240, %v192
    %v245 = vsel %vm232, %v240, %v197
    %v246 = vsel %vm233, %v240, %v202
    %v247 = vsel %vm234, %v240, %v207
    %v248 = vld [vmem:[%s4] sm:$0xff]
    %v249 = vld [vmem:[%s4 + $0x8] sm:$0xff]
    %v250 = vld [vmem:[%s4 + $0x10] sm:$0xff]
    %v251 = vld [vmem:[%s4 + $0x18] sm:$0xff]
    %v252 = vld [vmem:[%s4 + $0x20] sm:$0xff]
    %v253 = vld [vmem:[%s4 + $0x28] sm:$0xff]
    %v254 = vld [vmem:[%s5] sm:$0xff]
    %v255 = vld [vmem:[%s5 + $0x8] sm:$0xff]
    %v256 = vld [vmem:[%s5 + $0x10] sm:$0xff]
    %v257 = vld [vmem:[%s5 + $0x18] sm:$0xff]
    %v258 = vld [vmem:[%s5 + $0x20] sm:$0xff]
    %v259 = vld [vmem:[%s5 + $0x28] sm:$0xff]
    %v260 = vld [vmem:[%s6] sm:$0xff]
    %v261 = vld [vmem:[%s6 + $0x8] sm:$0xff]
    %v262 = vld [vmem:[%s6 + $0x10] sm:$0xff]
    %v263 = vld [vmem:[%s6 + $0x18] sm:$0xff]
    %v264 = vld [vmem:[%s6 + $0x20] sm:$0xff]
    %v265 = vld [vmem:[%s6 + $0x28] sm:$0xff]
    %v266 = vld [vmem:[%s7] sm:$0xff]
    %v267 = vld [vmem:[%s7 + $0x8] sm:$0xff]
    %v268 = vld [vmem:[%s7 + $0x10] sm:$0xff]
    %v269 = vld [vmem:[%s7 + $0x18] sm:$0xff]
    %v270 = vld [vmem:[%s7 + $0x20] sm:$0xff]
    %v271 = vld [vmem:[%s7 + $0x28] sm:$0xff]
    %v272 = vld [vmem:[%s7 + $0x30] sm:$0xff]
    %v273 = vld [vmem:[%s7 + $0x38] sm:$0xff]
    %v274 = vld [vmem:[%s7 + $0x40] sm:$0xff]
    %v275 = vld [vmem:[%s7 + $0x48] sm:$0xff]
    %v276 = vld [vmem:[%s7 + $0x50] sm:$0xff]
    %v277 = vld [vmem:[%s7 + $0x58] sm:$0xff]
    %v278 = vld [vmem:[%s7 + $0x60] sm:$0xff]
    %v279 = vld [vmem:[%s7 + $0x68] sm:$0xff]
    %v280 = vld [vmem:[%s7 + $0x70] sm:$0xff]
    %v281 = vld [vmem:[%s7 + $0x78] sm:$0xff]
    %v282 = vld [vmem:[%s8] sm:$0x3]
    %v284 = vlaneseq
    %v285 = vshrl.u32 %v284, 7
    %v286 = vsub.s32 0, %v285
    %v287 = vrot.slane %v282, %v286
    %v288 = vlaneseq
    %v289 = vshrl.u32 %v288, 7
    %v290 = vsub.s32 1, %v289
    %v291 = vrot.slane %v282, %v290
    %vm294 = vcmask 523264
    %v296 = vsel %vm294, %v242, 0
    %v299 = vsel %vm294, %v243, 0
    %v302 = vsel %vm294, %v244, 0
    %v305 = vsel %vm294, %v245, 0
    %v308 = vsel %vm294, %v246, 0
    %v311 = vsel %vm294, %v247, 0
    %313 = vmatprep.subr.mxu0 0.0
    %314 = vmatpush1.msra.mxu0 0.0
    %315 = vmatprep.subr.mxu0 0.0
    %316 = vmatpush1.msra.mxu0 0.0
    %317 = vmatprep.subr.mxu0 0.0
    %318 = vmatpush1.msra.mxu0 0.0
    %319 = vmatprep.subr.mxu0 0.0
    %320 = vmatpush1.msra.mxu0 0.0
    %321 = vmatprep.subr.mxu0 0.0
    %322 = vmatpush1.msra.mxu0 0.0
    %323 = vmatprep.subr.mxu0 0.0
    %324 = vmatpush1.msra.mxu0 0.0
    %325 = vmatprep.subr.mxu0 0.0
    %326 = vmatpush1.msra.mxu0 0.0
    %327 = vmatprep.subr.mxu0 0.0
    %328 = vmatpush1.msra.mxu0 0.0
    %329 = vmatprep.subr.mxu0 %v281
    %330 = vmatpush1.msra.mxu0 %v280
    %331 = vmatprep.subr.mxu0 %v279
    %332 = vmatpush1.msra.mxu0 %v278
    %333 = vmatprep.subr.mxu0 %v277
    %334 = vmatpush1.msra.mxu0 %v276
    %335 = vmatprep.subr.mxu0 %v275
    %336 = vmatpush1.msra.mxu0 %v274
    %337 = vmatprep.subr.mxu0 %v273
    %338 = vmatpush1.msra.mxu0 %v272
    %339 = vmatprep.subr.mxu0 %v271
    %340 = vmatpush1.msra.mxu0 %v270
    %341 = vmatprep.subr.mxu0 %v269
    %342 = vmatpush1.msra.mxu0 %v268
    %343 = vmatprep.subr.mxu0 %v267
    %344 = vmatpush1.msra.mxu0 %v266
    %345 = vmatprep.subr.mxu0 0.0
    %346 = vmatpush2.msra.mxu0 0.0
    %347 = vmatprep.subr.mxu0 0.0
    %348 = vmatpush2.msra.mxu0 0.0
    %349 = vmatprep.subr.mxu0 0.0
    %350 = vmatpush2.msra.mxu0 0.0
    %351 = vmatprep.subr.mxu0 0.0
    %352 = vmatpush2.msra.mxu0 0.0
    %353 = vmatprep.subr.mxu0 0.0
    %354 = vmatpush2.msra.mxu0 0.0
    %355 = vmatprep.subr.mxu0 0.0
    %356 = vmatpush2.msra.mxu0 0.0
    %357 = vmatprep.subr.mxu0 0.0
    %358 = vmatpush2.msra.mxu0 0.0
    %359 = vmatprep.subr.mxu0 0.0
    %360 = vmatpush2.msra.mxu0 0.0
    %361 = vmatprep.subr.mxu0 0.0
    %362 = vmatpush2.msra.mxu0 0.0
    %363 = vmatprep.subr.mxu0 0.0
    %364 = vmatpush2.msra.mxu0 0.0
    %365 = vmatprep.subr.mxu0 0.0
    %366 = vmatpush2.msra.mxu0 0.0
    %367 = vmatprep.subr.mxu0 0.0
    %368 = vmatpush2.msra.mxu0 0.0
    %369 = vmatprep.subr.mxu0 0.0
    %370 = vmatpush2.msra.mxu0 0.0
    %371 = vmatprep.subr.mxu0 0.0
    %372 = vmatpush2.msra.mxu0 0.0
    %373 = vmatprep.subr.mxu0 0.0
    %374 = vmatpush2.msra.mxu0 0.0
    %375 = vmatprep.subr.mxu0 0.0
    %376 = vmatpush2.msra.mxu0 0.0
    %377 = vmatprep.mubr.f32.mxu0 0.0
    %378 = vmatmul.mubr.f32.gmra.mxu0 %v296
    %v379 = vpop.f32.mrf.mxu0
    %v380 = vadd.f32 %v287, %v379
    %v381 = vpop.f32.mrf.mxu0
    %v382 = vadd.f32 %v291, %v381
    %383 = vmatprep.mubr.f32.mxu0 0.0
    %384 = vmatmul.mubr.f32.gmra.mxu0 %v299
    %v385 = vpop.f32.mrf.mxu0
    %v386 = vadd.f32 %v287, %v385
    %v387 = vpop.f32.mrf.mxu0
    %v388 = vadd.f32 %v291, %v387
    %389 = vmatprep.mubr.f32.mxu0 0.0
    %390 = vmatmul.mubr.f32.gmra.mxu0 %v302
    %v391 = vpop.f32.mrf.mxu0
    %v392 = vadd.f32 %v287, %v391
    %v393 = vpop.f32.mrf.mxu0
    %v394 = vadd.f32 %v291, %v393
    %395 = vmatprep.mubr.f32.mxu0 0.0
    %396 = vmatmul.mubr.f32.gmra.mxu0 %v305
    %v397 = vpop.f32.mrf.mxu0
    %v398 = vadd.f32 %v287, %v397
    %v399 = vpop.f32.mrf.mxu0
    %v400 = vadd.f32 %v291, %v399
    %401 = vmatprep.mubr.f32.mxu0 0.0
    %402 = vmatmul.mubr.f32.gmra.mxu0 %v308
    %v403 = vpop.f32.mrf.mxu0
    %v404 = vadd.f32 %v287, %v403
    %v405 = vpop.f32.mrf.mxu0
    %v406 = vadd.f32 %v291, %v405
    %407 = vmatprep.mubr.f32.mxu0 0.0
    %408 = vmatmul.mubr.f32.gmra.mxu0 %v311
    %v409 = vpop.f32.mrf.mxu0
    %v410 = vadd.f32 %v287, %v409
    %v411 = vpop.f32.mrf.mxu0
    %v412 = vadd.f32 %v291, %v411
    %413 = vdwg.mxu0
    %v414 = vmul.f32 %v380, %v248
    %v415 = vmul.f32 %v386, %v249
    %v416 = vmul.f32 %v392, %v250
    %v417 = vmul.f32 %v398, %v251
    %v418 = vmul.f32 %v404, %v252
    %v419 = vmul.f32 %v410, %v253
    %426 = vrot.lane.b32.xlu0 %v254, 96
    %v427 = vpop.permute.xlu0 %426
    %428 = vrot.lane.b32.xlu0 %v255, 96
    %v429 = vpop.permute.xlu0 %428
    %430 = vrot.lane.b32.xlu0 %v256, 96
    %v431 = vpop.permute.xlu0 %430
    %432 = vrot.lane.b32.xlu0 %v257, 96
    %v433 = vpop.permute.xlu0 %432
    %434 = vrot.lane.b32.xlu0 %v258, 96
    %v435 = vpop.permute.xlu0 %434
    %436 = vrot.lane.b32.xlu0 %v259, 96
    %v437 = vpop.permute.xlu0 %436
    %v444 = vmul.f32 %v380, %v427
    %v445 = vmul.f32 %v386, %v429
    %v446 = vmul.f32 %v392, %v431
    %v447 = vmul.f32 %v398, %v433
    %v448 = vmul.f32 %v404, %v435
    %v449 = vmul.f32 %v410, %v437
    %456 = vrot.lane.b32.xlu0 %v444, 32
    %v457 = vpop.permute.xlu0 %456
    %458 = vrot.lane.b32.xlu0 %v445, 32
    %v459 = vpop.permute.xlu0 %458
    %460 = vrot.lane.b32.xlu0 %v446, 32
    %v461 = vpop.permute.xlu0 %460
    %462 = vrot.lane.b32.xlu0 %v447, 32
    %v463 = vpop.permute.xlu0 %462
    %464 = vrot.lane.b32.xlu0 %v448, 32
    %v465 = vpop.permute.xlu0 %464
    %466 = vrot.lane.b32.xlu0 %v449, 32
    %v467 = vpop.permute.xlu0 %466
    %v474 = vsub.f32 %v414, %v457
    %v475 = vsub.f32 %v415, %v459
    %v476 = vsub.f32 %v416, %v461
    %v477 = vsub.f32 %v417, %v463
    %v478 = vsub.f32 %v418, %v465
    %v479 = vsub.f32 %v419, %v467
    %v480 = vmul.f32 %v380, %v254
    %v481 = vmul.f32 %v386, %v255
    %v482 = vmul.f32 %v392, %v256
    %v483 = vmul.f32 %v398, %v257
    %v484 = vmul.f32 %v404, %v258
    %v485 = vmul.f32 %v410, %v259
    %492 = vrot.lane.b32.xlu0 %v248, 96
    %v493 = vpop.permute.xlu0 %492
    %494 = vrot.lane.b32.xlu0 %v249, 96
    %v495 = vpop.permute.xlu0 %494
    %496 = vrot.lane.b32.xlu0 %v250, 96
    %v497 = vpop.permute.xlu0 %496
    %498 = vrot.lane.b32.xlu0 %v251, 96
    %v499 = vpop.permute.xlu0 %498
    %500 = vrot.lane.b32.xlu0 %v252, 96
    %v501 = vpop.permute.xlu0 %500
    %502 = vrot.lane.b32.xlu0 %v253, 96
    %v503 = vpop.permute.xlu0 %502
    %v510 = vmul.f32 %v380, %v493
    %v511 = vmul.f32 %v386, %v495
    %v512 = vmul.f32 %v392, %v497
    %v513 = vmul.f32 %v398, %v499
    %v514 = vmul.f32 %v404, %v501
    %v515 = vmul.f32 %v410, %v503
    %522 = vrot.lane.b32.xlu0 %v510, 32
    %v523 = vpop.permute.xlu0 %522
    %524 = vrot.lane.b32.xlu0 %v511, 32
    %v525 = vpop.permute.xlu0 %524
    %526 = vrot.lane.b32.xlu0 %v512, 32
    %v527 = vpop.permute.xlu0 %526
    %528 = vrot.lane.b32.xlu0 %v513, 32
    %v529 = vpop.permute.xlu0 %528
    %530 = vrot.lane.b32.xlu0 %v514, 32
    %v531 = vpop.permute.xlu0 %530
    %532 = vrot.lane.b32.xlu0 %v515, 32
    %v533 = vpop.permute.xlu0 %532
    %v540 = vadd.f32 %v480, %v523
    %v541 = vadd.f32 %v481, %v525
    %v542 = vadd.f32 %v482, %v527
    %v543 = vadd.f32 %v483, %v529
    %v544 = vadd.f32 %v484, %v531
    %v545 = vadd.f32 %v485, %v533
    %546 = vrot.lane.b32.xlu0 %v248, 32
    %v547 = vpop.permute.xlu0 %546
    %548 = vrot.lane.b32.xlu0 %v249, 32
    %v549 = vpop.permute.xlu0 %548
    %550 = vrot.lane.b32.xlu0 %v250, 32
    %v551 = vpop.permute.xlu0 %550
    %552 = vrot.lane.b32.xlu0 %v251, 32
    %v553 = vpop.permute.xlu0 %552
    %554 = vrot.lane.b32.xlu0 %v252, 32
    %v555 = vpop.permute.xlu0 %554
    %556 = vrot.lane.b32.xlu0 %v253, 32
    %v557 = vpop.permute.xlu0 %556
    %v564 = vmul.f32 %v380, %v547
    %v565 = vmul.f32 %v386, %v549
    %v566 = vmul.f32 %v392, %v551
    %v567 = vmul.f32 %v398, %v553
    %v568 = vmul.f32 %v404, %v555
    %v569 = vmul.f32 %v410, %v557
    %v570 = vmul.f32 %v382, %v254
    %v571 = vmul.f32 %v388, %v255
    %v572 = vmul.f32 %v394, %v256
    %v573 = vmul.f32 %v400, %v257
    %v574 = vmul.f32 %v406, %v258
    %v575 = vmul.f32 %v412, %v259
    %582 = vrot.lane.b32.xlu0 %v570, 32
    %v583 = vpop.permute.xlu0 %582
    %584 = vrot.lane.b32.xlu0 %v571, 32
    %v585 = vpop.permute.xlu0 %584
    %586 = vrot.lane.b32.xlu0 %v572, 32
    %v587 = vpop.permute.xlu0 %586
    %588 = vrot.lane.b32.xlu0 %v573, 32
    %v589 = vpop.permute.xlu0 %588
    %590 = vrot.lane.b32.xlu0 %v574, 32
    %v591 = vpop.permute.xlu0 %590
    %592 = vrot.lane.b32.xlu0 %v575, 32
    %v593 = vpop.permute.xlu0 %592
    %v600 = vsub.f32 %v564, %v583
    %v601 = vsub.f32 %v565, %v585
    %v602 = vsub.f32 %v566, %v587
    %v603 = vsub.f32 %v567, %v589
    %v604 = vsub.f32 %v568, %v591
    %v605 = vsub.f32 %v569, %v593
    %606 = vrot.lane.b32.xlu0 %v254, 32
    %v607 = vpop.permute.xlu0 %606
    %608 = vrot.lane.b32.xlu0 %v255, 32
    %v609 = vpop.permute.xlu0 %608
    %610 = vrot.lane.b32.xlu0 %v256, 32
    %v611 = vpop.permute.xlu0 %610
    %612 = vrot.lane.b32.xlu0 %v257, 32
    %v613 = vpop.permute.xlu0 %612
    %614 = vrot.lane.b32.xlu0 %v258, 32
    %v615 = vpop.permute.xlu0 %614
    %616 = vrot.lane.b32.xlu0 %v259, 32
    %v617 = vpop.permute.xlu0 %616
    %v624 = vmul.f32 %v380, %v607
    %v625 = vmul.f32 %v386, %v609
    %v626 = vmul.f32 %v392, %v611
    %v627 = vmul.f32 %v398, %v613
    %v628 = vmul.f32 %v404, %v615
    %v629 = vmul.f32 %v410, %v617
    %v630 = vmul.f32 %v382, %v248
    %v631 = vmul.f32 %v388, %v249
    %v632 = vmul.f32 %v394, %v250
    %v633 = vmul.f32 %v400, %v251
    %v634 = vmul.f32 %v406, %v252
    %v635 = vmul.f32 %v412, %v253
    %642 = vrot.lane.b32.xlu0 %v630, 32
    %v643 = vpop.permute.xlu0 %642
    %644 = vrot.lane.b32.xlu0 %v631, 32
    %v645 = vpop.permute.xlu0 %644
    %646 = vrot.lane.b32.xlu0 %v632, 32
    %v647 = vpop.permute.xlu0 %646
    %648 = vrot.lane.b32.xlu0 %v633, 32
    %v649 = vpop.permute.xlu0 %648
    %650 = vrot.lane.b32.xlu0 %v634, 32
    %v651 = vpop.permute.xlu0 %650
    %652 = vrot.lane.b32.xlu0 %v635, 32
    %v653 = vpop.permute.xlu0 %652
    %v660 = vadd.f32 %v624, %v643
    %v661 = vadd.f32 %v625, %v645
    %v662 = vadd.f32 %v626, %v647
    %v663 = vadd.f32 %v627, %v649
    %v664 = vadd.f32 %v628, %v651
    %v665 = vadd.f32 %v629, %v653
    %672 = vrot.lane.b32.xlu0 %v660, 96
    %v673 = vpop.permute.xlu0 %672
    %674 = vrot.lane.b32.xlu0 %v661, 96
    %v675 = vpop.permute.xlu0 %674
    %676 = vrot.lane.b32.xlu0 %v662, 96
    %v677 = vpop.permute.xlu0 %676
    %678 = vrot.lane.b32.xlu0 %v663, 96
    %v679 = vpop.permute.xlu0 %678
    %680 = vrot.lane.b32.xlu0 %v664, 96
    %v681 = vpop.permute.xlu0 %680
    %682 = vrot.lane.b32.xlu0 %v665, 96
    %v683 = vpop.permute.xlu0 %682
    %vm684 = vcmask 64512
    %v686 = vsel %vm684, %v540, 0
    %v689 = vsel %vm684, %v541, 0
    %v692 = vsel %vm684, %v542, 0
    %v695 = vsel %vm684, %v543, 0
    %v698 = vsel %vm684, %v544, 0
    %v701 = vsel %vm684, %v545, 0
    %v703 = vsel %vm684, %v673, 0
    %v705 = vsel %vm684, %v675, 0
    %v707 = vsel %vm684, %v677, 0
    %v709 = vsel %vm684, %v679, 0
    %v711 = vsel %vm684, %v681, 0
    %v713 = vsel %vm684, %v683, 0
    %715 = vmatprep.subr.mxu0 0.0
    %716 = vmatpush1.xpose.msra.mxu0 0.0
    %717 = vmatprep.subr.mxu0 0.0
    %718 = vmatpush1.xpose.msra.mxu0 0.0
    %719 = vmatprep.subr.mxu0 0.0
    %720 = vmatpush1.xpose.msra.mxu0 0.0
    %721 = vmatprep.subr.mxu0 0.0
    %722 = vmatpush1.xpose.msra.mxu0 0.0
    %723 = vmatprep.subr.mxu0 0.0
    %724 = vmatpush1.xpose.msra.mxu0 0.0
    %725 = vmatprep.subr.mxu0 0.0
    %726 = vmatpush1.xpose.msra.mxu0 0.0
    %727 = vmatprep.subr.mxu0 0.0
    %728 = vmatpush1.xpose.msra.mxu0 0.0
    %729 = vmatprep.subr.mxu0 0.0
    %730 = vmatpush1.xpose.msra.mxu0 0.0
    %731 = vmatprep.subr.mxu0 0.0
    %732 = vmatpush1.xpose.msra.mxu0 0.0
    %733 = vmatprep.subr.mxu0 0.0
    %734 = vmatpush1.xpose.msra.mxu0 0.0
    %735 = vmatprep.subr.mxu0 0.0
    %736 = vmatpush1.xpose.msra.mxu0 %v713
    %737 = vmatprep.subr.mxu0 0.0
    %738 = vmatpush1.xpose.msra.mxu0 %v711
    %739 = vmatprep.subr.mxu0 0.0
    %740 = vmatpush1.xpose.msra.mxu0 %v709
    %741 = vmatprep.subr.mxu0 0.0
    %742 = vmatpush1.xpose.msra.mxu0 %v707
    %743 = vmatprep.subr.mxu0 0.0
    %744 = vmatpush1.xpose.msra.mxu0 %v705
    %745 = vmatprep.subr.mxu0 0.0
    %746 = vmatpush1.xpose.msra.mxu0 %v703
    %747 = vmatprep.subr.mxu0 0.0
    %748 = vmatpush2.xpose.msra.mxu0 0.0
    %749 = vmatprep.subr.mxu0 0.0
    %750 = vmatpush2.xpose.msra.mxu0 0.0
    %751 = vmatprep.subr.mxu0 0.0
    %752 = vmatpush2.xpose.msra.mxu0 0.0
    %753 = vmatprep.subr.mxu0 0.0
    %754 = vmatpush2.xpose.msra.mxu0 0.0
    %755 = vmatprep.subr.mxu0 0.0
    %756 = vmatpush2.xpose.msra.mxu0 0.0
    %757 = vmatprep.subr.mxu0 0.0
    %758 = vmatpush2.xpose.msra.mxu0 0.0
    %759 = vmatprep.subr.mxu0 0.0
    %760 = vmatpush2.xpose.msra.mxu0 0.0
    %761 = vmatprep.subr.mxu0 0.0
    %762 = vmatpush2.xpose.msra.mxu0 0.0
    %763 = vmatprep.subr.mxu0 0.0
    %764 = vmatpush2.xpose.msra.mxu0 0.0
    %765 = vmatprep.subr.mxu0 0.0
    %766 = vmatpush2.xpose.msra.mxu0 0.0
    %767 = vmatprep.subr.mxu0 0.0
    %768 = vmatpush2.xpose.msra.mxu0 0.0
    %769 = vmatprep.subr.mxu0 0.0
    %770 = vmatpush2.xpose.msra.mxu0 0.0
    %771 = vmatprep.subr.mxu0 0.0
    %772 = vmatpush2.xpose.msra.mxu0 0.0
    %773 = vmatprep.subr.mxu0 0.0
    %774 = vmatpush2.xpose.msra.mxu0 0.0
    %775 = vmatprep.subr.mxu0 0.0
    %776 = vmatpush2.xpose.msra.mxu0 0.0
    %777 = vmatprep.subr.mxu0 0.0
    %778 = vmatpush2.xpose.msra.mxu0 0.0
    %779 = vmatprep.mubr.f32.mxu0 0.0
    %780 = vmatmul.mubr.f32.gmra.mxu0 %v686
    %v781 = vpop.f32.mrf.mxu0
    %v782 = vadd.f32 0.0, %v781
    %v783 = vpop.f32.mrf.mxu0
    %784 = vmatprep.mubr.f32.mxu0 0.0
    %785 = vmatmul.mubr.f32.gmra.mxu0 %v689
    %v786 = vpop.f32.mrf.mxu0
    %v787 = vadd.f32 0.0, %v786
    %v788 = vpop.f32.mrf.mxu0
    %789 = vmatprep.mubr.f32.mxu0 0.0
    %790 = vmatmul.mubr.f32.gmra.mxu0 %v692
    %v791 = vpop.f32.mrf.mxu0
    %v792 = vadd.f32 0.0, %v791
    %v793 = vpop.f32.mrf.mxu0
    %794 = vmatprep.mubr.f32.mxu0 0.0
    %795 = vmatmul.mubr.f32.gmra.mxu0 %v695
    %v796 = vpop.f32.mrf.mxu0
    %v797 = vadd.f32 0.0, %v796
    %v798 = vpop.f32.mrf.mxu0
    %799 = vmatprep.mubr.f32.mxu0 0.0
    %800 = vmatmul.mubr.f32.gmra.mxu0 %v698
    %v801 = vpop.f32.mrf.mxu0
    %v802 = vadd.f32 0.0, %v801
    %v803 = vpop.f32.mrf.mxu0
    %804 = vmatprep.mubr.f32.mxu0 0.0
    %805 = vmatmul.mubr.f32.gmra.mxu0 %v701
    %v806 = vpop.f32.mrf.mxu0
    %v807 = vadd.f32 0.0, %v806
    %v808 = vpop.f32.mrf.mxu0
    %809 = vdwg.mxu0
    %816 = vrot.lane.b32.xlu0 %v600, 96
    %v817 = vpop.permute.xlu0 %816
    %818 = vrot.lane.b32.xlu0 %v601, 96
    %v819 = vpop.permute.xlu0 %818
    %820 = vrot.lane.b32.xlu0 %v602, 96
    %v821 = vpop.permute.xlu0 %820
    %822 = vrot.lane.b32.xlu0 %v603, 96
    %v823 = vpop.permute.xlu0 %822
    %824 = vrot.lane.b32.xlu0 %v604, 96
    %v825 = vpop.permute.xlu0 %824
    %826 = vrot.lane.b32.xlu0 %v605, 96
    %v827 = vpop.permute.xlu0 %826
    %v829 = vsel %vm684, %v474, 0
    %v832 = vsel %vm684, %v475, 0
    %v835 = vsel %vm684, %v476, 0
    %v838 = vsel %vm684, %v477, 0
    %v841 = vsel %vm684, %v478, 0
    %v844 = vsel %vm684, %v479, 0
    %v846 = vsel %vm684, %v817, 0
    %v848 = vsel %vm684, %v819, 0
    %v850 = vsel %vm684, %v821, 0
    %v852 = vsel %vm684, %v823, 0
    %v854 = vsel %vm684, %v825, 0
    %v856 = vsel %vm684, %v827, 0
    %858 = vmatprep.subr.mxu0 0.0
    %859 = vmatpush1.xpose.msra.mxu0 0.0
    %860 = vmatprep.subr.mxu0 0.0
    %861 = vmatpush1.xpose.msra.mxu0 0.0
    %862 = vmatprep.subr.mxu0 0.0
    %863 = vmatpush1.xpose.msra.mxu0 0.0
    %864 = vmatprep.subr.mxu0 0.0
    %865 = vmatpush1.xpose.msra.mxu0 0.0
    %866 = vmatprep.subr.mxu0 0.0
    %867 = vmatpush1.xpose.msra.mxu0 0.0
    %868 = vmatprep.subr.mxu0 0.0
    %869 = vmatpush1.xpose.msra.mxu0 0.0
    %870 = vmatprep.subr.mxu0 0.0
    %871 = vmatpush1.xpose.msra.mxu0 0.0
    %872 = vmatprep.subr.mxu0 0.0
    %873 = vmatpush1.xpose.msra.mxu0 0.0
    %874 = vmatprep.subr.mxu0 0.0
    %875 = vmatpush1.xpose.msra.mxu0 0.0
    %876 = vmatprep.subr.mxu0 0.0
    %877 = vmatpush1.xpose.msra.mxu0 0.0
    %878 = vmatprep.subr.mxu0 0.0
    %879 = vmatpush1.xpose.msra.mxu0 %v856
    %880 = vmatprep.subr.mxu0 0.0
    %881 = vmatpush1.xpose.msra.mxu0 %v854
    %882 = vmatprep.subr.mxu0 0.0
    %883 = vmatpush1.xpose.msra.mxu0 %v852
    %884 = vmatprep.subr.mxu0 0.0
    %885 = vmatpush1.xpose.msra.mxu0 %v850
    %886 = vmatprep.subr.mxu0 0.0
    %887 = vmatpush1.xpose.msra.mxu0 %v848
    %888 = vmatprep.subr.mxu0 0.0
    %889 = vmatpush1.xpose.msra.mxu0 %v846
    %890 = vmatprep.subr.mxu0 0.0
    %891 = vmatpush2.xpose.msra.mxu0 0.0
    %892 = vmatprep.subr.mxu0 0.0
    %893 = vmatpush2.xpose.msra.mxu0 0.0
    %894 = vmatprep.subr.mxu0 0.0
    %895 = vmatpush2.xpose.msra.mxu0 0.0
    %896 = vmatprep.subr.mxu0 0.0
    %897 = vmatpush2.xpose.msra.mxu0 0.0
    %898 = vmatprep.subr.mxu0 0.0
    %899 = vmatpush2.xpose.msra.mxu0 0.0
    %900 = vmatprep.subr.mxu0 0.0
    %901 = vmatpush2.xpose.msra.mxu0 0.0
    %902 = vmatprep.subr.mxu0 0.0
    %903 = vmatpush2.xpose.msra.mxu0 0.0
    %904 = vmatprep.subr.mxu0 0.0
    %905 = vmatpush2.xpose.msra.mxu0 0.0
    %906 = vmatprep.subr.mxu0 0.0
    %907 = vmatpush2.xpose.msra.mxu0 0.0
    %908 = vmatprep.subr.mxu0 0.0
    %909 = vmatpush2.xpose.msra.mxu0 0.0
    %910 = vmatprep.subr.mxu0 0.0
    %911 = vmatpush2.xpose.msra.mxu0 0.0
    %912 = vmatprep.subr.mxu0 0.0
    %913 = vmatpush2.xpose.msra.mxu0 0.0
    %914 = vmatprep.subr.mxu0 0.0
    %915 = vmatpush2.xpose.msra.mxu0 0.0
    %916 = vmatprep.subr.mxu0 0.0
    %917 = vmatpush2.xpose.msra.mxu0 0.0
    %918 = vmatprep.subr.mxu0 0.0
    %919 = vmatpush2.xpose.msra.mxu0 0.0
    %920 = vmatprep.subr.mxu0 0.0
    %921 = vmatpush2.xpose.msra.mxu0 0.0
    %922 = vmatprep.mubr.f32.mxu0 0.0
    %923 = vmatmul.mubr.f32.gmra.mxu0 %v829
    %v924 = vpop.f32.mrf.mxu0
    %v925 = vadd.f32 %v782, %v924
    %v926 = vpop.f32.mrf.mxu0
    %927 = vmatprep.mubr.f32.mxu0 0.0
    %928 = vmatmul.mubr.f32.gmra.mxu0 %v832
    %v929 = vpop.f32.mrf.mxu0
    %v930 = vadd.f32 %v787, %v929
    %v931 = vpop.f32.mrf.mxu0
    %932 = vmatprep.mubr.f32.mxu0 0.0
    %933 = vmatmul.mubr.f32.gmra.mxu0 %v835
    %v934 = vpop.f32.mrf.mxu0
    %v935 = vadd.f32 %v792, %v934
    %v936 = vpop.f32.mrf.mxu0
    %937 = vmatprep.mubr.f32.mxu0 0.0
    %938 = vmatmul.mubr.f32.gmra.mxu0 %v838
    %v939 = vpop.f32.mrf.mxu0
    %v940 = vadd.f32 %v797, %v939
    %v941 = vpop.f32.mrf.mxu0
    %942 = vmatprep.mubr.f32.mxu0 0.0
    %943 = vmatmul.mubr.f32.gmra.mxu0 %v841
    %v944 = vpop.f32.mrf.mxu0
    %v945 = vadd.f32 %v802, %v944
    %v946 = vpop.f32.mrf.mxu0
    %947 = vmatprep.mubr.f32.mxu0 0.0
    %948 = vmatmul.mubr.f32.gmra.mxu0 %v844
    %v949 = vpop.f32.mrf.mxu0
    %v950 = vadd.f32 %v807, %v949
    %v951 = vpop.f32.mrf.mxu0
    %952 = vdwg.mxu0
    %953 = vmatprep.subr.mxu0 0.0
    %954 = vmatpush1.xpose.msra.mxu0 0.0
    %955 = vmatprep.subr.mxu0 0.0
    %956 = vmatpush1.xpose.msra.mxu0 0.0
    %957 = vmatprep.subr.mxu0 0.0
    %958 = vmatpush1.xpose.msra.mxu0 0.0
    %959 = vmatprep.subr.mxu0 0.0
    %960 = vmatpush1.xpose.msra.mxu0 0.0
    %961 = vmatprep.subr.mxu0 0.0
    %962 = vmatpush1.xpose.msra.mxu0 0.0
    %963 = vmatprep.subr.mxu0 0.0
    %964 = vmatpush1.xpose.msra.mxu0 0.0
    %965 = vmatprep.subr.mxu0 0.0
    %966 = vmatpush1.xpose.msra.mxu0 0.0
    %967 = vmatprep.subr.mxu0 0.0
    %968 = vmatpush1.xpose.msra.mxu0 0.0
    %969 = vmatprep.subr.mxu0 0.0
    %970 = vmatpush1.xpose.msra.mxu0 0.0
    %971 = vmatprep.subr.mxu0 0.0
    %972 = vmatpush1.xpose.msra.mxu0 0.0
    %973 = vmatprep.subr.mxu0 0.0
    %974 = vmatpush1.xpose.msra.mxu0 %v856
    %975 = vmatprep.subr.mxu0 0.0
    %976 = vmatpush1.xpose.msra.mxu0 %v854
    %977 = vmatprep.subr.mxu0 0.0
    %978 = vmatpush1.xpose.msra.mxu0 %v852
    %979 = vmatprep.subr.mxu0 0.0
    %980 = vmatpush1.xpose.msra.mxu0 %v850
    %981 = vmatprep.subr.mxu0 0.0
    %982 = vmatpush1.xpose.msra.mxu0 %v848
    %983 = vmatprep.subr.mxu0 0.0
    %984 = vmatpush1.xpose.msra.mxu0 %v846
    %985 = vmatprep.subr.mxu0 0.0
    %986 = vmatpush2.xpose.msra.mxu0 0.0
    %987 = vmatprep.subr.mxu0 0.0
    %988 = vmatpush2.xpose.msra.mxu0 0.0
    %989 = vmatprep.subr.mxu0 0.0
    %990 = vmatpush2.xpose.msra.mxu0 0.0
    %991 = vmatprep.subr.mxu0 0.0
    %992 = vmatpush2.xpose.msra.mxu0 0.0
    %993 = vmatprep.subr.mxu0 0.0
    %994 = vmatpush2.xpose.msra.mxu0 0.0
    %995 = vmatprep.subr.mxu0 0.0
    %996 = vmatpush2.xpose.msra.mxu0 0.0
    %997 = vmatprep.subr.mxu0 0.0
    %998 = vmatpush2.xpose.msra.mxu0 0.0
    %999 = vmatprep.subr.mxu0 0.0
    %1000 = vmatpush2.xpose.msra.mxu0 0.0
    %1001 = vmatprep.subr.mxu0 0.0
    %1002 = vmatpush2.xpose.msra.mxu0 0.0
    %1003 = vmatprep.subr.mxu0 0.0
    %1004 = vmatpush2.xpose.msra.mxu0 0.0
    %1005 = vmatprep.subr.mxu0 0.0
    %1006 = vmatpush2.xpose.msra.mxu0 0.0
    %1007 = vmatprep.subr.mxu0 0.0
    %1008 = vmatpush2.xpose.msra.mxu0 0.0
    %1009 = vmatprep.subr.mxu0 0.0
    %1010 = vmatpush2.xpose.msra.mxu0 0.0
    %1011 = vmatprep.subr.mxu0 0.0
    %1012 = vmatpush2.xpose.msra.mxu0 0.0
    %1013 = vmatprep.subr.mxu0 0.0
    %1014 = vmatpush2.xpose.msra.mxu0 0.0
    %1015 = vmatprep.subr.mxu0 0.0
    %1016 = vmatpush2.xpose.msra.mxu0 0.0
    %1017 = vmatprep.mubr.f32.mxu0 0.0
    %1018 = vmatmul.mubr.f32.gmra.mxu0 %v686
    %v1019 = vpop.f32.mrf.mxu0
    %v1020 = vadd.f32 0.0, %v1019
    %v1021 = vpop.f32.mrf.mxu0
    %1022 = vmatprep.mubr.f32.mxu0 0.0
    %1023 = vmatmul.mubr.f32.gmra.mxu0 %v689
    %v1024 = vpop.f32.mrf.mxu0
    %v1025 = vadd.f32 0.0, %v1024
    %v1026 = vpop.f32.mrf.mxu0
    %1027 = vmatprep.mubr.f32.mxu0 0.0
    %1028 = vmatmul.mubr.f32.gmra.mxu0 %v692
    %v1029 = vpop.f32.mrf.mxu0
    %v1030 = vadd.f32 0.0, %v1029
    %v1031 = vpop.f32.mrf.mxu0
    %1032 = vmatprep.mubr.f32.mxu0 0.0
    %1033 = vmatmul.mubr.f32.gmra.mxu0 %v695
    %v1034 = vpop.f32.mrf.mxu0
    %v1035 = vadd.f32 0.0, %v1034
    %v1036 = vpop.f32.mrf.mxu0
    %1037 = vmatprep.mubr.f32.mxu0 0.0
    %1038 = vmatmul.mubr.f32.gmra.mxu0 %v698
    %v1039 = vpop.f32.mrf.mxu0
    %v1040 = vadd.f32 0.0, %v1039
    %v1041 = vpop.f32.mrf.mxu0
    %1042 = vmatprep.mubr.f32.mxu0 0.0
    %1043 = vmatmul.mubr.f32.gmra.mxu0 %v701
    %v1044 = vpop.f32.mrf.mxu0
    %v1045 = vadd.f32 0.0, %v1044
    %v1046 = vpop.f32.mrf.mxu0
    %1047 = vdwg.mxu0
    %1048 = vmatprep.subr.mxu0 0.0
    %1049 = vmatpush1.xpose.msra.mxu0 0.0
    %1050 = vmatprep.subr.mxu0 0.0
    %1051 = vmatpush1.xpose.msra.mxu0 0.0
    %1052 = vmatprep.subr.mxu0 0.0
    %1053 = vmatpush1.xpose.msra.mxu0 0.0
    %1054 = vmatprep.subr.mxu0 0.0
    %1055 = vmatpush1.xpose.msra.mxu0 0.0
    %1056 = vmatprep.subr.mxu0 0.0
    %1057 = vmatpush1.xpose.msra.mxu0 0.0
    %1058 = vmatprep.subr.mxu0 0.0
    %1059 = vmatpush1.xpose.msra.mxu0 0.0
    %1060 = vmatprep.subr.mxu0 0.0
    %1061 = vmatpush1.xpose.msra.mxu0 0.0
    %1062 = vmatprep.subr.mxu0 0.0
    %1063 = vmatpush1.xpose.msra.mxu0 0.0
    %1064 = vmatprep.subr.mxu0 0.0
    %1065 = vmatpush1.xpose.msra.mxu0 0.0
    %1066 = vmatprep.subr.mxu0 0.0
    %1067 = vmatpush1.xpose.msra.mxu0 0.0
    %1068 = vmatprep.subr.mxu0 0.0
    %1069 = vmatpush1.xpose.msra.mxu0 %v713
    %1070 = vmatprep.subr.mxu0 0.0
    %1071 = vmatpush1.xpose.msra.mxu0 %v711
    %1072 = vmatprep.subr.mxu0 0.0
    %1073 = vmatpush1.xpose.msra.mxu0 %v709
    %1074 = vmatprep.subr.mxu0 0.0
    %1075 = vmatpush1.xpose.msra.mxu0 %v707
    %1076 = vmatprep.subr.mxu0 0.0
    %1077 = vmatpush1.xpose.msra.mxu0 %v705
    %1078 = vmatprep.subr.mxu0 0.0
    %1079 = vmatpush1.xpose.msra.mxu0 %v703
    %1080 = vmatprep.subr.mxu0 0.0
    %1081 = vmatpush2.xpose.msra.mxu0 0.0
    %1082 = vmatprep.subr.mxu0 0.0
    %1083 = vmatpush2.xpose.msra.mxu0 0.0
    %1084 = vmatprep.subr.mxu0 0.0
    %1085 = vmatpush2.xpose.msra.mxu0 0.0
    %1086 = vmatprep.subr.mxu0 0.0
    %1087 = vmatpush2.xpose.msra.mxu0 0.0
    %1088 = vmatprep.subr.mxu0 0.0
    %1089 = vmatpush2.xpose.msra.mxu0 0.0
    %1090 = vmatprep.subr.mxu0 0.0
    %1091 = vmatpush2.xpose.msra.mxu0 0.0
    %1092 = vmatprep.subr.mxu0 0.0
    %1093 = vmatpush2.xpose.msra.mxu0 0.0
    %1094 = vmatprep.subr.mxu0 0.0
    %1095 = vmatpush2.xpose.msra.mxu0 0.0
    %1096 = vmatprep.subr.mxu0 0.0
    %1097 = vmatpush2.xpose.msra.mxu0 0.0
    %1098 = vmatprep.subr.mxu0 0.0
    %1099 = vmatpush2.xpose.msra.mxu0 0.0
    %1100 = vmatprep.subr.mxu0 0.0
    %1101 = vmatpush2.xpose.msra.mxu0 0.0
    %1102 = vmatprep.subr.mxu0 0.0
    %1103 = vmatpush2.xpose.msra.mxu0 0.0
    %1104 = vmatprep.subr.mxu0 0.0
    %1105 = vmatpush2.xpose.msra.mxu0 0.0
    %1106 = vmatprep.subr.mxu0 0.0
    %1107 = vmatpush2.xpose.msra.mxu0 0.0
    %1108 = vmatprep.subr.mxu0 0.0
    %1109 = vmatpush2.xpose.msra.mxu0 0.0
    %1110 = vmatprep.subr.mxu0 0.0
    %1111 = vmatpush2.xpose.msra.mxu0 0.0
    %1112 = vmatprep.mubr.f32.mxu0 0.0
    %1113 = vmatmul.mubr.f32.gmra.mxu0 %v829
    %v1114 = vpop.f32.mrf.mxu0
    %v1115 = vadd.f32 0.0, %v1114
    %v1116 = vpop.f32.mrf.mxu0
    %1117 = vmatprep.mubr.f32.mxu0 0.0
    %1118 = vmatmul.mubr.f32.gmra.mxu0 %v832
    %v1119 = vpop.f32.mrf.mxu0
    %v1120 = vadd.f32 0.0, %v1119
    %v1121 = vpop.f32.mrf.mxu0
    %1122 = vmatprep.mubr.f32.mxu0 0.0
    %1123 = vmatmul.mubr.f32.gmra.mxu0 %v835
    %v1124 = vpop.f32.mrf.mxu0
    %v1125 = vadd.f32 0.0, %v1124
    %v1126 = vpop.f32.mrf.mxu0
    %1127 = vmatprep.mubr.f32.mxu0 0.0
    %1128 = vmatmul.mubr.f32.gmra.mxu0 %v838
    %v1129 = vpop.f32.mrf.mxu0
    %v1130 = vadd.f32 0.0, %v1129
    %v1131 = vpop.f32.mrf.mxu0
    %1132 = vmatprep.mubr.f32.mxu0 0.0
    %1133 = vmatmul.mubr.f32.gmra.mxu0 %v841
    %v1134 = vpop.f32.mrf.mxu0
    %v1135 = vadd.f32 0.0, %v1134
    %v1136 = vpop.f32.mrf.mxu0
    %1137 = vmatprep.mubr.f32.mxu0 0.0
    %1138 = vmatmul.mubr.f32.gmra.mxu0 %v844
    %v1139 = vpop.f32.mrf.mxu0
    %v1140 = vadd.f32 0.0, %v1139
    %v1141 = vpop.f32.mrf.mxu0
    %1142 = vdwg.mxu0
    %v1143 = vsub.f32 %v1020, %v1115
    %v1144 = vsub.f32 %v1025, %v1120
    %v1145 = vsub.f32 %v1030, %v1125
    %v1146 = vsub.f32 %v1035, %v1130
    %v1147 = vsub.f32 %v1040, %v1135
    %v1148 = vsub.f32 %v1045, %v1140
    %v1149 = vmul.f32 %v925, %v925
    %v1150 = vmul.f32 %v930, %v930
    %v1151 = vmul.f32 %v935, %v935
    %v1152 = vmul.f32 %v940, %v940
    %v1153 = vmul.f32 %v945, %v945
    %v1154 = vmul.f32 %v950, %v950
    %v1155 = vmul.f32 %v1143, %v1143
    %v1156 = vmul.f32 %v1144, %v1144
    %v1157 = vmul.f32 %v1145, %v1145
    %v1158 = vmul.f32 %v1146, %v1146
    %v1159 = vmul.f32 %v1147, %v1147
    %v1160 = vmul.f32 %v1148, %v1148
    %v1161 = vadd.f32 %v1149, %v1155
    %v1162 = vadd.f32 %v1150, %v1156
    %v1163 = vadd.f32 %v1151, %v1157
    %v1164 = vadd.f32 %v1152, %v1158
    %v1165 = vadd.f32 %v1153, %v1159
    %v1166 = vadd.f32 %v1154, %v1160
    %v1167 = vrsqrt.pop %v1161
    %v1168 = vmul.f32 %v1161, %v1167
    %vm1169 = vcmp.eq.f32.partialorder %v1161, inf
    %v1170 = vsel %vm1169, %v1161, %v1168
    %vm1171 = vcmp.eq.f32.partialorder %v1161, 0.0
    %v1172 = vand.u32 %v1161, 2147483648
    %v1173 = vsel %vm1171, %v1172, %v1170
    %v1174 = vrsqrt.pop %v1162
    %v1175 = vmul.f32 %v1162, %v1174
    %vm1176 = vcmp.eq.f32.partialorder %v1162, inf
    %v1177 = vsel %vm1176, %v1162, %v1175
    %vm1178 = vcmp.eq.f32.partialorder %v1162, 0.0
    %v1179 = vand.u32 %v1162, 2147483648
    %v1180 = vsel %vm1178, %v1179, %v1177
    %v1181 = vrsqrt.pop %v1163
    %v1182 = vmul.f32 %v1163, %v1181
    %vm1183 = vcmp.eq.f32.partialorder %v1163, inf
    %v1184 = vsel %vm1183, %v1163, %v1182
    %vm1185 = vcmp.eq.f32.partialorder %v1163, 0.0
    %v1186 = vand.u32 %v1163, 2147483648
    %v1187 = vsel %vm1185, %v1186, %v1184
    %v1188 = vrsqrt.pop %v1164
    %v1189 = vmul.f32 %v1164, %v1188
    %vm1190 = vcmp.eq.f32.partialorder %v1164, inf
    %v1191 = vsel %vm1190, %v1164, %v1189
    %vm1192 = vcmp.eq.f32.partialorder %v1164, 0.0
    %v1193 = vand.u32 %v1164, 2147483648
    %v1194 = vsel %vm1192, %v1193, %v1191
    %v1195 = vrsqrt.pop %v1165
    %v1196 = vmul.f32 %v1165, %v1195
    %vm1197 = vcmp.eq.f32.partialorder %v1165, inf
    %v1198 = vsel %vm1197, %v1165, %v1196
    %vm1199 = vcmp.eq.f32.partialorder %v1165, 0.0
    %v1200 = vand.u32 %v1165, 2147483648
    %v1201 = vsel %vm1199, %v1200, %v1198
    %v1202 = vrsqrt.pop %v1166
    %v1203 = vmul.f32 %v1166, %v1202
    %vm1204 = vcmp.eq.f32.partialorder %v1166, inf
    %v1205 = vsel %vm1204, %v1166, %v1203
    %vm1206 = vcmp.eq.f32.partialorder %v1166, 0.0
    %v1207 = vand.u32 %v1166, 2147483648
    %v1208 = vsel %vm1206, %v1207, %v1205
    %v1209 = vmul.f32 %v1173, 0.35355338
    %v1210 = vmul.f32 %v1180, 0.35355338
    %v1211 = vmul.f32 %v1187, 0.35355338
    %v1212 = vmul.f32 %v1194, 0.35355338
    %v1213 = vmul.f32 %v1201, 0.35355338
    %v1214 = vmul.f32 %v1208, 0.35355338
    %v1215 = vadd.f32 %v1209, %v260
    %v1216 = vadd.f32 %v1210, %v261
    %v1217 = vadd.f32 %v1211, %v262
    %v1218 = vadd.f32 %v1212, %v263
    %v1219 = vadd.f32 %v1213, %v264
    %v1220 = vadd.f32 %v1214, %v265
    %vm1221 = vcmask 392192
    %v1222 = vsel %vm1221, %v1215, -inf
    %1223 = vmax.xlane.f32.xlu0 %v1222
    %v1224 = vpop.xlane.xlu0 %1223
    %v1225 = vsel %vm1221, %v1216, -inf
    %1226 = vmax.xlane.f32.xlu0 %v1225
    %v1227 = vpop.xlane.xlu0 %1226
    %v1228 = vsel %vm1221, %v1217, -inf
    %1229 = vmax.xlane.f32.xlu0 %v1228
    %v1230 = vpop.xlane.xlu0 %1229
    %v1231 = vsel %vm1221, %v1218, -inf
    %1232 = vmax.xlane.f32.xlu0 %v1231
    %v1233 = vpop.xlane.xlu0 %1232
    %v1234 = vsel %vm1221, %v1219, -inf
    %1235 = vmax.xlane.f32.xlu0 %v1234
    %v1236 = vpop.xlane.xlu0 %1235
    %v1237 = vsel %vm1221, %v1220, -inf
    %1238 = vmax.xlane.f32.xlu0 %v1237
    %v1239 = vpop.xlane.xlu0 %1238
    %v1240 = vsub.f32 %v1215, %v1224
    %v1241 = vsub.f32 %v1216, %v1227
    %v1242 = vsub.f32 %v1217, %v1230
    %v1243 = vsub.f32 %v1218, %v1233
    %v1244 = vsub.f32 %v1219, %v1236
    %v1245 = vsub.f32 %v1220, %v1239
    %v1246 = vmul.f32 %v1240, 1.442695
    %v1247 = vpow.pop %v1246
    %v1248 = vmul.f32 %v1241, 1.442695
    %v1249 = vpow.pop %v1248
    %v1250 = vmul.f32 %v1242, 1.442695
    %v1251 = vpow.pop %v1250
    %v1252 = vmul.f32 %v1243, 1.442695
    %v1253 = vpow.pop %v1252
    %v1254 = vmul.f32 %v1244, 1.442695
    %v1255 = vpow.pop %v1254
    %v1256 = vmul.f32 %v1245, 1.442695
    %v1257 = vpow.pop %v1256
    %v1258 = vsel %vm1221, %v1247, 0.0
    %1259 = vadd.xlane.f32.xlu0 %v1258
    %v1260 = vpop.xlane.xlu0 %1259
    %v1261 = vsel %vm1221, %v1249, 0.0
    %1262 = vadd.xlane.f32.xlu0 %v1261
    %v1263 = vpop.xlane.xlu0 %1262
    %v1264 = vsel %vm1221, %v1251, 0.0
    %1265 = vadd.xlane.f32.xlu0 %v1264
    %v1266 = vpop.xlane.xlu0 %1265
    %v1267 = vsel %vm1221, %v1253, 0.0
    %1268 = vadd.xlane.f32.xlu0 %v1267
    %v1269 = vpop.xlane.xlu0 %1268
    %v1270 = vsel %vm1221, %v1255, 0.0
    %1271 = vadd.xlane.f32.xlu0 %v1270
    %v1272 = vpop.xlane.xlu0 %1271
    %v1273 = vsel %vm1221, %v1257, 0.0
    %1274 = vadd.xlane.f32.xlu0 %v1273
    %v1275 = vpop.xlane.xlu0 %1274
    %v1276 = vrcp.pop %v1260
    %v1277 = vrcp.pop %v1263
    %v1278 = vrcp.pop %v1266
    %v1279 = vrcp.pop %v1269
    %v1280 = vrcp.pop %v1272
    %v1281 = vrcp.pop %v1275
    %v1282 = vmul.f32 %v1247, %v1276
    %v1283 = vmul.f32 %v1249, %v1277
    %v1284 = vmul.f32 %v1251, %v1278
    %v1285 = vmul.f32 %v1253, %v1279
    %v1286 = vmul.f32 %v1255, %v1280
    %v1287 = vmul.f32 %v1257, %v1281
    %1294 = vrot.lane.b32.xlu0 %v380, 64
    %v1295 = vpop.permute.xlu0 %1294
    %1296 = vrot.lane.b32.xlu0 %v386, 64
    %v1297 = vpop.permute.xlu0 %1296
    %1298 = vrot.lane.b32.xlu0 %v392, 64
    %v1299 = vpop.permute.xlu0 %1298
    %1300 = vrot.lane.b32.xlu0 %v398, 64
    %v1301 = vpop.permute.xlu0 %1300
    %1302 = vrot.lane.b32.xlu0 %v404, 64
    %v1303 = vpop.permute.xlu0 %1302
    %1304 = vrot.lane.b32.xlu0 %v410, 64
    %v1305 = vpop.permute.xlu0 %1304
    %v1313 = vsel %vm1221, %v1282, 0
    %v1316 = vsel %vm1221, %v1283, 0
    %v1319 = vsel %vm1221, %v1284, 0
    %v1322 = vsel %vm1221, %v1285, 0
    %v1325 = vsel %vm1221, %v1286, 0
    %v1328 = vsel %vm1221, %v1287, 0
    %1330 = vmatprep.subr.mxu0 0.0
    %1331 = vmatpush1.msra.mxu0 0.0
    %1332 = vmatprep.subr.mxu0 0.0
    %1333 = vmatpush1.msra.mxu0 0.0
    %1334 = vmatprep.subr.mxu0 0.0
    %1335 = vmatpush1.msra.mxu0 0.0
    %1336 = vmatprep.subr.mxu0 0.0
    %1337 = vmatpush1.msra.mxu0 0.0
    %1338 = vmatprep.subr.mxu0 0.0
    %1339 = vmatpush1.msra.mxu0 0.0
    %1340 = vmatprep.subr.mxu0 0.0
    %1341 = vmatpush1.msra.mxu0 0.0
    %1342 = vmatprep.subr.mxu0 0.0
    %1343 = vmatpush1.msra.mxu0 0.0
    %1344 = vmatprep.subr.mxu0 0.0
    %1345 = vmatpush1.msra.mxu0 0.0
    %1346 = vmatprep.subr.mxu0 0.0
    %1347 = vmatpush1.msra.mxu0 0.0
    %1348 = vmatprep.subr.mxu0 0.0
    %1349 = vmatpush1.msra.mxu0 0.0
    %1350 = vmatprep.subr.mxu0 0.0
    %1351 = vmatpush1.msra.mxu0 %v1305
    %1352 = vmatprep.subr.mxu0 0.0
    %1353 = vmatpush1.msra.mxu0 %v1303
    %1354 = vmatprep.subr.mxu0 0.0
    %1355 = vmatpush1.msra.mxu0 %v1301
    %1356 = vmatprep.subr.mxu0 0.0
    %1357 = vmatpush1.msra.mxu0 %v1299
    %1358 = vmatprep.subr.mxu0 0.0
    %1359 = vmatpush1.msra.mxu0 %v1297
    %1360 = vmatprep.subr.mxu0 0.0
    %1361 = vmatpush1.msra.mxu0 %v1295
    %1362 = vmatprep.subr.mxu0 0.0
    %1363 = vmatpush2.msra.mxu0 0.0
    %1364 = vmatprep.subr.mxu0 0.0
    %1365 = vmatpush2.msra.mxu0 0.0
    %1366 = vmatprep.subr.mxu0 0.0
    %1367 = vmatpush2.msra.mxu0 0.0
    %1368 = vmatprep.subr.mxu0 0.0
    %1369 = vmatpush2.msra.mxu0 0.0
    %1370 = vmatprep.subr.mxu0 0.0
    %1371 = vmatpush2.msra.mxu0 0.0
    %1372 = vmatprep.subr.mxu0 0.0
    %1373 = vmatpush2.msra.mxu0 0.0
    %1374 = vmatprep.subr.mxu0 0.0
    %1375 = vmatpush2.msra.mxu0 0.0
    %1376 = vmatprep.subr.mxu0 0.0
    %1377 = vmatpush2.msra.mxu0 0.0
    %1378 = vmatprep.subr.mxu0 0.0
    %1379 = vmatpush2.msra.mxu0 0.0
    %1380 = vmatprep.subr.mxu0 0.0
    %1381 = vmatpush2.msra.mxu0 0.0
    %1382 = vmatprep.subr.mxu0 0.0
    %1383 = vmatpush2.msra.mxu0 0.0
    %1384 = vmatprep.subr.mxu0 0.0
    %1385 = vmatpush2.msra.mxu0 0.0
    %1386 = vmatprep.subr.mxu0 0.0
    %1387 = vmatpush2.msra.mxu0 0.0
    %1388 = vmatprep.subr.mxu0 0.0
    %1389 = vmatpush2.msra.mxu0 0.0
    %1390 = vmatprep.subr.mxu0 0.0
    %1391 = vmatpush2.msra.mxu0 0.0
    %1392 = vmatprep.subr.mxu0 0.0
    %1393 = vmatpush2.msra.mxu0 0.0
    %1394 = vmatprep.mubr.f32.mxu0 0.0
    %1395 = vmatmul.mubr.f32.gmra.mxu0 %v1313
    %v1396 = vpop.f32.mrf.mxu0
    %v1397 = vadd.f32 0.0, %v1396
    %v1398 = vpop.f32.mrf.mxu0
    %1399 = vmatprep.mubr.f32.mxu0 0.0
    %1400 = vmatmul.mubr.f32.gmra.mxu0 %v1316
    %v1401 = vpop.f32.mrf.mxu0
    %v1402 = vadd.f32 0.0, %v1401
    %v1403 = vpop.f32.mrf.mxu0
    %1404 = vmatprep.mubr.f32.mxu0 0.0
    %1405 = vmatmul.mubr.f32.gmra.mxu0 %v1319
    %v1406 = vpop.f32.mrf.mxu0
    %v1407 = vadd.f32 0.0, %v1406
    %v1408 = vpop.f32.mrf.mxu0
    %1409 = vmatprep.mubr.f32.mxu0 0.0
    %1410 = vmatmul.mubr.f32.gmra.mxu0 %v1322
    %v1411 = vpop.f32.mrf.mxu0
    %v1412 = vadd.f32 0.0, %v1411
    %v1413 = vpop.f32.mrf.mxu0
    %1414 = vmatprep.mubr.f32.mxu0 0.0
    %1415 = vmatmul.mubr.f32.gmra.mxu0 %v1325
    %v1416 = vpop.f32.mrf.mxu0
    %v1417 = vadd.f32 0.0, %v1416
    %v1418 = vpop.f32.mrf.mxu0
    %1419 = vmatprep.mubr.f32.mxu0 0.0
    %1420 = vmatmul.mubr.f32.gmra.mxu0 %v1328
    %v1421 = vpop.f32.mrf.mxu0
    %v1422 = vadd.f32 0.0, %v1421
    %v1423 = vpop.f32.mrf.mxu0
    %1424 = vdwg.mxu0
    %1425 = vst.msk [vmem:[#allocation2] sm:$0xff] %vm684, %v1397
    %1426 = vst.msk [vmem:[#allocation2 + $0x8] sm:$0xff] %vm684, %v1402
    %1427 = vst.msk [vmem:[#allocation2 + $0x10] sm:$0xff] %vm684, %v1407
    %1428 = vst.msk [vmem:[#allocation2 + $0x18] sm:$0xff] %vm684, %v1412
    %1429 = vst.msk [vmem:[#allocation2 + $0x20] sm:$0xff] %vm684, %v1417
    %1430 = vst.msk [vmem:[#allocation2 + $0x28] sm:$0xff] %vm684, %v1422
    %1437 = vrot.lane.b32.xlu0 %v382, 96
    %v1438 = vpop.permute.xlu0 %1437
    %1439 = vrot.lane.b32.xlu0 %v388, 96
    %v1440 = vpop.permute.xlu0 %1439
    %1441 = vrot.lane.b32.xlu0 %v394, 96
    %v1442 = vpop.permute.xlu0 %1441
    %1443 = vrot.lane.b32.xlu0 %v400, 96
    %v1444 = vpop.permute.xlu0 %1443
    %1445 = vrot.lane.b32.xlu0 %v406, 96
    %v1446 = vpop.permute.xlu0 %1445
    %1447 = vrot.lane.b32.xlu0 %v412, 96
    %v1448 = vpop.permute.xlu0 %1447
    %1455 = vmatprep.subr.mxu0 0.0
    %1456 = vmatpush1.msra.mxu0 0.0
    %1457 = vmatprep.subr.mxu0 0.0
    %1458 = vmatpush1.msra.mxu0 0.0
    %1459 = vmatprep.subr.mxu0 0.0
    %1460 = vmatpush1.msra.mxu0 0.0
    %1461 = vmatprep.subr.mxu0 0.0
    %1462 = vmatpush1.msra.mxu0 0.0
    %1463 = vmatprep.subr.mxu0 0.0
    %1464 = vmatpush1.msra.mxu0 0.0
    %1465 = vmatprep.subr.mxu0 0.0
    %1466 = vmatpush1.msra.mxu0 0.0
    %1467 = vmatprep.subr.mxu0 0.0
    %1468 = vmatpush1.msra.mxu0 0.0
    %1469 = vmatprep.subr.mxu0 0.0
    %1470 = vmatpush1.msra.mxu0 0.0
    %1471 = vmatprep.subr.mxu0 0.0
    %1472 = vmatpush1.msra.mxu0 0.0
    %1473 = vmatprep.subr.mxu0 0.0
    %1474 = vmatpush1.msra.mxu0 0.0
    %1475 = vmatprep.subr.mxu0 0.0
    %1476 = vmatpush1.msra.mxu0 %v1448
    %1477 = vmatprep.subr.mxu0 0.0
    %1478 = vmatpush1.msra.mxu0 %v1446
    %1479 = vmatprep.subr.mxu0 0.0
    %1480 = vmatpush1.msra.mxu0 %v1444
    %1481 = vmatprep.subr.mxu0 0.0
    %1482 = vmatpush1.msra.mxu0 %v1442
    %1483 = vmatprep.subr.mxu0 0.0
    %1484 = vmatpush1.msra.mxu0 %v1440
    %1485 = vmatprep.subr.mxu0 0.0
    %1486 = vmatpush1.msra.mxu0 %v1438
    %1487 = vmatprep.subr.mxu0 0.0
    %1488 = vmatpush2.msra.mxu0 0.0
    %1489 = vmatprep.subr.mxu0 0.0
    %1490 = vmatpush2.msra.mxu0 0.0
    %1491 = vmatprep.subr.mxu0 0.0
    %1492 = vmatpush2.msra.mxu0 0.0
    %1493 = vmatprep.subr.mxu0 0.0
    %1494 = vmatpush2.msra.mxu0 0.0
    %1495 = vmatprep.subr.mxu0 0.0
    %1496 = vmatpush2.msra.mxu0 0.0
    %1497 = vmatprep.subr.mxu0 0.0
    %1498 = vmatpush2.msra.mxu0 0.0
    %1499 = vmatprep.subr.mxu0 0.0
    %1500 = vmatpush2.msra.mxu0 0.0
    %1501 = vmatprep.subr.mxu0 0.0
    %1502 = vmatpush2.msra.mxu0 0.0
    %1503 = vmatprep.subr.mxu0 0.0
    %1504 = vmatpush2.msra.mxu0 0.0
    %1505 = vmatprep.subr.mxu0 0.0
    %1506 = vmatpush2.msra.mxu0 0.0
    %1507 = vmatprep.subr.mxu0 0.0
    %1508 = vmatpush2.msra.mxu0 0.0
    %1509 = vmatprep.subr.mxu0 0.0
    %1510 = vmatpush2.msra.mxu0 0.0
    %1511 = vmatprep.subr.mxu0 0.0
    %1512 = vmatpush2.msra.mxu0 0.0
    %1513 = vmatprep.subr.mxu0 0.0
    %1514 = vmatpush2.msra.mxu0 0.0
    %1515 = vmatprep.subr.mxu0 0.0
    %1516 = vmatpush2.msra.mxu0 0.0
    %1517 = vmatprep.subr.mxu0 0.0
    %1518 = vmatpush2.msra.mxu0 0.0
    %1519 = vmatprep.mubr.f32.mxu0 0.0
    %1520 = vmatmul.mubr.f32.gmra.mxu0 %v1313
    %v1521 = vpop.f32.mrf.mxu0
    %v1522 = vadd.f32 0.0, %v1521
    %v1523 = vpop.f32.mrf.mxu0
    %1524 = vmatprep.mubr.f32.mxu0 0.0
    %1525 = vmatmul.mubr.f32.gmra.mxu0 %v1316
    %v1526 = vpop.f32.mrf.mxu0
    %v1527 = vadd.f32 0.0, %v1526
    %v1528 = vpop.f32.mrf.mxu0
    %1529 = vmatprep.mubr.f32.mxu0 0.0
    %1530 = vmatmul.mubr.f32.gmra.mxu0 %v1319
    %v1531 = vpop.f32.mrf.mxu0
    %v1532 = vadd.f32 0.0, %v1531
    %v1533 = vpop.f32.mrf.mxu0
    %1534 = vmatprep.mubr.f32.mxu0 0.0
    %1535 = vmatmul.mubr.f32.gmra.mxu0 %v1322
    %v1536 = vpop.f32.mrf.mxu0
    %v1537 = vadd.f32 0.0, %v1536
    %v1538 = vpop.f32.mrf.mxu0
    %1539 = vmatprep.mubr.f32.mxu0 0.0
    %1540 = vmatmul.mubr.f32.gmra.mxu0 %v1325
    %v1541 = vpop.f32.mrf.mxu0
    %v1542 = vadd.f32 0.0, %v1541
    %v1543 = vpop.f32.mrf.mxu0
    %1544 = vmatprep.mubr.f32.mxu0 0.0
    %1545 = vmatmul.mubr.f32.gmra.mxu0 %v1328
    %v1546 = vpop.f32.mrf.mxu0
    %v1547 = vadd.f32 0.0, %v1546
    %v1548 = vpop.f32.mrf.mxu0
    %1549 = vdwg.mxu0
    %1556 = vrot.lane.b32.xlu0 %v1522, 32
    %v1557 = vpop.permute.xlu0 %1556
    %1558 = vrot.lane.b32.xlu0 %v1527, 32
    %v1559 = vpop.permute.xlu0 %1558
    %1560 = vrot.lane.b32.xlu0 %v1532, 32
    %v1561 = vpop.permute.xlu0 %1560
    %1562 = vrot.lane.b32.xlu0 %v1537, 32
    %v1563 = vpop.permute.xlu0 %1562
    %1564 = vrot.lane.b32.xlu0 %v1542, 32
    %v1565 = vpop.permute.xlu0 %1564
    %1566 = vrot.lane.b32.xlu0 %v1547, 32
    %v1567 = vpop.permute.xlu0 %1566
    %vm1574 = vcmask 326912
    %1575 = vst.msk [vmem:[#allocation2] sm:$0xff] %vm1574, %v1557
    %1576 = vst.msk [vmem:[#allocation2 + $0x8] sm:$0xff] %vm1574, %v1559
    %1577 = vst.msk [vmem:[#allocation2 + $0x10] sm:$0xff] %vm1574, %v1561
    %1578 = vst.msk [vmem:[#allocation2 + $0x18] sm:$0xff] %vm1574, %v1563
    %1579 = vst.msk [vmem:[#allocation2 + $0x20] sm:$0xff] %vm1574, %v1565
    %1580 = vst.msk [vmem:[#allocation2 + $0x28] sm:$0xff] %vm1574, %v1567
    %1581 = vrot.lane.b32.xlu0 %v540, 120
    %v1582 = vpop.permute.xlu0 %1581
    %1583 = vrot.lane.b32.xlu0 %v541, 120
    %v1584 = vpop.permute.xlu0 %1583
    %1585 = vrot.lane.b32.xlu0 %v542, 120
    %v1586 = vpop.permute.xlu0 %1585
    %1587 = vrot.lane.b32.xlu0 %v543, 120
    %v1588 = vpop.permute.xlu0 %1587
    %1589 = vrot.lane.b32.xlu0 %v544, 120
    %v1590 = vpop.permute.xlu0 %1589
    %1591 = vrot.lane.b32.xlu0 %v545, 120
    %v1592 = vpop.permute.xlu0 %1591
    %1593 = vrot.lane.b32.xlu0 %v660, 88
    %v1594 = vpop.permute.xlu0 %1593
    %1595 = vrot.lane.b32.xlu0 %v661, 88
    %v1596 = vpop.permute.xlu0 %1595
    %1597 = vrot.lane.b32.xlu0 %v662, 88
    %v1598 = vpop.permute.xlu0 %1597
    %1599 = vrot.lane.b32.xlu0 %v663, 88
    %v1600 = vpop.permute.xlu0 %1599
    %1601 = vrot.lane.b32.xlu0 %v664, 88
    %v1602 = vpop.permute.xlu0 %1601
    %1603 = vrot.lane.b32.xlu0 %v665, 88
    %v1604 = vpop.permute.xlu0 %1603
    %v1605 = vsel %vm684, %v1582, 0
    %v1607 = vsel %vm684, %v1584, 0
    %v1609 = vsel %vm684, %v1586, 0
    %v1611 = vsel %vm684, %v1588, 0
    %v1613 = vsel %vm684, %v1590, 0
    %v1615 = vsel %vm684, %v1592, 0
    %v1617 = vsel %vm684, %v1594, 0
    %v1619 = vsel %vm684, %v1596, 0
    %v1621 = vsel %vm684, %v1598, 0
    %v1623 = vsel %vm684, %v1600, 0
    %v1625 = vsel %vm684, %v1602, 0
    %v1627 = vsel %vm684, %v1604, 0
    %1629 = vmatprep.subr.mxu0 0.0
    %1630 = vmatpush1.xpose.msra.mxu0 0.0
    %1631 = vmatprep.subr.mxu0 0.0
    %1632 = vmatpush1.xpose.msra.mxu0 0.0
    %1633 = vmatprep.subr.mxu0 0.0
    %1634 = vmatpush1.xpose.msra.mxu0 0.0
    %1635 = vmatprep.subr.mxu0 0.0
    %1636 = vmatpush1.xpose.msra.mxu0 0.0
    %1637 = vmatprep.subr.mxu0 0.0
    %1638 = vmatpush1.xpose.msra.mxu0 0.0
    %1639 = vmatprep.subr.mxu0 0.0
    %1640 = vmatpush1.xpose.msra.mxu0 0.0
    %1641 = vmatprep.subr.mxu0 0.0
    %1642 = vmatpush1.xpose.msra.mxu0 0.0
    %1643 = vmatprep.subr.mxu0 0.0
    %1644 = vmatpush1.xpose.msra.mxu0 0.0
    %1645 = vmatprep.subr.mxu0 0.0
    %1646 = vmatpush1.xpose.msra.mxu0 0.0
    %1647 = vmatprep.subr.mxu0 0.0
    %1648 = vmatpush1.xpose.msra.mxu0 0.0
    %1649 = vmatprep.subr.mxu0 0.0
    %1650 = vmatpush1.xpose.msra.mxu0 %v1627
    %1651 = vmatprep.subr.mxu0 0.0
    %1652 = vmatpush1.xpose.msra.mxu0 %v1625
    %1653 = vmatprep.subr.mxu0 0.0
    %1654 = vmatpush1.xpose.msra.mxu0 %v1623
    %1655 = vmatprep.subr.mxu0 0.0
    %1656 = vmatpush1.xpose.msra.mxu0 %v1621
    %1657 = vmatprep.subr.mxu0 0.0
    %1658 = vmatpush1.xpose.msra.mxu0 %v1619
    %1659 = vmatprep.subr.mxu0 0.0
    %1660 = vmatpush1.xpose.msra.mxu0 %v1617
    %1661 = vmatprep.subr.mxu0 0.0
    %1662 = vmatpush2.xpose.msra.mxu0 0.0
    %1663 = vmatprep.subr.mxu0 0.0
    %1664 = vmatpush2.xpose.msra.mxu0 0.0
    %1665 = vmatprep.subr.mxu0 0.0
    %1666 = vmatpush2.xpose.msra.mxu0 0.0
    %1667 = vmatprep.subr.mxu0 0.0
    %1668 = vmatpush2.xpose.msra.mxu0 0.0
    %1669 = vmatprep.subr.mxu0 0.0
    %1670 = vmatpush2.xpose.msra.mxu0 0.0
    %1671 = vmatprep.subr.mxu0 0.0
    %1672 = vmatpush2.xpose.msra.mxu0 0.0
    %1673 = vmatprep.subr.mxu0 0.0
    %1674 = vmatpush2.xpose.msra.mxu0 0.0
    %1675 = vmatprep.subr.mxu0 0.0
    %1676 = vmatpush2.xpose.msra.mxu0 0.0
    %1677 = vmatprep.subr.mxu0 0.0
    %1678 = vmatpush2.xpose.msra.mxu0 0.0
    %1679 = vmatprep.subr.mxu0 0.0
    %1680 = vmatpush2.xpose.msra.mxu0 0.0
    %1681 = vmatprep.subr.mxu0 0.0
    %1682 = vmatpush2.xpose.msra.mxu0 0.0
    %1683 = vmatprep.subr.mxu0 0.0
    %1684 = vmatpush2.xpose.msra.mxu0 0.0
    %1685 = vmatprep.subr.mxu0 0.0
    %1686 = vmatpush2.xpose.msra.mxu0 0.0
    %1687 = vmatprep.subr.mxu0 0.0
    %1688 = vmatpush2.xpose.msra.mxu0 0.0
    %1689 = vmatprep.subr.mxu0 0.0
    %1690 = vmatpush2.xpose.msra.mxu0 0.0
    %1691 = vmatprep.subr.mxu0 0.0
    %1692 = vmatpush2.xpose.msra.mxu0 0.0
    %1693 = vmatprep.mubr.f32.mxu0 0.0
    %1694 = vmatmul.mubr.f32.gmra.mxu0 %v1605
    %v1695 = vpop.f32.mrf.mxu0
    %v1696 = vadd.f32 0.0, %v1695
    %v1697 = vpop.f32.mrf.mxu0
    %1698 = vmatprep.mubr.f32.mxu0 0.0
    %1699 = vmatmul.mubr.f32.gmra.mxu0 %v1607
    %v1700 = vpop.f32.mrf.mxu0
    %v1701 = vadd.f32 0.0, %v1700
    %v1702 = vpop.f32.mrf.mxu0
    %1703 = vmatprep.mubr.f32.mxu0 0.0
    %1704 = vmatmul.mubr.f32.gmra.mxu0 %v1609
    %v1705 = vpop.f32.mrf.mxu0
    %v1706 = vadd.f32 0.0, %v1705
    %v1707 = vpop.f32.mrf.mxu0
    %1708 = vmatprep.mubr.f32.mxu0 0.0
    %1709 = vmatmul.mubr.f32.gmra.mxu0 %v1611
    %v1710 = vpop.f32.mrf.mxu0
    %v1711 = vadd.f32 0.0, %v1710
    %v1712 = vpop.f32.mrf.mxu0
    %1713 = vmatprep.mubr.f32.mxu0 0.0
    %1714 = vmatmul.mubr.f32.gmra.mxu0 %v1613
    %v1715 = vpop.f32.mrf.mxu0
    %v1716 = vadd.f32 0.0, %v1715
    %v1717 = vpop.f32.mrf.mxu0
    %1718 = vmatprep.mubr.f32.mxu0 0.0
    %1719 = vmatmul.mubr.f32.gmra.mxu0 %v1615
    %v1720 = vpop.f32.mrf.mxu0
    %v1721 = vadd.f32 0.0, %v1720
    %v1722 = vpop.f32.mrf.mxu0
    %1723 = vdwg.mxu0
    %1724 = vrot.lane.b32.xlu0 %v474, 120
    %v1725 = vpop.permute.xlu0 %1724
    %1726 = vrot.lane.b32.xlu0 %v475, 120
    %v1727 = vpop.permute.xlu0 %1726
    %1728 = vrot.lane.b32.xlu0 %v476, 120
    %v1729 = vpop.permute.xlu0 %1728
    %1730 = vrot.lane.b32.xlu0 %v477, 120
    %v1731 = vpop.permute.xlu0 %1730
    %1732 = vrot.lane.b32.xlu0 %v478, 120
    %v1733 = vpop.permute.xlu0 %1732
    %1734 = vrot.lane.b32.xlu0 %v479, 120
    %v1735 = vpop.permute.xlu0 %1734
    %1736 = vrot.lane.b32.xlu0 %v600, 88
    %v1737 = vpop.permute.xlu0 %1736
    %1738 = vrot.lane.b32.xlu0 %v601, 88
    %v1739 = vpop.permute.xlu0 %1738
    %1740 = vrot.lane.b32.xlu0 %v602, 88
    %v1741 = vpop.permute.xlu0 %1740
    %1742 = vrot.lane.b32.xlu0 %v603, 88
    %v1743 = vpop.permute.xlu0 %1742
    %1744 = vrot.lane.b32.xlu0 %v604, 88
    %v1745 = vpop.permute.xlu0 %1744
    %1746 = vrot.lane.b32.xlu0 %v605, 88
    %v1747 = vpop.permute.xlu0 %1746
    %v1748 = vsel %vm684, %v1725, 0
    %v1750 = vsel %vm684, %v1727, 0
    %v1752 = vsel %vm684, %v1729, 0
    %v1754 = vsel %vm684, %v1731, 0
    %v1756 = vsel %vm684, %v1733, 0
    %v1758 = vsel %vm684, %v1735, 0
    %v1760 = vsel %vm684, %v1737, 0
    %v1762 = vsel %vm684, %v1739, 0
    %v1764 = vsel %vm684, %v1741, 0
    %v1766 = vsel %vm684, %v1743, 0
    %v1768 = vsel %vm684, %v1745, 0
    %v1770 = vsel %vm684, %v1747, 0
    %1772 = vmatprep.subr.mxu0 0.0
    %1773 = vmatpush1.xpose.msra.mxu0 0.0
    %1774 = vmatprep.subr.mxu0 0.0
    %1775 = vmatpush1.xpose.msra.mxu0 0.0
    %1776 = vmatprep.subr.mxu0 0.0
    %1777 = vmatpush1.xpose.msra.mxu0 0.0
    %1778 = vmatprep.subr.mxu0 0.0
    %1779 = vmatpush1.xpose.msra.mxu0 0.0
    %1780 = vmatprep.subr.mxu0 0.0
    %1781 = vmatpush1.xpose.msra.mxu0 0.0
    %1782 = vmatprep.subr.mxu0 0.0
    %1783 = vmatpush1.xpose.msra.mxu0 0.0
    %1784 = vmatprep.subr.mxu0 0.0
    %1785 = vmatpush1.xpose.msra.mxu0 0.0
    %1786 = vmatprep.subr.mxu0 0.0
    %1787 = vmatpush1.xpose.msra.mxu0 0.0
    %1788 = vmatprep.subr.mxu0 0.0
    %1789 = vmatpush1.xpose.msra.mxu0 0.0
    %1790 = vmatprep.subr.mxu0 0.0
    %1791 = vmatpush1.xpose.msra.mxu0 0.0
    %1792 = vmatprep.subr.mxu0 0.0
    %1793 = vmatpush1.xpose.msra.mxu0 %v1770
    %1794 = vmatprep.subr.mxu0 0.0
    %1795 = vmatpush1.xpose.msra.mxu0 %v1768
    %1796 = vmatprep.subr.mxu0 0.0
    %1797 = vmatpush1.xpose.msra.mxu0 %v1766
    %1798 = vmatprep.subr.mxu0 0.0
    %1799 = vmatpush1.xpose.msra.mxu0 %v1764
    %1800 = vmatprep.subr.mxu0 0.0
    %1801 = vmatpush1.xpose.msra.mxu0 %v1762
    %1802 = vmatprep.subr.mxu0 0.0
    %1803 = vmatpush1.xpose.msra.mxu0 %v1760
    %1804 = vmatprep.subr.mxu0 0.0
    %1805 = vmatpush2.xpose.msra.mxu0 0.0
    %1806 = vmatprep.subr.mxu0 0.0
    %1807 = vmatpush2.xpose.msra.mxu0 0.0
    %1808 = vmatprep.subr.mxu0 0.0
    %1809 = vmatpush2.xpose.msra.mxu0 0.0
    %1810 = vmatprep.subr.mxu0 0.0
    %1811 = vmatpush2.xpose.msra.mxu0 0.0
    %1812 = vmatprep.subr.mxu0 0.0
    %1813 = vmatpush2.xpose.msra.mxu0 0.0
    %1814 = vmatprep.subr.mxu0 0.0
    %1815 = vmatpush2.xpose.msra.mxu0 0.0
    %1816 = vmatprep.subr.mxu0 0.0
    %1817 = vmatpush2.xpose.msra.mxu0 0.0
    %1818 = vmatprep.subr.mxu0 0.0
    %1819 = vmatpush2.xpose.msra.mxu0 0.0
    %1820 = vmatprep.subr.mxu0 0.0
    %1821 = vmatpush2.xpose.msra.mxu0 0.0
    %1822 = vmatprep.subr.mxu0 0.0
    %1823 = vmatpush2.xpose.msra.mxu0 0.0
    %1824 = vmatprep.subr.mxu0 0.0
    %1825 = vmatpush2.xpose.msra.mxu0 0.0
    %1826 = vmatprep.subr.mxu0 0.0
    %1827 = vmatpush2.xpose.msra.mxu0 0.0
    %1828 = vmatprep.subr.mxu0 0.0
    %1829 = vmatpush2.xpose.msra.mxu0 0.0
    %1830 = vmatprep.subr.mxu0 0.0
    %1831 = vmatpush2.xpose.msra.mxu0 0.0
    %1832 = vmatprep.subr.mxu0 0.0
    %1833 = vmatpush2.xpose.msra.mxu0 0.0
    %1834 = vmatprep.subr.mxu0 0.0
    %1835 = vmatpush2.xpose.msra.mxu0 0.0
    %1836 = vmatprep.mubr.f32.mxu0 0.0
    %1837 = vmatmul.mubr.f32.gmra.mxu0 %v1748
    %v1838 = vpop.f32.mrf.mxu0
    %v1839 = vadd.f32 %v1696, %v1838
    %v1840 = vpop.f32.mrf.mxu0
    %1841 = vmatprep.mubr.f32.mxu0 0.0
    %1842 = vmatmul.mubr.f32.gmra.mxu0 %v1750
    %v1843 = vpop.f32.mrf.mxu0
    %v1844 = vadd.f32 %v1701, %v1843
    %v1845 = vpop.f32.mrf.mxu0
    %1846 = vmatprep.mubr.f32.mxu0 0.0
    %1847 = vmatmul.mubr.f32.gmra.mxu0 %v1752
    %v1848 = vpop.f32.mrf.mxu0
    %v1849 = vadd.f32 %v1706, %v1848
    %v1850 = vpop.f32.mrf.mxu0
    %1851 = vmatprep.mubr.f32.mxu0 0.0
    %1852 = vmatmul.mubr.f32.gmra.mxu0 %v1754
    %v1853 = vpop.f32.mrf.mxu0
    %v1854 = vadd.f32 %v1711, %v1853
    %v1855 = vpop.f32.mrf.mxu0
    %1856 = vmatprep.mubr.f32.mxu0 0.0
    %1857 = vmatmul.mubr.f32.gmra.mxu0 %v1756
    %v1858 = vpop.f32.mrf.mxu0
    %v1859 = vadd.f32 %v1716, %v1858
    %v1860 = vpop.f32.mrf.mxu0
    %1861 = vmatprep.mubr.f32.mxu0 0.0
    %1862 = vmatmul.mubr.f32.gmra.mxu0 %v1758
    %v1863 = vpop.f32.mrf.mxu0
    %v1864 = vadd.f32 %v1721, %v1863
    %v1865 = vpop.f32.mrf.mxu0
    %1866 = vdwg.mxu0
    %1867 = vmatprep.subr.mxu0 0.0
    %1868 = vmatpush1.xpose.msra.mxu0 0.0
    %1869 = vmatprep.subr.mxu0 0.0
    %1870 = vmatpush1.xpose.msra.mxu0 0.0
    %1871 = vmatprep.subr.mxu0 0.0
    %1872 = vmatpush1.xpose.msra.mxu0 0.0
    %1873 = vmatprep.subr.mxu0 0.0
    %1874 = vmatpush1.xpose.msra.mxu0 0.0
    %1875 = vmatprep.subr.mxu0 0.0
    %1876 = vmatpush1.xpose.msra.mxu0 0.0
    %1877 = vmatprep.subr.mxu0 0.0
    %1878 = vmatpush1.xpose.msra.mxu0 0.0
    %1879 = vmatprep.subr.mxu0 0.0
    %1880 = vmatpush1.xpose.msra.mxu0 0.0
    %1881 = vmatprep.subr.mxu0 0.0
    %1882 = vmatpush1.xpose.msra.mxu0 0.0
    %1883 = vmatprep.subr.mxu0 0.0
    %1884 = vmatpush1.xpose.msra.mxu0 0.0
    %1885 = vmatprep.subr.mxu0 0.0
    %1886 = vmatpush1.xpose.msra.mxu0 0.0
    %1887 = vmatprep.subr.mxu0 0.0
    %1888 = vmatpush1.xpose.msra.mxu0 %v1770
    %1889 = vmatprep.subr.mxu0 0.0
    %1890 = vmatpush1.xpose.msra.mxu0 %v1768
    %1891 = vmatprep.subr.mxu0 0.0
    %1892 = vmatpush1.xpose.msra.mxu0 %v1766
    %1893 = vmatprep.subr.mxu0 0.0
    %1894 = vmatpush1.xpose.msra.mxu0 %v1764
    %1895 = vmatprep.subr.mxu0 0.0
    %1896 = vmatpush1.xpose.msra.mxu0 %v1762
    %1897 = vmatprep.subr.mxu0 0.0
    %1898 = vmatpush1.xpose.msra.mxu0 %v1760
    %1899 = vmatprep.subr.mxu0 0.0
    %1900 = vmatpush2.xpose.msra.mxu0 0.0
    %1901 = vmatprep.subr.mxu0 0.0
    %1902 = vmatpush2.xpose.msra.mxu0 0.0
    %1903 = vmatprep.subr.mxu0 0.0
    %1904 = vmatpush2.xpose.msra.mxu0 0.0
    %1905 = vmatprep.subr.mxu0 0.0
    %1906 = vmatpush2.xpose.msra.mxu0 0.0
    %1907 = vmatprep.subr.mxu0 0.0
    %1908 = vmatpush2.xpose.msra.mxu0 0.0
    %1909 = vmatprep.subr.mxu0 0.0
    %1910 = vmatpush2.xpose.msra.mxu0 0.0
    %1911 = vmatprep.subr.mxu0 0.0
    %1912 = vmatpush2.xpose.msra.mxu0 0.0
    %1913 = vmatprep.subr.mxu0 0.0
    %1914 = vmatpush2.xpose.msra.mxu0 0.0
    %1915 = vmatprep.subr.mxu0 0.0
    %1916 = vmatpush2.xpose.msra.mxu0 0.0
    %1917 = vmatprep.subr.mxu0 0.0
    %1918 = vmatpush2.xpose.msra.mxu0 0.0
    %1919 = vmatprep.subr.mxu0 0.0
    %1920 = vmatpush2.xpose.msra.mxu0 0.0
    %1921 = vmatprep.subr.mxu0 0.0
    %1922 = vmatpush2.xpose.msra.mxu0 0.0
    %1923 = vmatprep.subr.mxu0 0.0
    %1924 = vmatpush2.xpose.msra.mxu0 0.0
    %1925 = vmatprep.subr.mxu0 0.0
    %1926 = vmatpush2.xpose.msra.mxu0 0.0
    %1927 = vmatprep.subr.mxu0 0.0
    %1928 = vmatpush2.xpose.msra.mxu0 0.0
    %1929 = vmatprep.subr.mxu0 0.0
    %1930 = vmatpush2.xpose.msra.mxu0 0.0
    %1931 = vmatprep.mubr.f32.mxu0 0.0
    %1932 = vmatmul.mubr.f32.gmra.mxu0 %v1605
    %v1933 = vpop.f32.mrf.mxu0
    %v1934 = vadd.f32 0.0, %v1933
    %v1935 = vpop.f32.mrf.mxu0
    %1936 = vmatprep.mubr.f32.mxu0 0.0
    %1937 = vmatmul.mubr.f32.gmra.mxu0 %v1607
    %v1938 = vpop.f32.mrf.mxu0
    %v1939 = vadd.f32 0.0, %v1938
    %v1940 = vpop.f32.mrf.mxu0
    %1941 = vmatprep.mubr.f32.mxu0 0.0
    %1942 = vmatmul.mubr.f32.gmra.mxu0 %v1609
    %v1943 = vpop.f32.mrf.mxu0
    %v1944 = vadd.f32 0.0, %v1943
    %v1945 = vpop.f32.mrf.mxu0
    %1946 = vmatprep.mubr.f32.mxu0 0.0
    %1947 = vmatmul.mubr.f32.gmra.mxu0 %v1611
    %v1948 = vpop.f32.mrf.mxu0
    %v1949 = vadd.f32 0.0, %v1948
    %v1950 = vpop.f32.mrf.mxu0
    %1951 = vmatprep.mubr.f32.mxu0 0.0
    %1952 = vmatmul.mubr.f32.gmra.mxu0 %v1613
    %v1953 = vpop.f32.mrf.mxu0
    %v1954 = vadd.f32 0.0, %v1953
    %v1955 = vpop.f32.mrf.mxu0
    %1956 = vmatprep.mubr.f32.mxu0 0.0
    %1957 = vmatmul.mubr.f32.gmra.mxu0 %v1615
    %v1958 = vpop.f32.mrf.mxu0
    %v1959 = vadd.f32 0.0, %v1958
    %v1960 = vpop.f32.mrf.mxu0
    %1961 = vdwg.mxu0
    %1962 = vmatprep.subr.mxu0 0.0
    %1963 = vmatpush1.xpose.msra.mxu0 0.0
    %1964 = vmatprep.subr.mxu0 0.0
    %1965 = vmatpush1.xpose.msra.mxu0 0.0
    %1966 = vmatprep.subr.mxu0 0.0
    %1967 = vmatpush1.xpose.msra.mxu0 0.0
    %1968 = vmatprep.subr.mxu0 0.0
    %1969 = vmatpush1.xpose.msra.mxu0 0.0
    %1970 = vmatprep.subr.mxu0 0.0
    %1971 = vmatpush1.xpose.msra.mxu0 0.0
    %1972 = vmatprep.subr.mxu0 0.0
    %1973 = vmatpush1.xpose.msra.mxu0 0.0
    %1974 = vmatprep.subr.mxu0 0.0
    %1975 = vmatpush1.xpose.msra.mxu0 0.0
    %1976 = vmatprep.subr.mxu0 0.0
    %1977 = vmatpush1.xpose.msra.mxu0 0.0
    %1978 = vmatprep.subr.mxu0 0.0
    %1979 = vmatpush1.xpose.msra.mxu0 0.0
    %1980 = vmatprep.subr.mxu0 0.0
    %1981 = vmatpush1.xpose.msra.mxu0 0.0
    %1982 = vmatprep.subr.mxu0 0.0
    %1983 = vmatpush1.xpose.msra.mxu0 %v1627
    %1984 = vmatprep.subr.mxu0 0.0
    %1985 = vmatpush1.xpose.msra.mxu0 %v1625
    %1986 = vmatprep.subr.mxu0 0.0
    %1987 = vmatpush1.xpose.msra.mxu0 %v1623
    %1988 = vmatprep.subr.mxu0 0.0
    %1989 = vmatpush1.xpose.msra.mxu0 %v1621
    %1990 = vmatprep.subr.mxu0 0.0
    %1991 = vmatpush1.xpose.msra.mxu0 %v1619
    %1992 = vmatprep.subr.mxu0 0.0
    %1993 = vmatpush1.xpose.msra.mxu0 %v1617
    %1994 = vmatprep.subr.mxu0 0.0
    %1995 = vmatpush2.xpose.msra.mxu0 0.0
    %1996 = vmatprep.subr.mxu0 0.0
    %1997 = vmatpush2.xpose.msra.mxu0 0.0
    %1998 = vmatprep.subr.mxu0 0.0
    %1999 = vmatpush2.xpose.msra.mxu0 0.0
    %2000 = vmatprep.subr.mxu0 0.0
    %2001 = vmatpush2.xpose.msra.mxu0 0.0
    %2002 = vmatprep.subr.mxu0 0.0
    %2003 = vmatpush2.xpose.msra.mxu0 0.0
    %2004 = vmatprep.subr.mxu0 0.0
    %2005 = vmatpush2.xpose.msra.mxu0 0.0
    %2006 = vmatprep.subr.mxu0 0.0
    %2007 = vmatpush2.xpose.msra.mxu0 0.0
    %2008 = vmatprep.subr.mxu0 0.0
    %2009 = vmatpush2.xpose.msra.mxu0 0.0
    %2010 = vmatprep.subr.mxu0 0.0
    %2011 = vmatpush2.xpose.msra.mxu0 0.0
    %2012 = vmatprep.subr.mxu0 0.0
    %2013 = vmatpush2.xpose.msra.mxu0 0.0
    %2014 = vmatprep.subr.mxu0 0.0
    %2015 = vmatpush2.xpose.msra.mxu0 0.0
    %2016 = vmatprep.subr.mxu0 0.0
    %2017 = vmatpush2.xpose.msra.mxu0 0.0
    %2018 = vmatprep.subr.mxu0 0.0
    %2019 = vmatpush2.xpose.msra.mxu0 0.0
    %2020 = vmatprep.subr.mxu0 0.0
    %2021 = vmatpush2.xpose.msra.mxu0 0.0
    %2022 = vmatprep.subr.mxu0 0.0
    %2023 = vmatpush2.xpose.msra.mxu0 0.0
    %2024 = vmatprep.subr.mxu0 0.0
    %2025 = vmatpush2.xpose.msra.mxu0 0.0
    %2026 = vmatprep.mubr.f32.mxu0 0.0
    %2027 = vmatmul.mubr.f32.gmra.mxu0 %v1748
    %v2028 = vpop.f32.mrf.mxu0
    %v2029 = vadd.f32 0.0, %v2028
    %v2030 = vpop.f32.mrf.mxu0
    %2031 = vmatprep.mubr.f32.mxu0 0.0
    %2032 = vmatmul.mubr.f32.gmra.mxu0 %v1750
    %v2033 = vpop.f32.mrf.mxu0
    %v2034 = vadd.f32 0.0, %v2033
    %v2035 = vpop.f32.mrf.mxu0
    %2036 = vmatprep.mubr.f32.mxu0 0.0
    %2037 = vmatmul.mubr.f32.gmra.mxu0 %v1752
    %v2038 = vpop.f32.mrf.mxu0
    %v2039 = vadd.f32 0.0, %v2038
    %v2040 = vpop.f32.mrf.mxu0
    %2041 = vmatprep.mubr.f32.mxu0 0.0
    %2042 = vmatmul.mubr.f32.gmra.mxu0 %v1754
    %v2043 = vpop.f32.mrf.mxu0
    %v2044 = vadd.f32 0.0, %v2043
    %v2045 = vpop.f32.mrf.mxu0
    %2046 = vmatprep.mubr.f32.mxu0 0.0
    %2047 = vmatmul.mubr.f32.gmra.mxu0 %v1756
    %v2048 = vpop.f32.mrf.mxu0
    %v2049 = vadd.f32 0.0, %v2048
    %v2050 = vpop.f32.mrf.mxu0
    %2051 = vmatprep.mubr.f32.mxu0 0.0
    %2052 = vmatmul.mubr.f32.gmra.mxu0 %v1758
    %v2053 = vpop.f32.mrf.mxu0
    %v2054 = vadd.f32 0.0, %v2053
    %v2055 = vpop.f32.mrf.mxu0
    %2056 = vdwg.mxu0
    %v2057 = vsub.f32 %v1934, %v2029
    %v2058 = vsub.f32 %v1939, %v2034
    %v2059 = vsub.f32 %v1944, %v2039
    %v2060 = vsub.f32 %v1949, %v2044
    %v2061 = vsub.f32 %v1954, %v2049
    %v2062 = vsub.f32 %v1959, %v2054
    %v2063 = vmul.f32 %v1839, %v1839
    %v2064 = vmul.f32 %v1844, %v1844
    %v2065 = vmul.f32 %v1849, %v1849
    %v2066 = vmul.f32 %v1854, %v1854
    %v2067 = vmul.f32 %v1859, %v1859
    %v2068 = vmul.f32 %v1864, %v1864
    %v2069 = vmul.f32 %v2057, %v2057
    %v2070 = vmul.f32 %v2058, %v2058
    %v2071 = vmul.f32 %v2059, %v2059
    %v2072 = vmul.f32 %v2060, %v2060
    %v2073 = vmul.f32 %v2061, %v2061
    %v2074 = vmul.f32 %v2062, %v2062
    %v2075 = vadd.f32 %v2063, %v2069
    %v2076 = vadd.f32 %v2064, %v2070
    %v2077 = vadd.f32 %v2065, %v2071
    %v2078 = vadd.f32 %v2066, %v2072
    %v2079 = vadd.f32 %v2067, %v2073
    %v2080 = vadd.f32 %v2068, %v2074
    %v2081 = vrsqrt.pop %v2075
    %v2082 = vmul.f32 %v2075, %v2081
    %vm2083 = vcmp.eq.f32.partialorder %v2075, inf
    %v2084 = vsel %vm2083, %v2075, %v2082
    %vm2085 = vcmp.eq.f32.partialorder %v2075, 0.0
    %v2086 = vand.u32 %v2075, 2147483648
    %v2087 = vsel %vm2085, %v2086, %v2084
    %v2088 = vrsqrt.pop %v2076
    %v2089 = vmul.f32 %v2076, %v2088
    %vm2090 = vcmp.eq.f32.partialorder %v2076, inf
    %v2091 = vsel %vm2090, %v2076, %v2089
    %vm2092 = vcmp.eq.f32.partialorder %v2076, 0.0
    %v2093 = vand.u32 %v2076, 2147483648
    %v2094 = vsel %vm2092, %v2093, %v2091
    %v2095 = vrsqrt.pop %v2077
    %v2096 = vmul.f32 %v2077, %v2095
    %vm2097 = vcmp.eq.f32.partialorder %v2077, inf
    %v2098 = vsel %vm2097, %v2077, %v2096
    %vm2099 = vcmp.eq.f32.partialorder %v2077, 0.0
    %v2100 = vand.u32 %v2077, 2147483648
    %v2101 = vsel %vm2099, %v2100, %v2098
    %v2102 = vrsqrt.pop %v2078
    %v2103 = vmul.f32 %v2078, %v2102
    %vm2104 = vcmp.eq.f32.partialorder %v2078, inf
    %v2105 = vsel %vm2104, %v2078, %v2103
    %vm2106 = vcmp.eq.f32.partialorder %v2078, 0.0
    %v2107 = vand.u32 %v2078, 2147483648
    %v2108 = vsel %vm2106, %v2107, %v2105
    %v2109 = vrsqrt.pop %v2079
    %v2110 = vmul.f32 %v2079, %v2109
    %vm2111 = vcmp.eq.f32.partialorder %v2079, inf
    %v2112 = vsel %vm2111, %v2079, %v2110
    %vm2113 = vcmp.eq.f32.partialorder %v2079, 0.0
    %v2114 = vand.u32 %v2079, 2147483648
    %v2115 = vsel %vm2113, %v2114, %v2112
    %v2116 = vrsqrt.pop %v2080
    %v2117 = vmul.f32 %v2080, %v2116
    %vm2118 = vcmp.eq.f32.partialorder %v2080, inf
    %v2119 = vsel %vm2118, %v2080, %v2117
    %vm2120 = vcmp.eq.f32.partialorder %v2080, 0.0
    %v2121 = vand.u32 %v2080, 2147483648
    %v2122 = vsel %vm2120, %v2121, %v2119
    %v2123 = vmul.f32 %v2087, 0.35355338
    %v2124 = vmul.f32 %v2094, 0.35355338
    %v2125 = vmul.f32 %v2101, 0.35355338
    %v2126 = vmul.f32 %v2108, 0.35355338
    %v2127 = vmul.f32 %v2115, 0.35355338
    %v2128 = vmul.f32 %v2122, 0.35355338
    %v2129 = vadd.f32 %v2123, %v260
    %v2130 = vadd.f32 %v2124, %v261
    %v2131 = vadd.f32 %v2125, %v262
    %v2132 = vadd.f32 %v2126, %v263
    %v2133 = vadd.f32 %v2127, %v264
    %v2134 = vadd.f32 %v2128, %v265
    %v2135 = vsel %vm1221, %v2129, -inf
    %2136 = vmax.xlane.f32.xlu0 %v2135
    %v2137 = vpop.xlane.xlu0 %2136
    %v2138 = vsel %vm1221, %v2130, -inf
    %2139 = vmax.xlane.f32.xlu0 %v2138
    %v2140 = vpop.xlane.xlu0 %2139
    %v2141 = vsel %vm1221, %v2131, -inf
    %2142 = vmax.xlane.f32.xlu0 %v2141
    %v2143 = vpop.xlane.xlu0 %2142
    %v2144 = vsel %vm1221, %v2132, -inf
    %2145 = vmax.xlane.f32.xlu0 %v2144
    %v2146 = vpop.xlane.xlu0 %2145
    %v2147 = vsel %vm1221, %v2133, -inf
    %2148 = vmax.xlane.f32.xlu0 %v2147
    %v2149 = vpop.xlane.xlu0 %2148
    %v2150 = vsel %vm1221, %v2134, -inf
    %2151 = vmax.xlane.f32.xlu0 %v2150
    %v2152 = vpop.xlane.xlu0 %2151
    %v2153 = vsub.f32 %v2129, %v2137
    %v2154 = vsub.f32 %v2130, %v2140
    %v2155 = vsub.f32 %v2131, %v2143
    %v2156 = vsub.f32 %v2132, %v2146
    %v2157 = vsub.f32 %v2133, %v2149
    %v2158 = vsub.f32 %v2134, %v2152
    %v2159 = vmul.f32 %v2153, 1.442695
    %v2160 = vpow.pop %v2159
    %v2161 = vmul.f32 %v2154, 1.442695
    %v2162 = vpow.pop %v2161
    %v2163 = vmul.f32 %v2155, 1.442695
    %v2164 = vpow.pop %v2163
    %v2165 = vmul.f32 %v2156, 1.442695
    %v2166 = vpow.pop %v2165
    %v2167 = vmul.f32 %v2157, 1.442695
    %v2168 = vpow.pop %v2167
    %v2169 = vmul.f32 %v2158, 1.442695
    %v2170 = vpow.pop %v2169
    %v2171 = vsel %vm1221, %v2160, 0.0
    %2172 = vadd.xlane.f32.xlu0 %v2171
    %v2173 = vpop.xlane.xlu0 %2172
    %v2174 = vsel %vm1221, %v2162, 0.0
    %2175 = vadd.xlane.f32.xlu0 %v2174
    %v2176 = vpop.xlane.xlu0 %2175
    %v2177 = vsel %vm1221, %v2164, 0.0
    %2178 = vadd.xlane.f32.xlu0 %v2177
    %v2179 = vpop.xlane.xlu0 %2178
    %v2180 = vsel %vm1221, %v2166, 0.0
    %2181 = vadd.xlane.f32.xlu0 %v2180
    %v2182 = vpop.xlane.xlu0 %2181
    %v2183 = vsel %vm1221, %v2168, 0.0
    %2184 = vadd.xlane.f32.xlu0 %v2183
    %v2185 = vpop.xlane.xlu0 %2184
    %v2186 = vsel %vm1221, %v2170, 0.0
    %2187 = vadd.xlane.f32.xlu0 %v2186
    %v2188 = vpop.xlane.xlu0 %2187
    %v2189 = vrcp.pop %v2173
    %v2190 = vrcp.pop %v2176
    %v2191 = vrcp.pop %v2179
    %v2192 = vrcp.pop %v2182
    %v2193 = vrcp.pop %v2185
    %v2194 = vrcp.pop %v2188
    %v2195 = vmul.f32 %v2160, %v2189
    %v2196 = vmul.f32 %v2162, %v2190
    %v2197 = vmul.f32 %v2164, %v2191
    %v2198 = vmul.f32 %v2166, %v2192
    %v2199 = vmul.f32 %v2168, %v2193
    %v2200 = vmul.f32 %v2170, %v2194
    %2201 = vrot.lane.b32.xlu0 %v380, 56
    %v2202 = vpop.permute.xlu0 %2201
    %2203 = vrot.lane.b32.xlu0 %v386, 56
    %v2204 = vpop.permute.xlu0 %2203
    %2205 = vrot.lane.b32.xlu0 %v392, 56
    %v2206 = vpop.permute.xlu0 %2205
    %2207 = vrot.lane.b32.xlu0 %v398, 56
    %v2208 = vpop.permute.xlu0 %2207
    %2209 = vrot.lane.b32.xlu0 %v404, 56
    %v2210 = vpop.permute.xlu0 %2209
    %2211 = vrot.lane.b32.xlu0 %v410, 56
    %v2212 = vpop.permute.xlu0 %2211
    %v2220 = vsel %vm1221, %v2195, 0
    %v2223 = vsel %vm1221, %v2196, 0
    %v2226 = vsel %vm1221, %v2197, 0
    %v2229 = vsel %vm1221, %v2198, 0
    %v2232 = vsel %vm1221, %v2199, 0
    %v2235 = vsel %vm1221, %v2200, 0
    %2237 = vmatprep.subr.mxu0 0.0
    %2238 = vmatpush1.msra.mxu0 0.0
    %2239 = vmatprep.subr.mxu0 0.0
    %2240 = vmatpush1.msra.mxu0 0.0
    %2241 = vmatprep.subr.mxu0 0.0
    %2242 = vmatpush1.msra.mxu0 0.0
    %2243 = vmatprep.subr.mxu0 0.0
    %2244 = vmatpush1.msra.mxu0 0.0
    %2245 = vmatprep.subr.mxu0 0.0
    %2246 = vmatpush1.msra.mxu0 0.0
    %2247 = vmatprep.subr.mxu0 0.0
    %2248 = vmatpush1.msra.mxu0 0.0
    %2249 = vmatprep.subr.mxu0 0.0
    %2250 = vmatpush1.msra.mxu0 0.0
    %2251 = vmatprep.subr.mxu0 0.0
    %2252 = vmatpush1.msra.mxu0 0.0
    %2253 = vmatprep.subr.mxu0 0.0
    %2254 = vmatpush1.msra.mxu0 0.0
    %2255 = vmatprep.subr.mxu0 0.0
    %2256 = vmatpush1.msra.mxu0 0.0
    %2257 = vmatprep.subr.mxu0 0.0
    %2258 = vmatpush1.msra.mxu0 %v2212
    %2259 = vmatprep.subr.mxu0 0.0
    %2260 = vmatpush1.msra.mxu0 %v2210
    %2261 = vmatprep.subr.mxu0 0.0
    %2262 = vmatpush1.msra.mxu0 %v2208
    %2263 = vmatprep.subr.mxu0 0.0
    %2264 = vmatpush1.msra.mxu0 %v2206
    %2265 = vmatprep.subr.mxu0 0.0
    %2266 = vmatpush1.msra.mxu0 %v2204
    %2267 = vmatprep.subr.mxu0 0.0
    %2268 = vmatpush1.msra.mxu0 %v2202
    %2269 = vmatprep.subr.mxu0 0.0
    %2270 = vmatpush2.msra.mxu0 0.0
    %2271 = vmatprep.subr.mxu0 0.0
    %2272 = vmatpush2.msra.mxu0 0.0
    %2273 = vmatprep.subr.mxu0 0.0
    %2274 = vmatpush2.msra.mxu0 0.0
    %2275 = vmatprep.subr.mxu0 0.0
    %2276 = vmatpush2.msra.mxu0 0.0
    %2277 = vmatprep.subr.mxu0 0.0
    %2278 = vmatpush2.msra.mxu0 0.0
    %2279 = vmatprep.subr.mxu0 0.0
    %2280 = vmatpush2.msra.mxu0 0.0
    %2281 = vmatprep.subr.mxu0 0.0
    %2282 = vmatpush2.msra.mxu0 0.0
    %2283 = vmatprep.subr.mxu0 0.0
    %2284 = vmatpush2.msra.mxu0 0.0
    %2285 = vmatprep.subr.mxu0 0.0
    %2286 = vmatpush2.msra.mxu0 0.0
    %2287 = vmatprep.subr.mxu0 0.0
    %2288 = vmatpush2.msra.mxu0 0.0
    %2289 = vmatprep.subr.mxu0 0.0
    %2290 = vmatpush2.msra.mxu0 0.0
    %2291 = vmatprep.subr.mxu0 0.0
    %2292 = vmatpush2.msra.mxu0 0.0
    %2293 = vmatprep.subr.mxu0 0.0
    %2294 = vmatpush2.msra.mxu0 0.0
    %2295 = vmatprep.subr.mxu0 0.0
    %2296 = vmatpush2.msra.mxu0 0.0
    %2297 = vmatprep.subr.mxu0 0.0
    %2298 = vmatpush2.msra.mxu0 0.0
    %2299 = vmatprep.subr.mxu0 0.0
    %2300 = vmatpush2.msra.mxu0 0.0
    %2301 = vmatprep.mubr.f32.mxu0 0.0
    %2302 = vmatmul.mubr.f32.gmra.mxu0 %v2220
    %v2303 = vpop.f32.mrf.mxu0
    %v2304 = vadd.f32 0.0, %v2303
    %v2305 = vpop.f32.mrf.mxu0
    %2306 = vmatprep.mubr.f32.mxu0 0.0
    %2307 = vmatmul.mubr.f32.gmra.mxu0 %v2223
    %v2308 = vpop.f32.mrf.mxu0
    %v2309 = vadd.f32 0.0, %v2308
    %v2310 = vpop.f32.mrf.mxu0
    %2311 = vmatprep.mubr.f32.mxu0 0.0
    %2312 = vmatmul.mubr.f32.gmra.mxu0 %v2226
    %v2313 = vpop.f32.mrf.mxu0
    %v2314 = vadd.f32 0.0, %v2313
    %v2315 = vpop.f32.mrf.mxu0
    %2316 = vmatprep.mubr.f32.mxu0 0.0
    %2317 = vmatmul.mubr.f32.gmra.mxu0 %v2229
    %v2318 = vpop.f32.mrf.mxu0
    %v2319 = vadd.f32 0.0, %v2318
    %v2320 = vpop.f32.mrf.mxu0
    %2321 = vmatprep.mubr.f32.mxu0 0.0
    %2322 = vmatmul.mubr.f32.gmra.mxu0 %v2232
    %v2323 = vpop.f32.mrf.mxu0
    %v2324 = vadd.f32 0.0, %v2323
    %v2325 = vpop.f32.mrf.mxu0
    %2326 = vmatprep.mubr.f32.mxu0 0.0
    %2327 = vmatmul.mubr.f32.gmra.mxu0 %v2235
    %v2328 = vpop.f32.mrf.mxu0
    %v2329 = vadd.f32 0.0, %v2328
    %v2330 = vpop.f32.mrf.mxu0
    %2331 = vdwg.mxu0
    %2338 = vrot.lane.b32.xlu0 %v2304, 8
    %v2339 = vpop.permute.xlu0 %2338
    %2340 = vrot.lane.b32.xlu0 %v2309, 8
    %v2341 = vpop.permute.xlu0 %2340
    %2342 = vrot.lane.b32.xlu0 %v2314, 8
    %v2343 = vpop.permute.xlu0 %2342
    %2344 = vrot.lane.b32.xlu0 %v2319, 8
    %v2345 = vpop.permute.xlu0 %2344
    %2346 = vrot.lane.b32.xlu0 %v2324, 8
    %v2347 = vpop.permute.xlu0 %2346
    %2348 = vrot.lane.b32.xlu0 %v2329, 8
    %v2349 = vpop.permute.xlu0 %2348
    %vm2356 = vcmask 130112
    %2357 = vst.msk [vmem:[#allocation2] sm:$0xff] %vm2356, %v2339
    %2358 = vst.msk [vmem:[#allocation2 + $0x8] sm:$0xff] %vm2356, %v2341
    %2359 = vst.msk [vmem:[#allocation2 + $0x10] sm:$0xff] %vm2356, %v2343
    %2360 = vst.msk [vmem:[#allocation2 + $0x18] sm:$0xff] %vm2356, %v2345
    %2361 = vst.msk [vmem:[#allocation2 + $0x20] sm:$0xff] %vm2356, %v2347
    %2362 = vst.msk [vmem:[#allocation2 + $0x28] sm:$0xff] %vm2356, %v2349
    %2363 = vrot.lane.b32.xlu0 %v382, 88
    %v2364 = vpop.permute.xlu0 %2363
    %2365 = vrot.lane.b32.xlu0 %v388, 88
    %v2366 = vpop.permute.xlu0 %2365
    %2367 = vrot.lane.b32.xlu0 %v394, 88
    %v2368 = vpop.permute.xlu0 %2367
    %2369 = vrot.lane.b32.xlu0 %v400, 88
    %v2370 = vpop.permute.xlu0 %2369
    %2371 = vrot.lane.b32.xlu0 %v406, 88
    %v2372 = vpop.permute.xlu0 %2371
    %2373 = vrot.lane.b32.xlu0 %v412, 88
    %v2374 = vpop.permute.xlu0 %2373
    %2381 = vmatprep.subr.mxu0 0.0
    %2382 = vmatpush1.msra.mxu0 0.0
    %2383 = vmatprep.subr.mxu0 0.0
    %2384 = vmatpush1.msra.mxu0 0.0
    %2385 = vmatprep.subr.mxu0 0.0
    %2386 = vmatpush1.msra.mxu0 0.0
    %2387 = vmatprep.subr.mxu0 0.0
    %2388 = vmatpush1.msra.mxu0 0.0
    %2389 = vmatprep.subr.mxu0 0.0
    %2390 = vmatpush1.msra.mxu0 0.0
    %2391 = vmatprep.subr.mxu0 0.0
    %2392 = vmatpush1.msra.mxu0 0.0
    %2393 = vmatprep.subr.mxu0 0.0
    %2394 = vmatpush1.msra.mxu0 0.0
    %2395 = vmatprep.subr.mxu0 0.0
    %2396 = vmatpush1.msra.mxu0 0.0
    %2397 = vmatprep.subr.mxu0 0.0
    %2398 = vmatpush1.msra.mxu0 0.0
    %2399 = vmatprep.subr.mxu0 0.0
    %2400 = vmatpush1.msra.mxu0 0.0
    %2401 = vmatprep.subr.mxu0 0.0
    %2402 = vmatpush1.msra.mxu0 %v2374
    %2403 = vmatprep.subr.mxu0 0.0
    %2404 = vmatpush1.msra.mxu0 %v2372
    %2405 = vmatprep.subr.mxu0 0.0
    %2406 = vmatpush1.msra.mxu0 %v2370
    %2407 = vmatprep.subr.mxu0 0.0
    %2408 = vmatpush1.msra.mxu0 %v2368
    %2409 = vmatprep.subr.mxu0 0.0
    %2410 = vmatpush1.msra.mxu0 %v2366
    %2411 = vmatprep.subr.mxu0 0.0
    %2412 = vmatpush1.msra.mxu0 %v2364
    %2413 = vmatprep.subr.mxu0 0.0
    %2414 = vmatpush2.msra.mxu0 0.0
    %2415 = vmatprep.subr.mxu0 0.0
    %2416 = vmatpush2.msra.mxu0 0.0
    %2417 = vmatprep.subr.mxu0 0.0
    %2418 = vmatpush2.msra.mxu0 0.0
    %2419 = vmatprep.subr.mxu0 0.0
    %2420 = vmatpush2.msra.mxu0 0.0
    %2421 = vmatprep.subr.mxu0 0.0
    %2422 = vmatpush2.msra.mxu0 0.0
    %2423 = vmatprep.subr.mxu0 0.0
    %2424 = vmatpush2.msra.mxu0 0.0
    %2425 = vmatprep.subr.mxu0 0.0
    %2426 = vmatpush2.msra.mxu0 0.0
    %2427 = vmatprep.subr.mxu0 0.0
    %2428 = vmatpush2.msra.mxu0 0.0
    %2429 = vmatprep.subr.mxu0 0.0
    %2430 = vmatpush2.msra.mxu0 0.0
    %2431 = vmatprep.subr.mxu0 0.0
    %2432 = vmatpush2.msra.mxu0 0.0
    %2433 = vmatprep.subr.mxu0 0.0
    %2434 = vmatpush2.msra.mxu0 0.0
    %2435 = vmatprep.subr.mxu0 0.0
    %2436 = vmatpush2.msra.mxu0 0.0
    %2437 = vmatprep.subr.mxu0 0.0
    %2438 = vmatpush2.msra.mxu0 0.0
    %2439 = vmatprep.subr.mxu0 0.0
    %2440 = vmatpush2.msra.mxu0 0.0
    %2441 = vmatprep.subr.mxu0 0.0
    %2442 = vmatpush2.msra.mxu0 0.0
    %2443 = vmatprep.subr.mxu0 0.0
    %2444 = vmatpush2.msra.mxu0 0.0
    %2445 = vmatprep.mubr.f32.mxu0 0.0
    %2446 = vmatmul.mubr.f32.gmra.mxu0 %v2220
    %v2447 = vpop.f32.mrf.mxu0
    %v2448 = vadd.f32 0.0, %v2447
    %v2449 = vpop.f32.mrf.mxu0
    %2450 = vmatprep.mubr.f32.mxu0 0.0
    %2451 = vmatmul.mubr.f32.gmra.mxu0 %v2223
    %v2452 = vpop.f32.mrf.mxu0
    %v2453 = vadd.f32 0.0, %v2452
    %v2454 = vpop.f32.mrf.mxu0
    %2455 = vmatprep.mubr.f32.mxu0 0.0
    %2456 = vmatmul.mubr.f32.gmra.mxu0 %v2226
    %v2457 = vpop.f32.mrf.mxu0
    %v2458 = vadd.f32 0.0, %v2457
    %v2459 = vpop.f32.mrf.mxu0
    %2460 = vmatprep.mubr.f32.mxu0 0.0
    %2461 = vmatmul.mubr.f32.gmra.mxu0 %v2229
    %v2462 = vpop.f32.mrf.mxu0
    %v2463 = vadd.f32 0.0, %v2462
    %v2464 = vpop.f32.mrf.mxu0
    %2465 = vmatprep.mubr.f32.mxu0 0.0
    %2466 = vmatmul.mubr.f32.gmra.mxu0 %v2232
    %v2467 = vpop.f32.mrf.mxu0
    %v2468 = vadd.f32 0.0, %v2467
    %v2469 = vpop.f32.mrf.mxu0
    %2470 = vmatprep.mubr.f32.mxu0 0.0
    %2471 = vmatmul.mubr.f32.gmra.mxu0 %v2235
    %v2472 = vpop.f32.mrf.mxu0
    %v2473 = vadd.f32 0.0, %v2472
    %v2474 = vpop.f32.mrf.mxu0
    %2475 = vdwg.mxu0
    %2482 = vrot.lane.b32.xlu0 %v2448, 40
    %v2483 = vpop.permute.xlu0 %2482
    %2484 = vrot.lane.b32.xlu0 %v2453, 40
    %v2485 = vpop.permute.xlu0 %2484
    %2486 = vrot.lane.b32.xlu0 %v2458, 40
    %v2487 = vpop.permute.xlu0 %2486
    %2488 = vrot.lane.b32.xlu0 %v2463, 40
    %v2489 = vpop.permute.xlu0 %2488
    %2490 = vrot.lane.b32.xlu0 %v2468, 40
    %v2491 = vpop.permute.xlu0 %2490
    %2492 = vrot.lane.b32.xlu0 %v2473, 40
    %v2493 = vpop.permute.xlu0 %2492
    %vm2500 = vcmask 392512
    %2501 = vst.msk [vmem:[#allocation2] sm:$0xff] %vm2500, %v2483
    %2502 = vst.msk [vmem:[#allocation2 + $0x8] sm:$0xff] %vm2500, %v2485
    %2503 = vst.msk [vmem:[#allocation2 + $0x10] sm:$0xff] %vm2500, %v2487
    %2504 = vst.msk [vmem:[#allocation2 + $0x18] sm:$0xff] %vm2500, %v2489
    %2505 = vst.msk [vmem:[#allocation2 + $0x20] sm:$0xff] %vm2500, %v2491
    %2506 = vst.msk [vmem:[#allocation2 + $0x28] sm:$0xff] %vm2500, %v2493
    %2507 = vrot.lane.b32.xlu0 %v540, 112
    %v2508 = vpop.permute.xlu0 %2507
    %2509 = vrot.lane.b32.xlu0 %v541, 112
    %v2510 = vpop.permute.xlu0 %2509
    %2511 = vrot.lane.b32.xlu0 %v542, 112
    %v2512 = vpop.permute.xlu0 %2511
    %2513 = vrot.lane.b32.xlu0 %v543, 112
    %v2514 = vpop.permute.xlu0 %2513
    %2515 = vrot.lane.b32.xlu0 %v544, 112
    %v2516 = vpop.permute.xlu0 %2515
    %2517 = vrot.lane.b32.xlu0 %v545, 112
    %v2518 = vpop.permute.xlu0 %2517
    %2519 = vrot.lane.b32.xlu0 %v660, 80
    %v2520 = vpop.permute.xlu0 %2519
    %2521 = vrot.lane.b32.xlu0 %v661, 80
    %v2522 = vpop.permute.xlu0 %2521
    %2523 = vrot.lane.b32.xlu0 %v662, 80
    %v2524 = vpop.permute.xlu0 %2523
    %2525 = vrot.lane.b32.xlu0 %v663, 80
    %v2526 = vpop.permute.xlu0 %2525
    %2527 = vrot.lane.b32.xlu0 %v664, 80
    %v2528 = vpop.permute.xlu0 %2527
    %2529 = vrot.lane.b32.xlu0 %v665, 80
    %v2530 = vpop.permute.xlu0 %2529
    %v2531 = vsel %vm684, %v2508, 0
    %v2533 = vsel %vm684, %v2510, 0
    %v2535 = vsel %vm684, %v2512, 0
    %v2537 = vsel %vm684, %v2514, 0
    %v2539 = vsel %vm684, %v2516, 0
    %v2541 = vsel %vm684, %v2518, 0
    %v2543 = vsel %vm684, %v2520, 0
    %v2545 = vsel %vm684, %v2522, 0
    %v2547 = vsel %vm684, %v2524, 0
    %v2549 = vsel %vm684, %v2526, 0
    %v2551 = vsel %vm684, %v2528, 0
    %v2553 = vsel %vm684, %v2530, 0
    %2555 = vmatprep.subr.mxu0 0.0
    %2556 = vmatpush1.xpose.msra.mxu0 0.0
    %2557 = vmatprep.subr.mxu0 0.0
    %2558 = vmatpush1.xpose.msra.mxu0 0.0
    %2559 = vmatprep.subr.mxu0 0.0
    %2560 = vmatpush1.xpose.msra.mxu0 0.0
    %2561 = vmatprep.subr.mxu0 0.0
    %2562 = vmatpush1.xpose.msra.mxu0 0.0
    %2563 = vmatprep.subr.mxu0 0.0
    %2564 = vmatpush1.xpose.msra.mxu0 0.0
    %2565 = vmatprep.subr.mxu0 0.0
    %2566 = vmatpush1.xpose.msra.mxu0 0.0
    %2567 = vmatprep.subr.mxu0 0.0
    %2568 = vmatpush1.xpose.msra.mxu0 0.0
    %2569 = vmatprep.subr.mxu0 0.0
    %2570 = vmatpush1.xpose.msra.mxu0 0.0
    %2571 = vmatprep.subr.mxu0 0.0
    %2572 = vmatpush1.xpose.msra.mxu0 0.0
    %2573 = vmatprep.subr.mxu0 0.0
    %2574 = vmatpush1.xpose.msra.mxu0 0.0
    %2575 = vmatprep.subr.mxu0 0.0
    %2576 = vmatpush1.xpose.msra.mxu0 %v2553
    %2577 = vmatprep.subr.mxu0 0.0
    %2578 = vmatpush1.xpose.msra.mxu0 %v2551
    %2579 = vmatprep.subr.mxu0 0.0
    %2580 = vmatpush1.xpose.msra.mxu0 %v2549
    %2581 = vmatprep.subr.mxu0 0.0
    %2582 = vmatpush1.xpose.msra.mxu0 %v2547
    %2583 = vmatprep.subr.mxu0 0.0
    %2584 = vmatpush1.xpose.msra.mxu0 %v2545
    %2585 = vmatprep.subr.mxu0 0.0
    %2586 = vmatpush1.xpose.msra.mxu0 %v2543
    %2587 = vmatprep.subr.mxu0 0.0
    %2588 = vmatpush2.xpose.msra.mxu0 0.0
    %2589 = vmatprep.subr.mxu0 0.0
    %2590 = vmatpush2.xpose.msra.mxu0 0.0
    %2591 = vmatprep.subr.mxu0 0.0
    %2592 = vmatpush2.xpose.msra.mxu0 0.0
    %2593 = vmatprep.subr.mxu0 0.0
    %2594 = vmatpush2.xpose.msra.mxu0 0.0
    %2595 = vmatprep.subr.mxu0 0.0
    %2596 = vmatpush2.xpose.msra.mxu0 0.0
    %2597 = vmatprep.subr.mxu0 0.0
    %2598 = vmatpush2.xpose.msra.mxu0 0.0
    %2599 = vmatprep.subr.mxu0 0.0
    %2600 = vmatpush2.xpose.msra.mxu0 0.0
    %2601 = vmatprep.subr.mxu0 0.0
    %2602 = vmatpush2.xpose.msra.mxu0 0.0
    %2603 = vmatprep.subr.mxu0 0.0
    %2604 = vmatpush2.xpose.msra.mxu0 0.0
    %2605 = vmatprep.subr.mxu0 0.0
    %2606 = vmatpush2.xpose.msra.mxu0 0.0
    %2607 = vmatprep.subr.mxu0 0.0
    %2608 = vmatpush2.xpose.msra.mxu0 0.0
    %2609 = vmatprep.subr.mxu0 0.0
    %2610 = vmatpush2.xpose.msra.mxu0 0.0
    %2611 = vmatprep.subr.mxu0 0.0
    %2612 = vmatpush2.xpose.msra.mxu0 0.0
    %2613 = vmatprep.subr.mxu0 0.0
    %2614 = vmatpush2.xpose.msra.mxu0 0.0
    %2615 = vmatprep.subr.mxu0 0.0
    %2616 = vmatpush2.xpose.msra.mxu0 0.0
    %2617 = vmatprep.subr.mxu0 0.0
    %2618 = vmatpush2.xpose.msra.mxu0 0.0
    %2619 = vmatprep.mubr.f32.mxu0 0.0
    %2620 = vmatmul.mubr.f32.gmra.mxu0 %v2531
    %v2621 = vpop.f32.mrf.mxu0
    %v2622 = vadd.f32 0.0, %v2621
    %v2623 = vpop.f32.mrf.mxu0
    %2624 = vmatprep.mubr.f32.mxu0 0.0
    %2625 = vmatmul.mubr.f32.gmra.mxu0 %v2533
    %v2626 = vpop.f32.mrf.mxu0
    %v2627 = vadd.f32 0.0, %v2626
    %v2628 = vpop.f32.mrf.mxu0
    %2629 = vmatprep.mubr.f32.mxu0 0.0
    %2630 = vmatmul.mubr.f32.gmra.mxu0 %v2535
    %v2631 = vpop.f32.mrf.mxu0
    %v2632 = vadd.f32 0.0, %v2631
    %v2633 = vpop.f32.mrf.mxu0
    %2634 = vmatprep.mubr.f32.mxu0 0.0
    %2635 = vmatmul.mubr.f32.gmra.mxu0 %v2537
    %v2636 = vpop.f32.mrf.mxu0
    %v2637 = vadd.f32 0.0, %v2636
    %v2638 = vpop.f32.mrf.mxu0
    %2639 = vmatprep.mubr.f32.mxu0 0.0
    %2640 = vmatmul.mubr.f32.gmra.mxu0 %v2539
    %v2641 = vpop.f32.mrf.mxu0
    %v2642 = vadd.f32 0.0, %v2641
    %v2643 = vpop.f32.mrf.mxu0
    %2644 = vmatprep.mubr.f32.mxu0 0.0
    %2645 = vmatmul.mubr.f32.gmra.mxu0 %v2541
    %v2646 = vpop.f32.mrf.mxu0
    %v2647 = vadd.f32 0.0, %v2646
    %v2648 = vpop.f32.mrf.mxu0
    %2649 = vdwg.mxu0
    %2650 = vrot.lane.b32.xlu0 %v474, 112
    %v2651 = vpop.permute.xlu0 %2650
    %2652 = vrot.lane.b32.xlu0 %v475, 112
    %v2653 = vpop.permute.xlu0 %2652
    %2654 = vrot.lane.b32.xlu0 %v476, 112
    %v2655 = vpop.permute.xlu0 %2654
    %2656 = vrot.lane.b32.xlu0 %v477, 112
    %v2657 = vpop.permute.xlu0 %2656
    %2658 = vrot.lane.b32.xlu0 %v478, 112
    %v2659 = vpop.permute.xlu0 %2658
    %2660 = vrot.lane.b32.xlu0 %v479, 112
    %v2661 = vpop.permute.xlu0 %2660
    %2662 = vrot.lane.b32.xlu0 %v600, 80
    %v2663 = vpop.permute.xlu0 %2662
    %2664 = vrot.lane.b32.xlu0 %v601, 80
    %v2665 = vpop.permute.xlu0 %2664
    %2666 = vrot.lane.b32.xlu0 %v602, 80
    %v2667 = vpop.permute.xlu0 %2666
    %2668 = vrot.lane.b32.xlu0 %v603, 80
    %v2669 = vpop.permute.xlu0 %2668
    %2670 = vrot.lane.b32.xlu0 %v604, 80
    %v2671 = vpop.permute.xlu0 %2670
    %2672 = vrot.lane.b32.xlu0 %v605, 80
    %v2673 = vpop.permute.xlu0 %2672
    %v2674 = vsel %vm684, %v2651, 0
    %v2676 = vsel %vm684, %v2653, 0
    %v2678 = vsel %vm684, %v2655, 0
    %v2680 = vsel %vm684, %v2657, 0
    %v2682 = vsel %vm684, %v2659, 0
    %v2684 = vsel %vm684, %v2661, 0
    %v2686 = vsel %vm684, %v2663, 0
    %v2688 = vsel %vm684, %v2665, 0
    %v2690 = vsel %vm684, %v2667, 0
    %v2692 = vsel %vm684, %v2669, 0
    %v2694 = vsel %vm684, %v2671, 0
    %v2696 = vsel %vm684, %v2673, 0
    %2698 = vmatprep.subr.mxu0 0.0
    %2699 = vmatpush1.xpose.msra.mxu0 0.0
    %2700 = vmatprep.subr.mxu0 0.0
    %2701 = vmatpush1.xpose.msra.mxu0 0.0
    %2702 = vmatprep.subr.mxu0 0.0
    %2703 = vmatpush1.xpose.msra.mxu0 0.0
    %2704 = vmatprep.subr.mxu0 0.0
    %2705 = vmatpush1.xpose.msra.mxu0 0.0
    %2706 = vmatprep.subr.mxu0 0.0
    %2707 = vmatpush1.xpose.msra.mxu0 0.0
    %2708 = vmatprep.subr.mxu0 0.0
    %2709 = vmatpush1.xpose.msra.mxu0 0.0
    %2710 = vmatprep.subr.mxu0 0.0
    %2711 = vmatpush1.xpose.msra.mxu0 0.0
    %2712 = vmatprep.subr.mxu0 0.0
    %2713 = vmatpush1.xpose.msra.mxu0 0.0
    %2714 = vmatprep.subr.mxu0 0.0
    %2715 = vmatpush1.xpose.msra.mxu0 0.0
    %2716 = vmatprep.subr.mxu0 0.0
    %2717 = vmatpush1.xpose.msra.mxu0 0.0
    %2718 = vmatprep.subr.mxu0 0.0
    %2719 = vmatpush1.xpose.msra.mxu0 %v2696
    %2720 = vmatprep.subr.mxu0 0.0
    %2721 = vmatpush1.xpose.msra.mxu0 %v2694
    %2722 = vmatprep.subr.mxu0 0.0
    %2723 = vmatpush1.xpose.msra.mxu0 %v2692
    %2724 = vmatprep.subr.mxu0 0.0
    %2725 = vmatpush1.xpose.msra.mxu0 %v2690
    %2726 = vmatprep.subr.mxu0 0.0
    %2727 = vmatpush1.xpose.msra.mxu0 %v2688
    %2728 = vmatprep.subr.mxu0 0.0
    %2729 = vmatpush1.xpose.msra.mxu0 %v2686
    %2730 = vmatprep.subr.mxu0 0.0
    %2731 = vmatpush2.xpose.msra.mxu0 0.0
    %2732 = vmatprep.subr.mxu0 0.0
    %2733 = vmatpush2.xpose.msra.mxu0 0.0
    %2734 = vmatprep.subr.mxu0 0.0
    %2735 = vmatpush2.xpose.msra.mxu0 0.0
    %2736 = vmatprep.subr.mxu0 0.0
    %2737 = vmatpush2.xpose.msra.mxu0 0.0
    %2738 = vmatprep.subr.mxu0 0.0
    %2739 = vmatpush2.xpose.msra.mxu0 0.0
    %2740 = vmatprep.subr.mxu0 0.0
    %2741 = vmatpush2.xpose.msra.mxu0 0.0
    %2742 = vmatprep.subr.mxu0 0.0
    %2743 = vmatpush2.xpose.msra.mxu0 0.0
    %2744 = vmatprep.subr.mxu0 0.0
    %2745 = vmatpush2.xpose.msra.mxu0 0.0
    %2746 = vmatprep.subr.mxu0 0.0
    %2747 = vmatpush2.xpose.msra.mxu0 0.0
    %2748 = vmatprep.subr.mxu0 0.0
    %2749 = vmatpush2.xpose.msra.mxu0 0.0
    %2750 = vmatprep.subr.mxu0 0.0
    %2751 = vmatpush2.xpose.msra.mxu0 0.0
    %2752 = vmatprep.subr.mxu0 0.0
    %2753 = vmatpush2.xpose.msra.mxu0 0.0
    %2754 = vmatprep.subr.mxu0 0.0
    %2755 = vmatpush2.xpose.msra.mxu0 0.0
    %2756 = vmatprep.subr.mxu0 0.0
    %2757 = vmatpush2.xpose.msra.mxu0 0.0
    %2758 = vmatprep.subr.mxu0 0.0
    %2759 = vmatpush2.xpose.msra.mxu0 0.0
    %2760 = vmatprep.subr.mxu0 0.0
    %2761 = vmatpush2.xpose.msra.mxu0 0.0
    %2762 = vmatprep.mubr.f32.mxu0 0.0
    %2763 = vmatmul.mubr.f32.gmra.mxu0 %v2674
    %v2764 = vpop.f32.mrf.mxu0
    %v2765 = vadd.f32 %v2622, %v2764
    %v2766 = vpop.f32.mrf.mxu0
    %2767 = vmatprep.mubr.f32.mxu0 0.0
    %2768 = vmatmul.mubr.f32.gmra.mxu0 %v2676
    %v2769 = vpop.f32.mrf.mxu0
    %v2770 = vadd.f32 %v2627, %v2769
    %v2771 = vpop.f32.mrf.mxu0
    %2772 = vmatprep.mubr.f32.mxu0 0.0
    %2773 = vmatmul.mubr.f32.gmra.mxu0 %v2678
    %v2774 = vpop.f32.mrf.mxu0
    %v2775 = vadd.f32 %v2632, %v2774
    %v2776 = vpop.f32.mrf.mxu0
    %2777 = vmatprep.mubr.f32.mxu0 0.0
    %2778 = vmatmul.mubr.f32.gmra.mxu0 %v2680
    %v2779 = vpop.f32.mrf.mxu0
    %v2780 = vadd.f32 %v2637, %v2779
    %v2781 = vpop.f32.mrf.mxu0
    %2782 = vmatprep.mubr.f32.mxu0 0.0
    %2783 = vmatmul.mubr.f32.gmra.mxu0 %v2682
    %v2784 = vpop.f32.mrf.mxu0
    %v2785 = vadd.f32 %v2642, %v2784
    %v2786 = vpop.f32.mrf.mxu0
    %2787 = vmatprep.mubr.f32.mxu0 0.0
    %2788 = vmatmul.mubr.f32.gmra.mxu0 %v2684
    %v2789 = vpop.f32.mrf.mxu0
    %v2790 = vadd.f32 %v2647, %v2789
    %v2791 = vpop.f32.mrf.mxu0
    %2792 = vdwg.mxu0
    %2793 = vmatprep.subr.mxu0 0.0
    %2794 = vmatpush1.xpose.msra.mxu0 0.0
    %2795 = vmatprep.subr.mxu0 0.0
    %2796 = vmatpush1.xpose.msra.mxu0 0.0
    %2797 = vmatprep.subr.mxu0 0.0
    %2798 = vmatpush1.xpose.msra.mxu0 0.0
    %2799 = vmatprep.subr.mxu0 0.0
    %2800 = vmatpush1.xpose.msra.mxu0 0.0
    %2801 = vmatprep.subr.mxu0 0.0
    %2802 = vmatpush1.xpose.msra.mxu0 0.0
    %2803 = vmatprep.subr.mxu0 0.0
    %2804 = vmatpush1.xpose.msra.mxu0 0.0
    %2805 = vmatprep.subr.mxu0 0.0
    %2806 = vmatpush1.xpose.msra.mxu0 0.0
    %2807 = vmatprep.subr.mxu0 0.0
    %2808 = vmatpush1.xpose.msra.mxu0 0.0
    %2809 = vmatprep.subr.mxu0 0.0
    %2810 = vmatpush1.xpose.msra.mxu0 0.0
    %2811 = vmatprep.subr.mxu0 0.0
    %2812 = vmatpush1.xpose.msra.mxu0 0.0
    %2813 = vmatprep.subr.mxu0 0.0
    %2814 = vmatpush1.xpose.msra.mxu0 %v2696
    %2815 = vmatprep.subr.mxu0 0.0
    %2816 = vmatpush1.xpose.msra.mxu0 %v2694
    %2817 = vmatprep.subr.mxu0 0.0
    %2818 = vmatpush1.xpose.msra.mxu0 %v2692
    %2819 = vmatprep.subr.mxu0 0.0
    %2820 = vmatpush1.xpose.msra.mxu0 %v2690
    %2821 = vmatprep.subr.mxu0 0.0
    %2822 = vmatpush1.xpose.msra.mxu0 %v2688
    %2823 = vmatprep.subr.mxu0 0.0
    %2824 = vmatpush1.xpose.msra.mxu0 %v2686
    %2825 = vmatprep.subr.mxu0 0.0
    %2826 = vmatpush2.xpose.msra.mxu0 0.0
    %2827 = vmatprep.subr.mxu0 0.0
    %2828 = vmatpush2.xpose.msra.mxu0 0.0
    %2829 = vmatprep.subr.mxu0 0.0
    %2830 = vmatpush2.xpose.msra.mxu0 0.0
    %2831 = vmatprep.subr.mxu0 0.0
    %2832 = vmatpush2.xpose.msra.mxu0 0.0
    %2833 = vmatprep.subr.mxu0 0.0
    %2834 = vmatpush2.xpose.msra.mxu0 0.0
    %2835 = vmatprep.subr.mxu0 0.0
    %2836 = vmatpush2.xpose.msra.mxu0 0.0
    %2837 = vmatprep.subr.mxu0 0.0
    %2838 = vmatpush2.xpose.msra.mxu0 0.0
    %2839 = vmatprep.subr.mxu0 0.0
    %2840 = vmatpush2.xpose.msra.mxu0 0.0
    %2841 = vmatprep.subr.mxu0 0.0
    %2842 = vmatpush2.xpose.msra.mxu0 0.0
    %2843 = vmatprep.subr.mxu0 0.0
    %2844 = vmatpush2.xpose.msra.mxu0 0.0
    %2845 = vmatprep.subr.mxu0 0.0
    %2846 = vmatpush2.xpose.msra.mxu0 0.0
    %2847 = vmatprep.subr.mxu0 0.0
    %2848 = vmatpush2.xpose.msra.mxu0 0.0
    %2849 = vmatprep.subr.mxu0 0.0
    %2850 = vmatpush2.xpose.msra.mxu0 0.0
    %2851 = vmatprep.subr.mxu0 0.0
    %2852 = vmatpush2.xpose.msra.mxu0 0.0
    %2853 = vmatprep.subr.mxu0 0.0
    %2854 = vmatpush2.xpose.msra.mxu0 0.0
    %2855 = vmatprep.subr.mxu0 0.0
    %2856 = vmatpush2.xpose.msra.mxu0 0.0
    %2857 = vmatprep.mubr.f32.mxu0 0.0
    %2858 = vmatmul.mubr.f32.gmra.mxu0 %v2531
    %v2859 = vpop.f32.mrf.mxu0
    %v2860 = vadd.f32 0.0, %v2859
    %v2861 = vpop.f32.mrf.mxu0
    %2862 = vmatprep.mubr.f32.mxu0 0.0
    %2863 = vmatmul.mubr.f32.gmra.mxu0 %v2533
    %v2864 = vpop.f32.mrf.mxu0
    %v2865 = vadd.f32 0.0, %v2864
    %v2866 = vpop.f32.mrf.mxu0
    %2867 = vmatprep.mubr.f32.mxu0 0.0
    %2868 = vmatmul.mubr.f32.gmra.mxu0 %v2535
    %v2869 = vpop.f32.mrf.mxu0
    %v2870 = vadd.f32 0.0, %v2869
    %v2871 = vpop.f32.mrf.mxu0
    %2872 = vmatprep.mubr.f32.mxu0 0.0
    %2873 = vmatmul.mubr.f32.gmra.mxu0 %v2537
    %v2874 = vpop.f32.mrf.mxu0
    %v2875 = vadd.f32 0.0, %v2874
    %v2876 = vpop.f32.mrf.mxu0
    %2877 = vmatprep.mubr.f32.mxu0 0.0
    %2878 = vmatmul.mubr.f32.gmra.mxu0 %v2539
    %v2879 = vpop.f32.mrf.mxu0
    %v2880 = vadd.f32 0.0, %v2879
    %v2881 = vpop.f32.mrf.mxu0
    %2882 = vmatprep.mubr.f32.mxu0 0.0
    %2883 = vmatmul.mubr.f32.gmra.mxu0 %v2541
    %v2884 = vpop.f32.mrf.mxu0
    %v2885 = vadd.f32 0.0, %v2884
    %v2886 = vpop.f32.mrf.mxu0
    %2887 = vdwg.mxu0
    %2888 = vmatprep.subr.mxu0 0.0
    %2889 = vmatpush1.xpose.msra.mxu0 0.0
    %2890 = vmatprep.subr.mxu0 0.0
    %2891 = vmatpush1.xpose.msra.mxu0 0.0
    %2892 = vmatprep.subr.mxu0 0.0
    %2893 = vmatpush1.xpose.msra.mxu0 0.0
    %2894 = vmatprep.subr.mxu0 0.0
    %2895 = vmatpush1.xpose.msra.mxu0 0.0
    %2896 = vmatprep.subr.mxu0 0.0
    %2897 = vmatpush1.xpose.msra.mxu0 0.0
    %2898 = vmatprep.subr.mxu0 0.0
    %2899 = vmatpush1.xpose.msra.mxu0 0.0
    %2900 = vmatprep.subr.mxu0 0.0
    %2901 = vmatpush1.xpose.msra.mxu0 0.0
    %2902 = vmatprep.subr.mxu0 0.0
    %2903 = vmatpush1.xpose.msra.mxu0 0.0
    %2904 = vmatprep.subr.mxu0 0.0
    %2905 = vmatpush1.xpose.msra.mxu0 0.0
    %2906 = vmatprep.subr.mxu0 0.0
    %2907 = vmatpush1.xpose.msra.mxu0 0.0
    %2908 = vmatprep.subr.mxu0 0.0
    %2909 = vmatpush1.xpose.msra.mxu0 %v2553
    %2910 = vmatprep.subr.mxu0 0.0
    %2911 = vmatpush1.xpose.msra.mxu0 %v2551
    %2912 = vmatprep.subr.mxu0 0.0
    %2913 = vmatpush1.xpose.msra.mxu0 %v2549
    %2914 = vmatprep.subr.mxu0 0.0
    %2915 = vmatpush1.xpose.msra.mxu0 %v2547
    %2916 = vmatprep.subr.mxu0 0.0
    %2917 = vmatpush1.xpose.msra.mxu0 %v2545
    %2918 = vmatprep.subr.mxu0 0.0
    %2919 = vmatpush1.xpose.msra.mxu0 %v2543
    %2920 = vmatprep.subr.mxu0 0.0
    %2921 = vmatpush2.xpose.msra.mxu0 0.0
    %2922 = vmatprep.subr.mxu0 0.0
    %2923 = vmatpush2.xpose.msra.mxu0 0.0
    %2924 = vmatprep.subr.mxu0 0.0
    %2925 = vmatpush2.xpose.msra.mxu0 0.0
    %2926 = vmatprep.subr.mxu0 0.0
    %2927 = vmatpush2.xpose.msra.mxu0 0.0
    %2928 = vmatprep.subr.mxu0 0.0
    %2929 = vmatpush2.xpose.msra.mxu0 0.0
    %2930 = vmatprep.subr.mxu0 0.0
    %2931 = vmatpush2.xpose.msra.mxu0 0.0
    %2932 = vmatprep.subr.mxu0 0.0
    %2933 = vmatpush2.xpose.msra.mxu0 0.0
    %2934 = vmatprep.subr.mxu0 0.0
    %2935 = vmatpush2.xpose.msra.mxu0 0.0
    %2936 = vmatprep.subr.mxu0 0.0
    %2937 = vmatpush2.xpose.msra.mxu0 0.0
    %2938 = vmatprep.subr.mxu0 0.0
    %2939 = vmatpush2.xpose.msra.mxu0 0.0
    %2940 = vmatprep.subr.mxu0 0.0
    %2941 = vmatpush2.xpose.msra.mxu0 0.0
    %2942 = vmatprep.subr.mxu0 0.0
    %2943 = vmatpush2.xpose.msra.mxu0 0.0
    %2944 = vmatprep.subr.mxu0 0.0
    %2945 = vmatpush2.xpose.msra.mxu0 0.0
    %2946 = vmatprep.subr.mxu0 0.0
    %2947 = vmatpush2.xpose.msra.mxu0 0.0
    %2948 = vmatprep.subr.mxu0 0.0
    %2949 = vmatpush2.xpose.msra.mxu0 0.0
    %2950 = vmatprep.subr.mxu0 0.0
    %2951 = vmatpush2.xpose.msra.mxu0 0.0
    %2952 = vmatprep.mubr.f32.mxu0 0.0
    %2953 = vmatmul.mubr.f32.gmra.mxu0 %v2674
    %v2954 = vpop.f32.mrf.mxu0
    %v2955 = vadd.f32 0.0, %v2954
    %v2956 = vpop.f32.mrf.mxu0
    %2957 = vmatprep.mubr.f32.mxu0 0.0
    %2958 = vmatmul.mubr.f32.gmra.mxu0 %v2676
    %v2959 = vpop.f32.mrf.mxu0
    %v2960 = vadd.f32 0.0, %v2959
    %v2961 = vpop.f32.mrf.mxu0
    %2962 = vmatprep.mubr.f32.mxu0 0.0
    %2963 = vmatmul.mubr.f32.gmra.mxu0 %v2678
    %v2964 = vpop.f32.mrf.mxu0
    %v2965 = vadd.f32 0.0, %v2964
    %v2966 = vpop.f32.mrf.mxu0
    %2967 = vmatprep.mubr.f32.mxu0 0.0
    %2968 = vmatmul.mubr.f32.gmra.mxu0 %v2680
    %v2969 = vpop.f32.mrf.mxu0
    %v2970 = vadd.f32 0.0, %v2969
    %v2971 = vpop.f32.mrf.mxu0
    %2972 = vmatprep.mubr.f32.mxu0 0.0
    %2973 = vmatmul.mubr.f32.gmra.mxu0 %v2682
    %v2974 = vpop.f32.mrf.mxu0
    %v2975 = vadd.f32 0.0, %v2974
    %v2976 = vpop.f32.mrf.mxu0
    %2977 = vmatprep.mubr.f32.mxu0 0.0
    %2978 = vmatmul.mubr.f32.gmra.mxu0 %v2684
    %v2979 = vpop.f32.mrf.mxu0
    %v2980 = vadd.f32 0.0, %v2979
    %v2981 = vpop.f32.mrf.mxu0
    %2982 = vdwg.mxu0
    %v2983 = vsub.f32 %v2860, %v2955
    %v2984 = vsub.f32 %v2865, %v2960
    %v2985 = vsub.f32 %v2870, %v2965
    %v2986 = vsub.f32 %v2875, %v2970
    %v2987 = vsub.f32 %v2880, %v2975
    %v2988 = vsub.f32 %v2885, %v2980
    %v2989 = vmul.f32 %v2765, %v2765
    %v2990 = vmul.f32 %v2770, %v2770
    %v2991 = vmul.f32 %v2775, %v2775
    %v2992 = vmul.f32 %v2780, %v2780
    %v2993 = vmul.f32 %v2785, %v2785
    %v2994 = vmul.f32 %v2790, %v2790
    %v2995 = vmul.f32 %v2983, %v2983
    %v2996 = vmul.f32 %v2984, %v2984
    %v2997 = vmul.f32 %v2985, %v2985
    %v2998 = vmul.f32 %v2986, %v2986
    %v2999 = vmul.f32 %v2987, %v2987
    %v3000 = vmul.f32 %v2988, %v2988
    %v3001 = vadd.f32 %v2989, %v2995
    %v3002 = vadd.f32 %v2990, %v2996
    %v3003 = vadd.f32 %v2991, %v2997
    %v3004 = vadd.f32 %v2992, %v2998
    %v3005 = vadd.f32 %v2993, %v2999
    %v3006 = vadd.f32 %v2994, %v3000
    %v3007 = vrsqrt.pop %v3001
    %v3008 = vmul.f32 %v3001, %v3007
    %vm3009 = vcmp.eq.f32.partialorder %v3001, inf
    %v3010 = vsel %vm3009, %v3001, %v3008
    %vm3011 = vcmp.eq.f32.partialorder %v3001, 0.0
    %v3012 = vand.u32 %v3001, 2147483648
    %v3013 = vsel %vm3011, %v3012, %v3010
    %v3014 = vrsqrt.pop %v3002
    %v3015 = vmul.f32 %v3002, %v3014
    %vm3016 = vcmp.eq.f32.partialorder %v3002, inf
    %v3017 = vsel %vm3016, %v3002, %v3015
    %vm3018 = vcmp.eq.f32.partialorder %v3002, 0.0
    %v3019 = vand.u32 %v3002, 2147483648
    %v3020 = vsel %vm3018, %v3019, %v3017
    %v3021 = vrsqrt.pop %v3003
    %v3022 = vmul.f32 %v3003, %v3021
    %vm3023 = vcmp.eq.f32.partialorder %v3003, inf
    %v3024 = vsel %vm3023, %v3003, %v3022
    %vm3025 = vcmp.eq.f32.partialorder %v3003, 0.0
    %v3026 = vand.u32 %v3003, 2147483648
    %v3027 = vsel %vm3025, %v3026, %v3024
    %v3028 = vrsqrt.pop %v3004
    %v3029 = vmul.f32 %v3004, %v3028
    %vm3030 = vcmp.eq.f32.partialorder %v3004, inf
    %v3031 = vsel %vm3030, %v3004, %v3029
    %vm3032 = vcmp.eq.f32.partialorder %v3004, 0.0
    %v3033 = vand.u32 %v3004, 2147483648
    %v3034 = vsel %vm3032, %v3033, %v3031
    %v3035 = vrsqrt.pop %v3005
    %v3036 = vmul.f32 %v3005, %v3035
    %vm3037 = vcmp.eq.f32.partialorder %v3005, inf
    %v3038 = vsel %vm3037, %v3005, %v3036
    %vm3039 = vcmp.eq.f32.partialorder %v3005, 0.0
    %v3040 = vand.u32 %v3005, 2147483648
    %v3041 = vsel %vm3039, %v3040, %v3038
    %v3042 = vrsqrt.pop %v3006
    %v3043 = vmul.f32 %v3006, %v3042
    %vm3044 = vcmp.eq.f32.partialorder %v3006, inf
    %v3045 = vsel %vm3044, %v3006, %v3043
    %vm3046 = vcmp.eq.f32.partialorder %v3006, 0.0
    %v3047 = vand.u32 %v3006, 2147483648
    %v3048 = vsel %vm3046, %v3047, %v3045
    %v3049 = vmul.f32 %v3013, 0.35355338
    %v3050 = vmul.f32 %v3020, 0.35355338
    %v3051 = vmul.f32 %v3027, 0.35355338
    %v3052 = vmul.f32 %v3034, 0.35355338
    %v3053 = vmul.f32 %v3041, 0.35355338
    %v3054 = vmul.f32 %v3048, 0.35355338
    %v3055 = vadd.f32 %v3049, %v260
    %v3056 = vadd.f32 %v3050, %v261
    %v3057 = vadd.f32 %v3051, %v262
    %v3058 = vadd.f32 %v3052, %v263
    %v3059 = vadd.f32 %v3053, %v264
    %v3060 = vadd.f32 %v3054, %v265
    %v3061 = vsel %vm1221, %v3055, -inf
    %3062 = vmax.xlane.f32.xlu0 %v3061
    %v3063 = vpop.xlane.xlu0 %3062
    %v3064 = vsel %vm1221, %v3056, -inf
    %3065 = vmax.xlane.f32.xlu0 %v3064
    %v3066 = vpop.xlane.xlu0 %3065
    %v3067 = vsel %vm1221, %v3057, -inf
    %3068 = vmax.xlane.f32.xlu0 %v3067
    %v3069 = vpop.xlane.xlu0 %3068
    %v3070 = vsel %vm1221, %v3058, -inf
    %3071 = vmax.xlane.f32.xlu0 %v3070
    %v3072 = vpop.xlane.xlu0 %3071
    %v3073 = vsel %vm1221, %v3059, -inf
    %3074 = vmax.xlane.f32.xlu0 %v3073
    %v3075 = vpop.xlane.xlu0 %3074
    %v3076 = vsel %vm1221, %v3060, -inf
    %3077 = vmax.xlane.f32.xlu0 %v3076
    %v3078 = vpop.xlane.xlu0 %3077
    %v3079 = vsub.f32 %v3055, %v3063
    %v3080 = vsub.f32 %v3056, %v3066
    %v3081 = vsub.f32 %v3057, %v3069
    %v3082 = vsub.f32 %v3058, %v3072
    %v3083 = vsub.f32 %v3059, %v3075
    %v3084 = vsub.f32 %v3060, %v3078
    %v3085 = vmul.f32 %v3079, 1.442695
    %v3086 = vpow.pop %v3085
    %v3087 = vmul.f32 %v3080, 1.442695
    %v3088 = vpow.pop %v3087
    %v3089 = vmul.f32 %v3081, 1.442695
    %v3090 = vpow.pop %v3089
    %v3091 = vmul.f32 %v3082, 1.442695
    %v3092 = vpow.pop %v3091
    %v3093 = vmul.f32 %v3083, 1.442695
    %v3094 = vpow.pop %v3093
    %v3095 = vmul.f32 %v3084, 1.442695
    %v3096 = vpow.pop %v3095
    %v3097 = vsel %vm1221, %v3086, 0.0
    %3098 = vadd.xlane.f32.xlu0 %v3097
    %v3099 = vpop.xlane.xlu0 %3098
    %v3100 = vsel %vm1221, %v3088, 0.0
    %3101 = vadd.xlane.f32.xlu0 %v3100
    %v3102 = vpop.xlane.xlu0 %3101
    %v3103 = vsel %vm1221, %v3090, 0.0
    %3104 = vadd.xlane.f32.xlu0 %v3103
    %v3105 = vpop.xlane.xlu0 %3104
    %v3106 = vsel %vm1221, %v3092, 0.0
    %3107 = vadd.xlane.f32.xlu0 %v3106
    %v3108 = vpop.xlane.xlu0 %3107
    %v3109 = vsel %vm1221, %v3094, 0.0
    %3110 = vadd.xlane.f32.xlu0 %v3109
    %v3111 = vpop.xlane.xlu0 %3110
    %v3112 = vsel %vm1221, %v3096, 0.0
    %3113 = vadd.xlane.f32.xlu0 %v3112
    %v3114 = vpop.xlane.xlu0 %3113
    %v3115 = vrcp.pop %v3099
    %v3116 = vrcp.pop %v3102
    %v3117 = vrcp.pop %v3105
    %v3118 = vrcp.pop %v3108
    %v3119 = vrcp.pop %v3111
    %v3120 = vrcp.pop %v3114
    %v3121 = vmul.f32 %v3086, %v3115
    %v3122 = vmul.f32 %v3088, %v3116
    %v3123 = vmul.f32 %v3090, %v3117
    %v3124 = vmul.f32 %v3092, %v3118
    %v3125 = vmul.f32 %v3094, %v3119
    %v3126 = vmul.f32 %v3096, %v3120
    %3127 = vrot.lane.b32.xlu0 %v380, 48
    %v3128 = vpop.permute.xlu0 %3127
    %3129 = vrot.lane.b32.xlu0 %v386, 48
    %v3130 = vpop.permute.xlu0 %3129
    %3131 = vrot.lane.b32.xlu0 %v392, 48
    %v3132 = vpop.permute.xlu0 %3131
    %3133 = vrot.lane.b32.xlu0 %v398, 48
    %v3134 = vpop.permute.xlu0 %3133
    %3135 = vrot.lane.b32.xlu0 %v404, 48
    %v3136 = vpop.permute.xlu0 %3135
    %3137 = vrot.lane.b32.xlu0 %v410, 48
    %v3138 = vpop.permute.xlu0 %3137
    %v3146 = vsel %vm1221, %v3121, 0
    %v3149 = vsel %vm1221, %v3122, 0
    %v3152 = vsel %vm1221, %v3123, 0
    %v3155 = vsel %vm1221, %v3124, 0
    %v3158 = vsel %vm1221, %v3125, 0
    %v3161 = vsel %vm1221, %v3126, 0
    %3163 = vmatprep.subr.mxu0 0.0
    %3164 = vmatpush1.msra.mxu0 0.0
    %3165 = vmatprep.subr.mxu0 0.0
    %3166 = vmatpush1.msra.mxu0 0.0
    %3167 = vmatprep.subr.mxu0 0.0
    %3168 = vmatpush1.msra.mxu0 0.0
    %3169 = vmatprep.subr.mxu0 0.0
    %3170 = vmatpush1.msra.mxu0 0.0
    %3171 = vmatprep.subr.mxu0 0.0
    %3172 = vmatpush1.msra.mxu0 0.0
    %3173 = vmatprep.subr.mxu0 0.0
    %3174 = vmatpush1.msra.mxu0 0.0
    %3175 = vmatprep.subr.mxu0 0.0
    %3176 = vmatpush1.msra.mxu0 0.0
    %3177 = vmatprep.subr.mxu0 0.0
    %3178 = vmatpush1.msra.mxu0 0.0
    %3179 = vmatprep.subr.mxu0 0.0
    %3180 = vmatpush1.msra.mxu0 0.0
    %3181 = vmatprep.subr.mxu0 0.0
    %3182 = vmatpush1.msra.mxu0 0.0
    %3183 = vmatprep.subr.mxu0 0.0
    %3184 = vmatpush1.msra.mxu0 %v3138
    %3185 = vmatprep.subr.mxu0 0.0
    %3186 = vmatpush1.msra.mxu0 %v3136
    %3187 = vmatprep.subr.mxu0 0.0
    %3188 = vmatpush1.msra.mxu0 %v3134
    %3189 = vmatprep.subr.mxu0 0.0
    %3190 = vmatpush1.msra.mxu0 %v3132
    %3191 = vmatprep.subr.mxu0 0.0
    %3192 = vmatpush1.msra.mxu0 %v3130
    %3193 = vmatprep.subr.mxu0 0.0
    %3194 = vmatpush1.msra.mxu0 %v3128
    %3195 = vmatprep.subr.mxu0 0.0
    %3196 = vmatpush2.msra.mxu0 0.0
    %3197 = vmatprep.subr.mxu0 0.0
    %3198 = vmatpush2.msra.mxu0 0.0
    %3199 = vmatprep.subr.mxu0 0.0
    %3200 = vmatpush2.msra.mxu0 0.0
    %3201 = vmatprep.subr.mxu0 0.0
    %3202 = vmatpush2.msra.mxu0 0.0
    %3203 = vmatprep.subr.mxu0 0.0
    %3204 = vmatpush2.msra.mxu0 0.0
    %3205 = vmatprep.subr.mxu0 0.0
    %3206 = vmatpush2.msra.mxu0 0.0
    %3207 = vmatprep.subr.mxu0 0.0
    %3208 = vmatpush2.msra.mxu0 0.0
    %3209 = vmatprep.subr.mxu0 0.0
    %3210 = vmatpush2.msra.mxu0 0.0
    %3211 = vmatprep.subr.mxu0 0.0
    %3212 = vmatpush2.msra.mxu0 0.0
    %3213 = vmatprep.subr.mxu0 0.0
    %3214 = vmatpush2.msra.mxu0 0.0
    %3215 = vmatprep.subr.mxu0 0.0
    %3216 = vmatpush2.msra.mxu0 0.0
    %3217 = vmatprep.subr.mxu0 0.0
    %3218 = vmatpush2.msra.mxu0 0.0
    %3219 = vmatprep.subr.mxu0 0.0
    %3220 = vmatpush2.msra.mxu0 0.0
    %3221 = vmatprep.subr.mxu0 0.0
    %3222 = vmatpush2.msra.mxu0 0.0
    %3223 = vmatprep.subr.mxu0 0.0
    %3224 = vmatpush2.msra.mxu0 0.0
    %3225 = vmatprep.subr.mxu0 0.0
    %3226 = vmatpush2.msra.mxu0 0.0
    %3227 = vmatprep.mubr.f32.mxu0 0.0
    %3228 = vmatmul.mubr.f32.gmra.mxu0 %v3146
    %v3229 = vpop.f32.mrf.mxu0
    %v3230 = vadd.f32 0.0, %v3229
    %v3231 = vpop.f32.mrf.mxu0
    %3232 = vmatprep.mubr.f32.mxu0 0.0
    %3233 = vmatmul.mubr.f32.gmra.mxu0 %v3149
    %v3234 = vpop.f32.mrf.mxu0
    %v3235 = vadd.f32 0.0, %v3234
    %v3236 = vpop.f32.mrf.mxu0
    %3237 = vmatprep.mubr.f32.mxu0 0.0
    %3238 = vmatmul.mubr.f32.gmra.mxu0 %v3152
    %v3239 = vpop.f32.mrf.mxu0
    %v3240 = vadd.f32 0.0, %v3239
    %v3241 = vpop.f32.mrf.mxu0
    %3242 = vmatprep.mubr.f32.mxu0 0.0
    %3243 = vmatmul.mubr.f32.gmra.mxu0 %v3155
    %v3244 = vpop.f32.mrf.mxu0
    %v3245 = vadd.f32 0.0, %v3244
    %v3246 = vpop.f32.mrf.mxu0
    %3247 = vmatprep.mubr.f32.mxu0 0.0
    %3248 = vmatmul.mubr.f32.gmra.mxu0 %v3158
    %v3249 = vpop.f32.mrf.mxu0
    %v3250 = vadd.f32 0.0, %v3249
    %v3251 = vpop.f32.mrf.mxu0
    %3252 = vmatprep.mubr.f32.mxu0 0.0
    %3253 = vmatmul.mubr.f32.gmra.mxu0 %v3161
    %v3254 = vpop.f32.mrf.mxu0
    %v3255 = vadd.f32 0.0, %v3254
    %v3256 = vpop.f32.mrf.mxu0
    %3257 = vdwg.mxu0
    %3264 = vrot.lane.b32.xlu0 %v3230, 16
    %v3265 = vpop.permute.xlu0 %3264
    %3266 = vrot.lane.b32.xlu0 %v3235, 16
    %v3267 = vpop.permute.xlu0 %3266
    %3268 = vrot.lane.b32.xlu0 %v3240, 16
    %v3269 = vpop.permute.xlu0 %3268
    %3270 = vrot.lane.b32.xlu0 %v3245, 16
    %v3271 = vpop.permute.xlu0 %3270
    %3272 = vrot.lane.b32.xlu0 %v3250, 16
    %v3273 = vpop.permute.xlu0 %3272
    %3274 = vrot.lane.b32.xlu0 %v3255, 16
    %v3275 = vpop.permute.xlu0 %3274
    %vm3282 = vcmask 195712
    %3283 = vst.msk [vmem:[#allocation2] sm:$0xff] %vm3282, %v3265
    %3284 = vst.msk [vmem:[#allocation2 + $0x8] sm:$0xff] %vm3282, %v3267
    %3285 = vst.msk [vmem:[#allocation2 + $0x10] sm:$0xff] %vm3282, %v3269
    %3286 = vst.msk [vmem:[#allocation2 + $0x18] sm:$0xff] %vm3282, %v3271
    %3287 = vst.msk [vmem:[#allocation2 + $0x20] sm:$0xff] %vm3282, %v3273
    %3288 = vst.msk [vmem:[#allocation2 + $0x28] sm:$0xff] %vm3282, %v3275
    %3289 = vrot.lane.b32.xlu0 %v382, 80
    %v3290 = vpop.permute.xlu0 %3289
    %3291 = vrot.lane.b32.xlu0 %v388, 80
    %v3292 = vpop.permute.xlu0 %3291
    %3293 = vrot.lane.b32.xlu0 %v394, 80
    %v3294 = vpop.permute.xlu0 %3293
    %3295 = vrot.lane.b32.xlu0 %v400, 80
    %v3296 = vpop.permute.xlu0 %3295
    %3297 = vrot.lane.b32.xlu0 %v406, 80
    %v3298 = vpop.permute.xlu0 %3297
    %3299 = vrot.lane.b32.xlu0 %v412, 80
    %v3300 = vpop.permute.xlu0 %3299
    %3307 = vmatprep.subr.mxu0 0.0
    %3308 = vmatpush1.msra.mxu0 0.0
    %3309 = vmatprep.subr.mxu0 0.0
    %3310 = vmatpush1.msra.mxu0 0.0
    %3311 = vmatprep.subr.mxu0 0.0
    %3312 = vmatpush1.msra.mxu0 0.0
    %3313 = vmatprep.subr.mxu0 0.0
    %3314 = vmatpush1.msra.mxu0 0.0
    %3315 = vmatprep.subr.mxu0 0.0
    %3316 = vmatpush1.msra.mxu0 0.0
    %3317 = vmatprep.subr.mxu0 0.0
    %3318 = vmatpush1.msra.mxu0 0.0
    %3319 = vmatprep.subr.mxu0 0.0
    %3320 = vmatpush1.msra.mxu0 0.0
    %3321 = vmatprep.subr.mxu0 0.0
    %3322 = vmatpush1.msra.mxu0 0.0
    %3323 = vmatprep.subr.mxu0 0.0
    %3324 = vmatpush1.msra.mxu0 0.0
    %3325 = vmatprep.subr.mxu0 0.0
    %3326 = vmatpush1.msra.mxu0 0.0
    %3327 = vmatprep.subr.mxu0 0.0
    %3328 = vmatpush1.msra.mxu0 %v3300
    %3329 = vmatprep.subr.mxu0 0.0
    %3330 = vmatpush1.msra.mxu0 %v3298
    %3331 = vmatprep.subr.mxu0 0.0
    %3332 = vmatpush1.msra.mxu0 %v3296
    %3333 = vmatprep.subr.mxu0 0.0
    %3334 = vmatpush1.msra.mxu0 %v3294
    %3335 = vmatprep.subr.mxu0 0.0
    %3336 = vmatpush1.msra.mxu0 %v3292
    %3337 = vmatprep.subr.mxu0 0.0
    %3338 = vmatpush1.msra.mxu0 %v3290
    %3339 = vmatprep.subr.mxu0 0.0
    %3340 = vmatpush2.msra.mxu0 0.0
    %3341 = vmatprep.subr.mxu0 0.0
    %3342 = vmatpush2.msra.mxu0 0.0
    %3343 = vmatprep.subr.mxu0 0.0
    %3344 = vmatpush2.msra.mxu0 0.0
    %3345 = vmatprep.subr.mxu0 0.0
    %3346 = vmatpush2.msra.mxu0 0.0
    %3347 = vmatprep.subr.mxu0 0.0
    %3348 = vmatpush2.msra.mxu0 0.0
    %3349 = vmatprep.subr.mxu0 0.0
    %3350 = vmatpush2.msra.mxu0 0.0
    %3351 = vmatprep.subr.mxu0 0.0
    %3352 = vmatpush2.msra.mxu0 0.0
    %3353 = vmatprep.subr.mxu0 0.0
    %3354 = vmatpush2.msra.mxu0 0.0
    %3355 = vmatprep.subr.mxu0 0.0
    %3356 = vmatpush2.msra.mxu0 0.0
    %3357 = vmatprep.subr.mxu0 0.0
    %3358 = vmatpush2.msra.mxu0 0.0
    %3359 = vmatprep.subr.mxu0 0.0
    %3360 = vmatpush2.msra.mxu0 0.0
    %3361 = vmatprep.subr.mxu0 0.0
    %3362 = vmatpush2.msra.mxu0 0.0
    %3363 = vmatprep.subr.mxu0 0.0
    %3364 = vmatpush2.msra.mxu0 0.0
    %3365 = vmatprep.subr.mxu0 0.0
    %3366 = vmatpush2.msra.mxu0 0.0
    %3367 = vmatprep.subr.mxu0 0.0
    %3368 = vmatpush2.msra.mxu0 0.0
    %3369 = vmatprep.subr.mxu0 0.0
    %3370 = vmatpush2.msra.mxu0 0.0
    %3371 = vmatprep.mubr.f32.mxu0 0.0
    %3372 = vmatmul.mubr.f32.gmra.mxu0 %v3146
    %v3373 = vpop.f32.mrf.mxu0
    %v3374 = vadd.f32 0.0, %v3373
    %v3375 = vpop.f32.mrf.mxu0
    %3376 = vmatprep.mubr.f32.mxu0 0.0
    %3377 = vmatmul.mubr.f32.gmra.mxu0 %v3149
    %v3378 = vpop.f32.mrf.mxu0
    %v3379 = vadd.f32 0.0, %v3378
    %v3380 = vpop.f32.mrf.mxu0
    %3381 = vmatprep.mubr.f32.mxu0 0.0
    %3382 = vmatmul.mubr.f32.gmra.mxu0 %v3152
    %v3383 = vpop.f32.mrf.mxu0
    %v3384 = vadd.f32 0.0, %v3383
    %v3385 = vpop.f32.mrf.mxu0
    %3386 = vmatprep.mubr.f32.mxu0 0.0
    %3387 = vmatmul.mubr.f32.gmra.mxu0 %v3155
    %v3388 = vpop.f32.mrf.mxu0
    %v3389 = vadd.f32 0.0, %v3388
    %v3390 = vpop.f32.mrf.mxu0
    %3391 = vmatprep.mubr.f32.mxu0 0.0
    %3392 = vmatmul.mubr.f32.gmra.mxu0 %v3158
    %v3393 = vpop.f32.mrf.mxu0
    %v3394 = vadd.f32 0.0, %v3393
    %v3395 = vpop.f32.mrf.mxu0
    %3396 = vmatprep.mubr.f32.mxu0 0.0
    %3397 = vmatmul.mubr.f32.gmra.mxu0 %v3161
    %v3398 = vpop.f32.mrf.mxu0
    %v3399 = vadd.f32 0.0, %v3398
    %v3400 = vpop.f32.mrf.mxu0
    %3401 = vdwg.mxu0
    %3408 = vrot.lane.b32.xlu0 %v3374, 48
    %v3409 = vpop.permute.xlu0 %3408
    %3410 = vrot.lane.b32.xlu0 %v3379, 48
    %v3411 = vpop.permute.xlu0 %3410
    %3412 = vrot.lane.b32.xlu0 %v3384, 48
    %v3413 = vpop.permute.xlu0 %3412
    %3414 = vrot.lane.b32.xlu0 %v3389, 48
    %v3415 = vpop.permute.xlu0 %3414
    %3416 = vrot.lane.b32.xlu0 %v3394, 48
    %v3417 = vpop.permute.xlu0 %3416
    %3418 = vrot.lane.b32.xlu0 %v3399, 48
    %v3419 = vpop.permute.xlu0 %3418
    %vm3426 = vcmask 458112
    %3427 = vst.msk [vmem:[#allocation2] sm:$0xff] %vm3426, %v3409
    %3428 = vst.msk [vmem:[#allocation2 + $0x8] sm:$0xff] %vm3426, %v3411
    %3429 = vst.msk [vmem:[#allocation2 + $0x10] sm:$0xff] %vm3426, %v3413
    %3430 = vst.msk [vmem:[#allocation2 + $0x18] sm:$0xff] %vm3426, %v3415
    %3431 = vst.msk [vmem:[#allocation2 + $0x20] sm:$0xff] %vm3426, %v3417
    %3432 = vst.msk [vmem:[#allocation2 + $0x28] sm:$0xff] %vm3426, %v3419
    %3433 = vrot.lane.b32.xlu0 %v540, 104
    %v3434 = vpop.permute.xlu0 %3433
    %3435 = vrot.lane.b32.xlu0 %v541, 104
    %v3436 = vpop.permute.xlu0 %3435
    %3437 = vrot.lane.b32.xlu0 %v542, 104
    %v3438 = vpop.permute.xlu0 %3437
    %3439 = vrot.lane.b32.xlu0 %v543, 104
    %v3440 = vpop.permute.xlu0 %3439
    %3441 = vrot.lane.b32.xlu0 %v544, 104
    %v3442 = vpop.permute.xlu0 %3441
    %3443 = vrot.lane.b32.xlu0 %v545, 104
    %v3444 = vpop.permute.xlu0 %3443
    %3445 = vrot.lane.b32.xlu0 %v660, 72
    %v3446 = vpop.permute.xlu0 %3445
    %3447 = vrot.lane.b32.xlu0 %v661, 72
    %v3448 = vpop.permute.xlu0 %3447
    %3449 = vrot.lane.b32.xlu0 %v662, 72
    %v3450 = vpop.permute.xlu0 %3449
    %3451 = vrot.lane.b32.xlu0 %v663, 72
    %v3452 = vpop.permute.xlu0 %3451
    %3453 = vrot.lane.b32.xlu0 %v664, 72
    %v3454 = vpop.permute.xlu0 %3453
    %3455 = vrot.lane.b32.xlu0 %v665, 72
    %v3456 = vpop.permute.xlu0 %3455
    %v3457 = vsel %vm684, %v3434, 0
    %v3459 = vsel %vm684, %v3436, 0
    %v3461 = vsel %vm684, %v3438, 0
    %v3463 = vsel %vm684, %v3440, 0
    %v3465 = vsel %vm684, %v3442, 0
    %v3467 = vsel %vm684, %v3444, 0
    %v3469 = vsel %vm684, %v3446, 0
    %v3471 = vsel %vm684, %v3448, 0
    %v3473 = vsel %vm684, %v3450, 0
    %v3475 = vsel %vm684, %v3452, 0
    %v3477 = vsel %vm684, %v3454, 0
    %v3479 = vsel %vm684, %v3456, 0
    %3481 = vmatprep.subr.mxu0 0.0
    %3482 = vmatpush1.xpose.msra.mxu0 0.0
    %3483 = vmatprep.subr.mxu0 0.0
    %3484 = vmatpush1.xpose.msra.mxu0 0.0
    %3485 = vmatprep.subr.mxu0 0.0
    %3486 = vmatpush1.xpose.msra.mxu0 0.0
    %3487 = vmatprep.subr.mxu0 0.0
    %3488 = vmatpush1.xpose.msra.mxu0 0.0
    %3489 = vmatprep.subr.mxu0 0.0
    %3490 = vmatpush1.xpose.msra.mxu0 0.0
    %3491 = vmatprep.subr.mxu0 0.0
    %3492 = vmatpush1.xpose.msra.mxu0 0.0
    %3493 = vmatprep.subr.mxu0 0.0
    %3494 = vmatpush1.xpose.msra.mxu0 0.0
    %3495 = vmatprep.subr.mxu0 0.0
    %3496 = vmatpush1.xpose.msra.mxu0 0.0
    %3497 = vmatprep.subr.mxu0 0.0
    %3498 = vmatpush1.xpose.msra.mxu0 0.0
    %3499 = vmatprep.subr.mxu0 0.0
    %3500 = vmatpush1.xpose.msra.mxu0 0.0
    %3501 = vmatprep.subr.mxu0 0.0
    %3502 = vmatpush1.xpose.msra.mxu0 %v3479
    %3503 = vmatprep.subr.mxu0 0.0
    %3504 = vmatpush1.xpose.msra.mxu0 %v3477
    %3505 = vmatprep.subr.mxu0 0.0
    %3506 = vmatpush1.xpose.msra.mxu0 %v3475
    %3507 = vmatprep.subr.mxu0 0.0
    %3508 = vmatpush1.xpose.msra.mxu0 %v3473
    %3509 = vmatprep.subr.mxu0 0.0
    %3510 = vmatpush1.xpose.msra.mxu0 %v3471
    %3511 = vmatprep.subr.mxu0 0.0
    %3512 = vmatpush1.xpose.msra.mxu0 %v3469
    %3513 = vmatprep.subr.mxu0 0.0
    %3514 = vmatpush2.xpose.msra.mxu0 0.0
    %3515 = vmatprep.subr.mxu0 0.0
    %3516 = vmatpush2.xpose.msra.mxu0 0.0
    %3517 = vmatprep.subr.mxu0 0.0
    %3518 = vmatpush2.xpose.msra.mxu0 0.0
    %3519 = vmatprep.subr.mxu0 0.0
    %3520 = vmatpush2.xpose.msra.mxu0 0.0
    %3521 = vmatprep.subr.mxu0 0.0
    %3522 = vmatpush2.xpose.msra.mxu0 0.0
    %3523 = vmatprep.subr.mxu0 0.0
    %3524 = vmatpush2.xpose.msra.mxu0 0.0
    %3525 = vmatprep.subr.mxu0 0.0
    %3526 = vmatpush2.xpose.msra.mxu0 0.0
    %3527 = vmatprep.subr.mxu0 0.0
    %3528 = vmatpush2.xpose.msra.mxu0 0.0
    %3529 = vmatprep.subr.mxu0 0.0
    %3530 = vmatpush2.xpose.msra.mxu0 0.0
    %3531 = vmatprep.subr.mxu0 0.0
    %3532 = vmatpush2.xpose.msra.mxu0 0.0
    %3533 = vmatprep.subr.mxu0 0.0
    %3534 = vmatpush2.xpose.msra.mxu0 0.0
    %3535 = vmatprep.subr.mxu0 0.0
    %3536 = vmatpush2.xpose.msra.mxu0 0.0
    %3537 = vmatprep.subr.mxu0 0.0
    %3538 = vmatpush2.xpose.msra.mxu0 0.0
    %3539 = vmatprep.subr.mxu0 0.0
    %3540 = vmatpush2.xpose.msra.mxu0 0.0
    %3541 = vmatprep.subr.mxu0 0.0
    %3542 = vmatpush2.xpose.msra.mxu0 0.0
    %3543 = vmatprep.subr.mxu0 0.0
    %3544 = vmatpush2.xpose.msra.mxu0 0.0
    %3545 = vmatprep.mubr.f32.mxu0 0.0
    %3546 = vmatmul.mubr.f32.gmra.mxu0 %v3457
    %v3547 = vpop.f32.mrf.mxu0
    %v3548 = vadd.f32 0.0, %v3547
    %v3549 = vpop.f32.mrf.mxu0
    %3550 = vmatprep.mubr.f32.mxu0 0.0
    %3551 = vmatmul.mubr.f32.gmra.mxu0 %v3459
    %v3552 = vpop.f32.mrf.mxu0
    %v3553 = vadd.f32 0.0, %v3552
    %v3554 = vpop.f32.mrf.mxu0
    %3555 = vmatprep.mubr.f32.mxu0 0.0
    %3556 = vmatmul.mubr.f32.gmra.mxu0 %v3461
    %v3557 = vpop.f32.mrf.mxu0
    %v3558 = vadd.f32 0.0, %v3557
    %v3559 = vpop.f32.mrf.mxu0
    %3560 = vmatprep.mubr.f32.mxu0 0.0
    %3561 = vmatmul.mubr.f32.gmra.mxu0 %v3463
    %v3562 = vpop.f32.mrf.mxu0
    %v3563 = vadd.f32 0.0, %v3562
    %v3564 = vpop.f32.mrf.mxu0
    %3565 = vmatprep.mubr.f32.mxu0 0.0
    %3566 = vmatmul.mubr.f32.gmra.mxu0 %v3465
    %v3567 = vpop.f32.mrf.mxu0
    %v3568 = vadd.f32 0.0, %v3567
    %v3569 = vpop.f32.mrf.mxu0
    %3570 = vmatprep.mubr.f32.mxu0 0.0
    %3571 = vmatmul.mubr.f32.gmra.mxu0 %v3467
    %v3572 = vpop.f32.mrf.mxu0
    %v3573 = vadd.f32 0.0, %v3572
    %v3574 = vpop.f32.mrf.mxu0
    %3575 = vdwg.mxu0
    %3576 = vrot.lane.b32.xlu0 %v474, 104
    %v3577 = vpop.permute.xlu0 %3576
    %3578 = vrot.lane.b32.xlu0 %v475, 104
    %v3579 = vpop.permute.xlu0 %3578
    %3580 = vrot.lane.b32.xlu0 %v476, 104
    %v3581 = vpop.permute.xlu0 %3580
    %3582 = vrot.lane.b32.xlu0 %v477, 104
    %v3583 = vpop.permute.xlu0 %3582
    %3584 = vrot.lane.b32.xlu0 %v478, 104
    %v3585 = vpop.permute.xlu0 %3584
    %3586 = vrot.lane.b32.xlu0 %v479, 104
    %v3587 = vpop.permute.xlu0 %3586
    %3588 = vrot.lane.b32.xlu0 %v600, 72
    %v3589 = vpop.permute.xlu0 %3588
    %3590 = vrot.lane.b32.xlu0 %v601, 72
    %v3591 = vpop.permute.xlu0 %3590
    %3592 = vrot.lane.b32.xlu0 %v602, 72
    %v3593 = vpop.permute.xlu0 %3592
    %3594 = vrot.lane.b32.xlu0 %v603, 72
    %v3595 = vpop.permute.xlu0 %3594
    %3596 = vrot.lane.b32.xlu0 %v604, 72
    %v3597 = vpop.permute.xlu0 %3596
    %3598 = vrot.lane.b32.xlu0 %v605, 72
    %v3599 = vpop.permute.xlu0 %3598
    %v3600 = vsel %vm684, %v3577, 0
    %v3602 = vsel %vm684, %v3579, 0
    %v3604 = vsel %vm684, %v3581, 0
    %v3606 = vsel %vm684, %v3583, 0
    %v3608 = vsel %vm684, %v3585, 0
    %v3610 = vsel %vm684, %v3587, 0
    %v3612 = vsel %vm684, %v3589, 0
    %v3614 = vsel %vm684, %v3591, 0
    %v3616 = vsel %vm684, %v3593, 0
    %v3618 = vsel %vm684, %v3595, 0
    %v3620 = vsel %vm684, %v3597, 0
    %v3622 = vsel %vm684, %v3599, 0
    %3624 = vmatprep.subr.mxu0 0.0
    %3625 = vmatpush1.xpose.msra.mxu0 0.0
    %3626 = vmatprep.subr.mxu0 0.0
    %3627 = vmatpush1.xpose.msra.mxu0 0.0
    %3628 = vmatprep.subr.mxu0 0.0
    %3629 = vmatpush1.xpose.msra.mxu0 0.0
    %3630 = vmatprep.subr.mxu0 0.0
    %3631 = vmatpush1.xpose.msra.mxu0 0.0
    %3632 = vmatprep.subr.mxu0 0.0
    %3633 = vmatpush1.xpose.msra.mxu0 0.0
    %3634 = vmatprep.subr.mxu0 0.0
    %3635 = vmatpush1.xpose.msra.mxu0 0.0
    %3636 = vmatprep.subr.mxu0 0.0
    %3637 = vmatpush1.xpose.msra.mxu0 0.0
    %3638 = vmatprep.subr.mxu0 0.0
    %3639 = vmatpush1.xpose.msra.mxu0 0.0
    %3640 = vmatprep.subr.mxu0 0.0
    %3641 = vmatpush1.xpose.msra.mxu0 0.0
    %3642 = vmatprep.subr.mxu0 0.0
    %3643 = vmatpush1.xpose.msra.mxu0 0.0
    %3644 = vmatprep.subr.mxu0 0.0
    %3645 = vmatpush1.xpose.msra.mxu0 %v3622
    %3646 = vmatprep.subr.mxu0 0.0
    %3647 = vmatpush1.xpose.msra.mxu0 %v3620
    %3648 = vmatprep.subr.mxu0 0.0
    %3649 = vmatpush1.xpose.msra.mxu0 %v3618
    %3650 = vmatprep.subr.mxu0 0.0
    %3651 = vmatpush1.xpose.msra.mxu0 %v3616
    %3652 = vmatprep.subr.mxu0 0.0
    %3653 = vmatpush1.xpose.msra.mxu0 %v3614
    %3654 = vmatprep.subr.mxu0 0.0
    %3655 = vmatpush1.xpose.msra.mxu0 %v3612
    %3656 = vmatprep.subr.mxu0 0.0
    %3657 = vmatpush2.xpose.msra.mxu0 0.0
    %3658 = vmatprep.subr.mxu0 0.0
    %3659 = vmatpush2.xpose.msra.mxu0 0.0
    %3660 = vmatprep.subr.mxu0 0.0
    %3661 = vmatpush2.xpose.msra.mxu0 0.0
    %3662 = vmatprep.subr.mxu0 0.0
    %3663 = vmatpush2.xpose.msra.mxu0 0.0
    %3664 = vmatprep.subr.mxu0 0.0
    %3665 = vmatpush2.xpose.msra.mxu0 0.0
    %3666 = vmatprep.subr.mxu0 0.0
    %3667 = vmatpush2.xpose.msra.mxu0 0.0
    %3668 = vmatprep.subr.mxu0 0.0
    %3669 = vmatpush2.xpose.msra.mxu0 0.0
    %3670 = vmatprep.subr.mxu0 0.0
    %3671 = vmatpush2.xpose.msra.mxu0 0.0
    %3672 = vmatprep.subr.mxu0 0.0
    %3673 = vmatpush2.xpose.msra.mxu0 0.0
    %3674 = vmatprep.subr.mxu0 0.0
    %3675 = vmatpush2.xpose.msra.mxu0 0.0
    %3676 = vmatprep.subr.mxu0 0.0
    %3677 = vmatpush2.xpose.msra.mxu0 0.0
    %3678 = vmatprep.subr.mxu0 0.0
    %3679 = vmatpush2.xpose.msra.mxu0 0.0
    %3680 = vmatprep.subr.mxu0 0.0
    %3681 = vmatpush2.xpose.msra.mxu0 0.0
    %3682 = vmatprep.subr.mxu0 0.0
    %3683 = vmatpush2.xpose.msra.mxu0 0.0
    %3684 = vmatprep.subr.mxu0 0.0
    %3685 = vmatpush2.xpose.msra.mxu0 0.0
    %3686 = vmatprep.subr.mxu0 0.0
    %3687 = vmatpush2.xpose.msra.mxu0 0.0
    %3688 = vmatprep.mubr.f32.mxu0 0.0
    %3689 = vmatmul.mubr.f32.gmra.mxu0 %v3600
    %v3690 = vpop.f32.mrf.mxu0
    %v3691 = vadd.f32 %v3548, %v3690
    %v3692 = vpop.f32.mrf.mxu0
    %3693 = vmatprep.mubr.f32.mxu0 0.0
    %3694 = vmatmul.mubr.f32.gmra.mxu0 %v3602
    %v3695 = vpop.f32.mrf.mxu0
    %v3696 = vadd.f32 %v3553, %v3695
    %v3697 = vpop.f32.mrf.mxu0
    %3698 = vmatprep.mubr.f32.mxu0 0.0
    %3699 = vmatmul.mubr.f32.gmra.mxu0 %v3604
    %v3700 = vpop.f32.mrf.mxu0
    %v3701 = vadd.f32 %v3558, %v3700
    %v3702 = vpop.f32.mrf.mxu0
    %3703 = vmatprep.mubr.f32.mxu0 0.0
    %3704 = vmatmul.mubr.f32.gmra.mxu0 %v3606
    %v3705 = vpop.f32.mrf.mxu0
    %v3706 = vadd.f32 %v3563, %v3705
    %v3707 = vpop.f32.mrf.mxu0
    %3708 = vmatprep.mubr.f32.mxu0 0.0
    %3709 = vmatmul.mubr.f32.gmra.mxu0 %v3608
    %v3710 = vpop.f32.mrf.mxu0
    %v3711 = vadd.f32 %v3568, %v3710
    %v3712 = vpop.f32.mrf.mxu0
    %3713 = vmatprep.mubr.f32.mxu0 0.0
    %3714 = vmatmul.mubr.f32.gmra.mxu0 %v3610
    %v3715 = vpop.f32.mrf.mxu0
    %v3716 = vadd.f32 %v3573, %v3715
    %v3717 = vpop.f32.mrf.mxu0
    %3718 = vdwg.mxu0
    %3719 = vmatprep.subr.mxu0 0.0
    %3720 = vmatpush1.xpose.msra.mxu0 0.0
    %3721 = vmatprep.subr.mxu0 0.0
    %3722 = vmatpush1.xpose.msra.mxu0 0.0
    %3723 = vmatprep.subr.mxu0 0.0
    %3724 = vmatpush1.xpose.msra.mxu0 0.0
    %3725 = vmatprep.subr.mxu0 0.0
    %3726 = vmatpush1.xpose.msra.mxu0 0.0
    %3727 = vmatprep.subr.mxu0 0.0
    %3728 = vmatpush1.xpose.msra.mxu0 0.0
    %3729 = vmatprep.subr.mxu0 0.0
    %3730 = vmatpush1.xpose.msra.mxu0 0.0
    %3731 = vmatprep.subr.mxu0 0.0
    %3732 = vmatpush1.xpose.msra.mxu0 0.0
    %3733 = vmatprep.subr.mxu0 0.0
    %3734 = vmatpush1.xpose.msra.mxu0 0.0
    %3735 = vmatprep.subr.mxu0 0.0
    %3736 = vmatpush1.xpose.msra.mxu0 0.0
    %3737 = vmatprep.subr.mxu0 0.0
    %3738 = vmatpush1.xpose.msra.mxu0 0.0
    %3739 = vmatprep.subr.mxu0 0.0
    %3740 = vmatpush1.xpose.msra.mxu0 %v3622
    %3741 = vmatprep.subr.mxu0 0.0
    %3742 = vmatpush1.xpose.msra.mxu0 %v3620
    %3743 = vmatprep.subr.mxu0 0.0
    %3744 = vmatpush1.xpose.msra.mxu0 %v3618
    %3745 = vmatprep.subr.mxu0 0.0
    %3746 = vmatpush1.xpose.msra.mxu0 %v3616
    %3747 = vmatprep.subr.mxu0 0.0
    %3748 = vmatpush1.xpose.msra.mxu0 %v3614
    %3749 = vmatprep.subr.mxu0 0.0
    %3750 = vmatpush1.xpose.msra.mxu0 %v3612
    %3751 = vmatprep.subr.mxu0 0.0
    %3752 = vmatpush2.xpose.msra.mxu0 0.0
    %3753 = vmatprep.subr.mxu0 0.0
    %3754 = vmatpush2.xpose.msra.mxu0 0.0
    %3755 = vmatprep.subr.mxu0 0.0
    %3756 = vmatpush2.xpose.msra.mxu0 0.0
    %3757 = vmatprep.subr.mxu0 0.0
    %3758 = vmatpush2.xpose.msra.mxu0 0.0
    %3759 = vmatprep.subr.mxu0 0.0
    %3760 = vmatpush2.xpose.msra.mxu0 0.0
    %3761 = vmatprep.subr.mxu0 0.0
    %3762 = vmatpush2.xpose.msra.mxu0 0.0
    %3763 = vmatprep.subr.mxu0 0.0
    %3764 = vmatpush2.xpose.msra.mxu0 0.0
    %3765 = vmatprep.subr.mxu0 0.0
    %3766 = vmatpush2.xpose.msra.mxu0 0.0
    %3767 = vmatprep.subr.mxu0 0.0
    %3768 = vmatpush2.xpose.msra.mxu0 0.0
    %3769 = vmatprep.subr.mxu0 0.0
    %3770 = vmatpush2.xpose.msra.mxu0 0.0
    %3771 = vmatprep.subr.mxu0 0.0
    %3772 = vmatpush2.xpose.msra.mxu0 0.0
    %3773 = vmatprep.subr.mxu0 0.0
    %3774 = vmatpush2.xpose.msra.mxu0 0.0
    %3775 = vmatprep.subr.mxu0 0.0
    %3776 = vmatpush2.xpose.msra.mxu0 0.0
    %3777 = vmatprep.subr.mxu0 0.0
    %3778 = vmatpush2.xpose.msra.mxu0 0.0
    %3779 = vmatprep.subr.mxu0 0.0
    %3780 = vmatpush2.xpose.msra.mxu0 0.0
    %3781 = vmatprep.subr.mxu0 0.0
    %3782 = vmatpush2.xpose.msra.mxu0 0.0
    %3783 = vmatprep.mubr.f32.mxu0 0.0
    %3784 = vmatmul.mubr.f32.gmra.mxu0 %v3457
    %v3785 = vpop.f32.mrf.mxu0
    %v3786 = vadd.f32 0.0, %v3785
    %v3787 = vpop.f32.mrf.mxu0
    %3788 = vmatprep.mubr.f32.mxu0 0.0
    %3789 = vmatmul.mubr.f32.gmra.mxu0 %v3459
    %v3790 = vpop.f32.mrf.mxu0
    %v3791 = vadd.f32 0.0, %v3790
    %v3792 = vpop.f32.mrf.mxu0
    %3793 = vmatprep.mubr.f32.mxu0 0.0
    %3794 = vmatmul.mubr.f32.gmra.mxu0 %v3461
    %v3795 = vpop.f32.mrf.mxu0
    %v3796 = vadd.f32 0.0, %v3795
    %v3797 = vpop.f32.mrf.mxu0
    %3798 = vmatprep.mubr.f32.mxu0 0.0
    %3799 = vmatmul.mubr.f32.gmra.mxu0 %v3463
    %v3800 = vpop.f32.mrf.mxu0
    %v3801 = vadd.f32 0.0, %v3800
    %v3802 = vpop.f32.mrf.mxu0
    %3803 = vmatprep.mubr.f32.mxu0 0.0
    %3804 = vmatmul.mubr.f32.gmra.mxu0 %v3465
    %v3805 = vpop.f32.mrf.mxu0
    %v3806 = vadd.f32 0.0, %v3805
    %v3807 = vpop.f32.mrf.mxu0
    %3808 = vmatprep.mubr.f32.mxu0 0.0
    %3809 = vmatmul.mubr.f32.gmra.mxu0 %v3467
    %v3810 = vpop.f32.mrf.mxu0
    %v3811 = vadd.f32 0.0, %v3810
    %v3812 = vpop.f32.mrf.mxu0
    %3813 = vdwg.mxu0
    %3814 = vmatprep.subr.mxu0 0.0
    %3815 = vmatpush1.xpose.msra.mxu0 0.0
    %3816 = vmatprep.subr.mxu0 0.0
    %3817 = vmatpush1.xpose.msra.mxu0 0.0
    %3818 = vmatprep.subr.mxu0 0.0
    %3819 = vmatpush1.xpose.msra.mxu0 0.0
    %3820 = vmatprep.subr.mxu0 0.0
    %3821 = vmatpush1.xpose.msra.mxu0 0.0
    %3822 = vmatprep.subr.mxu0 0.0
    %3823 = vmatpush1.xpose.msra.mxu0 0.0
    %3824 = vmatprep.subr.mxu0 0.0
    %3825 = vmatpush1.xpose.msra.mxu0 0.0
    %3826 = vmatprep.subr.mxu0 0.0
    %3827 = vmatpush1.xpose.msra.mxu0 0.0
    %3828 = vmatprep.subr.mxu0 0.0
    %3829 = vmatpush1.xpose.msra.mxu0 0.0
    %3830 = vmatprep.subr.mxu0 0.0
    %3831 = vmatpush1.xpose.msra.mxu0 0.0
    %3832 = vmatprep.subr.mxu0 0.0
    %3833 = vmatpush1.xpose.msra.mxu0 0.0
    %3834 = vmatprep.subr.mxu0 0.0
    %3835 = vmatpush1.xpose.msra.mxu0 %v3479
    %3836 = vmatprep.subr.mxu0 0.0
    %3837 = vmatpush1.xpose.msra.mxu0 %v3477
    %3838 = vmatprep.subr.mxu0 0.0
    %3839 = vmatpush1.xpose.msra.mxu0 %v3475
    %3840 = vmatprep.subr.mxu0 0.0
    %3841 = vmatpush1.xpose.msra.mxu0 %v3473
    %3842 = vmatprep.subr.mxu0 0.0
    %3843 = vmatpush1.xpose.msra.mxu0 %v3471
    %3844 = vmatprep.subr.mxu0 0.0
    %3845 = vmatpush1.xpose.msra.mxu0 %v3469
    %3846 = vmatprep.subr.mxu0 0.0
    %3847 = vmatpush2.xpose.msra.mxu0 0.0
    %3848 = vmatprep.subr.mxu0 0.0
    %3849 = vmatpush2.xpose.msra.mxu0 0.0
    %3850 = vmatprep.subr.mxu0 0.0
    %3851 = vmatpush2.xpose.msra.mxu0 0.0
    %3852 = vmatprep.subr.mxu0 0.0
    %3853 = vmatpush2.xpose.msra.mxu0 0.0
    %3854 = vmatprep.subr.mxu0 0.0
    %3855 = vmatpush2.xpose.msra.mxu0 0.0
    %3856 = vmatprep.subr.mxu0 0.0
    %3857 = vmatpush2.xpose.msra.mxu0 0.0
    %3858 = vmatprep.subr.mxu0 0.0
    %3859 = vmatpush2.xpose.msra.mxu0 0.0
    %3860 = vmatprep.subr.mxu0 0.0
    %3861 = vmatpush2.xpose.msra.mxu0 0.0
    %3862 = vmatprep.subr.mxu0 0.0
    %3863 = vmatpush2.xpose.msra.mxu0 0.0
    %3864 = vmatprep.subr.mxu0 0.0
    %3865 = vmatpush2.xpose.msra.mxu0 0.0
    %3866 = vmatprep.subr.mxu0 0.0
    %3867 = vmatpush2.xpose.msra.mxu0 0.0
    %3868 = vmatprep.subr.mxu0 0.0
    %3869 = vmatpush2.xpose.msra.mxu0 0.0
    %3870 = vmatprep.subr.mxu0 0.0
    %3871 = vmatpush2.xpose.msra.mxu0 0.0
    %3872 = vmatprep.subr.mxu0 0.0
    %3873 = vmatpush2.xpose.msra.mxu0 0.0
    %3874 = vmatprep.subr.mxu0 0.0
    %3875 = vmatpush2.xpose.msra.mxu0 0.0
    %3876 = vmatprep.subr.mxu0 0.0
    %3877 = vmatpush2.xpose.msra.mxu0 0.0
    %3878 = vmatprep.mubr.f32.mxu0 0.0
    %3879 = vmatmul.mubr.f32.gmra.mxu0 %v3600
    %v3880 = vpop.f32.mrf.mxu0
    %v3881 = vadd.f32 0.0, %v3880
    %v3882 = vpop.f32.mrf.mxu0
    %3883 = vmatprep.mubr.f32.mxu0 0.0
    %3884 = vmatmul.mubr.f32.gmra.mxu0 %v3602
    %v3885 = vpop.f32.mrf.mxu0
    %v3886 = vadd.f32 0.0, %v3885
    %v3887 = vpop.f32.mrf.mxu0
    %3888 = vmatprep.mubr.f32.mxu0 0.0
    %3889 = vmatmul.mubr.f32.gmra.mxu0 %v3604
    %v3890 = vpop.f32.mrf.mxu0
    %v3891 = vadd.f32 0.0, %v3890
    %v3892 = vpop.f32.mrf.mxu0
    %3893 = vmatprep.mubr.f32.mxu0 0.0
    %3894 = vmatmul.mubr.f32.gmra.mxu0 %v3606
    %v3895 = vpop.f32.mrf.mxu0
    %v3896 = vadd.f32 0.0, %v3895
    %v3897 = vpop.f32.mrf.mxu0
    %3898 = vmatprep.mubr.f32.mxu0 0.0
    %3899 = vmatmul.mubr.f32.gmra.mxu0 %v3608
    %v3900 = vpop.f32.mrf.mxu0
    %v3901 = vadd.f32 0.0, %v3900
    %v3902 = vpop.f32.mrf.mxu0
    %3903 = vmatprep.mubr.f32.mxu0 0.0
    %3904 = vmatmul.mubr.f32.gmra.mxu0 %v3610
    %v3905 = vpop.f32.mrf.mxu0
    %v3906 = vadd.f32 0.0, %v3905
    %v3907 = vpop.f32.mrf.mxu0
    %3908 = vdwg.mxu0
    %v3909 = vsub.f32 %v3786, %v3881
    %v3910 = vsub.f32 %v3791, %v3886
    %v3911 = vsub.f32 %v3796, %v3891
    %v3912 = vsub.f32 %v3801, %v3896
    %v3913 = vsub.f32 %v3806, %v3901
    %v3914 = vsub.f32 %v3811, %v3906
    %v3915 = vmul.f32 %v3691, %v3691
    %v3916 = vmul.f32 %v3696, %v3696
    %v3917 = vmul.f32 %v3701, %v3701
    %v3918 = vmul.f32 %v3706, %v3706
    %v3919 = vmul.f32 %v3711, %v3711
    %v3920 = vmul.f32 %v3716, %v3716
    %v3921 = vmul.f32 %v3909, %v3909
    %v3922 = vmul.f32 %v3910, %v3910
    %v3923 = vmul.f32 %v3911, %v3911
    %v3924 = vmul.f32 %v3912, %v3912
    %v3925 = vmul.f32 %v3913, %v3913
    %v3926 = vmul.f32 %v3914, %v3914
    %v3927 = vadd.f32 %v3915, %v3921
    %v3928 = vadd.f32 %v3916, %v3922
    %v3929 = vadd.f32 %v3917, %v3923
    %v3930 = vadd.f32 %v3918, %v3924
    %v3931 = vadd.f32 %v3919, %v3925
    %v3932 = vadd.f32 %v3920, %v3926
    %v3933 = vrsqrt.pop %v3927
    %v3934 = vmul.f32 %v3927, %v3933
    %vm3935 = vcmp.eq.f32.partialorder %v3927, inf
    %v3936 = vsel %vm3935, %v3927, %v3934
    %vm3937 = vcmp.eq.f32.partialorder %v3927, 0.0
    %v3938 = vand.u32 %v3927, 2147483648
    %v3939 = vsel %vm3937, %v3938, %v3936
    %v3940 = vrsqrt.pop %v3928
    %v3941 = vmul.f32 %v3928, %v3940
    %vm3942 = vcmp.eq.f32.partialorder %v3928, inf
    %v3943 = vsel %vm3942, %v3928, %v3941
    %vm3944 = vcmp.eq.f32.partialorder %v3928, 0.0
    %v3945 = vand.u32 %v3928, 2147483648
    %v3946 = vsel %vm3944, %v3945, %v3943
    %v3947 = vrsqrt.pop %v3929
    %v3948 = vmul.f32 %v3929, %v3947
    %vm3949 = vcmp.eq.f32.partialorder %v3929, inf
    %v3950 = vsel %vm3949, %v3929, %v3948
    %vm3951 = vcmp.eq.f32.partialorder %v3929, 0.0
    %v3952 = vand.u32 %v3929, 2147483648
    %v3953 = vsel %vm3951, %v3952, %v3950
    %v3954 = vrsqrt.pop %v3930
    %v3955 = vmul.f32 %v3930, %v3954
    %vm3956 = vcmp.eq.f32.partialorder %v3930, inf
    %v3957 = vsel %vm3956, %v3930, %v3955
    %vm3958 = vcmp.eq.f32.partialorder %v3930, 0.0
    %v3959 = vand.u32 %v3930, 2147483648
    %v3960 = vsel %vm3958, %v3959, %v3957
    %v3961 = vrsqrt.pop %v3931
    %v3962 = vmul.f32 %v3931, %v3961
    %vm3963 = vcmp.eq.f32.partialorder %v3931, inf
    %v3964 = vsel %vm3963, %v3931, %v3962
    %vm3965 = vcmp.eq.f32.partialorder %v3931, 0.0
    %v3966 = vand.u32 %v3931, 2147483648
    %v3967 = vsel %vm3965, %v3966, %v3964
    %v3968 = vrsqrt.pop %v3932
    %v3969 = vmul.f32 %v3932, %v3968
    %vm3970 = vcmp.eq.f32.partialorder %v3932, inf
    %v3971 = vsel %vm3970, %v3932, %v3969
    %vm3972 = vcmp.eq.f32.partialorder %v3932, 0.0
    %v3973 = vand.u32 %v3932, 2147483648
    %v3974 = vsel %vm3972, %v3973, %v3971
    %v3975 = vmul.f32 %v3939, 0.35355338
    %v3976 = vmul.f32 %v3946, 0.35355338
    %v3977 = vmul.f32 %v3953, 0.35355338
    %v3978 = vmul.f32 %v3960, 0.35355338
    %v3979 = vmul.f32 %v3967, 0.35355338
    %v3980 = vmul.f32 %v3974, 0.35355338
    %v3981 = vadd.f32 %v3975, %v260
    %v3982 = vadd.f32 %v3976, %v261
    %v3983 = vadd.f32 %v3977, %v262
    %v3984 = vadd.f32 %v3978, %v263
    %v3985 = vadd.f32 %v3979, %v264
    %v3986 = vadd.f32 %v3980, %v265
    %v3987 = vsel %vm1221, %v3981, -inf
    %3988 = vmax.xlane.f32.xlu0 %v3987
    %v3989 = vpop.xlane.xlu0 %3988
    %v3990 = vsel %vm1221, %v3982, -inf
    %3991 = vmax.xlane.f32.xlu0 %v3990
    %v3992 = vpop.xlane.xlu0 %3991
    %v3993 = vsel %vm1221, %v3983, -inf
    %3994 = vmax.xlane.f32.xlu0 %v3993
    %v3995 = vpop.xlane.xlu0 %3994
    %v3996 = vsel %vm1221, %v3984, -inf
    %3997 = vmax.xlane.f32.xlu0 %v3996
    %v3998 = vpop.xlane.xlu0 %3997
    %v3999 = vsel %vm1221, %v3985, -inf
    %4000 = vmax.xlane.f32.xlu0 %v3999
    %v4001 = vpop.xlane.xlu0 %4000
    %v4002 = vsel %vm1221, %v3986, -inf
    %4003 = vmax.xlane.f32.xlu0 %v4002
    %v4004 = vpop.xlane.xlu0 %4003
    %v4005 = vsub.f32 %v3981, %v3989
    %v4006 = vsub.f32 %v3982, %v3992
    %v4007 = vsub.f32 %v3983, %v3995
    %v4008 = vsub.f32 %v3984, %v3998
    %v4009 = vsub.f32 %v3985, %v4001
    %v4010 = vsub.f32 %v3986, %v4004
    %v4011 = vmul.f32 %v4005, 1.442695
    %v4012 = vpow.pop %v4011
    %v4013 = vmul.f32 %v4006, 1.442695
    %v4014 = vpow.pop %v4013
    %v4015 = vmul.f32 %v4007, 1.442695
    %v4016 = vpow.pop %v4015
    %v4017 = vmul.f32 %v4008, 1.442695
    %v4018 = vpow.pop %v4017
    %v4019 = vmul.f32 %v4009, 1.442695
    %v4020 = vpow.pop %v4019
    %v4021 = vmul.f32 %v4010, 1.442695
    %v4022 = vpow.pop %v4021
    %v4023 = vsel %vm1221, %v4012, 0.0
    %4024 = vadd.xlane.f32.xlu0 %v4023
    %v4025 = vpop.xlane.xlu0 %4024
    %v4026 = vsel %vm1221, %v4014, 0.0
    %4027 = vadd.xlane.f32.xlu0 %v4026
    %v4028 = vpop.xlane.xlu0 %4027
    %v4029 = vsel %vm1221, %v4016, 0.0
    %4030 = vadd.xlane.f32.xlu0 %v4029
    %v4031 = vpop.xlane.xlu0 %4030
    %v4032 = vsel %vm1221, %v4018, 0.0
    %4033 = vadd.xlane.f32.xlu0 %v4032
    %v4034 = vpop.xlane.xlu0 %4033
    %v4035 = vsel %vm1221, %v4020, 0.0
    %4036 = vadd.xlane.f32.xlu0 %v4035
    %v4037 = vpop.xlane.xlu0 %4036
    %v4038 = vsel %vm1221, %v4022, 0.0
    %4039 = vadd.xlane.f32.xlu0 %v4038
    %v4040 = vpop.xlane.xlu0 %4039
    %v4041 = vrcp.pop %v4025
    %v4042 = vrcp.pop %v4028
    %v4043 = vrcp.pop %v4031
    %v4044 = vrcp.pop %v4034
    %v4045 = vrcp.pop %v4037
    %v4046 = vrcp.pop %v4040
    %v4047 = vmul.f32 %v4012, %v4041
    %v4048 = vmul.f32 %v4014, %v4042
    %v4049 = vmul.f32 %v4016, %v4043
    %v4050 = vmul.f32 %v4018, %v4044
    %v4051 = vmul.f32 %v4020, %v4045
    %v4052 = vmul.f32 %v4022, %v4046
    %4053 = vrot.lane.b32.xlu0 %v380, 40
    %v4054 = vpop.permute.xlu0 %4053
    %4055 = vrot.lane.b32.xlu0 %v386, 40
    %v4056 = vpop.permute.xlu0 %4055
    %4057 = vrot.lane.b32.xlu0 %v392, 40
    %v4058 = vpop.permute.xlu0 %4057
    %4059 = vrot.lane.b32.xlu0 %v398, 40
    %v4060 = vpop.permute.xlu0 %4059
    %4061 = vrot.lane.b32.xlu0 %v404, 40
    %v4062 = vpop.permute.xlu0 %4061
    %4063 = vrot.lane.b32.xlu0 %v410, 40
    %v4064 = vpop.permute.xlu0 %4063
    %v4072 = vsel %vm1221, %v4047, 0
    %v4075 = vsel %vm1221, %v4048, 0
    %v4078 = vsel %vm1221, %v4049, 0
    %v4081 = vsel %vm1221, %v4050, 0
    %v4084 = vsel %vm1221, %v4051, 0
    %v4087 = vsel %vm1221, %v4052, 0
    %4089 = vmatprep.subr.mxu0 0.0
    %4090 = vmatpush1.msra.mxu0 0.0
    %4091 = vmatprep.subr.mxu0 0.0
    %4092 = vmatpush1.msra.mxu0 0.0
    %4093 = vmatprep.subr.mxu0 0.0
    %4094 = vmatpush1.msra.mxu0 0.0
    %4095 = vmatprep.subr.mxu0 0.0
    %4096 = vmatpush1.msra.mxu0 0.0
    %4097 = vmatprep.subr.mxu0 0.0
    %4098 = vmatpush1.msra.mxu0 0.0
    %4099 = vmatprep.subr.mxu0 0.0
    %4100 = vmatpush1.msra.mxu0 0.0
    %4101 = vmatprep.subr.mxu0 0.0
    %4102 = vmatpush1.msra.mxu0 0.0
    %4103 = vmatprep.subr.mxu0 0.0
    %4104 = vmatpush1.msra.mxu0 0.0
    %4105 = vmatprep.subr.mxu0 0.0
    %4106 = vmatpush1.msra.mxu0 0.0
    %4107 = vmatprep.subr.mxu0 0.0
    %4108 = vmatpush1.msra.mxu0 0.0
    %4109 = vmatprep.subr.mxu0 0.0
    %4110 = vmatpush1.msra.mxu0 %v4064
    %4111 = vmatprep.subr.mxu0 0.0
    %4112 = vmatpush1.msra.mxu0 %v4062
    %4113 = vmatprep.subr.mxu0 0.0
    %4114 = vmatpush1.msra.mxu0 %v4060
    %4115 = vmatprep.subr.mxu0 0.0
    %4116 = vmatpush1.msra.mxu0 %v4058
    %4117 = vmatprep.subr.mxu0 0.0
    %4118 = vmatpush1.msra.mxu0 %v4056
    %4119 = vmatprep.subr.mxu0 0.0
    %4120 = vmatpush1.msra.mxu0 %v4054
    %4121 = vmatprep.subr.mxu0 0.0
    %4122 = vmatpush2.msra.mxu0 0.0
    %4123 = vmatprep.subr.mxu0 0.0
    %4124 = vmatpush2.msra.mxu0 0.0
    %4125 = vmatprep.subr.mxu0 0.0
    %4126 = vmatpush2.msra.mxu0 0.0
    %4127 = vmatprep.subr.mxu0 0.0
    %4128 = vmatpush2.msra.mxu0 0.0
    %4129 = vmatprep.subr.mxu0 0.0
    %4130 = vmatpush2.msra.mxu0 0.0
    %4131 = vmatprep.subr.mxu0 0.0
    %4132 = vmatpush2.msra.mxu0 0.0
    %4133 = vmatprep.subr.mxu0 0.0
    %4134 = vmatpush2.msra.mxu0 0.0
    %4135 = vmatprep.subr.mxu0 0.0
    %4136 = vmatpush2.msra.mxu0 0.0
    %4137 = vmatprep.subr.mxu0 0.0
    %4138 = vmatpush2.msra.mxu0 0.0
    %4139 = vmatprep.subr.mxu0 0.0
    %4140 = vmatpush2.msra.mxu0 0.0
    %4141 = vmatprep.subr.mxu0 0.0
    %4142 = vmatpush2.msra.mxu0 0.0
    %4143 = vmatprep.subr.mxu0 0.0
    %4144 = vmatpush2.msra.mxu0 0.0
    %4145 = vmatprep.subr.mxu0 0.0
    %4146 = vmatpush2.msra.mxu0 0.0
    %4147 = vmatprep.subr.mxu0 0.0
    %4148 = vmatpush2.msra.mxu0 0.0
    %4149 = vmatprep.subr.mxu0 0.0
    %4150 = vmatpush2.msra.mxu0 0.0
    %4151 = vmatprep.subr.mxu0 0.0
    %4152 = vmatpush2.msra.mxu0 0.0
    %4153 = vmatprep.mubr.f32.mxu0 0.0
    %4154 = vmatmul.mubr.f32.gmra.mxu0 %v4072
    %v4155 = vpop.f32.mrf.mxu0
    %v4156 = vadd.f32 0.0, %v4155
    %v4157 = vpop.f32.mrf.mxu0
    %4158 = vmatprep.mubr.f32.mxu0 0.0
    %4159 = vmatmul.mubr.f32.gmra.mxu0 %v4075
    %v4160 = vpop.f32.mrf.mxu0
    %v4161 = vadd.f32 0.0, %v4160
    %v4162 = vpop.f32.mrf.mxu0
    %4163 = vmatprep.mubr.f32.mxu0 0.0
    %4164 = vmatmul.mubr.f32.gmra.mxu0 %v4078
    %v4165 = vpop.f32.mrf.mxu0
    %v4166 = vadd.f32 0.0, %v4165
    %v4167 = vpop.f32.mrf.mxu0
    %4168 = vmatprep.mubr.f32.mxu0 0.0
    %4169 = vmatmul.mubr.f32.gmra.mxu0 %v4081
    %v4170 = vpop.f32.mrf.mxu0
    %v4171 = vadd.f32 0.0, %v4170
    %v4172 = vpop.f32.mrf.mxu0
    %4173 = vmatprep.mubr.f32.mxu0 0.0
    %4174 = vmatmul.mubr.f32.gmra.mxu0 %v4084
    %v4175 = vpop.f32.mrf.mxu0
    %v4176 = vadd.f32 0.0, %v4175
    %v4177 = vpop.f32.mrf.mxu0
    %4178 = vmatprep.mubr.f32.mxu0 0.0
    %4179 = vmatmul.mubr.f32.gmra.mxu0 %v4087
    %v4180 = vpop.f32.mrf.mxu0
    %v4181 = vadd.f32 0.0, %v4180
    %v4182 = vpop.f32.mrf.mxu0
    %4183 = vdwg.mxu0
    %4190 = vrot.lane.b32.xlu0 %v4156, 24
    %v4191 = vpop.permute.xlu0 %4190
    %4192 = vrot.lane.b32.xlu0 %v4161, 24
    %v4193 = vpop.permute.xlu0 %4192
    %4194 = vrot.lane.b32.xlu0 %v4166, 24
    %v4195 = vpop.permute.xlu0 %4194
    %4196 = vrot.lane.b32.xlu0 %v4171, 24
    %v4197 = vpop.permute.xlu0 %4196
    %4198 = vrot.lane.b32.xlu0 %v4176, 24
    %v4199 = vpop.permute.xlu0 %4198
    %4200 = vrot.lane.b32.xlu0 %v4181, 24
    %v4201 = vpop.permute.xlu0 %4200
    %vm4208 = vcmask 261312
    %4209 = vst.msk [vmem:[#allocation2] sm:$0xff] %vm4208, %v4191
    %4210 = vst.msk [vmem:[#allocation2 + $0x8] sm:$0xff] %vm4208, %v4193
    %4211 = vst.msk [vmem:[#allocation2 + $0x10] sm:$0xff] %vm4208, %v4195
    %4212 = vst.msk [vmem:[#allocation2 + $0x18] sm:$0xff] %vm4208, %v4197
    %4213 = vst.msk [vmem:[#allocation2 + $0x20] sm:$0xff] %vm4208, %v4199
    %4214 = vst.msk [vmem:[#allocation2 + $0x28] sm:$0xff] %vm4208, %v4201
    %4215 = vrot.lane.b32.xlu0 %v382, 72
    %v4216 = vpop.permute.xlu0 %4215
    %4217 = vrot.lane.b32.xlu0 %v388, 72
    %v4218 = vpop.permute.xlu0 %4217
    %4219 = vrot.lane.b32.xlu0 %v394, 72
    %v4220 = vpop.permute.xlu0 %4219
    %4221 = vrot.lane.b32.xlu0 %v400, 72
    %v4222 = vpop.permute.xlu0 %4221
    %4223 = vrot.lane.b32.xlu0 %v406, 72
    %v4224 = vpop.permute.xlu0 %4223
    %4225 = vrot.lane.b32.xlu0 %v412, 72
    %v4226 = vpop.permute.xlu0 %4225
    %4233 = vmatprep.subr.mxu0 0.0
    %4234 = vmatpush1.msra.mxu0 0.0
    %4235 = vmatprep.subr.mxu0 0.0
    %4236 = vmatpush1.msra.mxu0 0.0
    %4237 = vmatprep.subr.mxu0 0.0
    %4238 = vmatpush1.msra.mxu0 0.0
    %4239 = vmatprep.subr.mxu0 0.0
    %4240 = vmatpush1.msra.mxu0 0.0
    %4241 = vmatprep.subr.mxu0 0.0
    %4242 = vmatpush1.msra.mxu0 0.0
    %4243 = vmatprep.subr.mxu0 0.0
    %4244 = vmatpush1.msra.mxu0 0.0
    %4245 = vmatprep.subr.mxu0 0.0
    %4246 = vmatpush1.msra.mxu0 0.0
    %4247 = vmatprep.subr.mxu0 0.0
    %4248 = vmatpush1.msra.mxu0 0.0
    %4249 = vmatprep.subr.mxu0 0.0
    %4250 = vmatpush1.msra.mxu0 0.0
    %4251 = vmatprep.subr.mxu0 0.0
    %4252 = vmatpush1.msra.mxu0 0.0
    %4253 = vmatprep.subr.mxu0 0.0
    %4254 = vmatpush1.msra.mxu0 %v4226
    %4255 = vmatprep.subr.mxu0 0.0
    %4256 = vmatpush1.msra.mxu0 %v4224
    %4257 = vmatprep.subr.mxu0 0.0
    %4258 = vmatpush1.msra.mxu0 %v4222
    %4259 = vmatprep.subr.mxu0 0.0
    %4260 = vmatpush1.msra.mxu0 %v4220
    %4261 = vmatprep.subr.mxu0 0.0
    %4262 = vmatpush1.msra.mxu0 %v4218
    %4263 = vmatprep.subr.mxu0 0.0
    %4264 = vmatpush1.msra.mxu0 %v4216
    %4265 = vmatprep.subr.mxu0 0.0
    %4266 = vmatpush2.msra.mxu0 0.0
    %4267 = vmatprep.subr.mxu0 0.0
    %4268 = vmatpush2.msra.mxu0 0.0
    %4269 = vmatprep.subr.mxu0 0.0
    %4270 = vmatpush2.msra.mxu0 0.0
    %4271 = vmatprep.subr.mxu0 0.0
    %4272 = vmatpush2.msra.mxu0 0.0
    %4273 = vmatprep.subr.mxu0 0.0
    %4274 = vmatpush2.msra.mxu0 0.0
    %4275 = vmatprep.subr.mxu0 0.0
    %4276 = vmatpush2.msra.mxu0 0.0
    %4277 = vmatprep.subr.mxu0 0.0
    %4278 = vmatpush2.msra.mxu0 0.0
    %4279 = vmatprep.subr.mxu0 0.0
    %4280 = vmatpush2.msra.mxu0 0.0
    %4281 = vmatprep.subr.mxu0 0.0
    %4282 = vmatpush2.msra.mxu0 0.0
    %4283 = vmatprep.subr.mxu0 0.0
    %4284 = vmatpush2.msra.mxu0 0.0
    %4285 = vmatprep.subr.mxu0 0.0
    %4286 = vmatpush2.msra.mxu0 0.0
    %4287 = vmatprep.subr.mxu0 0.0
    %4288 = vmatpush2.msra.mxu0 0.0
    %4289 = vmatprep.subr.mxu0 0.0
    %4290 = vmatpush2.msra.mxu0 0.0
    %4291 = vmatprep.subr.mxu0 0.0
    %4292 = vmatpush2.msra.mxu0 0.0
    %4293 = vmatprep.subr.mxu0 0.0
    %4294 = vmatpush2.msra.mxu0 0.0
    %4295 = vmatprep.subr.mxu0 0.0
    %4296 = vmatpush2.msra.mxu0 0.0
    %4297 = vmatprep.mubr.f32.mxu0 0.0
    %4298 = vmatmul.mubr.f32.gmra.mxu0 %v4072
    %v4299 = vpop.f32.mrf.mxu0
    %v4300 = vadd.f32 0.0, %v4299
    %v4301 = vpop.f32.mrf.mxu0
    %4302 = vmatprep.mubr.f32.mxu0 0.0
    %4303 = vmatmul.mubr.f32.gmra.mxu0 %v4075
    %v4304 = vpop.f32.mrf.mxu0
    %v4305 = vadd.f32 0.0, %v4304
    %v4306 = vpop.f32.mrf.mxu0
    %4307 = vmatprep.mubr.f32.mxu0 0.0
    %4308 = vmatmul.mubr.f32.gmra.mxu0 %v4078
    %v4309 = vpop.f32.mrf.mxu0
    %v4310 = vadd.f32 0.0, %v4309
    %v4311 = vpop.f32.mrf.mxu0
    %4312 = vmatprep.mubr.f32.mxu0 0.0
    %4313 = vmatmul.mubr.f32.gmra.mxu0 %v4081
    %v4314 = vpop.f32.mrf.mxu0
    %v4315 = vadd.f32 0.0, %v4314
    %v4316 = vpop.f32.mrf.mxu0
    %4317 = vmatprep.mubr.f32.mxu0 0.0
    %4318 = vmatmul.mubr.f32.gmra.mxu0 %v4084
    %v4319 = vpop.f32.mrf.mxu0
    %v4320 = vadd.f32 0.0, %v4319
    %v4321 = vpop.f32.mrf.mxu0
    %4322 = vmatprep.mubr.f32.mxu0 0.0
    %4323 = vmatmul.mubr.f32.gmra.mxu0 %v4087
    %v4324 = vpop.f32.mrf.mxu0
    %v4325 = vadd.f32 0.0, %v4324
    %v4326 = vpop.f32.mrf.mxu0
    %4327 = vdwg.mxu0
    %4334 = vrot.lane.b32.xlu0 %v4300, 56
    %v4335 = vpop.permute.xlu0 %4334
    %4336 = vrot.lane.b32.xlu0 %v4305, 56
    %v4337 = vpop.permute.xlu0 %4336
    %4338 = vrot.lane.b32.xlu0 %v4310, 56
    %v4339 = vpop.permute.xlu0 %4338
    %4340 = vrot.lane.b32.xlu0 %v4315, 56
    %v4341 = vpop.permute.xlu0 %4340
    %4342 = vrot.lane.b32.xlu0 %v4320, 56
    %v4343 = vpop.permute.xlu0 %4342
    %4344 = vrot.lane.b32.xlu0 %v4325, 56
    %v4345 = vpop.permute.xlu0 %4344
    %vm4352 = vcmask 523712
    %4353 = vst.msk [vmem:[#allocation2] sm:$0xff] %vm4352, %v4335
    %4354 = vst.msk [vmem:[#allocation2 + $0x8] sm:$0xff] %vm4352, %v4337
    %4355 = vst.msk [vmem:[#allocation2 + $0x10] sm:$0xff] %vm4352, %v4339
    %4356 = vst.msk [vmem:[#allocation2 + $0x18] sm:$0xff] %vm4352, %v4341
    %4357 = vst.msk [vmem:[#allocation2 + $0x20] sm:$0xff] %vm4352, %v4343
    %4358 = vst.msk [vmem:[#allocation2 + $0x28] sm:$0xff] %vm4352, %v4345
    %v4359 = vld [vmem:[#allocation2] sm:$0xff]
    %v4360 = vld [vmem:[#allocation2 + $0x8] sm:$0xff]
    %v4361 = vld [vmem:[#allocation2 + $0x10] sm:$0xff]
    %v4362 = vld [vmem:[#allocation2 + $0x18] sm:$0xff]
    %v4363 = vld [vmem:[#allocation2 + $0x20] sm:$0xff]
    %v4364 = vld [vmem:[#allocation2 + $0x28] sm:$0xff]
    %v4365 = vld [vmem:[%s9] sm:$0xff]
    %v4366 = vld [vmem:[%s9 + $0x8] sm:$0xff]
    %v4367 = vld [vmem:[%s9 + $0x10] sm:$0xff]
    %v4368 = vld [vmem:[%s9 + $0x18] sm:$0xff]
    %v4369 = vld [vmem:[%s9 + $0x20] sm:$0xff]
    %v4370 = vld [vmem:[%s9 + $0x28] sm:$0xff]
    %v4371 = vld [vmem:[%s9 + $0x30] sm:$0xff]
    %v4372 = vld [vmem:[%s9 + $0x38] sm:$0xff]
    %v4373 = vld [vmem:[%s10] sm:$0x1]
    %v4375 = vlaneseq
    %v4376 = vshrl.u32 %v4375, 7
    %v4377 = vsub.s32 0, %v4376
    %v4378 = vrot.slane %v4373, %v4377
    %v4381 = vsel %vm294, %v4359, 0
    %v4384 = vsel %vm294, %v4360, 0
    %v4387 = vsel %vm294, %v4361, 0
    %v4390 = vsel %vm294, %v4362, 0
    %v4393 = vsel %vm294, %v4363, 0
    %v4396 = vsel %vm294, %v4364, 0
    %4398 = vmatprep.subr.mxu0 0.0
    %4399 = vmatpush1.msra.mxu0 0.0
    %4400 = vmatprep.subr.mxu0 0.0
    %4401 = vmatpush1.msra.mxu0 0.0
    %4402 = vmatprep.subr.mxu0 0.0
    %4403 = vmatpush1.msra.mxu0 0.0
    %4404 = vmatprep.subr.mxu0 0.0
    %4405 = vmatpush1.msra.mxu0 0.0
    %4406 = vmatprep.subr.mxu0 0.0
    %4407 = vmatpush1.msra.mxu0 0.0
    %4408 = vmatprep.subr.mxu0 0.0
    %4409 = vmatpush1.msra.mxu0 0.0
    %4410 = vmatprep.subr.mxu0 0.0
    %4411 = vmatpush1.msra.mxu0 0.0
    %4412 = vmatprep.subr.mxu0 0.0
    %4413 = vmatpush1.msra.mxu0 0.0
    %4414 = vmatprep.subr.mxu0 0.0
    %4415 = vmatpush1.msra.mxu0 %v4372
    %4416 = vmatprep.subr.mxu0 0.0
    %4417 = vmatpush1.msra.mxu0 %v4371
    %4418 = vmatprep.subr.mxu0 0.0
    %4419 = vmatpush1.msra.mxu0 %v4370
    %4420 = vmatprep.subr.mxu0 0.0
    %4421 = vmatpush1.msra.mxu0 %v4369
    %4422 = vmatprep.subr.mxu0 0.0
    %4423 = vmatpush1.msra.mxu0 %v4368
    %4424 = vmatprep.subr.mxu0 0.0
    %4425 = vmatpush1.msra.mxu0 %v4367
    %4426 = vmatprep.subr.mxu0 0.0
    %4427 = vmatpush1.msra.mxu0 %v4366
    %4428 = vmatprep.subr.mxu0 0.0
    %4429 = vmatpush1.msra.mxu0 %v4365
    %4430 = vmatprep.subr.mxu0 0.0
    %4431 = vmatpush2.msra.mxu0 0.0
    %4432 = vmatprep.subr.mxu0 0.0
    %4433 = vmatpush2.msra.mxu0 0.0
    %4434 = vmatprep.subr.mxu0 0.0
    %4435 = vmatpush2.msra.mxu0 0.0
    %4436 = vmatprep.subr.mxu0 0.0
    %4437 = vmatpush2.msra.mxu0 0.0
    %4438 = vmatprep.subr.mxu0 0.0
    %4439 = vmatpush2.msra.mxu0 0.0
    %4440 = vmatprep.subr.mxu0 0.0
    %4441 = vmatpush2.msra.mxu0 0.0
    %4442 = vmatprep.subr.mxu0 0.0
    %4443 = vmatpush2.msra.mxu0 0.0
    %4444 = vmatprep.subr.mxu0 0.0
    %4445 = vmatpush2.msra.mxu0 0.0
    %4446 = vmatprep.subr.mxu0 0.0
    %4447 = vmatpush2.msra.mxu0 0.0
    %4448 = vmatprep.subr.mxu0 0.0
    %4449 = vmatpush2.msra.mxu0 0.0
    %4450 = vmatprep.subr.mxu0 0.0
    %4451 = vmatpush2.msra.mxu0 0.0
    %4452 = vmatprep.subr.mxu0 0.0
    %4453 = vmatpush2.msra.mxu0 0.0
    %4454 = vmatprep.subr.mxu0 0.0
    %4455 = vmatpush2.msra.mxu0 0.0
    %4456 = vmatprep.subr.mxu0 0.0
    %4457 = vmatpush2.msra.mxu0 0.0
    %4458 = vmatprep.subr.mxu0 0.0
    %4459 = vmatpush2.msra.mxu0 0.0
    %4460 = vmatprep.subr.mxu0 0.0
    %4461 = vmatpush2.msra.mxu0 0.0
    %4462 = vmatprep.mubr.f32.mxu0 0.0
    %4463 = vmatmul.mubr.f32.gmra.mxu0 %v4381
    %v4464 = vpop.f32.mrf.mxu0
    %v4465 = vadd.f32 %v4378, %v4464
    %v4466 = vpop.f32.mrf.mxu0
    %4467 = vmatprep.mubr.f32.mxu0 0.0
    %4468 = vmatmul.mubr.f32.gmra.mxu0 %v4384
    %v4469 = vpop.f32.mrf.mxu0
    %v4470 = vadd.f32 %v4378, %v4469
    %v4471 = vpop.f32.mrf.mxu0
    %4472 = vmatprep.mubr.f32.mxu0 0.0
    %4473 = vmatmul.mubr.f32.gmra.mxu0 %v4387
    %v4474 = vpop.f32.mrf.mxu0
    %v4475 = vadd.f32 %v4378, %v4474
    %v4476 = vpop.f32.mrf.mxu0
    %4477 = vmatprep.mubr.f32.mxu0 0.0
    %4478 = vmatmul.mubr.f32.gmra.mxu0 %v4390
    %v4479 = vpop.f32.mrf.mxu0
    %v4480 = vadd.f32 %v4378, %v4479
    %v4481 = vpop.f32.mrf.mxu0
    %4482 = vmatprep.mubr.f32.mxu0 0.0
    %4483 = vmatmul.mubr.f32.gmra.mxu0 %v4393
    %v4484 = vpop.f32.mrf.mxu0
    %v4485 = vadd.f32 %v4378, %v4484
    %v4486 = vpop.f32.mrf.mxu0
    %4487 = vmatprep.mubr.f32.mxu0 0.0
    %4488 = vmatmul.mubr.f32.gmra.mxu0 %v4396
    %v4489 = vpop.f32.mrf.mxu0
    %v4490 = vadd.f32 %v4378, %v4489
    %v4491 = vpop.f32.mrf.mxu0
    %4492 = vdwg.mxu0
    %v4493 = vld [vmem:[%s11] sm:$0xff]
    %v4494 = vld [vmem:[%s11 + $0x8] sm:$0xff]
    %v4495 = vld [vmem:[%s11 + $0x10] sm:$0xff]
    %v4496 = vld [vmem:[%s11 + $0x18] sm:$0xff]
    %v4497 = vld [vmem:[%s11 + $0x20] sm:$0xff]
    %v4498 = vld [vmem:[%s11 + $0x28] sm:$0xff]
    %v4499 = vld [vmem:[%s11 + $0x30] sm:$0xff]
    %v4500 = vld [vmem:[%s11 + $0x38] sm:$0xff]
    %v4501 = vld [vmem:[%s12] sm:$0x1]
    %v4503 = vlaneseq
    %v4504 = vshrl.u32 %v4503, 7
    %v4505 = vsub.s32 0, %v4504
    %v4506 = vrot.slane %v4501, %v4505
    %v4509 = vsel %vm294, %v4465, 0
    %v4512 = vsel %vm294, %v4470, 0
    %v4515 = vsel %vm294, %v4475, 0
    %v4518 = vsel %vm294, %v4480, 0
    %v4521 = vsel %vm294, %v4485, 0
    %v4524 = vsel %vm294, %v4490, 0
    %4526 = vmatprep.subr.mxu0 0.0
    %4527 = vmatpush1.msra.mxu0 0.0
    %4528 = vmatprep.subr.mxu0 0.0
    %4529 = vmatpush1.msra.mxu0 0.0
    %4530 = vmatprep.subr.mxu0 0.0
    %4531 = vmatpush1.msra.mxu0 0.0
    %4532 = vmatprep.subr.mxu0 0.0
    %4533 = vmatpush1.msra.mxu0 0.0
    %4534 = vmatprep.subr.mxu0 0.0
    %4535 = vmatpush1.msra.mxu0 0.0
    %4536 = vmatprep.subr.mxu0 0.0
    %4537 = vmatpush1.msra.mxu0 0.0
    %4538 = vmatprep.subr.mxu0 0.0
    %4539 = vmatpush1.msra.mxu0 0.0
    %4540 = vmatprep.subr.mxu0 0.0
    %4541 = vmatpush1.msra.mxu0 0.0
    %4542 = vmatprep.subr.mxu0 0.0
    %4543 = vmatpush1.msra.mxu0 %v4500
    %4544 = vmatprep.subr.mxu0 0.0
    %4545 = vmatpush1.msra.mxu0 %v4499
    %4546 = vmatprep.subr.mxu0 0.0
    %4547 = vmatpush1.msra.mxu0 %v4498
    %4548 = vmatprep.subr.mxu0 0.0
    %4549 = vmatpush1.msra.mxu0 %v4497
    %4550 = vmatprep.subr.mxu0 0.0
    %4551 = vmatpush1.msra.mxu0 %v4496
    %4552 = vmatprep.subr.mxu0 0.0
    %4553 = vmatpush1.msra.mxu0 %v4495
    %4554 = vmatprep.subr.mxu0 0.0
    %4555 = vmatpush1.msra.mxu0 %v4494
    %4556 = vmatprep.subr.mxu0 0.0
    %4557 = vmatpush1.msra.mxu0 %v4493
    %4558 = vmatprep.subr.mxu0 0.0
    %4559 = vmatpush2.msra.mxu0 0.0
    %4560 = vmatprep.subr.mxu0 0.0
    %4561 = vmatpush2.msra.mxu0 0.0
    %4562 = vmatprep.subr.mxu0 0.0
    %4563 = vmatpush2.msra.mxu0 0.0
    %4564 = vmatprep.subr.mxu0 0.0
    %4565 = vmatpush2.msra.mxu0 0.0
    %4566 = vmatprep.subr.mxu0 0.0
    %4567 = vmatpush2.msra.mxu0 0.0
    %4568 = vmatprep.subr.mxu0 0.0
    %4569 = vmatpush2.msra.mxu0 0.0
    %4570 = vmatprep.subr.mxu0 0.0
    %4571 = vmatpush2.msra.mxu0 0.0
    %4572 = vmatprep.subr.mxu0 0.0
    %4573 = vmatpush2.msra.mxu0 0.0
    %4574 = vmatprep.subr.mxu0 0.0
    %4575 = vmatpush2.msra.mxu0 0.0
    %4576 = vmatprep.subr.mxu0 0.0
    %4577 = vmatpush2.msra.mxu0 0.0
    %4578 = vmatprep.subr.mxu0 0.0
    %4579 = vmatpush2.msra.mxu0 0.0
    %4580 = vmatprep.subr.mxu0 0.0
    %4581 = vmatpush2.msra.mxu0 0.0
    %4582 = vmatprep.subr.mxu0 0.0
    %4583 = vmatpush2.msra.mxu0 0.0
    %4584 = vmatprep.subr.mxu0 0.0
    %4585 = vmatpush2.msra.mxu0 0.0
    %4586 = vmatprep.subr.mxu0 0.0
    %4587 = vmatpush2.msra.mxu0 0.0
    %4588 = vmatprep.subr.mxu0 0.0
    %4589 = vmatpush2.msra.mxu0 0.0
    %4590 = vmatprep.mubr.f32.mxu0 0.0
    %4591 = vmatmul.mubr.f32.gmra.mxu0 %v4509
    %v4592 = vpop.f32.mrf.mxu0
    %v4593 = vadd.f32 %v4506, %v4592
    %v4594 = vpop.f32.mrf.mxu0
    %4595 = vmatprep.mubr.f32.mxu0 0.0
    %4596 = vmatmul.mubr.f32.gmra.mxu0 %v4512
    %v4597 = vpop.f32.mrf.mxu0
    %v4598 = vadd.f32 %v4506, %v4597
    %v4599 = vpop.f32.mrf.mxu0
    %4600 = vmatprep.mubr.f32.mxu0 0.0
    %4601 = vmatmul.mubr.f32.gmra.mxu0 %v4515
    %v4602 = vpop.f32.mrf.mxu0
    %v4603 = vadd.f32 %v4506, %v4602
    %v4604 = vpop.f32.mrf.mxu0
    %4605 = vmatprep.mubr.f32.mxu0 0.0
    %4606 = vmatmul.mubr.f32.gmra.mxu0 %v4518
    %v4607 = vpop.f32.mrf.mxu0
    %v4608 = vadd.f32 %v4506, %v4607
    %v4609 = vpop.f32.mrf.mxu0
    %4610 = vmatprep.mubr.f32.mxu0 0.0
    %4611 = vmatmul.mubr.f32.gmra.mxu0 %v4521
    %v4612 = vpop.f32.mrf.mxu0
    %v4613 = vadd.f32 %v4506, %v4612
    %v4614 = vpop.f32.mrf.mxu0
    %4615 = vmatprep.mubr.f32.mxu0 0.0
    %4616 = vmatmul.mubr.f32.gmra.mxu0 %v4524
    %v4617 = vpop.f32.mrf.mxu0
    %v4618 = vadd.f32 %v4506, %v4617
    %v4619 = vpop.f32.mrf.mxu0
    %4620 = vdwg.mxu0
    %v4621 = vld [vmem:[%s13] sm:$0xff]
    %v4622 = vld [vmem:[%s13 + $0x8] sm:$0xff]
    %v4623 = vld [vmem:[%s13 + $0x10] sm:$0xff]
    %v4624 = vld [vmem:[%s13 + $0x18] sm:$0xff]
    %v4625 = vld [vmem:[%s13 + $0x20] sm:$0xff]
    %v4626 = vld [vmem:[%s13 + $0x28] sm:$0xff]
    %v4627 = vld [vmem:[%s13 + $0x30] sm:$0xff]
    %v4628 = vld [vmem:[%s13 + $0x38] sm:$0xff]
    %v4629 = vld [vmem:[%s13 + $0x40] sm:$0xff]
    %v4630 = vld [vmem:[%s13 + $0x48] sm:$0xff]
    %v4631 = vld [vmem:[%s13 + $0x50] sm:$0xff]
    %v4632 = vld [vmem:[%s13 + $0x58] sm:$0xff]
    %v4633 = vld [vmem:[%s13 + $0x60] sm:$0xff]
    %v4634 = vld [vmem:[%s13 + $0x68] sm:$0xff]
    %v4635 = vld [vmem:[%s13 + $0x70] sm:$0xff]
    %v4636 = vld [vmem:[%s13 + $0x78] sm:$0xff]
    %v4637 = vld [vmem:[%s14] sm:$0x1]
    %v4639 = vlaneseq
    %v4640 = vshrl.u32 %v4639, 7
    %v4641 = vsub.s32 0, %v4640
    %v4642 = vrot.slane %v4637, %v4641
    %4644 = vmatprep.subr.mxu0 0.0
    %4645 = vmatpush1.msra.mxu0 %v4636
    %4646 = vmatprep.subr.mxu0 0.0
    %4647 = vmatpush1.msra.mxu0 %v4635
    %4648 = vmatprep.subr.mxu0 0.0
    %4649 = vmatpush1.msra.mxu0 %v4634
    %4650 = vmatprep.subr.mxu0 0.0
    %4651 = vmatpush1.msra.mxu0 %v4633
    %4652 = vmatprep.subr.mxu0 0.0
    %4653 = vmatpush1.msra.mxu0 %v4632
    %4654 = vmatprep.subr.mxu0 0.0
    %4655 = vmatpush1.msra.mxu0 %v4631
    %4656 = vmatprep.subr.mxu0 0.0
    %4657 = vmatpush1.msra.mxu0 %v4630
    %4658 = vmatprep.subr.mxu0 0.0
    %4659 = vmatpush1.msra.mxu0 %v4629
    %4660 = vmatprep.subr.mxu0 0.0
    %4661 = vmatpush1.msra.mxu0 %v4628
    %4662 = vmatprep.subr.mxu0 0.0
    %4663 = vmatpush1.msra.mxu0 %v4627
    %4664 = vmatprep.subr.mxu0 0.0
    %4665 = vmatpush1.msra.mxu0 %v4626
    %4666 = vmatprep.subr.mxu0 0.0
    %4667 = vmatpush1.msra.mxu0 %v4625
    %4668 = vmatprep.subr.mxu0 0.0
    %4669 = vmatpush1.msra.mxu0 %v4624
    %4670 = vmatprep.subr.mxu0 0.0
    %4671 = vmatpush1.msra.mxu0 %v4623
    %4672 = vmatprep.subr.mxu0 0.0
    %4673 = vmatpush1.msra.mxu0 %v4622
    %4674 = vmatprep.subr.mxu0 0.0
    %4675 = vmatpush1.msra.mxu0 %v4621
    %4676 = vmatprep.subr.mxu0 0.0
    %4677 = vmatpush2.msra.mxu0 0.0
    %4678 = vmatprep.subr.mxu0 0.0
    %4679 = vmatpush2.msra.mxu0 0.0
    %4680 = vmatprep.subr.mxu0 0.0
    %4681 = vmatpush2.msra.mxu0 0.0
    %4682 = vmatprep.subr.mxu0 0.0
    %4683 = vmatpush2.msra.mxu0 0.0
    %4684 = vmatprep.subr.mxu0 0.0
    %4685 = vmatpush2.msra.mxu0 0.0
    %4686 = vmatprep.subr.mxu0 0.0
    %4687 = vmatpush2.msra.mxu0 0.0
    %4688 = vmatprep.subr.mxu0 0.0
    %4689 = vmatpush2.msra.mxu0 0.0
    %4690 = vmatprep.subr.mxu0 0.0
    %4691 = vmatpush2.msra.mxu0 0.0
    %4692 = vmatprep.subr.mxu0 0.0
    %4693 = vmatpush2.msra.mxu0 0.0
    %4694 = vmatprep.subr.mxu0 0.0
    %4695 = vmatpush2.msra.mxu0 0.0
    %4696 = vmatprep.subr.mxu0 0.0
    %4697 = vmatpush2.msra.mxu0 0.0
    %4698 = vmatprep.subr.mxu0 0.0
    %4699 = vmatpush2.msra.mxu0 0.0
    %4700 = vmatprep.subr.mxu0 0.0
    %4701 = vmatpush2.msra.mxu0 0.0
    %4702 = vmatprep.subr.mxu0 0.0
    %4703 = vmatpush2.msra.mxu0 0.0
    %4704 = vmatprep.subr.mxu0 0.0
    %4705 = vmatpush2.msra.mxu0 0.0
    %4706 = vmatprep.subr.mxu0 0.0
    %4707 = vmatpush2.msra.mxu0 0.0
    %4708 = vmatprep.mubr.f32.mxu0 0.0
    %4709 = vmatmul.mubr.f32.gmra.mxu0 %v4593
    %v4710 = vpop.f32.mrf.mxu0
    %v4711 = vadd.f32 %v4642, %v4710
    %v4712 = vpop.f32.mrf.mxu0
    %4713 = vmatprep.mubr.f32.mxu0 0.0
    %4714 = vmatmul.mubr.f32.gmra.mxu0 %v4598
    %v4715 = vpop.f32.mrf.mxu0
    %v4716 = vadd.f32 %v4642, %v4715
    %v4717 = vpop.f32.mrf.mxu0
    %4718 = vmatprep.mubr.f32.mxu0 0.0
    %4719 = vmatmul.mubr.f32.gmra.mxu0 %v4603
    %v4720 = vpop.f32.mrf.mxu0
    %v4721 = vadd.f32 %v4642, %v4720
    %v4722 = vpop.f32.mrf.mxu0
    %4723 = vmatprep.mubr.f32.mxu0 0.0
    %4724 = vmatmul.mubr.f32.gmra.mxu0 %v4608
    %v4725 = vpop.f32.mrf.mxu0
    %v4726 = vadd.f32 %v4642, %v4725
    %v4727 = vpop.f32.mrf.mxu0
    %4728 = vmatprep.mubr.f32.mxu0 0.0
    %4729 = vmatmul.mubr.f32.gmra.mxu0 %v4613
    %v4730 = vpop.f32.mrf.mxu0
    %v4731 = vadd.f32 %v4642, %v4730
    %v4732 = vpop.f32.mrf.mxu0
    %4733 = vmatprep.mubr.f32.mxu0 0.0
    %4734 = vmatmul.mubr.f32.gmra.mxu0 %v4618
    %v4735 = vpop.f32.mrf.mxu0
    %v4736 = vadd.f32 %v4642, %v4735
    %v4737 = vpop.f32.mrf.mxu0
    %4738 = vdwg.mxu0
    %v4739 = vld [vmem:[%s15] sm:$0xff]
    %v4740 = vld [vmem:[%s15 + $0x8] sm:$0xff]
    %v4741 = vld [vmem:[%s15 + $0x10] sm:$0xff]
    %v4742 = vld [vmem:[%s15 + $0x18] sm:$0xff]
    %v4743 = vld [vmem:[%s15 + $0x20] sm:$0xff]
    %v4744 = vld [vmem:[%s15 + $0x28] sm:$0xff]
    %v4745 = vld [vmem:[%s15 + $0x30] sm:$0xff]
    %v4746 = vld [vmem:[%s15 + $0x38] sm:$0xff]
    %v4747 = vld [vmem:[%s15 + $0x40] sm:$0xff]
    %v4748 = vld [vmem:[%s15 + $0x48] sm:$0xff]
    %v4749 = vld [vmem:[%s15 + $0x50] sm:$0xff]
    %v4750 = vld [vmem:[%s15 + $0x58] sm:$0xff]
    %v4751 = vld [vmem:[%s15 + $0x60] sm:$0xff]
    %v4752 = vld [vmem:[%s15 + $0x68] sm:$0xff]
    %v4753 = vld [vmem:[%s15 + $0x70] sm:$0xff]
    %v4754 = vld [vmem:[%s15 + $0x78] sm:$0xff]
    %v4755 = vld [vmem:[%s16] sm:$0x3]
    %v4757 = vlaneseq
    %v4758 = vshrl.u32 %v4757, 7
    %v4759 = vsub.s32 0, %v4758
    %v4760 = vrot.slane %v4755, %v4759
    %v4761 = vlaneseq
    %v4762 = vshrl.u32 %v4761, 7
    %v4763 = vsub.s32 1, %v4762
    %v4764 = vrot.slane %v4755, %v4763
    %v4768 = vsel %vm294, %v4711, 0
    %v4771 = vsel %vm294, %v4716, 0
    %v4774 = vsel %vm294, %v4721, 0
    %v4777 = vsel %vm294, %v4726, 0
    %v4780 = vsel %vm294, %v4731, 0
    %v4783 = vsel %vm294, %v4736, 0
    %4785 = vmatprep.subr.mxu0 0.0
    %4786 = vmatpush1.msra.mxu0 0.0
    %4787 = vmatprep.subr.mxu0 0.0
    %4788 = vmatpush1.msra.mxu0 0.0
    %4789 = vmatprep.subr.mxu0 0.0
    %4790 = vmatpush1.msra.mxu0 0.0
    %4791 = vmatprep.subr.mxu0 0.0
    %4792 = vmatpush1.msra.mxu0 0.0
    %4793 = vmatprep.subr.mxu0 0.0
    %4794 = vmatpush1.msra.mxu0 0.0
    %4795 = vmatprep.subr.mxu0 0.0
    %4796 = vmatpush1.msra.mxu0 0.0
    %4797 = vmatprep.subr.mxu0 0.0
    %4798 = vmatpush1.msra.mxu0 0.0
    %4799 = vmatprep.subr.mxu0 0.0
    %4800 = vmatpush1.msra.mxu0 0.0
    %4801 = vmatprep.subr.mxu0 %v4754
    %4802 = vmatpush1.msra.mxu0 %v4753
    %4803 = vmatprep.subr.mxu0 %v4752
    %4804 = vmatpush1.msra.mxu0 %v4751
    %4805 = vmatprep.subr.mxu0 %v4750
    %4806 = vmatpush1.msra.mxu0 %v4749
    %4807 = vmatprep.subr.mxu0 %v4748
    %4808 = vmatpush1.msra.mxu0 %v4747
    %4809 = vmatprep.subr.mxu0 %v4746
    %4810 = vmatpush1.msra.mxu0 %v4745
    %4811 = vmatprep.subr.mxu0 %v4744
    %4812 = vmatpush1.msra.mxu0 %v4743
    %4813 = vmatprep.subr.mxu0 %v4742
    %4814 = vmatpush1.msra.mxu0 %v4741
    %4815 = vmatprep.subr.mxu0 %v4740
    %4816 = vmatpush1.msra.mxu0 %v4739
    %4817 = vmatprep.subr.mxu0 0.0
    %4818 = vmatpush2.msra.mxu0 0.0
    %4819 = vmatprep.subr.mxu0 0.0
    %4820 = vmatpush2.msra.mxu0 0.0
    %4821 = vmatprep.subr.mxu0 0.0
    %4822 = vmatpush2.msra.mxu0 0.0
    %4823 = vmatprep.subr.mxu0 0.0
    %4824 = vmatpush2.msra.mxu0 0.0
    %4825 = vmatprep.subr.mxu0 0.0
    %4826 = vmatpush2.msra.mxu0 0.0
    %4827 = vmatprep.subr.mxu0 0.0
    %4828 = vmatpush2.msra.mxu0 0.0
    %4829 = vmatprep.subr.mxu0 0.0
    %4830 = vmatpush2.msra.mxu0 0.0
    %4831 = vmatprep.subr.mxu0 0.0
    %4832 = vmatpush2.msra.mxu0 0.0
    %4833 = vmatprep.subr.mxu0 0.0
    %4834 = vmatpush2.msra.mxu0 0.0
    %4835 = vmatprep.subr.mxu0 0.0
    %4836 = vmatpush2.msra.mxu0 0.0
    %4837 = vmatprep.subr.mxu0 0.0
    %4838 = vmatpush2.msra.mxu0 0.0
    %4839 = vmatprep.subr.mxu0 0.0
    %4840 = vmatpush2.msra.mxu0 0.0
    %4841 = vmatprep.subr.mxu0 0.0
    %4842 = vmatpush2.msra.mxu0 0.0
    %4843 = vmatprep.subr.mxu0 0.0
    %4844 = vmatpush2.msra.mxu0 0.0
    %4845 = vmatprep.subr.mxu0 0.0
    %4846 = vmatpush2.msra.mxu0 0.0
    %4847 = vmatprep.subr.mxu0 0.0
    %4848 = vmatpush2.msra.mxu0 0.0
    %4849 = vmatprep.mubr.f32.mxu0 0.0
    %4850 = vmatmul.mubr.f32.gmra.mxu0 %v4768
    %v4851 = vpop.f32.mrf.mxu0
    %v4852 = vadd.f32 %v4760, %v4851
    %v4853 = vpop.f32.mrf.mxu0
    %v4854 = vadd.f32 %v4764, %v4853
    %4855 = vmatprep.mubr.f32.mxu0 0.0
    %4856 = vmatmul.mubr.f32.gmra.mxu0 %v4771
    %v4857 = vpop.f32.mrf.mxu0
    %v4858 = vadd.f32 %v4760, %v4857
    %v4859 = vpop.f32.mrf.mxu0
    %v4860 = vadd.f32 %v4764, %v4859
    %4861 = vmatprep.mubr.f32.mxu0 0.0
    %4862 = vmatmul.mubr.f32.gmra.mxu0 %v4774
    %v4863 = vpop.f32.mrf.mxu0
    %v4864 = vadd.f32 %v4760, %v4863
    %v4865 = vpop.f32.mrf.mxu0
    %v4866 = vadd.f32 %v4764, %v4865
    %4867 = vmatprep.mubr.f32.mxu0 0.0
    %4868 = vmatmul.mubr.f32.gmra.mxu0 %v4777
    %v4869 = vpop.f32.mrf.mxu0
    %v4870 = vadd.f32 %v4760, %v4869
    %v4871 = vpop.f32.mrf.mxu0
    %v4872 = vadd.f32 %v4764, %v4871
    %4873 = vmatprep.mubr.f32.mxu0 0.0
    %4874 = vmatmul.mubr.f32.gmra.mxu0 %v4780
    %v4875 = vpop.f32.mrf.mxu0
    %v4876 = vadd.f32 %v4760, %v4875
    %v4877 = vpop.f32.mrf.mxu0
    %v4878 = vadd.f32 %v4764, %v4877
    %4879 = vmatprep.mubr.f32.mxu0 0.0
    %4880 = vmatmul.mubr.f32.gmra.mxu0 %v4783
    %v4881 = vpop.f32.mrf.mxu0
    %v4882 = vadd.f32 %v4760, %v4881
    %v4883 = vpop.f32.mrf.mxu0
    %v4884 = vadd.f32 %v4764, %v4883
    %4885 = vdwg.mxu0
    %v4886 = vmul.f32 %v4852, %v248
    %v4887 = vmul.f32 %v4858, %v249
    %v4888 = vmul.f32 %v4864, %v250
    %v4889 = vmul.f32 %v4870, %v251
    %v4890 = vmul.f32 %v4876, %v252
    %v4891 = vmul.f32 %v4882, %v253
    %v4892 = vmul.f32 %v4852, %v427
    %v4893 = vmul.f32 %v4858, %v429
    %v4894 = vmul.f32 %v4864, %v431
    %v4895 = vmul.f32 %v4870, %v433
    %v4896 = vmul.f32 %v4876, %v435
    %v4897 = vmul.f32 %v4882, %v437
    %4904 = vrot.lane.b32.xlu0 %v4892, 32
    %v4905 = vpop.permute.xlu0 %4904
    %4906 = vrot.lane.b32.xlu0 %v4893, 32
    %v4907 = vpop.permute.xlu0 %4906
    %4908 = vrot.lane.b32.xlu0 %v4894, 32
    %v4909 = vpop.permute.xlu0 %4908
    %4910 = vrot.lane.b32.xlu0 %v4895, 32
    %v4911 = vpop.permute.xlu0 %4910
    %4912 = vrot.lane.b32.xlu0 %v4896, 32
    %v4913 = vpop.permute.xlu0 %4912
    %4914 = vrot.lane.b32.xlu0 %v4897, 32
    %v4915 = vpop.permute.xlu0 %4914
    %v4922 = vsub.f32 %v4886, %v4905
    %v4923 = vsub.f32 %v4887, %v4907
    %v4924 = vsub.f32 %v4888, %v4909
    %v4925 = vsub.f32 %v4889, %v4911
    %v4926 = vsub.f32 %v4890, %v4913
    %v4927 = vsub.f32 %v4891, %v4915
    %v4928 = vmul.f32 %v4852, %v254
    %v4929 = vmul.f32 %v4858, %v255
    %v4930 = vmul.f32 %v4864, %v256
    %v4931 = vmul.f32 %v4870, %v257
    %v4932 = vmul.f32 %v4876, %v258
    %v4933 = vmul.f32 %v4882, %v259
    %v4934 = vmul.f32 %v4852, %v493
    %v4935 = vmul.f32 %v4858, %v495
    %v4936 = vmul.f32 %v4864, %v497
    %v4937 = vmul.f32 %v4870, %v499
    %v4938 = vmul.f32 %v4876, %v501
    %v4939 = vmul.f32 %v4882, %v503
    %4946 = vrot.lane.b32.xlu0 %v4934, 32
    %v4947 = vpop.permute.xlu0 %4946
    %4948 = vrot.lane.b32.xlu0 %v4935, 32
    %v4949 = vpop.permute.xlu0 %4948
    %4950 = vrot.lane.b32.xlu0 %v4936, 32
    %v4951 = vpop.permute.xlu0 %4950
    %4952 = vrot.lane.b32.xlu0 %v4937, 32
    %v4953 = vpop.permute.xlu0 %4952
    %4954 = vrot.lane.b32.xlu0 %v4938, 32
    %v4955 = vpop.permute.xlu0 %4954
    %4956 = vrot.lane.b32.xlu0 %v4939, 32
    %v4957 = vpop.permute.xlu0 %4956
    %v4964 = vadd.f32 %v4928, %v4947
    %v4965 = vadd.f32 %v4929, %v4949
    %v4966 = vadd.f32 %v4930, %v4951
    %v4967 = vadd.f32 %v4931, %v4953
    %v4968 = vadd.f32 %v4932, %v4955
    %v4969 = vadd.f32 %v4933, %v4957
    %v4970 = vmul.f32 %v4852, %v547
    %v4971 = vmul.f32 %v4858, %v549
    %v4972 = vmul.f32 %v4864, %v551
    %v4973 = vmul.f32 %v4870, %v553
    %v4974 = vmul.f32 %v4876, %v555
    %v4975 = vmul.f32 %v4882, %v557
    %v4976 = vmul.f32 %v4854, %v254
    %v4977 = vmul.f32 %v4860, %v255
    %v4978 = vmul.f32 %v4866, %v256
    %v4979 = vmul.f32 %v4872, %v257
    %v4980 = vmul.f32 %v4878, %v258
    %v4981 = vmul.f32 %v4884, %v259
    %4988 = vrot.lane.b32.xlu0 %v4976, 32
    %v4989 = vpop.permute.xlu0 %4988
    %4990 = vrot.lane.b32.xlu0 %v4977, 32
    %v4991 = vpop.permute.xlu0 %4990
    %4992 = vrot.lane.b32.xlu0 %v4978, 32
    %v4993 = vpop.permute.xlu0 %4992
    %4994 = vrot.lane.b32.xlu0 %v4979, 32
    %v4995 = vpop.permute.xlu0 %4994
    %4996 = vrot.lane.b32.xlu0 %v4980, 32
    %v4997 = vpop.permute.xlu0 %4996
    %4998 = vrot.lane.b32.xlu0 %v4981, 32
    %v4999 = vpop.permute.xlu0 %4998
    %v5006 = vsub.f32 %v4970, %v4989
    %v5007 = vsub.f32 %v4971, %v4991
    %v5008 = vsub.f32 %v4972, %v4993
    %v5009 = vsub.f32 %v4973, %v4995
    %v5010 = vsub.f32 %v4974, %v4997
    %v5011 = vsub.f32 %v4975, %v4999
    %v5012 = vmul.f32 %v4852, %v607
    %v5013 = vmul.f32 %v4858, %v609
    %v5014 = vmul.f32 %v4864, %v611
    %v5015 = vmul.f32 %v4870, %v613
    %v5016 = vmul.f32 %v4876, %v615
    %v5017 = vmul.f32 %v4882, %v617
    %v5018 = vmul.f32 %v4854, %v248
    %v5019 = vmul.f32 %v4860, %v249
    %v5020 = vmul.f32 %v4866, %v250
    %v5021 = vmul.f32 %v4872, %v251
    %v5022 = vmul.f32 %v4878, %v252
    %v5023 = vmul.f32 %v4884, %v253
    %5030 = vrot.lane.b32.xlu0 %v5018, 32
    %v5031 = vpop.permute.xlu0 %5030
    %5032 = vrot.lane.b32.xlu0 %v5019, 32
    %v5033 = vpop.permute.xlu0 %5032
    %5034 = vrot.lane.b32.xlu0 %v5020, 32
    %v5035 = vpop.permute.xlu0 %5034
    %5036 = vrot.lane.b32.xlu0 %v5021, 32
    %v5037 = vpop.permute.xlu0 %5036
    %5038 = vrot.lane.b32.xlu0 %v5022, 32
    %v5039 = vpop.permute.xlu0 %5038
    %5040 = vrot.lane.b32.xlu0 %v5023, 32
    %v5041 = vpop.permute.xlu0 %5040
    %v5048 = vadd.f32 %v5012, %v5031
    %v5049 = vadd.f32 %v5013, %v5033
    %v5050 = vadd.f32 %v5014, %v5035
    %v5051 = vadd.f32 %v5015, %v5037
    %v5052 = vadd.f32 %v5016, %v5039
    %v5053 = vadd.f32 %v5017, %v5041
    %5060 = vrot.lane.b32.xlu0 %v5048, 96
    %v5061 = vpop.permute.xlu0 %5060
    %5062 = vrot.lane.b32.xlu0 %v5049, 96
    %v5063 = vpop.permute.xlu0 %5062
    %5064 = vrot.lane.b32.xlu0 %v5050, 96
    %v5065 = vpop.permute.xlu0 %5064
    %5066 = vrot.lane.b32.xlu0 %v5051, 96
    %v5067 = vpop.permute.xlu0 %5066
    %5068 = vrot.lane.b32.xlu0 %v5052, 96
    %v5069 = vpop.permute.xlu0 %5068
    %5070 = vrot.lane.b32.xlu0 %v5053, 96
    %v5071 = vpop.permute.xlu0 %5070
    %v5073 = vsel %vm684, %v4964, 0
    %v5076 = vsel %vm684, %v4965, 0
    %v5079 = vsel %vm684, %v4966, 0
    %v5082 = vsel %vm684, %v4967, 0
    %v5085 = vsel %vm684, %v4968, 0
    %v5088 = vsel %vm684, %v4969, 0
    %v5090 = vsel %vm684, %v5061, 0
    %v5092 = vsel %vm684, %v5063, 0
    %v5094 = vsel %vm684, %v5065, 0
    %v5096 = vsel %vm684, %v5067, 0
    %v5098 = vsel %vm684, %v5069, 0
    %v5100 = vsel %vm684, %v5071, 0
    %5102 = vmatprep.subr.mxu0 0.0
    %5103 = vmatpush1.xpose.msra.mxu0 0.0
    %5104 = vmatprep.subr.mxu0 0.0
    %5105 = vmatpush1.xpose.msra.mxu0 0.0
    %5106 = vmatprep.subr.mxu0 0.0
    %5107 = vmatpush1.xpose.msra.mxu0 0.0
    %5108 = vmatprep.subr.mxu0 0.0
    %5109 = vmatpush1.xpose.msra.mxu0 0.0
    %5110 = vmatprep.subr.mxu0 0.0
    %5111 = vmatpush1.xpose.msra.mxu0 0.0
    %5112 = vmatprep.subr.mxu0 0.0
    %5113 = vmatpush1.xpose.msra.mxu0 0.0
    %5114 = vmatprep.subr.mxu0 0.0
    %5115 = vmatpush1.xpose.msra.mxu0 0.0
    %5116 = vmatprep.subr.mxu0 0.0
    %5117 = vmatpush1.xpose.msra.mxu0 0.0
    %5118 = vmatprep.subr.mxu0 0.0
    %5119 = vmatpush1.xpose.msra.mxu0 0.0
    %5120 = vmatprep.subr.mxu0 0.0
    %5121 = vmatpush1.xpose.msra.mxu0 0.0
    %5122 = vmatprep.subr.mxu0 0.0
    %5123 = vmatpush1.xpose.msra.mxu0 %v5100
    %5124 = vmatprep.subr.mxu0 0.0
    %5125 = vmatpush1.xpose.msra.mxu0 %v5098
    %5126 = vmatprep.subr.mxu0 0.0
    %5127 = vmatpush1.xpose.msra.mxu0 %v5096
    %5128 = vmatprep.subr.mxu0 0.0
    %5129 = vmatpush1.xpose.msra.mxu0 %v5094
    %5130 = vmatprep.subr.mxu0 0.0
    %5131 = vmatpush1.xpose.msra.mxu0 %v5092
    %5132 = vmatprep.subr.mxu0 0.0
    %5133 = vmatpush1.xpose.msra.mxu0 %v5090
    %5134 = vmatprep.subr.mxu0 0.0
    %5135 = vmatpush2.xpose.msra.mxu0 0.0
    %5136 = vmatprep.subr.mxu0 0.0
    %5137 = vmatpush2.xpose.msra.mxu0 0.0
    %5138 = vmatprep.subr.mxu0 0.0
    %5139 = vmatpush2.xpose.msra.mxu0 0.0
    %5140 = vmatprep.subr.mxu0 0.0
    %5141 = vmatpush2.xpose.msra.mxu0 0.0
    %5142 = vmatprep.subr.mxu0 0.0
    %5143 = vmatpush2.xpose.msra.mxu0 0.0
    %5144 = vmatprep.subr.mxu0 0.0
    %5145 = vmatpush2.xpose.msra.mxu0 0.0
    %5146 = vmatprep.subr.mxu0 0.0
    %5147 = vmatpush2.xpose.msra.mxu0 0.0
    %5148 = vmatprep.subr.mxu0 0.0
    %5149 = vmatpush2.xpose.msra.mxu0 0.0
    %5150 = vmatprep.subr.mxu0 0.0
    %5151 = vmatpush2.xpose.msra.mxu0 0.0
    %5152 = vmatprep.subr.mxu0 0.0
    %5153 = vmatpush2.xpose.msra.mxu0 0.0
    %5154 = vmatprep.subr.mxu0 0.0
    %5155 = vmatpush2.xpose.msra.mxu0 0.0
    %5156 = vmatprep.subr.mxu0 0.0
    %5157 = vmatpush2.xpose.msra.mxu0 0.0
    %5158 = vmatprep.subr.mxu0 0.0
    %5159 = vmatpush2.xpose.msra.mxu0 0.0
    %5160 = vmatprep.subr.mxu0 0.0
    %5161 = vmatpush2.xpose.msra.mxu0 0.0
    %5162 = vmatprep.subr.mxu0 0.0
    %5163 = vmatpush2.xpose.msra.mxu0 0.0
    %5164 = vmatprep.subr.mxu0 0.0
    %5165 = vmatpush2.xpose.msra.mxu0 0.0
    %5166 = vmatprep.mubr.f32.mxu0 0.0
    %5167 = vmatmul.mubr.f32.gmra.mxu0 %v5073
    %v5168 = vpop.f32.mrf.mxu0
    %v5169 = vadd.f32 0.0, %v5168
    %v5170 = vpop.f32.mrf.mxu0
    %5171 = vmatprep.mubr.f32.mxu0 0.0
    %5172 = vmatmul.mubr.f32.gmra.mxu0 %v5076
    %v5173 = vpop.f32.mrf.mxu0
    %v5174 = vadd.f32 0.0, %v5173
    %v5175 = vpop.f32.mrf.mxu0
    %5176 = vmatprep.mubr.f32.mxu0 0.0
    %5177 = vmatmul.mubr.f32.gmra.mxu0 %v5079
    %v5178 = vpop.f32.mrf.mxu0
    %v5179 = vadd.f32 0.0, %v5178
    %v5180 = vpop.f32.mrf.mxu0
    %5181 = vmatprep.mubr.f32.mxu0 0.0
    %5182 = vmatmul.mubr.f32.gmra.mxu0 %v5082
    %v5183 = vpop.f32.mrf.mxu0
    %v5184 = vadd.f32 0.0, %v5183
    %v5185 = vpop.f32.mrf.mxu0
    %5186 = vmatprep.mubr.f32.mxu0 0.0
    %5187 = vmatmul.mubr.f32.gmra.mxu0 %v5085
    %v5188 = vpop.f32.mrf.mxu0
    %v5189 = vadd.f32 0.0, %v5188
    %v5190 = vpop.f32.mrf.mxu0
    %5191 = vmatprep.mubr.f32.mxu0 0.0
    %5192 = vmatmul.mubr.f32.gmra.mxu0 %v5088
    %v5193 = vpop.f32.mrf.mxu0
    %v5194 = vadd.f32 0.0, %v5193
    %v5195 = vpop.f32.mrf.mxu0
    %5196 = vdwg.mxu0
    %5203 = vrot.lane.b32.xlu0 %v5006, 96
    %v5204 = vpop.permute.xlu0 %5203
    %5205 = vrot.lane.b32.xlu0 %v5007, 96
    %v5206 = vpop.permute.xlu0 %5205
    %5207 = vrot.lane.b32.xlu0 %v5008, 96
    %v5208 = vpop.permute.xlu0 %5207
    %5209 = vrot.lane.b32.xlu0 %v5009, 96
    %v5210 = vpop.permute.xlu0 %5209
    %5211 = vrot.lane.b32.xlu0 %v5010, 96
    %v5212 = vpop.permute.xlu0 %5211
    %5213 = vrot.lane.b32.xlu0 %v5011, 96
    %v5214 = vpop.permute.xlu0 %5213
    %v5216 = vsel %vm684, %v4922, 0
    %v5219 = vsel %vm684, %v4923, 0
    %v5222 = vsel %vm684, %v4924, 0
    %v5225 = vsel %vm684, %v4925, 0
    %v5228 = vsel %vm684, %v4926, 0
    %v5231 = vsel %vm684, %v4927, 0
    %v5233 = vsel %vm684, %v5204, 0
    %v5235 = vsel %vm684, %v5206, 0
    %v5237 = vsel %vm684, %v5208, 0
    %v5239 = vsel %vm684, %v5210, 0
    %v5241 = vsel %vm684, %v5212, 0
    %v5243 = vsel %vm684, %v5214, 0
    %5245 = vmatprep.subr.mxu0 0.0
    %5246 = vmatpush1.xpose.msra.mxu0 0.0
    %5247 = vmatprep.subr.mxu0 0.0
    %5248 = vmatpush1.xpose.msra.mxu0 0.0
    %5249 = vmatprep.subr.mxu0 0.0
    %5250 = vmatpush1.xpose.msra.mxu0 0.0
    %5251 = vmatprep.subr.mxu0 0.0
    %5252 = vmatpush1.xpose.msra.mxu0 0.0
    %5253 = vmatprep.subr.mxu0 0.0
    %5254 = vmatpush1.xpose.msra.mxu0 0.0
    %5255 = vmatprep.subr.mxu0 0.0
    %5256 = vmatpush1.xpose.msra.mxu0 0.0
    %5257 = vmatprep.subr.mxu0 0.0
    %5258 = vmatpush1.xpose.msra.mxu0 0.0
    %5259 = vmatprep.subr.mxu0 0.0
    %5260 = vmatpush1.xpose.msra.mxu0 0.0
    %5261 = vmatprep.subr.mxu0 0.0
    %5262 = vmatpush1.xpose.msra.mxu0 0.0
    %5263 = vmatprep.subr.mxu0 0.0
    %5264 = vmatpush1.xpose.msra.mxu0 0.0
    %5265 = vmatprep.subr.mxu0 0.0
    %5266 = vmatpush1.xpose.msra.mxu0 %v5243
    %5267 = vmatprep.subr.mxu0 0.0
    %5268 = vmatpush1.xpose.msra.mxu0 %v5241
    %5269 = vmatprep.subr.mxu0 0.0
    %5270 = vmatpush1.xpose.msra.mxu0 %v5239
    %5271 = vmatprep.subr.mxu0 0.0
    %5272 = vmatpush1.xpose.msra.mxu0 %v5237
    %5273 = vmatprep.subr.mxu0 0.0
    %5274 = vmatpush1.xpose.msra.mxu0 %v5235
    %5275 = vmatprep.subr.mxu0 0.0
    %5276 = vmatpush1.xpose.msra.mxu0 %v5233
    %5277 = vmatprep.subr.mxu0 0.0
    %5278 = vmatpush2.xpose.msra.mxu0 0.0
    %5279 = vmatprep.subr.mxu0 0.0
    %5280 = vmatpush2.xpose.msra.mxu0 0.0
    %5281 = vmatprep.subr.mxu0 0.0
    %5282 = vmatpush2.xpose.msra.mxu0 0.0
    %5283 = vmatprep.subr.mxu0 0.0
    %5284 = vmatpush2.xpose.msra.mxu0 0.0
    %5285 = vmatprep.subr.mxu0 0.0
    %5286 = vmatpush2.xpose.msra.mxu0 0.0
    %5287 = vmatprep.subr.mxu0 0.0
    %5288 = vmatpush2.xpose.msra.mxu0 0.0
    %5289 = vmatprep.subr.mxu0 0.0
    %5290 = vmatpush2.xpose.msra.mxu0 0.0
    %5291 = vmatprep.subr.mxu0 0.0
    %5292 = vmatpush2.xpose.msra.mxu0 0.0
    %5293 = vmatprep.subr.mxu0 0.0
    %5294 = vmatpush2.xpose.msra.mxu0 0.0
    %5295 = vmatprep.subr.mxu0 0.0
    %5296 = vmatpush2.xpose.msra.mxu0 0.0
    %5297 = vmatprep.subr.mxu0 0.0
    %5298 = vmatpush2.xpose.msra.mxu0 0.0
    %5299 = vmatprep.subr.mxu0 0.0
    %5300 = vmatpush2.xpose.msra.mxu0 0.0
    %5301 = vmatprep.subr.mxu0 0.0
    %5302 = vmatpush2.xpose.msra.mxu0 0.0
    %5303 = vmatprep.subr.mxu0 0.0
    %5304 = vmatpush2.xpose.msra.mxu0 0.0
    %5305 = vmatprep.subr.mxu0 0.0
    %5306 = vmatpush2.xpose.msra.mxu0 0.0
    %5307 = vmatprep.subr.mxu0 0.0
    %5308 = vmatpush2.xpose.msra.mxu0 0.0
    %5309 = vmatprep.mubr.f32.mxu0 0.0
    %5310 = vmatmul.mubr.f32.gmra.mxu0 %v5216
    %v5311 = vpop.f32.mrf.mxu0
    %v5312 = vadd.f32 %v5169, %v5311
    %v5313 = vpop.f32.mrf.mxu0
    %5314 = vmatprep.mubr.f32.mxu0 0.0
    %5315 = vmatmul.mubr.f32.gmra.mxu0 %v5219
    %v5316 = vpop.f32.mrf.mxu0
    %v5317 = vadd.f32 %v5174, %v5316
    %v5318 = vpop.f32.mrf.mxu0
    %5319 = vmatprep.mubr.f32.mxu0 0.0
    %5320 = vmatmul.mubr.f32.gmra.mxu0 %v5222
    %v5321 = vpop.f32.mrf.mxu0
    %v5322 = vadd.f32 %v5179, %v5321
    %v5323 = vpop.f32.mrf.mxu0
    %5324 = vmatprep.mubr.f32.mxu0 0.0
    %5325 = vmatmul.mubr.f32.gmra.mxu0 %v5225
    %v5326 = vpop.f32.mrf.mxu0
    %v5327 = vadd.f32 %v5184, %v5326
    %v5328 = vpop.f32.mrf.mxu0
    %5329 = vmatprep.mubr.f32.mxu0 0.0
    %5330 = vmatmul.mubr.f32.gmra.mxu0 %v5228
    %v5331 = vpop.f32.mrf.mxu0
    %v5332 = vadd.f32 %v5189, %v5331
    %v5333 = vpop.f32.mrf.mxu0
    %5334 = vmatprep.mubr.f32.mxu0 0.0
    %5335 = vmatmul.mubr.f32.gmra.mxu0 %v5231
    %v5336 = vpop.f32.mrf.mxu0
    %v5337 = vadd.f32 %v5194, %v5336
    %v5338 = vpop.f32.mrf.mxu0
    %5339 = vdwg.mxu0
    %5340 = vmatprep.subr.mxu0 0.0
    %5341 = vmatpush1.xpose.msra.mxu0 0.0
    %5342 = vmatprep.subr.mxu0 0.0
    %5343 = vmatpush1.xpose.msra.mxu0 0.0
    %5344 = vmatprep.subr.mxu0 0.0
    %5345 = vmatpush1.xpose.msra.mxu0 0.0
    %5346 = vmatprep.subr.mxu0 0.0
    %5347 = vmatpush1.xpose.msra.mxu0 0.0
    %5348 = vmatprep.subr.mxu0 0.0
    %5349 = vmatpush1.xpose.msra.mxu0 0.0
    %5350 = vmatprep.subr.mxu0 0.0
    %5351 = vmatpush1.xpose.msra.mxu0 0.0
    %5352 = vmatprep.subr.mxu0 0.0
    %5353 = vmatpush1.xpose.msra.mxu0 0.0
    %5354 = vmatprep.subr.mxu0 0.0
    %5355 = vmatpush1.xpose.msra.mxu0 0.0
    %5356 = vmatprep.subr.mxu0 0.0
    %5357 = vmatpush1.xpose.msra.mxu0 0.0
    %5358 = vmatprep.subr.mxu0 0.0
    %5359 = vmatpush1.xpose.msra.mxu0 0.0
    %5360 = vmatprep.subr.mxu0 0.0
    %5361 = vmatpush1.xpose.msra.mxu0 %v5243
    %5362 = vmatprep.subr.mxu0 0.0
    %5363 = vmatpush1.xpose.msra.mxu0 %v5241
    %5364 = vmatprep.subr.mxu0 0.0
    %5365 = vmatpush1.xpose.msra.mxu0 %v5239
    %5366 = vmatprep.subr.mxu0 0.0
    %5367 = vmatpush1.xpose.msra.mxu0 %v5237
    %5368 = vmatprep.subr.mxu0 0.0
    %5369 = vmatpush1.xpose.msra.mxu0 %v5235
    %5370 = vmatprep.subr.mxu0 0.0
    %5371 = vmatpush1.xpose.msra.mxu0 %v5233
    %5372 = vmatprep.subr.mxu0 0.0
    %5373 = vmatpush2.xpose.msra.mxu0 0.0
    %5374 = vmatprep.subr.mxu0 0.0
    %5375 = vmatpush2.xpose.msra.mxu0 0.0
    %5376 = vmatprep.subr.mxu0 0.0
    %5377 = vmatpush2.xpose.msra.mxu0 0.0
    %5378 = vmatprep.subr.mxu0 0.0
    %5379 = vmatpush2.xpose.msra.mxu0 0.0
    %5380 = vmatprep.subr.mxu0 0.0
    %5381 = vmatpush2.xpose.msra.mxu0 0.0
    %5382 = vmatprep.subr.mxu0 0.0
    %5383 = vmatpush2.xpose.msra.mxu0 0.0
    %5384 = vmatprep.subr.mxu0 0.0
    %5385 = vmatpush2.xpose.msra.mxu0 0.0
    %5386 = vmatprep.subr.mxu0 0.0
    %5387 = vmatpush2.xpose.msra.mxu0 0.0
    %5388 = vmatprep.subr.mxu0 0.0
    %5389 = vmatpush2.xpose.msra.mxu0 0.0
    %5390 = vmatprep.subr.mxu0 0.0
    %5391 = vmatpush2.xpose.msra.mxu0 0.0
    %5392 = vmatprep.subr.mxu0 0.0
    %5393 = vmatpush2.xpose.msra.mxu0 0.0
    %5394 = vmatprep.subr.mxu0 0.0
    %5395 = vmatpush2.xpose.msra.mxu0 0.0
    %5396 = vmatprep.subr.mxu0 0.0
    %5397 = vmatpush2.xpose.msra.mxu0 0.0
    %5398 = vmatprep.subr.mxu0 0.0
    %5399 = vmatpush2.xpose.msra.mxu0 0.0
    %5400 = vmatprep.subr.mxu0 0.0
    %5401 = vmatpush2.xpose.msra.mxu0 0.0
    %5402 = vmatprep.subr.mxu0 0.0
    %5403 = vmatpush2.xpose.msra.mxu0 0.0
    %5404 = vmatprep.mubr.f32.mxu0 0.0
    %5405 = vmatmul.mubr.f32.gmra.mxu0 %v5073
    %v5406 = vpop.f32.mrf.mxu0
    %v5407 = vadd.f32 0.0, %v5406
    %v5408 = vpop.f32.mrf.mxu0
    %5409 = vmatprep.mubr.f32.mxu0 0.0
    %5410 = vmatmul.mubr.f32.gmra.mxu0 %v5076
    %v5411 = vpop.f32.mrf.mxu0
    %v5412 = vadd.f32 0.0, %v5411
    %v5413 = vpop.f32.mrf.mxu0
    %5414 = vmatprep.mubr.f32.mxu0 0.0
    %5415 = vmatmul.mubr.f32.gmra.mxu0 %v5079
    %v5416 = vpop.f32.mrf.mxu0
    %v5417 = vadd.f32 0.0, %v5416
    %v5418 = vpop.f32.mrf.mxu0
    %5419 = vmatprep.mubr.f32.mxu0 0.0
    %5420 = vmatmul.mubr.f32.gmra.mxu0 %v5082
    %v5421 = vpop.f32.mrf.mxu0
    %v5422 = vadd.f32 0.0, %v5421
    %v5423 = vpop.f32.mrf.mxu0
    %5424 = vmatprep.mubr.f32.mxu0 0.0
    %5425 = vmatmul.mubr.f32.gmra.mxu0 %v5085
    %v5426 = vpop.f32.mrf.mxu0
    %v5427 = vadd.f32 0.0, %v5426
    %v5428 = vpop.f32.mrf.mxu0
    %5429 = vmatprep.mubr.f32.mxu0 0.0
    %5430 = vmatmul.mubr.f32.gmra.mxu0 %v5088
    %v5431 = vpop.f32.mrf.mxu0
    %v5432 = vadd.f32 0.0, %v5431
    %v5433 = vpop.f32.mrf.mxu0
    %5434 = vdwg.mxu0
    %5435 = vmatprep.subr.mxu0 0.0
    %5436 = vmatpush1.xpose.msra.mxu0 0.0
    %5437 = vmatprep.subr.mxu0 0.0
    %5438 = vmatpush1.xpose.msra.mxu0 0.0
    %5439 = vmatprep.subr.mxu0 0.0
    %5440 = vmatpush1.xpose.msra.mxu0 0.0
    %5441 = vmatprep.subr.mxu0 0.0
    %5442 = vmatpush1.xpose.msra.mxu0 0.0
    %5443 = vmatprep.subr.mxu0 0.0
    %5444 = vmatpush1.xpose.msra.mxu0 0.0
    %5445 = vmatprep.subr.mxu0 0.0
    %5446 = vmatpush1.xpose.msra.mxu0 0.0
    %5447 = vmatprep.subr.mxu0 0.0
    %5448 = vmatpush1.xpose.msra.mxu0 0.0
    %5449 = vmatprep.subr.mxu0 0.0
    %5450 = vmatpush1.xpose.msra.mxu0 0.0
    %5451 = vmatprep.subr.mxu0 0.0
    %5452 = vmatpush1.xpose.msra.mxu0 0.0
    %5453 = vmatprep.subr.mxu0 0.0
    %5454 = vmatpush1.xpose.msra.mxu0 0.0
    %5455 = vmatprep.subr.mxu0 0.0
    %5456 = vmatpush1.xpose.msra.mxu0 %v5100
    %5457 = vmatprep.subr.mxu0 0.0
    %5458 = vmatpush1.xpose.msra.mxu0 %v5098
    %5459 = vmatprep.subr.mxu0 0.0
    %5460 = vmatpush1.xpose.msra.mxu0 %v5096
    %5461 = vmatprep.subr.mxu0 0.0
    %5462 = vmatpush1.xpose.msra.mxu0 %v5094
    %5463 = vmatprep.subr.mxu0 0.0
    %5464 = vmatpush1.xpose.msra.mxu0 %v5092
    %5465 = vmatprep.subr.mxu0 0.0
    %5466 = vmatpush1.xpose.msra.mxu0 %v5090
    %5467 = vmatprep.subr.mxu0 0.0
    %5468 = vmatpush2.xpose.msra.mxu0 0.0
    %5469 = vmatprep.subr.mxu0 0.0
    %5470 = vmatpush2.xpose.msra.mxu0 0.0
    %5471 = vmatprep.subr.mxu0 0.0
    %5472 = vmatpush2.xpose.msra.mxu0 0.0
    %5473 = vmatprep.subr.mxu0 0.0
    %5474 = vmatpush2.xpose.msra.mxu0 0.0
    %5475 = vmatprep.subr.mxu0 0.0
    %5476 = vmatpush2.xpose.msra.mxu0 0.0
    %5477 = vmatprep.subr.mxu0 0.0
    %5478 = vmatpush2.xpose.msra.mxu0 0.0
    %5479 = vmatprep.subr.mxu0 0.0
    %5480 = vmatpush2.xpose.msra.mxu0 0.0
    %5481 = vmatprep.subr.mxu0 0.0
    %5482 = vmatpush2.xpose.msra.mxu0 0.0
    %5483 = vmatprep.subr.mxu0 0.0
    %5484 = vmatpush2.xpose.msra.mxu0 0.0
    %5485 = vmatprep.subr.mxu0 0.0
    %5486 = vmatpush2.xpose.msra.mxu0 0.0
    %5487 = vmatprep.subr.mxu0 0.0
    %5488 = vmatpush2.xpose.msra.mxu0 0.0
    %5489 = vmatprep.subr.mxu0 0.0
    %5490 = vmatpush2.xpose.msra.mxu0 0.0
    %5491 = vmatprep.subr.mxu0 0.0
    %5492 = vmatpush2.xpose.msra.mxu0 0.0
    %5493 = vmatprep.subr.mxu0 0.0
    %5494 = vmatpush2.xpose.msra.mxu0 0.0
    %5495 = vmatprep.subr.mxu0 0.0
    %5496 = vmatpush2.xpose.msra.mxu0 0.0
    %5497 = vmatprep.subr.mxu0 0.0
    %5498 = vmatpush2.xpose.msra.mxu0 0.0
    %5499 = vmatprep.mubr.f32.mxu0 0.0
    %5500 = vmatmul.mubr.f32.gmra.mxu0 %v5216
    %v5501 = vpop.f32.mrf.mxu0
    %v5502 = vadd.f32 0.0, %v5501
    %v5503 = vpop.f32.mrf.mxu0
    %5504 = vmatprep.mubr.f32.mxu0 0.0
    %5505 = vmatmul.mubr.f32.gmra.mxu0 %v5219
    %v5506 = vpop.f32.mrf.mxu0
    %v5507 = vadd.f32 0.0, %v5506
    %v5508 = vpop.f32.mrf.mxu0
    %5509 = vmatprep.mubr.f32.mxu0 0.0
    %5510 = vmatmul.mubr.f32.gmra.mxu0 %v5222
    %v5511 = vpop.f32.mrf.mxu0
    %v5512 = vadd.f32 0.0, %v5511
    %v5513 = vpop.f32.mrf.mxu0
    %5514 = vmatprep.mubr.f32.mxu0 0.0
    %5515 = vmatmul.mubr.f32.gmra.mxu0 %v5225
    %v5516 = vpop.f32.mrf.mxu0
    %v5517 = vadd.f32 0.0, %v5516
    %v5518 = vpop.f32.mrf.mxu0
    %5519 = vmatprep.mubr.f32.mxu0 0.0
    %5520 = vmatmul.mubr.f32.gmra.mxu0 %v5228
    %v5521 = vpop.f32.mrf.mxu0
    %v5522 = vadd.f32 0.0, %v5521
    %v5523 = vpop.f32.mrf.mxu0
    %5524 = vmatprep.mubr.f32.mxu0 0.0
    %5525 = vmatmul.mubr.f32.gmra.mxu0 %v5231
    %v5526 = vpop.f32.mrf.mxu0
    %v5527 = vadd.f32 0.0, %v5526
    %v5528 = vpop.f32.mrf.mxu0
    %5529 = vdwg.mxu0
    %v5530 = vsub.f32 %v5407, %v5502
    %v5531 = vsub.f32 %v5412, %v5507
    %v5532 = vsub.f32 %v5417, %v5512
    %v5533 = vsub.f32 %v5422, %v5517
    %v5534 = vsub.f32 %v5427, %v5522
    %v5535 = vsub.f32 %v5432, %v5527
    %v5536 = vmul.f32 %v5312, %v5312
    %v5537 = vmul.f32 %v5317, %v5317
    %v5538 = vmul.f32 %v5322, %v5322
    %v5539 = vmul.f32 %v5327, %v5327
    %v5540 = vmul.f32 %v5332, %v5332
    %v5541 = vmul.f32 %v5337, %v5337
    %v5542 = vmul.f32 %v5530, %v5530
    %v5543 = vmul.f32 %v5531, %v5531
    %v5544 = vmul.f32 %v5532, %v5532
    %v5545 = vmul.f32 %v5533, %v5533
    %v5546 = vmul.f32 %v5534, %v5534
    %v5547 = vmul.f32 %v5535, %v5535
    %v5548 = vadd.f32 %v5536, %v5542
    %v5549 = vadd.f32 %v5537, %v5543
    %v5550 = vadd.f32 %v5538, %v5544
    %v5551 = vadd.f32 %v5539, %v5545
    %v5552 = vadd.f32 %v5540, %v5546
    %v5553 = vadd.f32 %v5541, %v5547
    %v5554 = vrsqrt.pop %v5548
    %v5555 = vmul.f32 %v5548, %v5554
    %vm5556 = vcmp.eq.f32.partialorder %v5548, inf
    %v5557 = vsel %vm5556, %v5548, %v5555
    %vm5558 = vcmp.eq.f32.partialorder %v5548, 0.0
    %v5559 = vand.u32 %v5548, 2147483648
    %v5560 = vsel %vm5558, %v5559, %v5557
    %v5561 = vrsqrt.pop %v5549
    %v5562 = vmul.f32 %v5549, %v5561
    %vm5563 = vcmp.eq.f32.partialorder %v5549, inf
    %v5564 = vsel %vm5563, %v5549, %v5562
    %vm5565 = vcmp.eq.f32.partialorder %v5549, 0.0
    %v5566 = vand.u32 %v5549, 2147483648
    %v5567 = vsel %vm5565, %v5566, %v5564
    %v5568 = vrsqrt.pop %v5550
    %v5569 = vmul.f32 %v5550, %v5568
    %vm5570 = vcmp.eq.f32.partialorder %v5550, inf
    %v5571 = vsel %vm5570, %v5550, %v5569
    %vm5572 = vcmp.eq.f32.partialorder %v5550, 0.0
    %v5573 = vand.u32 %v5550, 2147483648
    %v5574 = vsel %vm5572, %v5573, %v5571
    %v5575 = vrsqrt.pop %v5551
    %v5576 = vmul.f32 %v5551, %v5575
    %vm5577 = vcmp.eq.f32.partialorder %v5551, inf
    %v5578 = vsel %vm5577, %v5551, %v5576
    %vm5579 = vcmp.eq.f32.partialorder %v5551, 0.0
    %v5580 = vand.u32 %v5551, 2147483648
    %v5581 = vsel %vm5579, %v5580, %v5578
    %v5582 = vrsqrt.pop %v5552
    %v5583 = vmul.f32 %v5552, %v5582
    %vm5584 = vcmp.eq.f32.partialorder %v5552, inf
    %v5585 = vsel %vm5584, %v5552, %v5583
    %vm5586 = vcmp.eq.f32.partialorder %v5552, 0.0
    %v5587 = vand.u32 %v5552, 2147483648
    %v5588 = vsel %vm5586, %v5587, %v5585
    %v5589 = vrsqrt.pop %v5553
    %v5590 = vmul.f32 %v5553, %v5589
    %vm5591 = vcmp.eq.f32.partialorder %v5553, inf
    %v5592 = vsel %vm5591, %v5553, %v5590
    %vm5593 = vcmp.eq.f32.partialorder %v5553, 0.0
    %v5594 = vand.u32 %v5553, 2147483648
    %v5595 = vsel %vm5593, %v5594, %v5592
    %v5596 = vmul.f32 %v5560, 0.35355338
    %v5597 = vmul.f32 %v5567, 0.35355338
    %v5598 = vmul.f32 %v5574, 0.35355338
    %v5599 = vmul.f32 %v5581, 0.35355338
    %v5600 = vmul.f32 %v5588, 0.35355338
    %v5601 = vmul.f32 %v5595, 0.35355338
    %v5602 = vadd.f32 %v5596, %v260
    %v5603 = vadd.f32 %v5597, %v261
    %v5604 = vadd.f32 %v5598, %v262
    %v5605 = vadd.f32 %v5599, %v263
    %v5606 = vadd.f32 %v5600, %v264
    %v5607 = vadd.f32 %v5601, %v265
    %v5608 = vsel %vm1221, %v5602, -inf
    %5609 = vmax.xlane.f32.xlu0 %v5608
    %v5610 = vpop.xlane.xlu0 %5609
    %v5611 = vsel %vm1221, %v5603, -inf
    %5612 = vmax.xlane.f32.xlu0 %v5611
    %v5613 = vpop.xlane.xlu0 %5612
    %v5614 = vsel %vm1221, %v5604, -inf
    %5615 = vmax.xlane.f32.xlu0 %v5614
    %v5616 = vpop.xlane.xlu0 %5615
    %v5617 = vsel %vm1221, %v5605, -inf
    %5618 = vmax.xlane.f32.xlu0 %v5617
    %v5619 = vpop.xlane.xlu0 %5618
    %v5620 = vsel %vm1221, %v5606, -inf
    %5621 = vmax.xlane.f32.xlu0 %v5620
    %v5622 = vpop.xlane.xlu0 %5621
    %v5623 = vsel %vm1221, %v5607, -inf
    %5624 = vmax.xlane.f32.xlu0 %v5623
    %v5625 = vpop.xlane.xlu0 %5624
    %v5626 = vsub.f32 %v5602, %v5610
    %v5627 = vsub.f32 %v5603, %v5613
    %v5628 = vsub.f32 %v5604, %v5616
    %v5629 = vsub.f32 %v5605, %v5619
    %v5630 = vsub.f32 %v5606, %v5622
    %v5631 = vsub.f32 %v5607, %v5625
    %v5632 = vmul.f32 %v5626, 1.442695
    %v5633 = vpow.pop %v5632
    %v5634 = vmul.f32 %v5627, 1.442695
    %v5635 = vpow.pop %v5634
    %v5636 = vmul.f32 %v5628, 1.442695
    %v5637 = vpow.pop %v5636
    %v5638 = vmul.f32 %v5629, 1.442695
    %v5639 = vpow.pop %v5638
    %v5640 = vmul.f32 %v5630, 1.442695
    %v5641 = vpow.pop %v5640
    %v5642 = vmul.f32 %v5631, 1.442695
    %v5643 = vpow.pop %v5642
    %v5644 = vsel %vm1221, %v5633, 0.0
    %5645 = vadd.xlane.f32.xlu0 %v5644
    %v5646 = vpop.xlane.xlu0 %5645
    %v5647 = vsel %vm1221, %v5635, 0.0
    %5648 = vadd.xlane.f32.xlu0 %v5647
    %v5649 = vpop.xlane.xlu0 %5648
    %v5650 = vsel %vm1221, %v5637, 0.0
    %5651 = vadd.xlane.f32.xlu0 %v5650
    %v5652 = vpop.xlane.xlu0 %5651
    %v5653 = vsel %vm1221, %v5639, 0.0
    %5654 = vadd.xlane.f32.xlu0 %v5653
    %v5655 = vpop.xlane.xlu0 %5654
    %v5656 = vsel %vm1221, %v5641, 0.0
    %5657 = vadd.xlane.f32.xlu0 %v5656
    %v5658 = vpop.xlane.xlu0 %5657
    %v5659 = vsel %vm1221, %v5643, 0.0
    %5660 = vadd.xlane.f32.xlu0 %v5659
    %v5661 = vpop.xlane.xlu0 %5660
    %v5662 = vrcp.pop %v5646
    %v5663 = vrcp.pop %v5649
    %v5664 = vrcp.pop %v5652
    %v5665 = vrcp.pop %v5655
    %v5666 = vrcp.pop %v5658
    %v5667 = vrcp.pop %v5661
    %v5668 = vmul.f32 %v5633, %v5662
    %v5669 = vmul.f32 %v5635, %v5663
    %v5670 = vmul.f32 %v5637, %v5664
    %v5671 = vmul.f32 %v5639, %v5665
    %v5672 = vmul.f32 %v5641, %v5666
    %v5673 = vmul.f32 %v5643, %v5667
    %5680 = vrot.lane.b32.xlu0 %v4852, 64
    %v5681 = vpop.permute.xlu0 %5680
    %5682 = vrot.lane.b32.xlu0 %v4858, 64
    %v5683 = vpop.permute.xlu0 %5682
    %5684 = vrot.lane.b32.xlu0 %v4864, 64
    %v5685 = vpop.permute.xlu0 %5684
    %5686 = vrot.lane.b32.xlu0 %v4870, 64
    %v5687 = vpop.permute.xlu0 %5686
    %5688 = vrot.lane.b32.xlu0 %v4876, 64
    %v5689 = vpop.permute.xlu0 %5688
    %5690 = vrot.lane.b32.xlu0 %v4882, 64
    %v5691 = vpop.permute.xlu0 %5690
    %v5699 = vsel %vm1221, %v5668, 0
    %v5702 = vsel %vm1221, %v5669, 0
    %v5705 = vsel %vm1221, %v5670, 0
    %v5708 = vsel %vm1221, %v5671, 0
    %v5711 = vsel %vm1221, %v5672, 0
    %v5714 = vsel %vm1221, %v5673, 0
    %5716 = vmatprep.subr.mxu0 0.0
    %5717 = vmatpush1.msra.mxu0 0.0
    %5718 = vmatprep.subr.mxu0 0.0
    %5719 = vmatpush1.msra.mxu0 0.0
    %5720 = vmatprep.subr.mxu0 0.0
    %5721 = vmatpush1.msra.mxu0 0.0
    %5722 = vmatprep.subr.mxu0 0.0
    %5723 = vmatpush1.msra.mxu0 0.0
    %5724 = vmatprep.subr.mxu0 0.0
    %5725 = vmatpush1.msra.mxu0 0.0
    %5726 = vmatprep.subr.mxu0 0.0
    %5727 = vmatpush1.msra.mxu0 0.0
    %5728 = vmatprep.subr.mxu0 0.0
    %5729 = vmatpush1.msra.mxu0 0.0
    %5730 = vmatprep.subr.mxu0 0.0
    %5731 = vmatpush1.msra.mxu0 0.0
    %5732 = vmatprep.subr.mxu0 0.0
    %5733 = vmatpush1.msra.mxu0 0.0
    %5734 = vmatprep.subr.mxu0 0.0
    %5735 = vmatpush1.msra.mxu0 0.0
    %5736 = vmatprep.subr.mxu0 0.0
    %5737 = vmatpush1.msra.mxu0 %v5691
    %5738 = vmatprep.subr.mxu0 0.0
    %5739 = vmatpush1.msra.mxu0 %v5689
    %5740 = vmatprep.subr.mxu0 0.0
    %5741 = vmatpush1.msra.mxu0 %v5687
    %5742 = vmatprep.subr.mxu0 0.0
    %5743 = vmatpush1.msra.mxu0 %v5685
    %5744 = vmatprep.subr.mxu0 0.0
    %5745 = vmatpush1.msra.mxu0 %v5683
    %5746 = vmatprep.subr.mxu0 0.0
    %5747 = vmatpush1.msra.mxu0 %v5681
    %5748 = vmatprep.subr.mxu0 0.0
    %5749 = vmatpush2.msra.mxu0 0.0
    %5750 = vmatprep.subr.mxu0 0.0
    %5751 = vmatpush2.msra.mxu0 0.0
    %5752 = vmatprep.subr.mxu0 0.0
    %5753 = vmatpush2.msra.mxu0 0.0
    %5754 = vmatprep.subr.mxu0 0.0
    %5755 = vmatpush2.msra.mxu0 0.0
    %5756 = vmatprep.subr.mxu0 0.0
    %5757 = vmatpush2.msra.mxu0 0.0
    %5758 = vmatprep.subr.mxu0 0.0
    %5759 = vmatpush2.msra.mxu0 0.0
    %5760 = vmatprep.subr.mxu0 0.0
    %5761 = vmatpush2.msra.mxu0 0.0
    %5762 = vmatprep.subr.mxu0 0.0
    %5763 = vmatpush2.msra.mxu0 0.0
    %5764 = vmatprep.subr.mxu0 0.0
    %5765 = vmatpush2.msra.mxu0 0.0
    %5766 = vmatprep.subr.mxu0 0.0
    %5767 = vmatpush2.msra.mxu0 0.0
    %5768 = vmatprep.subr.mxu0 0.0
    %5769 = vmatpush2.msra.mxu0 0.0
    %5770 = vmatprep.subr.mxu0 0.0
    %5771 = vmatpush2.msra.mxu0 0.0
    %5772 = vmatprep.subr.mxu0 0.0
    %5773 = vmatpush2.msra.mxu0 0.0
    %5774 = vmatprep.subr.mxu0 0.0
    %5775 = vmatpush2.msra.mxu0 0.0
    %5776 = vmatprep.subr.mxu0 0.0
    %5777 = vmatpush2.msra.mxu0 0.0
    %5778 = vmatprep.subr.mxu0 0.0
    %5779 = vmatpush2.msra.mxu0 0.0
    %5780 = vmatprep.mubr.f32.mxu0 0.0
    %5781 = vmatmul.mubr.f32.gmra.mxu0 %v5699
    %v5782 = vpop.f32.mrf.mxu0
    %v5783 = vadd.f32 0.0, %v5782
    %v5784 = vpop.f32.mrf.mxu0
    %5785 = vmatprep.mubr.f32.mxu0 0.0
    %5786 = vmatmul.mubr.f32.gmra.mxu0 %v5702
    %v5787 = vpop.f32.mrf.mxu0
    %v5788 = vadd.f32 0.0, %v5787
    %v5789 = vpop.f32.mrf.mxu0
    %5790 = vmatprep.mubr.f32.mxu0 0.0
    %5791 = vmatmul.mubr.f32.gmra.mxu0 %v5705
    %v5792 = vpop.f32.mrf.mxu0
    %v5793 = vadd.f32 0.0, %v5792
    %v5794 = vpop.f32.mrf.mxu0
    %5795 = vmatprep.mubr.f32.mxu0 0.0
    %5796 = vmatmul.mubr.f32.gmra.mxu0 %v5708
    %v5797 = vpop.f32.mrf.mxu0
    %v5798 = vadd.f32 0.0, %v5797
    %v5799 = vpop.f32.mrf.mxu0
    %5800 = vmatprep.mubr.f32.mxu0 0.0
    %5801 = vmatmul.mubr.f32.gmra.mxu0 %v5711
    %v5802 = vpop.f32.mrf.mxu0
    %v5803 = vadd.f32 0.0, %v5802
    %v5804 = vpop.f32.mrf.mxu0
    %5805 = vmatprep.mubr.f32.mxu0 0.0
    %5806 = vmatmul.mubr.f32.gmra.mxu0 %v5714
    %v5807 = vpop.f32.mrf.mxu0
    %v5808 = vadd.f32 0.0, %v5807
    %v5809 = vpop.f32.mrf.mxu0
    %5810 = vdwg.mxu0
    %5811 = vst.msk [vmem:[#allocation2] sm:$0xff] %vm684, %v5783
    %5812 = vst.msk [vmem:[#allocation2 + $0x8] sm:$0xff] %vm684, %v5788
    %5813 = vst.msk [vmem:[#allocation2 + $0x10] sm:$0xff] %vm684, %v5793
    %5814 = vst.msk [vmem:[#allocation2 + $0x18] sm:$0xff] %vm684, %v5798
    %5815 = vst.msk [vmem:[#allocation2 + $0x20] sm:$0xff] %vm684, %v5803
    %5816 = vst.msk [vmem:[#allocation2 + $0x28] sm:$0xff] %vm684, %v5808
    %5823 = vrot.lane.b32.xlu0 %v4854, 96
    %v5824 = vpop.permute.xlu0 %5823
    %5825 = vrot.lane.b32.xlu0 %v4860, 96
    %v5826 = vpop.permute.xlu0 %5825
    %5827 = vrot.lane.b32.xlu0 %v4866, 96
    %v5828 = vpop.permute.xlu0 %5827
    %5829 = vrot.lane.b32.xlu0 %v4872, 96
    %v5830 = vpop.permute.xlu0 %5829
    %5831 = vrot.lane.b32.xlu0 %v4878, 96
    %v5832 = vpop.permute.xlu0 %5831
    %5833 = vrot.lane.b32.xlu0 %v4884, 96
    %v5834 = vpop.permute.xlu0 %5833
    %5841 = vmatprep.subr.mxu0 0.0
    %5842 = vmatpush1.msra.mxu0 0.0
    %5843 = vmatprep.subr.mxu0 0.0
    %5844 = vmatpush1.msra.mxu0 0.0
    %5845 = vmatprep.subr.mxu0 0.0
    %5846 = vmatpush1.msra.mxu0 0.0
    %5847 = vmatprep.subr.mxu0 0.0
    %5848 = vmatpush1.msra.mxu0 0.0
    %5849 = vmatprep.subr.mxu0 0.0
    %5850 = vmatpush1.msra.mxu0 0.0
    %5851 = vmatprep.subr.mxu0 0.0
    %5852 = vmatpush1.msra.mxu0 0.0
    %5853 = vmatprep.subr.mxu0 0.0
    %5854 = vmatpush1.msra.mxu0 0.0
    %5855 = vmatprep.subr.mxu0 0.0
    %5856 = vmatpush1.msra.mxu0 0.0
    %5857 = vmatprep.subr.mxu0 0.0
    %5858 = vmatpush1.msra.mxu0 0.0
    %5859 = vmatprep.subr.mxu0 0.0
    %5860 = vmatpush1.msra.mxu0 0.0
    %5861 = vmatprep.subr.mxu0 0.0
    %5862 = vmatpush1.msra.mxu0 %v5834
    %5863 = vmatprep.subr.mxu0 0.0
    %5864 = vmatpush1.msra.mxu0 %v5832
    %5865 = vmatprep.subr.mxu0 0.0
    %5866 = vmatpush1.msra.mxu0 %v5830
    %5867 = vmatprep.subr.mxu0 0.0
    %5868 = vmatpush1.msra.mxu0 %v5828
    %5869 = vmatprep.subr.mxu0 0.0
    %5870 = vmatpush1.msra.mxu0 %v5826
    %5871 = vmatprep.subr.mxu0 0.0
    %5872 = vmatpush1.msra.mxu0 %v5824
    %5873 = vmatprep.subr.mxu0 0.0
    %5874 = vmatpush2.msra.mxu0 0.0
    %5875 = vmatprep.subr.mxu0 0.0
    %5876 = vmatpush2.msra.mxu0 0.0
    %5877 = vmatprep.subr.mxu0 0.0
    %5878 = vmatpush2.msra.mxu0 0.0
    %5879 = vmatprep.subr.mxu0 0.0
    %5880 = vmatpush2.msra.mxu0 0.0
    %5881 = vmatprep.subr.mxu0 0.0
    %5882 = vmatpush2.msra.mxu0 0.0
    %5883 = vmatprep.subr.mxu0 0.0
    %5884 = vmatpush2.msra.mxu0 0.0
    %5885 = vmatprep.subr.mxu0 0.0
    %5886 = vmatpush2.msra.mxu0 0.0
    %5887 = vmatprep.subr.mxu0 0.0
    %5888 = vmatpush2.msra.mxu0 0.0
    %5889 = vmatprep.subr.mxu0 0.0
    %5890 = vmatpush2.msra.mxu0 0.0
    %5891 = vmatprep.subr.mxu0 0.0
    %5892 = vmatpush2.msra.mxu0 0.0
    %5893 = vmatprep.subr.mxu0 0.0
    %5894 = vmatpush2.msra.mxu0 0.0
    %5895 = vmatprep.subr.mxu0 0.0
    %5896 = vmatpush2.msra.mxu0 0.0
    %5897 = vmatprep.subr.mxu0 0.0
    %5898 = vmatpush2.msra.mxu0 0.0
    %5899 = vmatprep.subr.mxu0 0.0
    %5900 = vmatpush2.msra.mxu0 0.0
    %5901 = vmatprep.subr.mxu0 0.0
    %5902 = vmatpush2.msra.mxu0 0.0
    %5903 = vmatprep.subr.mxu0 0.0
    %5904 = vmatpush2.msra.mxu0 0.0
    %5905 = vmatprep.mubr.f32.mxu0 0.0
    %5906 = vmatmul.mubr.f32.gmra.mxu0 %v5699
    %v5907 = vpop.f32.mrf.mxu0
    %v5908 = vadd.f32 0.0, %v5907
    %v5909 = vpop.f32.mrf.mxu0
    %5910 = vmatprep.mubr.f32.mxu0 0.0
    %5911 = vmatmul.mubr.f32.gmra.mxu0 %v5702
    %v5912 = vpop.f32.mrf.mxu0
    %v5913 = vadd.f32 0.0, %v5912
    %v5914 = vpop.f32.mrf.mxu0
    %5915 = vmatprep.mubr.f32.mxu0 0.0
    %5916 = vmatmul.mubr.f32.gmra.mxu0 %v5705
    %v5917 = vpop.f32.mrf.mxu0
    %v5918 = vadd.f32 0.0, %v5917
    %v5919 = vpop.f32.mrf.mxu0
    %5920 = vmatprep.mubr.f32.mxu0 0.0
    %5921 = vmatmul.mubr.f32.gmra.mxu0 %v5708
    %v5922 = vpop.f32.mrf.mxu0
    %v5923 = vadd.f32 0.0, %v5922
    %v5924 = vpop.f32.mrf.mxu0
    %5925 = vmatprep.mubr.f32.mxu0 0.0
    %5926 = vmatmul.mubr.f32.gmra.mxu0 %v5711
    %v5927 = vpop.f32.mrf.mxu0
    %v5928 = vadd.f32 0.0, %v5927
    %v5929 = vpop.f32.mrf.mxu0
    %5930 = vmatprep.mubr.f32.mxu0 0.0
    %5931 = vmatmul.mubr.f32.gmra.mxu0 %v5714
    %v5932 = vpop.f32.mrf.mxu0
    %v5933 = vadd.f32 0.0, %v5932
    %v5934 = vpop.f32.mrf.mxu0
    %5935 = vdwg.mxu0
    %5942 = vrot.lane.b32.xlu0 %v5908, 32
    %v5943 = vpop.permute.xlu0 %5942
    %5944 = vrot.lane.b32.xlu0 %v5913, 32
    %v5945 = vpop.permute.xlu0 %5944
    %5946 = vrot.lane.b32.xlu0 %v5918, 32
    %v5947 = vpop.permute.xlu0 %5946
    %5948 = vrot.lane.b32.xlu0 %v5923, 32
    %v5949 = vpop.permute.xlu0 %5948
    %5950 = vrot.lane.b32.xlu0 %v5928, 32
    %v5951 = vpop.permute.xlu0 %5950
    %5952 = vrot.lane.b32.xlu0 %v5933, 32
    %v5953 = vpop.permute.xlu0 %5952
    %5960 = vst.msk [vmem:[#allocation2] sm:$0xff] %vm1574, %v5943
    %5961 = vst.msk [vmem:[#allocation2 + $0x8] sm:$0xff] %vm1574, %v5945
    %5962 = vst.msk [vmem:[#allocation2 + $0x10] sm:$0xff] %vm1574, %v5947
    %5963 = vst.msk [vmem:[#allocation2 + $0x18] sm:$0xff] %vm1574, %v5949
    %5964 = vst.msk [vmem:[#allocation2 + $0x20] sm:$0xff] %vm1574, %v5951
    %5965 = vst.msk [vmem:[#allocation2 + $0x28] sm:$0xff] %vm1574, %v5953
    %5966 = vrot.lane.b32.xlu0 %v4964, 120
    %v5967 = vpop.permute.xlu0 %5966
    %5968 = vrot.lane.b32.xlu0 %v4965, 120
    %v5969 = vpop.permute.xlu0 %5968
    %5970 = vrot.lane.b32.xlu0 %v4966, 120
    %v5971 = vpop.permute.xlu0 %5970
    %5972 = vrot.lane.b32.xlu0 %v4967, 120
    %v5973 = vpop.permute.xlu0 %5972
    %5974 = vrot.lane.b32.xlu0 %v4968, 120
    %v5975 = vpop.permute.xlu0 %5974
    %5976 = vrot.lane.b32.xlu0 %v4969, 120
    %v5977 = vpop.permute.xlu0 %5976
    %5978 = vrot.lane.b32.xlu0 %v5048, 88
    %v5979 = vpop.permute.xlu0 %5978
    %5980 = vrot.lane.b32.xlu0 %v5049, 88
    %v5981 = vpop.permute.xlu0 %5980
    %5982 = vrot.lane.b32.xlu0 %v5050, 88
    %v5983 = vpop.permute.xlu0 %5982
    %5984 = vrot.lane.b32.xlu0 %v5051, 88
    %v5985 = vpop.permute.xlu0 %5984
    %5986 = vrot.lane.b32.xlu0 %v5052, 88
    %v5987 = vpop.permute.xlu0 %5986
    %5988 = vrot.lane.b32.xlu0 %v5053, 88
    %v5989 = vpop.permute.xlu0 %5988
    %v5990 = vsel %vm684, %v5967, 0
    %v5992 = vsel %vm684, %v5969, 0
    %v5994 = vsel %vm684, %v5971, 0
    %v5996 = vsel %vm684, %v5973, 0
    %v5998 = vsel %vm684, %v5975, 0
    %v6000 = vsel %vm684, %v5977, 0
    %v6002 = vsel %vm684, %v5979, 0
    %v6004 = vsel %vm684, %v5981, 0
    %v6006 = vsel %vm684, %v5983, 0
    %v6008 = vsel %vm684, %v5985, 0
    %v6010 = vsel %vm684, %v5987, 0
    %v6012 = vsel %vm684, %v5989, 0
    %6014 = vmatprep.subr.mxu0 0.0
    %6015 = vmatpush1.xpose.msra.mxu0 0.0
    %6016 = vmatprep.subr.mxu0 0.0
    %6017 = vmatpush1.xpose.msra.mxu0 0.0
    %6018 = vmatprep.subr.mxu0 0.0
    %6019 = vmatpush1.xpose.msra.mxu0 0.0
    %6020 = vmatprep.subr.mxu0 0.0
    %6021 = vmatpush1.xpose.msra.mxu0 0.0
    %6022 = vmatprep.subr.mxu0 0.0
    %6023 = vmatpush1.xpose.msra.mxu0 0.0
    %6024 = vmatprep.subr.mxu0 0.0
    %6025 = vmatpush1.xpose.msra.mxu0 0.0
    %6026 = vmatprep.subr.mxu0 0.0
    %6027 = vmatpush1.xpose.msra.mxu0 0.0
    %6028 = vmatprep.subr.mxu0 0.0
    %6029 = vmatpush1.xpose.msra.mxu0 0.0
    %6030 = vmatprep.subr.mxu0 0.0
    %6031 = vmatpush1.xpose.msra.mxu0 0.0
    %6032 = vmatprep.subr.mxu0 0.0
    %6033 = vmatpush1.xpose.msra.mxu0 0.0
    %6034 = vmatprep.subr.mxu0 0.0
    %6035 = vmatpush1.xpose.msra.mxu0 %v6012
    %6036 = vmatprep.subr.mxu0 0.0
    %6037 = vmatpush1.xpose.msra.mxu0 %v6010
    %6038 = vmatprep.subr.mxu0 0.0
    %6039 = vmatpush1.xpose.msra.mxu0 %v6008
    %6040 = vmatprep.subr.mxu0 0.0
    %6041 = vmatpush1.xpose.msra.mxu0 %v6006
    %6042 = vmatprep.subr.mxu0 0.0
    %6043 = vmatpush1.xpose.msra.mxu0 %v6004
    %6044 = vmatprep.subr.mxu0 0.0
    %6045 = vmatpush1.xpose.msra.mxu0 %v6002
    %6046 = vmatprep.subr.mxu0 0.0
    %6047 = vmatpush2.xpose.msra.mxu0 0.0
    %6048 = vmatprep.subr.mxu0 0.0
    %6049 = vmatpush2.xpose.msra.mxu0 0.0
    %6050 = vmatprep.subr.mxu0 0.0
    %6051 = vmatpush2.xpose.msra.mxu0 0.0
    %6052 = vmatprep.subr.mxu0 0.0
    %6053 = vmatpush2.xpose.msra.mxu0 0.0
    %6054 = vmatprep.subr.mxu0 0.0
    %6055 = vmatpush2.xpose.msra.mxu0 0.0
    %6056 = vmatprep.subr.mxu0 0.0
    %6057 = vmatpush2.xpose.msra.mxu0 0.0
    %6058 = vmatprep.subr.mxu0 0.0
    %6059 = vmatpush2.xpose.msra.mxu0 0.0
    %6060 = vmatprep.subr.mxu0 0.0
    %6061 = vmatpush2.xpose.msra.mxu0 0.0
    %6062 = vmatprep.subr.mxu0 0.0
    %6063 = vmatpush2.xpose.msra.mxu0 0.0
    %6064 = vmatprep.subr.mxu0 0.0
    %6065 = vmatpush2.xpose.msra.mxu0 0.0
    %6066 = vmatprep.subr.mxu0 0.0
    %6067 = vmatpush2.xpose.msra.mxu0 0.0
    %6068 = vmatprep.subr.mxu0 0.0
    %6069 = vmatpush2.xpose.msra.mxu0 0.0
    %6070 = vmatprep.subr.mxu0 0.0
    %6071 = vmatpush2.xpose.msra.mxu0 0.0
    %6072 = vmatprep.subr.mxu0 0.0
    %6073 = vmatpush2.xpose.msra.mxu0 0.0
    %6074 = vmatprep.subr.mxu0 0.0
    %6075 = vmatpush2.xpose.msra.mxu0 0.0
    %6076 = vmatprep.subr.mxu0 0.0
    %6077 = vmatpush2.xpose.msra.mxu0 0.0
    %6078 = vmatprep.mubr.f32.mxu0 0.0
    %6079 = vmatmul.mubr.f32.gmra.mxu0 %v5990
    %v6080 = vpop.f32.mrf.mxu0
    %v6081 = vadd.f32 0.0, %v6080
    %v6082 = vpop.f32.mrf.mxu0
    %6083 = vmatprep.mubr.f32.mxu0 0.0
    %6084 = vmatmul.mubr.f32.gmra.mxu0 %v5992
    %v6085 = vpop.f32.mrf.mxu0
    %v6086 = vadd.f32 0.0, %v6085
    %v6087 = vpop.f32.mrf.mxu0
    %6088 = vmatprep.mubr.f32.mxu0 0.0
    %6089 = vmatmul.mubr.f32.gmra.mxu0 %v5994
    %v6090 = vpop.f32.mrf.mxu0
    %v6091 = vadd.f32 0.0, %v6090
    %v6092 = vpop.f32.mrf.mxu0
    %6093 = vmatprep.mubr.f32.mxu0 0.0
    %6094 = vmatmul.mubr.f32.gmra.mxu0 %v5996
    %v6095 = vpop.f32.mrf.mxu0
    %v6096 = vadd.f32 0.0, %v6095
    %v6097 = vpop.f32.mrf.mxu0
    %6098 = vmatprep.mubr.f32.mxu0 0.0
    %6099 = vmatmul.mubr.f32.gmra.mxu0 %v5998
    %v6100 = vpop.f32.mrf.mxu0
    %v6101 = vadd.f32 0.0, %v6100
    %v6102 = vpop.f32.mrf.mxu0
    %6103 = vmatprep.mubr.f32.mxu0 0.0
    %6104 = vmatmul.mubr.f32.gmra.mxu0 %v6000
    %v6105 = vpop.f32.mrf.mxu0
    %v6106 = vadd.f32 0.0, %v6105
    %v6107 = vpop.f32.mrf.mxu0
    %6108 = vdwg.mxu0
    %6109 = vrot.lane.b32.xlu0 %v4922, 120
    %v6110 = vpop.permute.xlu0 %6109
    %6111 = vrot.lane.b32.xlu0 %v4923, 120
    %v6112 = vpop.permute.xlu0 %6111
    %6113 = vrot.lane.b32.xlu0 %v4924, 120
    %v6114 = vpop.permute.xlu0 %6113
    %6115 = vrot.lane.b32.xlu0 %v4925, 120
    %v6116 = vpop.permute.xlu0 %6115
    %6117 = vrot.lane.b32.xlu0 %v4926, 120
    %v6118 = vpop.permute.xlu0 %6117
    %6119 = vrot.lane.b32.xlu0 %v4927, 120
    %v6120 = vpop.permute.xlu0 %6119
    %6121 = vrot.lane.b32.xlu0 %v5006, 88
    %v6122 = vpop.permute.xlu0 %6121
    %6123 = vrot.lane.b32.xlu0 %v5007, 88
    %v6124 = vpop.permute.xlu0 %6123
    %6125 = vrot.lane.b32.xlu0 %v5008, 88
    %v6126 = vpop.permute.xlu0 %6125
    %6127 = vrot.lane.b32.xlu0 %v5009, 88
    %v6128 = vpop.permute.xlu0 %6127
    %6129 = vrot.lane.b32.xlu0 %v5010, 88
    %v6130 = vpop.permute.xlu0 %6129
    %6131 = vrot.lane.b32.xlu0 %v5011, 88
    %v6132 = vpop.permute.xlu0 %6131
    %v6133 = vsel %vm684, %v6110, 0
    %v6135 = vsel %vm684, %v6112, 0
    %v6137 = vsel %vm684, %v6114, 0
    %v6139 = vsel %vm684, %v6116, 0
    %v6141 = vsel %vm684, %v6118, 0
    %v6143 = vsel %vm684, %v6120, 0
    %v6145 = vsel %vm684, %v6122, 0
    %v6147 = vsel %vm684, %v6124, 0
    %v6149 = vsel %vm684, %v6126, 0
    %v6151 = vsel %vm684, %v6128, 0
    %v6153 = vsel %vm684, %v6130, 0
    %v6155 = vsel %vm684, %v6132, 0
    %6157 = vmatprep.subr.mxu0 0.0
    %6158 = vmatpush1.xpose.msra.mxu0 0.0
    %6159 = vmatprep.subr.mxu0 0.0
    %6160 = vmatpush1.xpose.msra.mxu0 0.0
    %6161 = vmatprep.subr.mxu0 0.0
    %6162 = vmatpush1.xpose.msra.mxu0 0.0
    %6163 = vmatprep.subr.mxu0 0.0
    %6164 = vmatpush1.xpose.msra.mxu0 0.0
    %6165 = vmatprep.subr.mxu0 0.0
    %6166 = vmatpush1.xpose.msra.mxu0 0.0
    %6167 = vmatprep.subr.mxu0 0.0
    %6168 = vmatpush1.xpose.msra.mxu0 0.0
    %6169 = vmatprep.subr.mxu0 0.0
    %6170 = vmatpush1.xpose.msra.mxu0 0.0
    %6171 = vmatprep.subr.mxu0 0.0
    %6172 = vmatpush1.xpose.msra.mxu0 0.0
    %6173 = vmatprep.subr.mxu0 0.0
    %6174 = vmatpush1.xpose.msra.mxu0 0.0
    %6175 = vmatprep.subr.mxu0 0.0
    %6176 = vmatpush1.xpose.msra.mxu0 0.0
    %6177 = vmatprep.subr.mxu0 0.0
    %6178 = vmatpush1.xpose.msra.mxu0 %v6155
    %6179 = vmatprep.subr.mxu0 0.0
    %6180 = vmatpush1.xpose.msra.mxu0 %v6153
    %6181 = vmatprep.subr.mxu0 0.0
    %6182 = vmatpush1.xpose.msra.mxu0 %v6151
    %6183 = vmatprep.subr.mxu0 0.0
    %6184 = vmatpush1.xpose.msra.mxu0 %v6149
    %6185 = vmatprep.subr.mxu0 0.0
    %6186 = vmatpush1.xpose.msra.mxu0 %v6147
    %6187 = vmatprep.subr.mxu0 0.0
    %6188 = vmatpush1.xpose.msra.mxu0 %v6145
    %6189 = vmatprep.subr.mxu0 0.0
    %6190 = vmatpush2.xpose.msra.mxu0 0.0
    %6191 = vmatprep.subr.mxu0 0.0
    %6192 = vmatpush2.xpose.msra.mxu0 0.0
    %6193 = vmatprep.subr.mxu0 0.0
    %6194 = vmatpush2.xpose.msra.mxu0 0.0
    %6195 = vmatprep.subr.mxu0 0.0
    %6196 = vmatpush2.xpose.msra.mxu0 0.0
    %6197 = vmatprep.subr.mxu0 0.0
    %6198 = vmatpush2.xpose.msra.mxu0 0.0
    %6199 = vmatprep.subr.mxu0 0.0
    %6200 = vmatpush2.xpose.msra.mxu0 0.0
    %6201 = vmatprep.subr.mxu0 0.0
    %6202 = vmatpush2.xpose.msra.mxu0 0.0
    %6203 = vmatprep.subr.mxu0 0.0
    %6204 = vmatpush2.xpose.msra.mxu0 0.0
    %6205 = vmatprep.subr.mxu0 0.0
    %6206 = vmatpush2.xpose.msra.mxu0 0.0
    %6207 = vmatprep.subr.mxu0 0.0
    %6208 = vmatpush2.xpose.msra.mxu0 0.0
    %6209 = vmatprep.subr.mxu0 0.0
    %6210 = vmatpush2.xpose.msra.mxu0 0.0
    %6211 = vmatprep.subr.mxu0 0.0
    %6212 = vmatpush2.xpose.msra.mxu0 0.0
    %6213 = vmatprep.subr.mxu0 0.0
    %6214 = vmatpush2.xpose.msra.mxu0 0.0
    %6215 = vmatprep.subr.mxu0 0.0
    %6216 = vmatpush2.xpose.msra.mxu0 0.0
    %6217 = vmatprep.subr.mxu0 0.0
    %6218 = vmatpush2.xpose.msra.mxu0 0.0
    %6219 = vmatprep.subr.mxu0 0.0
    %6220 = vmatpush2.xpose.msra.mxu0 0.0
    %6221 = vmatprep.mubr.f32.mxu0 0.0
    %6222 = vmatmul.mubr.f32.gmra.mxu0 %v6133
    %v6223 = vpop.f32.mrf.mxu0
    %v6224 = vadd.f32 %v6081, %v6223
    %v6225 = vpop.f32.mrf.mxu0
    %6226 = vmatprep.mubr.f32.mxu0 0.0
    %6227 = vmatmul.mubr.f32.gmra.mxu0 %v6135
    %v6228 = vpop.f32.mrf.mxu0
    %v6229 = vadd.f32 %v6086, %v6228
    %v6230 = vpop.f32.mrf.mxu0
    %6231 = vmatprep.mubr.f32.mxu0 0.0
    %6232 = vmatmul.mubr.f32.gmra.mxu0 %v6137
    %v6233 = vpop.f32.mrf.mxu0
    %v6234 = vadd.f32 %v6091, %v6233
    %v6235 = vpop.f32.mrf.mxu0
    %6236 = vmatprep.mubr.f32.mxu0 0.0
    %6237 = vmatmul.mubr.f32.gmra.mxu0 %v6139
    %v6238 = vpop.f32.mrf.mxu0
    %v6239 = vadd.f32 %v6096, %v6238
    %v6240 = vpop.f32.mrf.mxu0
    %6241 = vmatprep.mubr.f32.mxu0 0.0
    %6242 = vmatmul.mubr.f32.gmra.mxu0 %v6141
    %v6243 = vpop.f32.mrf.mxu0
    %v6244 = vadd.f32 %v6101, %v6243
    %v6245 = vpop.f32.mrf.mxu0
    %6246 = vmatprep.mubr.f32.mxu0 0.0
    %6247 = vmatmul.mubr.f32.gmra.mxu0 %v6143
    %v6248 = vpop.f32.mrf.mxu0
    %v6249 = vadd.f32 %v6106, %v6248
    %v6250 = vpop.f32.mrf.mxu0
    %6251 = vdwg.mxu0
    %6252 = vmatprep.subr.mxu0 0.0
    %6253 = vmatpush1.xpose.msra.mxu0 0.0
    %6254 = vmatprep.subr.mxu0 0.0
    %6255 = vmatpush1.xpose.msra.mxu0 0.0
    %6256 = vmatprep.subr.mxu0 0.0
    %6257 = vmatpush1.xpose.msra.mxu0 0.0
    %6258 = vmatprep.subr.mxu0 0.0
    %6259 = vmatpush1.xpose.msra.mxu0 0.0
    %6260 = vmatprep.subr.mxu0 0.0
    %6261 = vmatpush1.xpose.msra.mxu0 0.0
    %6262 = vmatprep.subr.mxu0 0.0
    %6263 = vmatpush1.xpose.msra.mxu0 0.0
    %6264 = vmatprep.subr.mxu0 0.0
    %6265 = vmatpush1.xpose.msra.mxu0 0.0
    %6266 = vmatprep.subr.mxu0 0.0
    %6267 = vmatpush1.xpose.msra.mxu0 0.0
    %6268 = vmatprep.subr.mxu0 0.0
    %6269 = vmatpush1.xpose.msra.mxu0 0.0
    %6270 = vmatprep.subr.mxu0 0.0
    %6271 = vmatpush1.xpose.msra.mxu0 0.0
    %6272 = vmatprep.subr.mxu0 0.0
    %6273 = vmatpush1.xpose.msra.mxu0 %v6155
    %6274 = vmatprep.subr.mxu0 0.0
    %6275 = vmatpush1.xpose.msra.mxu0 %v6153
    %6276 = vmatprep.subr.mxu0 0.0
    %6277 = vmatpush1.xpose.msra.mxu0 %v6151
    %6278 = vmatprep.subr.mxu0 0.0
    %6279 = vmatpush1.xpose.msra.mxu0 %v6149
    %6280 = vmatprep.subr.mxu0 0.0
    %6281 = vmatpush1.xpose.msra.mxu0 %v6147
    %6282 = vmatprep.subr.mxu0 0.0
    %6283 = vmatpush1.xpose.msra.mxu0 %v6145
    %6284 = vmatprep.subr.mxu0 0.0
    %6285 = vmatpush2.xpose.msra.mxu0 0.0
    %6286 = vmatprep.subr.mxu0 0.0
    %6287 = vmatpush2.xpose.msra.mxu0 0.0
    %6288 = vmatprep.subr.mxu0 0.0
    %6289 = vmatpush2.xpose.msra.mxu0 0.0
    %6290 = vmatprep.subr.mxu0 0.0
    %6291 = vmatpush2.xpose.msra.mxu0 0.0
    %6292 = vmatprep.subr.mxu0 0.0
    %6293 = vmatpush2.xpose.msra.mxu0 0.0
    %6294 = vmatprep.subr.mxu0 0.0
    %6295 = vmatpush2.xpose.msra.mxu0 0.0
    %6296 = vmatprep.subr.mxu0 0.0
    %6297 = vmatpush2.xpose.msra.mxu0 0.0
    %6298 = vmatprep.subr.mxu0 0.0
    %6299 = vmatpush2.xpose.msra.mxu0 0.0
    %6300 = vmatprep.subr.mxu0 0.0
    %6301 = vmatpush2.xpose.msra.mxu0 0.0
    %6302 = vmatprep.subr.mxu0 0.0
    %6303 = vmatpush2.xpose.msra.mxu0 0.0
    %6304 = vmatprep.subr.mxu0 0.0
    %6305 = vmatpush2.xpose.msra.mxu0 0.0
    %6306 = vmatprep.subr.mxu0 0.0
    %6307 = vmatpush2.xpose.msra.mxu0 0.0
    %6308 = vmatprep.subr.mxu0 0.0
    %6309 = vmatpush2.xpose.msra.mxu0 0.0
    %6310 = vmatprep.subr.mxu0 0.0
    %6311 = vmatpush2.xpose.msra.mxu0 0.0
    %6312 = vmatprep.subr.mxu0 0.0
    %6313 = vmatpush2.xpose.msra.mxu0 0.0
    %6314 = vmatprep.subr.mxu0 0.0
    %6315 = vmatpush2.xpose.msra.mxu0 0.0
    %6316 = vmatprep.mubr.f32.mxu0 0.0
    %6317 = vmatmul.mubr.f32.gmra.mxu0 %v5990
    %v6318 = vpop.f32.mrf.mxu0
    %v6319 = vadd.f32 0.0, %v6318
    %v6320 = vpop.f32.mrf.mxu0
    %6321 = vmatprep.mubr.f32.mxu0 0.0
    %6322 = vmatmul.mubr.f32.gmra.mxu0 %v5992
    %v6323 = vpop.f32.mrf.mxu0
    %v6324 = vadd.f32 0.0, %v6323
    %v6325 = vpop.f32.mrf.mxu0
    %6326 = vmatprep.mubr.f32.mxu0 0.0
    %6327 = vmatmul.mubr.f32.gmra.mxu0 %v5994
    %v6328 = vpop.f32.mrf.mxu0
    %v6329 = vadd.f32 0.0, %v6328
    %v6330 = vpop.f32.mrf.mxu0
    %6331 = vmatprep.mubr.f32.mxu0 0.0
    %6332 = vmatmul.mubr.f32.gmra.mxu0 %v5996
    %v6333 = vpop.f32.mrf.mxu0
    %v6334 = vadd.f32 0.0, %v6333
    %v6335 = vpop.f32.mrf.mxu0
    %6336 = vmatprep.mubr.f32.mxu0 0.0
    %6337 = vmatmul.mubr.f32.gmra.mxu0 %v5998
    %v6338 = vpop.f32.mrf.mxu0
    %v6339 = vadd.f32 0.0, %v6338
    %v6340 = vpop.f32.mrf.mxu0
    %6341 = vmatprep.mubr.f32.mxu0 0.0
    %6342 = vmatmul.mubr.f32.gmra.mxu0 %v6000
    %v6343 = vpop.f32.mrf.mxu0
    %v6344 = vadd.f32 0.0, %v6343
    %v6345 = vpop.f32.mrf.mxu0
    %6346 = vdwg.mxu0
    %6347 = vmatprep.subr.mxu0 0.0
    %6348 = vmatpush1.xpose.msra.mxu0 0.0
    %6349 = vmatprep.subr.mxu0 0.0
    %6350 = vmatpush1.xpose.msra.mxu0 0.0
    %6351 = vmatprep.subr.mxu0 0.0
    %6352 = vmatpush1.xpose.msra.mxu0 0.0
    %6353 = vmatprep.subr.mxu0 0.0
    %6354 = vmatpush1.xpose.msra.mxu0 0.0
    %6355 = vmatprep.subr.mxu0 0.0
    %6356 = vmatpush1.xpose.msra.mxu0 0.0
    %6357 = vmatprep.subr.mxu0 0.0
    %6358 = vmatpush1.xpose.msra.mxu0 0.0
    %6359 = vmatprep.subr.mxu0 0.0
    %6360 = vmatpush1.xpose.msra.mxu0 0.0
    %6361 = vmatprep.subr.mxu0 0.0
    %6362 = vmatpush1.xpose.msra.mxu0 0.0
    %6363 = vmatprep.subr.mxu0 0.0
    %6364 = vmatpush1.xpose.msra.mxu0 0.0
    %6365 = vmatprep.subr.mxu0 0.0
    %6366 = vmatpush1.xpose.msra.mxu0 0.0
    %6367 = vmatprep.subr.mxu0 0.0
    %6368 = vmatpush1.xpose.msra.mxu0 %v6012
    %6369 = vmatprep.subr.mxu0 0.0
    %6370 = vmatpush1.xpose.msra.mxu0 %v6010
    %6371 = vmatprep.subr.mxu0 0.0
    %6372 = vmatpush1.xpose.msra.mxu0 %v6008
    %6373 = vmatprep.subr.mxu0 0.0
    %6374 = vmatpush1.xpose.msra.mxu0 %v6006
    %6375 = vmatprep.subr.mxu0 0.0
    %6376 = vmatpush1.xpose.msra.mxu0 %v6004
    %6377 = vmatprep.subr.mxu0 0.0
    %6378 = vmatpush1.xpose.msra.mxu0 %v6002
    %6379 = vmatprep.subr.mxu0 0.0
    %6380 = vmatpush2.xpose.msra.mxu0 0.0
    %6381 = vmatprep.subr.mxu0 0.0
    %6382 = vmatpush2.xpose.msra.mxu0 0.0
    %6383 = vmatprep.subr.mxu0 0.0
    %6384 = vmatpush2.xpose.msra.mxu0 0.0
    %6385 = vmatprep.subr.mxu0 0.0
    %6386 = vmatpush2.xpose.msra.mxu0 0.0
    %6387 = vmatprep.subr.mxu0 0.0
    %6388 = vmatpush2.xpose.msra.mxu0 0.0
    %6389 = vmatprep.subr.mxu0 0.0
    %6390 = vmatpush2.xpose.msra.mxu0 0.0
    %6391 = vmatprep.subr.mxu0 0.0
    %6392 = vmatpush2.xpose.msra.mxu0 0.0
    %6393 = vmatprep.subr.mxu0 0.0
    %6394 = vmatpush2.xpose.msra.mxu0 0.0
    %6395 = vmatprep.subr.mxu0 0.0
    %6396 = vmatpush2.xpose.msra.mxu0 0.0
    %6397 = vmatprep.subr.mxu0 0.0
    %6398 = vmatpush2.xpose.msra.mxu0 0.0
    %6399 = vmatprep.subr.mxu0 0.0
    %6400 = vmatpush2.xpose.msra.mxu0 0.0
    %6401 = vmatprep.subr.mxu0 0.0
    %6402 = vmatpush2.xpose.msra.mxu0 0.0
    %6403 = vmatprep.subr.mxu0 0.0
    %6404 = vmatpush2.xpose.msra.mxu0 0.0
    %6405 = vmatprep.subr.mxu0 0.0
    %6406 = vmatpush2.xpose.msra.mxu0 0.0
    %6407 = vmatprep.subr.mxu0 0.0
    %6408 = vmatpush2.xpose.msra.mxu0 0.0
    %6409 = vmatprep.subr.mxu0 0.0
    %6410 = vmatpush2.xpose.msra.mxu0 0.0
    %6411 = vmatprep.mubr.f32.mxu0 0.0
    %6412 = vmatmul.mubr.f32.gmra.mxu0 %v6133
    %v6413 = vpop.f32.mrf.mxu0
    %v6414 = vadd.f32 0.0, %v6413
    %v6415 = vpop.f32.mrf.mxu0
    %6416 = vmatprep.mubr.f32.mxu0 0.0
    %6417 = vmatmul.mubr.f32.gmra.mxu0 %v6135
    %v6418 = vpop.f32.mrf.mxu0
    %v6419 = vadd.f32 0.0, %v6418
    %v6420 = vpop.f32.mrf.mxu0
    %6421 = vmatprep.mubr.f32.mxu0 0.0
    %6422 = vmatmul.mubr.f32.gmra.mxu0 %v6137
    %v6423 = vpop.f32.mrf.mxu0
    %v6424 = vadd.f32 0.0, %v6423
    %v6425 = vpop.f32.mrf.mxu0
    %6426 = vmatprep.mubr.f32.mxu0 0.0
    %6427 = vmatmul.mubr.f32.gmra.mxu0 %v6139
    %v6428 = vpop.f32.mrf.mxu0
    %v6429 = vadd.f32 0.0, %v6428
    %v6430 = vpop.f32.mrf.mxu0
    %6431 = vmatprep.mubr.f32.mxu0 0.0
    %6432 = vmatmul.mubr.f32.gmra.mxu0 %v6141
    %v6433 = vpop.f32.mrf.mxu0
    %v6434 = vadd.f32 0.0, %v6433
    %v6435 = vpop.f32.mrf.mxu0
    %6436 = vmatprep.mubr.f32.mxu0 0.0
    %6437 = vmatmul.mubr.f32.gmra.mxu0 %v6143
    %v6438 = vpop.f32.mrf.mxu0
    %v6439 = vadd.f32 0.0, %v6438
    %v6440 = vpop.f32.mrf.mxu0
    %6441 = vdwg.mxu0
    %v6442 = vsub.f32 %v6319, %v6414
    %v6443 = vsub.f32 %v6324, %v6419
    %v6444 = vsub.f32 %v6329, %v6424
    %v6445 = vsub.f32 %v6334, %v6429
    %v6446 = vsub.f32 %v6339, %v6434
    %v6447 = vsub.f32 %v6344, %v6439
    %v6448 = vmul.f32 %v6224, %v6224
    %v6449 = vmul.f32 %v6229, %v6229
    %v6450 = vmul.f32 %v6234, %v6234
    %v6451 = vmul.f32 %v6239, %v6239
    %v6452 = vmul.f32 %v6244, %v6244
    %v6453 = vmul.f32 %v6249, %v6249
    %v6454 = vmul.f32 %v6442, %v6442
    %v6455 = vmul.f32 %v6443, %v6443
    %v6456 = vmul.f32 %v6444, %v6444
    %v6457 = vmul.f32 %v6445, %v6445
    %v6458 = vmul.f32 %v6446, %v6446
    %v6459 = vmul.f32 %v6447, %v6447
    %v6460 = vadd.f32 %v6448, %v6454
    %v6461 = vadd.f32 %v6449, %v6455
    %v6462 = vadd.f32 %v6450, %v6456
    %v6463 = vadd.f32 %v6451, %v6457
    %v6464 = vadd.f32 %v6452, %v6458
    %v6465 = vadd.f32 %v6453, %v6459
    %v6466 = vrsqrt.pop %v6460
    %v6467 = vmul.f32 %v6460, %v6466
    %vm6468 = vcmp.eq.f32.partialorder %v6460, inf
    %v6469 = vsel %vm6468, %v6460, %v6467
    %vm6470 = vcmp.eq.f32.partialorder %v6460, 0.0
    %v6471 = vand.u32 %v6460, 2147483648
    %v6472 = vsel %vm6470, %v6471, %v6469
    %v6473 = vrsqrt.pop %v6461
    %v6474 = vmul.f32 %v6461, %v6473
    %vm6475 = vcmp.eq.f32.partialorder %v6461, inf
    %v6476 = vsel %vm6475, %v6461, %v6474
    %vm6477 = vcmp.eq.f32.partialorder %v6461, 0.0
    %v6478 = vand.u32 %v6461, 2147483648
    %v6479 = vsel %vm6477, %v6478, %v6476
    %v6480 = vrsqrt.pop %v6462
    %v6481 = vmul.f32 %v6462, %v6480
    %vm6482 = vcmp.eq.f32.partialorder %v6462, inf
    %v6483 = vsel %vm6482, %v6462, %v6481
    %vm6484 = vcmp.eq.f32.partialorder %v6462, 0.0
    %v6485 = vand.u32 %v6462, 2147483648
    %v6486 = vsel %vm6484, %v6485, %v6483
    %v6487 = vrsqrt.pop %v6463
    %v6488 = vmul.f32 %v6463, %v6487
    %vm6489 = vcmp.eq.f32.partialorder %v6463, inf
    %v6490 = vsel %vm6489, %v6463, %v6488
    %vm6491 = vcmp.eq.f32.partialorder %v6463, 0.0
    %v6492 = vand.u32 %v6463, 2147483648
    %v6493 = vsel %vm6491, %v6492, %v6490
    %v6494 = vrsqrt.pop %v6464
    %v6495 = vmul.f32 %v6464, %v6494
    %vm6496 = vcmp.eq.f32.partialorder %v6464, inf
    %v6497 = vsel %vm6496, %v6464, %v6495
    %vm6498 = vcmp.eq.f32.partialorder %v6464, 0.0
    %v6499 = vand.u32 %v6464, 2147483648
    %v6500 = vsel %vm6498, %v6499, %v6497
    %v6501 = vrsqrt.pop %v6465
    %v6502 = vmul.f32 %v6465, %v6501
    %vm6503 = vcmp.eq.f32.partialorder %v6465, inf
    %v6504 = vsel %vm6503, %v6465, %v6502
    %vm6505 = vcmp.eq.f32.partialorder %v6465, 0.0
    %v6506 = vand.u32 %v6465, 2147483648
    %v6507 = vsel %vm6505, %v6506, %v6504
    %v6508 = vmul.f32 %v6472, 0.35355338
    %v6509 = vmul.f32 %v6479, 0.35355338
    %v6510 = vmul.f32 %v6486, 0.35355338
    %v6511 = vmul.f32 %v6493, 0.35355338
    %v6512 = vmul.f32 %v6500, 0.35355338
    %v6513 = vmul.f32 %v6507, 0.35355338
    %v6514 = vadd.f32 %v6508, %v260
    %v6515 = vadd.f32 %v6509, %v261
    %v6516 = vadd.f32 %v6510, %v262
    %v6517 = vadd.f32 %v6511, %v263
    %v6518 = vadd.f32 %v6512, %v264
    %v6519 = vadd.f32 %v6513, %v265
    %v6520 = vsel %vm1221, %v6514, -inf
    %6521 = vmax.xlane.f32.xlu0 %v6520
    %v6522 = vpop.xlane.xlu0 %6521
    %v6523 = vsel %vm1221, %v6515, -inf
    %6524 = vmax.xlane.f32.xlu0 %v6523
    %v6525 = vpop.xlane.xlu0 %6524
    %v6526 = vsel %vm1221, %v6516, -inf
    %6527 = vmax.xlane.f32.xlu0 %v6526
    %v6528 = vpop.xlane.xlu0 %6527
    %v6529 = vsel %vm1221, %v6517, -inf
    %6530 = vmax.xlane.f32.xlu0 %v6529
    %v6531 = vpop.xlane.xlu0 %6530
    %v6532 = vsel %vm1221, %v6518, -inf
    %6533 = vmax.xlane.f32.xlu0 %v6532
    %v6534 = vpop.xlane.xlu0 %6533
    %v6535 = vsel %vm1221, %v6519, -inf
    %6536 = vmax.xlane.f32.xlu0 %v6535
    %v6537 = vpop.xlane.xlu0 %6536
    %v6538 = vsub.f32 %v6514, %v6522
    %v6539 = vsub.f32 %v6515, %v6525
    %v6540 = vsub.f32 %v6516, %v6528
    %v6541 = vsub.f32 %v6517, %v6531
    %v6542 = vsub.f32 %v6518, %v6534
    %v6543 = vsub.f32 %v6519, %v6537
    %v6544 = vmul.f32 %v6538, 1.442695
    %v6545 = vpow.pop %v6544
    %v6546 = vmul.f32 %v6539, 1.442695
    %v6547 = vpow.pop %v6546
    %v6548 = vmul.f32 %v6540, 1.442695
    %v6549 = vpow.pop %v6548
    %v6550 = vmul.f32 %v6541, 1.442695
    %v6551 = vpow.pop %v6550
    %v6552 = vmul.f32 %v6542, 1.442695
    %v6553 = vpow.pop %v6552
    %v6554 = vmul.f32 %v6543, 1.442695
    %v6555 = vpow.pop %v6554
    %v6556 = vsel %vm1221, %v6545, 0.0
    %6557 = vadd.xlane.f32.xlu0 %v6556
    %v6558 = vpop.xlane.xlu0 %6557
    %v6559 = vsel %vm1221, %v6547, 0.0
    %6560 = vadd.xlane.f32.xlu0 %v6559
    %v6561 = vpop.xlane.xlu0 %6560
    %v6562 = vsel %vm1221, %v6549, 0.0
    %6563 = vadd.xlane.f32.xlu0 %v6562
    %v6564 = vpop.xlane.xlu0 %6563
    %v6565 = vsel %vm1221, %v6551, 0.0
    %6566 = vadd.xlane.f32.xlu0 %v6565
    %v6567 = vpop.xlane.xlu0 %6566
    %v6568 = vsel %vm1221, %v6553, 0.0
    %6569 = vadd.xlane.f32.xlu0 %v6568
    %v6570 = vpop.xlane.xlu0 %6569
    %v6571 = vsel %vm1221, %v6555, 0.0
    %6572 = vadd.xlane.f32.xlu0 %v6571
    %v6573 = vpop.xlane.xlu0 %6572
    %v6574 = vrcp.pop %v6558
    %v6575 = vrcp.pop %v6561
    %v6576 = vrcp.pop %v6564
    %v6577 = vrcp.pop %v6567
    %v6578 = vrcp.pop %v6570
    %v6579 = vrcp.pop %v6573
    %v6580 = vmul.f32 %v6545, %v6574
    %v6581 = vmul.f32 %v6547, %v6575
    %v6582 = vmul.f32 %v6549, %v6576
    %v6583 = vmul.f32 %v6551, %v6577
    %v6584 = vmul.f32 %v6553, %v6578
    %v6585 = vmul.f32 %v6555, %v6579
    %6586 = vrot.lane.b32.xlu0 %v4852, 56
    %v6587 = vpop.permute.xlu0 %6586
    %6588 = vrot.lane.b32.xlu0 %v4858, 56
    %v6589 = vpop.permute.xlu0 %6588
    %6590 = vrot.lane.b32.xlu0 %v4864, 56
    %v6591 = vpop.permute.xlu0 %6590
    %6592 = vrot.lane.b32.xlu0 %v4870, 56
    %v6593 = vpop.permute.xlu0 %6592
    %6594 = vrot.lane.b32.xlu0 %v4876, 56
    %v6595 = vpop.permute.xlu0 %6594
    %6596 = vrot.lane.b32.xlu0 %v4882, 56
    %v6597 = vpop.permute.xlu0 %6596
    %v6605 = vsel %vm1221, %v6580, 0
    %v6608 = vsel %vm1221, %v6581, 0
    %v6611 = vsel %vm1221, %v6582, 0
    %v6614 = vsel %vm1221, %v6583, 0
    %v6617 = vsel %vm1221, %v6584, 0
    %v6620 = vsel %vm1221, %v6585, 0
    %6622 = vmatprep.subr.mxu0 0.0
    %6623 = vmatpush1.msra.mxu0 0.0
    %6624 = vmatprep.subr.mxu0 0.0
    %6625 = vmatpush1.msra.mxu0 0.0
    %6626 = vmatprep.subr.mxu0 0.0
    %6627 = vmatpush1.msra.mxu0 0.0
    %6628 = vmatprep.subr.mxu0 0.0
    %6629 = vmatpush1.msra.mxu0 0.0
    %6630 = vmatprep.subr.mxu0 0.0
    %6631 = vmatpush1.msra.mxu0 0.0
    %6632 = vmatprep.subr.mxu0 0.0
    %6633 = vmatpush1.msra.mxu0 0.0
    %6634 = vmatprep.subr.mxu0 0.0
    %6635 = vmatpush1.msra.mxu0 0.0
    %6636 = vmatprep.subr.mxu0 0.0
    %6637 = vmatpush1.msra.mxu0 0.0
    %6638 = vmatprep.subr.mxu0 0.0
    %6639 = vmatpush1.msra.mxu0 0.0
    %6640 = vmatprep.subr.mxu0 0.0
    %6641 = vmatpush1.msra.mxu0 0.0
    %6642 = vmatprep.subr.mxu0 0.0
    %6643 = vmatpush1.msra.mxu0 %v6597
    %6644 = vmatprep.subr.mxu0 0.0
    %6645 = vmatpush1.msra.mxu0 %v6595
    %6646 = vmatprep.subr.mxu0 0.0
    %6647 = vmatpush1.msra.mxu0 %v6593
    %6648 = vmatprep.subr.mxu0 0.0
    %6649 = vmatpush1.msra.mxu0 %v6591
    %6650 = vmatprep.subr.mxu0 0.0
    %6651 = vmatpush1.msra.mxu0 %v6589
    %6652 = vmatprep.subr.mxu0 0.0
    %6653 = vmatpush1.msra.mxu0 %v6587
    %6654 = vmatprep.subr.mxu0 0.0
    %6655 = vmatpush2.msra.mxu0 0.0
    %6656 = vmatprep.subr.mxu0 0.0
    %6657 = vmatpush2.msra.mxu0 0.0
    %6658 = vmatprep.subr.mxu0 0.0
    %6659 = vmatpush2.msra.mxu0 0.0
    %6660 = vmatprep.subr.mxu0 0.0
    %6661 = vmatpush2.msra.mxu0 0.0
    %6662 = vmatprep.subr.mxu0 0.0
    %6663 = vmatpush2.msra.mxu0 0.0
    %6664 = vmatprep.subr.mxu0 0.0
    %6665 = vmatpush2.msra.mxu0 0.0
    %6666 = vmatprep.subr.mxu0 0.0
    %6667 = vmatpush2.msra.mxu0 0.0
    %6668 = vmatprep.subr.mxu0 0.0
    %6669 = vmatpush2.msra.mxu0 0.0
    %6670 = vmatprep.subr.mxu0 0.0
    %6671 = vmatpush2.msra.mxu0 0.0
    %6672 = vmatprep.subr.mxu0 0.0
    %6673 = vmatpush2.msra.mxu0 0.0
    %6674 = vmatprep.subr.mxu0 0.0
    %6675 = vmatpush2.msra.mxu0 0.0
    %6676 = vmatprep.subr.mxu0 0.0
    %6677 = vmatpush2.msra.mxu0 0.0
    %6678 = vmatprep.subr.mxu0 0.0
    %6679 = vmatpush2.msra.mxu0 0.0
    %6680 = vmatprep.subr.mxu0 0.0
    %6681 = vmatpush2.msra.mxu0 0.0
    %6682 = vmatprep.subr.mxu0 0.0
    %6683 = vmatpush2.msra.mxu0 0.0
    %6684 = vmatprep.subr.mxu0 0.0
    %6685 = vmatpush2.msra.mxu0 0.0
    %6686 = vmatprep.mubr.f32.mxu0 0.0
    %6687 = vmatmul.mubr.f32.gmra.mxu0 %v6605
    %v6688 = vpop.f32.mrf.mxu0
    %v6689 = vadd.f32 0.0, %v6688
    %v6690 = vpop.f32.mrf.mxu0
    %6691 = vmatprep.mubr.f32.mxu0 0.0
    %6692 = vmatmul.mubr.f32.gmra.mxu0 %v6608
    %v6693 = vpop.f32.mrf.mxu0
    %v6694 = vadd.f32 0.0, %v6693
    %v6695 = vpop.f32.mrf.mxu0
    %6696 = vmatprep.mubr.f32.mxu0 0.0
    %6697 = vmatmul.mubr.f32.gmra.mxu0 %v6611
    %v6698 = vpop.f32.mrf.mxu0
    %v6699 = vadd.f32 0.0, %v6698
    %v6700 = vpop.f32.mrf.mxu0
    %6701 = vmatprep.mubr.f32.mxu0 0.0
    %6702 = vmatmul.mubr.f32.gmra.mxu0 %v6614
    %v6703 = vpop.f32.mrf.mxu0
    %v6704 = vadd.f32 0.0, %v6703
    %v6705 = vpop.f32.mrf.mxu0
    %6706 = vmatprep.mubr.f32.mxu0 0.0
    %6707 = vmatmul.mubr.f32.gmra.mxu0 %v6617
    %v6708 = vpop.f32.mrf.mxu0
    %v6709 = vadd.f32 0.0, %v6708
    %v6710 = vpop.f32.mrf.mxu0
    %6711 = vmatprep.mubr.f32.mxu0 0.0
    %6712 = vmatmul.mubr.f32.gmra.mxu0 %v6620
    %v6713 = vpop.f32.mrf.mxu0
    %v6714 = vadd.f32 0.0, %v6713
    %v6715 = vpop.f32.mrf.mxu0
    %6716 = vdwg.mxu0
    %6723 = vrot.lane.b32.xlu0 %v6689, 8
    %v6724 = vpop.permute.xlu0 %6723
    %6725 = vrot.lane.b32.xlu0 %v6694, 8
    %v6726 = vpop.permute.xlu0 %6725
    %6727 = vrot.lane.b32.xlu0 %v6699, 8
    %v6728 = vpop.permute.xlu0 %6727
    %6729 = vrot.lane.b32.xlu0 %v6704, 8
    %v6730 = vpop.permute.xlu0 %6729
    %6731 = vrot.lane.b32.xlu0 %v6709, 8
    %v6732 = vpop.permute.xlu0 %6731
    %6733 = vrot.lane.b32.xlu0 %v6714, 8
    %v6734 = vpop.permute.xlu0 %6733
    %6741 = vst.msk [vmem:[#allocation2] sm:$0xff] %vm2356, %v6724
    %6742 = vst.msk [vmem:[#allocation2 + $0x8] sm:$0xff] %vm2356, %v6726
    %6743 = vst.msk [vmem:[#allocation2 + $0x10] sm:$0xff] %vm2356, %v6728
    %6744 = vst.msk [vmem:[#allocation2 + $0x18] sm:$0xff] %vm2356, %v6730
    %6745 = vst.msk [vmem:[#allocation2 + $0x20] sm:$0xff] %vm2356, %v6732
    %6746 = vst.msk [vmem:[#allocation2 + $0x28] sm:$0xff] %vm2356, %v6734
    %6747 = vrot.lane.b32.xlu0 %v4854, 88
    %v6748 = vpop.permute.xlu0 %6747
    %6749 = vrot.lane.b32.xlu0 %v4860, 88
    %v6750 = vpop.permute.xlu0 %6749
    %6751 = vrot.lane.b32.xlu0 %v4866, 88
    %v6752 = vpop.permute.xlu0 %6751
    %6753 = vrot.lane.b32.xlu0 %v4872, 88
    %v6754 = vpop.permute.xlu0 %6753
    %6755 = vrot.lane.b32.xlu0 %v4878, 88
    %v6756 = vpop.permute.xlu0 %6755
    %6757 = vrot.lane.b32.xlu0 %v4884, 88
    %v6758 = vpop.permute.xlu0 %6757
    %6765 = vmatprep.subr.mxu0 0.0
    %6766 = vmatpush1.msra.mxu0 0.0
    %6767 = vmatprep.subr.mxu0 0.0
    %6768 = vmatpush1.msra.mxu0 0.0
    %6769 = vmatprep.subr.mxu0 0.0
    %6770 = vmatpush1.msra.mxu0 0.0
    %6771 = vmatprep.subr.mxu0 0.0
    %6772 = vmatpush1.msra.mxu0 0.0
    %6773 = vmatprep.subr.mxu0 0.0
    %6774 = vmatpush1.msra.mxu0 0.0
    %6775 = vmatprep.subr.mxu0 0.0
    %6776 = vmatpush1.msra.mxu0 0.0
    %6777 = vmatprep.subr.mxu0 0.0
    %6778 = vmatpush1.msra.mxu0 0.0
    %6779 = vmatprep.subr.mxu0 0.0
    %6780 = vmatpush1.msra.mxu0 0.0
    %6781 = vmatprep.subr.mxu0 0.0
    %6782 = vmatpush1.msra.mxu0 0.0
    %6783 = vmatprep.subr.mxu0 0.0
    %6784 = vmatpush1.msra.mxu0 0.0
    %6785 = vmatprep.subr.mxu0 0.0
    %6786 = vmatpush1.msra.mxu0 %v6758
    %6787 = vmatprep.subr.mxu0 0.0
    %6788 = vmatpush1.msra.mxu0 %v6756
    %6789 = vmatprep.subr.mxu0 0.0
    %6790 = vmatpush1.msra.mxu0 %v6754
    %6791 = vmatprep.subr.mxu0 0.0
    %6792 = vmatpush1.msra.mxu0 %v6752
    %6793 = vmatprep.subr.mxu0 0.0
    %6794 = vmatpush1.msra.mxu0 %v6750
    %6795 = vmatprep.subr.mxu0 0.0
    %6796 = vmatpush1.msra.mxu0 %v6748
    %6797 = vmatprep.subr.mxu0 0.0
    %6798 = vmatpush2.msra.mxu0 0.0
    %6799 = vmatprep.subr.mxu0 0.0
    %6800 = vmatpush2.msra.mxu0 0.0
    %6801 = vmatprep.subr.mxu0 0.0
    %6802 = vmatpush2.msra.mxu0 0.0
    %6803 = vmatprep.subr.mxu0 0.0
    %6804 = vmatpush2.msra.mxu0 0.0
    %6805 = vmatprep.subr.mxu0 0.0
    %6806 = vmatpush2.msra.mxu0 0.0
    %6807 = vmatprep.subr.mxu0 0.0
    %6808 = vmatpush2.msra.mxu0 0.0
    %6809 = vmatprep.subr.mxu0 0.0
    %6810 = vmatpush2.msra.mxu0 0.0
    %6811 = vmatprep.subr.mxu0 0.0
    %6812 = vmatpush2.msra.mxu0 0.0
    %6813 = vmatprep.subr.mxu0 0.0
    %6814 = vmatpush2.msra.mxu0 0.0
    %6815 = vmatprep.subr.mxu0 0.0
    %6816 = vmatpush2.msra.mxu0 0.0
    %6817 = vmatprep.subr.mxu0 0.0
    %6818 = vmatpush2.msra.mxu0 0.0
    %6819 = vmatprep.subr.mxu0 0.0
    %6820 = vmatpush2.msra.mxu0 0.0
    %6821 = vmatprep.subr.mxu0 0.0
    %6822 = vmatpush2.msra.mxu0 0.0
    %6823 = vmatprep.subr.mxu0 0.0
    %6824 = vmatpush2.msra.mxu0 0.0
    %6825 = vmatprep.subr.mxu0 0.0
    %6826 = vmatpush2.msra.mxu0 0.0
    %6827 = vmatprep.subr.mxu0 0.0
    %6828 = vmatpush2.msra.mxu0 0.0
    %6829 = vmatprep.mubr.f32.mxu0 0.0
    %6830 = vmatmul.mubr.f32.gmra.mxu0 %v6605
    %v6831 = vpop.f32.mrf.mxu0
    %v6832 = vadd.f32 0.0, %v6831
    %v6833 = vpop.f32.mrf.mxu0
    %6834 = vmatprep.mubr.f32.mxu0 0.0
    %6835 = vmatmul.mubr.f32.gmra.mxu0 %v6608
    %v6836 = vpop.f32.mrf.mxu0
    %v6837 = vadd.f32 0.0, %v6836
    %v6838 = vpop.f32.mrf.mxu0
    %6839 = vmatprep.mubr.f32.mxu0 0.0
    %6840 = vmatmul.mubr.f32.gmra.mxu0 %v6611
    %v6841 = vpop.f32.mrf.mxu0
    %v6842 = vadd.f32 0.0, %v6841
    %v6843 = vpop.f32.mrf.mxu0
    %6844 = vmatprep.mubr.f32.mxu0 0.0
    %6845 = vmatmul.mubr.f32.gmra.mxu0 %v6614
    %v6846 = vpop.f32.mrf.mxu0
    %v6847 = vadd.f32 0.0, %v6846
    %v6848 = vpop.f32.mrf.mxu0
    %6849 = vmatprep.mubr.f32.mxu0 0.0
    %6850 = vmatmul.mubr.f32.gmra.mxu0 %v6617
    %v6851 = vpop.f32.mrf.mxu0
    %v6852 = vadd.f32 0.0, %v6851
    %v6853 = vpop.f32.mrf.mxu0
    %6854 = vmatprep.mubr.f32.mxu0 0.0
    %6855 = vmatmul.mubr.f32.gmra.mxu0 %v6620
    %v6856 = vpop.f32.mrf.mxu0
    %v6857 = vadd.f32 0.0, %v6856
    %v6858 = vpop.f32.mrf.mxu0
    %6859 = vdwg.mxu0
    %6866 = vrot.lane.b32.xlu0 %v6832, 40
    %v6867 = vpop.permute.xlu0 %6866
    %6868 = vrot.lane.b32.xlu0 %v6837, 40
    %v6869 = vpop.permute.xlu0 %6868
    %6870 = vrot.lane.b32.xlu0 %v6842, 40
    %v6871 = vpop.permute.xlu0 %6870
    %6872 = vrot.lane.b32.xlu0 %v6847, 40
    %v6873 = vpop.permute.xlu0 %6872
    %6874 = vrot.lane.b32.xlu0 %v6852, 40
    %v6875 = vpop.permute.xlu0 %6874
    %6876 = vrot.lane.b32.xlu0 %v6857, 40
    %v6877 = vpop.permute.xlu0 %6876
    %6884 = vst.msk [vmem:[#allocation2] sm:$0xff] %vm2500, %v6867
    %6885 = vst.msk [vmem:[#allocation2 + $0x8] sm:$0xff] %vm2500, %v6869
    %6886 = vst.msk [vmem:[#allocation2 + $0x10] sm:$0xff] %vm2500, %v6871
    %6887 = vst.msk [vmem:[#allocation2 + $0x18] sm:$0xff] %vm2500, %v6873
    %6888 = vst.msk [vmem:[#allocation2 + $0x20] sm:$0xff] %vm2500, %v6875
    %6889 = vst.msk [vmem:[#allocation2 + $0x28] sm:$0xff] %vm2500, %v6877
    %6890 = vrot.lane.b32.xlu0 %v4964, 112
    %v6891 = vpop.permute.xlu0 %6890
    %6892 = vrot.lane.b32.xlu0 %v4965, 112
    %v6893 = vpop.permute.xlu0 %6892
    %6894 = vrot.lane.b32.xlu0 %v4966, 112
    %v6895 = vpop.permute.xlu0 %6894
    %6896 = vrot.lane.b32.xlu0 %v4967, 112
    %v6897 = vpop.permute.xlu0 %6896
    %6898 = vrot.lane.b32.xlu0 %v4968, 112
    %v6899 = vpop.permute.xlu0 %6898
    %6900 = vrot.lane.b32.xlu0 %v4969, 112
    %v6901 = vpop.permute.xlu0 %6900
    %6902 = vrot.lane.b32.xlu0 %v5048, 80
    %v6903 = vpop.permute.xlu0 %6902
    %6904 = vrot.lane.b32.xlu0 %v5049, 80
    %v6905 = vpop.permute.xlu0 %6904
    %6906 = vrot.lane.b32.xlu0 %v5050, 80
    %v6907 = vpop.permute.xlu0 %6906
    %6908 = vrot.lane.b32.xlu0 %v5051, 80
    %v6909 = vpop.permute.xlu0 %6908
    %6910 = vrot.lane.b32.xlu0 %v5052, 80
    %v6911 = vpop.permute.xlu0 %6910
    %6912 = vrot.lane.b32.xlu0 %v5053, 80
    %v6913 = vpop.permute.xlu0 %6912
    %v6914 = vsel %vm684, %v6891, 0
    %v6916 = vsel %vm684, %v6893, 0
    %v6918 = vsel %vm684, %v6895, 0
    %v6920 = vsel %vm684, %v6897, 0
    %v6922 = vsel %vm684, %v6899, 0
    %v6924 = vsel %vm684, %v6901, 0
    %v6926 = vsel %vm684, %v6903, 0
    %v6928 = vsel %vm684, %v6905, 0
    %v6930 = vsel %vm684, %v6907, 0
    %v6932 = vsel %vm684, %v6909, 0
    %v6934 = vsel %vm684, %v6911, 0
    %v6936 = vsel %vm684, %v6913, 0
    %6938 = vmatprep.subr.mxu0 0.0
    %6939 = vmatpush1.xpose.msra.mxu0 0.0
    %6940 = vmatprep.subr.mxu0 0.0
    %6941 = vmatpush1.xpose.msra.mxu0 0.0
    %6942 = vmatprep.subr.mxu0 0.0
    %6943 = vmatpush1.xpose.msra.mxu0 0.0
    %6944 = vmatprep.subr.mxu0 0.0
    %6945 = vmatpush1.xpose.msra.mxu0 0.0
    %6946 = vmatprep.subr.mxu0 0.0
    %6947 = vmatpush1.xpose.msra.mxu0 0.0
    %6948 = vmatprep.subr.mxu0 0.0
    %6949 = vmatpush1.xpose.msra.mxu0 0.0
    %6950 = vmatprep.subr.mxu0 0.0
    %6951 = vmatpush1.xpose.msra.mxu0 0.0
    %6952 = vmatprep.subr.mxu0 0.0
    %6953 = vmatpush1.xpose.msra.mxu0 0.0
    %6954 = vmatprep.subr.mxu0 0.0
    %6955 = vmatpush1.xpose.msra.mxu0 0.0
    %6956 = vmatprep.subr.mxu0 0.0
    %6957 = vmatpush1.xpose.msra.mxu0 0.0
    %6958 = vmatprep.subr.mxu0 0.0
    %6959 = vmatpush1.xpose.msra.mxu0 %v6936
    %6960 = vmatprep.subr.mxu0 0.0
    %6961 = vmatpush1.xpose.msra.mxu0 %v6934
    %6962 = vmatprep.subr.mxu0 0.0
    %6963 = vmatpush1.xpose.msra.mxu0 %v6932
    %6964 = vmatprep.subr.mxu0 0.0
    %6965 = vmatpush1.xpose.msra.mxu0 %v6930
    %6966 = vmatprep.subr.mxu0 0.0
    %6967 = vmatpush1.xpose.msra.mxu0 %v6928
    %6968 = vmatprep.subr.mxu0 0.0
    %6969 = vmatpush1.xpose.msra.mxu0 %v6926
    %6970 = vmatprep.subr.mxu0 0.0
    %6971 = vmatpush2.xpose.msra.mxu0 0.0
    %6972 = vmatprep.subr.mxu0 0.0
    %6973 = vmatpush2.xpose.msra.mxu0 0.0
    %6974 = vmatprep.subr.mxu0 0.0
    %6975 = vmatpush2.xpose.msra.mxu0 0.0
    %6976 = vmatprep.subr.mxu0 0.0
    %6977 = vmatpush2.xpose.msra.mxu0 0.0
    %6978 = vmatprep.subr.mxu0 0.0
    %6979 = vmatpush2.xpose.msra.mxu0 0.0
    %6980 = vmatprep.subr.mxu0 0.0
    %6981 = vmatpush2.xpose.msra.mxu0 0.0
    %6982 = vmatprep.subr.mxu0 0.0
    %6983 = vmatpush2.xpose.msra.mxu0 0.0
    %6984 = vmatprep.subr.mxu0 0.0
    %6985 = vmatpush2.xpose.msra.mxu0 0.0
    %6986 = vmatprep.subr.mxu0 0.0
    %6987 = vmatpush2.xpose.msra.mxu0 0.0
    %6988 = vmatprep.subr.mxu0 0.0
    %6989 = vmatpush2.xpose.msra.mxu0 0.0
    %6990 = vmatprep.subr.mxu0 0.0
    %6991 = vmatpush2.xpose.msra.mxu0 0.0
    %6992 = vmatprep.subr.mxu0 0.0
    %6993 = vmatpush2.xpose.msra.mxu0 0.0
    %6994 = vmatprep.subr.mxu0 0.0
    %6995 = vmatpush2.xpose.msra.mxu0 0.0
    %6996 = vmatprep.subr.mxu0 0.0
    %6997 = vmatpush2.xpose.msra.mxu0 0.0
    %6998 = vmatprep.subr.mxu0 0.0
    %6999 = vmatpush2.xpose.msra.mxu0 0.0
    %7000 = vmatprep.subr.mxu0 0.0
    %7001 = vmatpush2.xpose.msra.mxu0 0.0
    %7002 = vmatprep.mubr.f32.mxu0 0.0
    %7003 = vmatmul.mubr.f32.gmra.mxu0 %v6914
    %v7004 = vpop.f32.mrf.mxu0
    %v7005 = vadd.f32 0.0, %v7004
    %v7006 = vpop.f32.mrf.mxu0
    %7007 = vmatprep.mubr.f32.mxu0 0.0
    %7008 = vmatmul.mubr.f32.gmra.mxu0 %v6916
    %v7009 = vpop.f32.mrf.mxu0
    %v7010 = vadd.f32 0.0, %v7009
    %v7011 = vpop.f32.mrf.mxu0
    %7012 = vmatprep.mubr.f32.mxu0 0.0
    %7013 = vmatmul.mubr.f32.gmra.mxu0 %v6918
    %v7014 = vpop.f32.mrf.mxu0
    %v7015 = vadd.f32 0.0, %v7014
    %v7016 = vpop.f32.mrf.mxu0
    %7017 = vmatprep.mubr.f32.mxu0 0.0
    %7018 = vmatmul.mubr.f32.gmra.mxu0 %v6920
    %v7019 = vpop.f32.mrf.mxu0
    %v7020 = vadd.f32 0.0, %v7019
    %v7021 = vpop.f32.mrf.mxu0
    %7022 = vmatprep.mubr.f32.mxu0 0.0
    %7023 = vmatmul.mubr.f32.gmra.mxu0 %v6922
    %v7024 = vpop.f32.mrf.mxu0
    %v7025 = vadd.f32 0.0, %v7024
    %v7026 = vpop.f32.mrf.mxu0
    %7027 = vmatprep.mubr.f32.mxu0 0.0
    %7028 = vmatmul.mubr.f32.gmra.mxu0 %v6924
    %v7029 = vpop.f32.mrf.mxu0
    %v7030 = vadd.f32 0.0, %v7029
    %v7031 = vpop.f32.mrf.mxu0
    %7032 = vdwg.mxu0
    %7033 = vrot.lane.b32.xlu0 %v4922, 112
    %v7034 = vpop.permute.xlu0 %7033
    %7035 = vrot.lane.b32.xlu0 %v4923, 112
    %v7036 = vpop.permute.xlu0 %7035
    %7037 = vrot.lane.b32.xlu0 %v4924, 112
    %v7038 = vpop.permute.xlu0 %7037
    %7039 = vrot.lane.b32.xlu0 %v4925, 112
    %v7040 = vpop.permute.xlu0 %7039
    %7041 = vrot.lane.b32.xlu0 %v4926, 112
    %v7042 = vpop.permute.xlu0 %7041
    %7043 = vrot.lane.b32.xlu0 %v4927, 112
    %v7044 = vpop.permute.xlu0 %7043
    %7045 = vrot.lane.b32.xlu0 %v5006, 80
    %v7046 = vpop.permute.xlu0 %7045
    %7047 = vrot.lane.b32.xlu0 %v5007, 80
    %v7048 = vpop.permute.xlu0 %7047
    %7049 = vrot.lane.b32.xlu0 %v5008, 80
    %v7050 = vpop.permute.xlu0 %7049
    %7051 = vrot.lane.b32.xlu0 %v5009, 80
    %v7052 = vpop.permute.xlu0 %7051
    %7053 = vrot.lane.b32.xlu0 %v5010, 80
    %v7054 = vpop.permute.xlu0 %7053
    %7055 = vrot.lane.b32.xlu0 %v5011, 80
    %v7056 = vpop.permute.xlu0 %7055
    %v7057 = vsel %vm684, %v7034, 0
    %v7059 = vsel %vm684, %v7036, 0
    %v7061 = vsel %vm684, %v7038, 0
    %v7063 = vsel %vm684, %v7040, 0
    %v7065 = vsel %vm684, %v7042, 0
    %v7067 = vsel %vm684, %v7044, 0
    %v7069 = vsel %vm684, %v7046, 0
    %v7071 = vsel %vm684, %v7048, 0
    %v7073 = vsel %vm684, %v7050, 0
    %v7075 = vsel %vm684, %v7052, 0
    %v7077 = vsel %vm684, %v7054, 0
    %v7079 = vsel %vm684, %v7056, 0
    %7081 = vmatprep.subr.mxu0 0.0
    %7082 = vmatpush1.xpose.msra.mxu0 0.0
    %7083 = vmatprep.subr.mxu0 0.0
    %7084 = vmatpush1.xpose.msra.mxu0 0.0
    %7085 = vmatprep.subr.mxu0 0.0
    %7086 = vmatpush1.xpose.msra.mxu0 0.0
    %7087 = vmatprep.subr.mxu0 0.0
    %7088 = vmatpush1.xpose.msra.mxu0 0.0
    %7089 = vmatprep.subr.mxu0 0.0
    %7090 = vmatpush1.xpose.msra.mxu0 0.0
    %7091 = vmatprep.subr.mxu0 0.0
    %7092 = vmatpush1.xpose.msra.mxu0 0.0
    %7093 = vmatprep.subr.mxu0 0.0
    %7094 = vmatpush1.xpose.msra.mxu0 0.0
    %7095 = vmatprep.subr.mxu0 0.0
    %7096 = vmatpush1.xpose.msra.mxu0 0.0
    %7097 = vmatprep.subr.mxu0 0.0
    %7098 = vmatpush1.xpose.msra.mxu0 0.0
    %7099 = vmatprep.subr.mxu0 0.0
    %7100 = vmatpush1.xpose.msra.mxu0 0.0
    %7101 = vmatprep.subr.mxu0 0.0
    %7102 = vmatpush1.xpose.msra.mxu0 %v7079
    %7103 = vmatprep.subr.mxu0 0.0
    %7104 = vmatpush1.xpose.msra.mxu0 %v7077
    %7105 = vmatprep.subr.mxu0 0.0
    %7106 = vmatpush1.xpose.msra.mxu0 %v7075
    %7107 = vmatprep.subr.mxu0 0.0
    %7108 = vmatpush1.xpose.msra.mxu0 %v7073
    %7109 = vmatprep.subr.mxu0 0.0
    %7110 = vmatpush1.xpose.msra.mxu0 %v7071
    %7111 = vmatprep.subr.mxu0 0.0
    %7112 = vmatpush1.xpose.msra.mxu0 %v7069
    %7113 = vmatprep.subr.mxu0 0.0
    %7114 = vmatpush2.xpose.msra.mxu0 0.0
    %7115 = vmatprep.subr.mxu0 0.0
    %7116 = vmatpush2.xpose.msra.mxu0 0.0
    %7117 = vmatprep.subr.mxu0 0.0
    %7118 = vmatpush2.xpose.msra.mxu0 0.0
    %7119 = vmatprep.subr.mxu0 0.0
    %7120 = vmatpush2.xpose.msra.mxu0 0.0
    %7121 = vmatprep.subr.mxu0 0.0
    %7122 = vmatpush2.xpose.msra.mxu0 0.0
    %7123 = vmatprep.subr.mxu0 0.0
    %7124 = vmatpush2.xpose.msra.mxu0 0.0
    %7125 = vmatprep.subr.mxu0 0.0
    %7126 = vmatpush2.xpose.msra.mxu0 0.0
    %7127 = vmatprep.subr.mxu0 0.0
    %7128 = vmatpush2.xpose.msra.mxu0 0.0
    %7129 = vmatprep.subr.mxu0 0.0
    %7130 = vmatpush2.xpose.msra.mxu0 0.0
    %7131 = vmatprep.subr.mxu0 0.0
    %7132 = vmatpush2.xpose.msra.mxu0 0.0
    %7133 = vmatprep.subr.mxu0 0.0
    %7134 = vmatpush2.xpose.msra.mxu0 0.0
    %7135 = vmatprep.subr.mxu0 0.0
    %7136 = vmatpush2.xpose.msra.mxu0 0.0
    %7137 = vmatprep.subr.mxu0 0.0
    %7138 = vmatpush2.xpose.msra.mxu0 0.0
    %7139 = vmatprep.subr.mxu0 0.0
    %7140 = vmatpush2.xpose.msra.mxu0 0.0
    %7141 = vmatprep.subr.mxu0 0.0
    %7142 = vmatpush2.xpose.msra.mxu0 0.0
    %7143 = vmatprep.subr.mxu0 0.0
    %7144 = vmatpush2.xpose.msra.mxu0 0.0
    %7145 = vmatprep.mubr.f32.mxu0 0.0
    %7146 = vmatmul.mubr.f32.gmra.mxu0 %v7057
    %v7147 = vpop.f32.mrf.mxu0
    %v7148 = vadd.f32 %v7005, %v7147
    %v7149 = vpop.f32.mrf.mxu0
    %7150 = vmatprep.mubr.f32.mxu0 0.0
    %7151 = vmatmul.mubr.f32.gmra.mxu0 %v7059
    %v7152 = vpop.f32.mrf.mxu0
    %v7153 = vadd.f32 %v7010, %v7152
    %v7154 = vpop.f32.mrf.mxu0
    %7155 = vmatprep.mubr.f32.mxu0 0.0
    %7156 = vmatmul.mubr.f32.gmra.mxu0 %v7061
    %v7157 = vpop.f32.mrf.mxu0
    %v7158 = vadd.f32 %v7015, %v7157
    %v7159 = vpop.f32.mrf.mxu0
    %7160 = vmatprep.mubr.f32.mxu0 0.0
    %7161 = vmatmul.mubr.f32.gmra.mxu0 %v7063
    %v7162 = vpop.f32.mrf.mxu0
    %v7163 = vadd.f32 %v7020, %v7162
    %v7164 = vpop.f32.mrf.mxu0
    %7165 = vmatprep.mubr.f32.mxu0 0.0
    %7166 = vmatmul.mubr.f32.gmra.mxu0 %v7065
    %v7167 = vpop.f32.mrf.mxu0
    %v7168 = vadd.f32 %v7025, %v7167
    %v7169 = vpop.f32.mrf.mxu0
    %7170 = vmatprep.mubr.f32.mxu0 0.0
    %7171 = vmatmul.mubr.f32.gmra.mxu0 %v7067
    %v7172 = vpop.f32.mrf.mxu0
    %v7173 = vadd.f32 %v7030, %v7172
    %v7174 = vpop.f32.mrf.mxu0
    %7175 = vdwg.mxu0
    %7176 = vmatprep.subr.mxu0 0.0
    %7177 = vmatpush1.xpose.msra.mxu0 0.0
    %7178 = vmatprep.subr.mxu0 0.0
    %7179 = vmatpush1.xpose.msra.mxu0 0.0
    %7180 = vmatprep.subr.mxu0 0.0
    %7181 = vmatpush1.xpose.msra.mxu0 0.0
    %7182 = vmatprep.subr.mxu0 0.0
    %7183 = vmatpush1.xpose.msra.mxu0 0.0
    %7184 = vmatprep.subr.mxu0 0.0
    %7185 = vmatpush1.xpose.msra.mxu0 0.0
    %7186 = vmatprep.subr.mxu0 0.0
    %7187 = vmatpush1.xpose.msra.mxu0 0.0
    %7188 = vmatprep.subr.mxu0 0.0
    %7189 = vmatpush1.xpose.msra.mxu0 0.0
    %7190 = vmatprep.subr.mxu0 0.0
    %7191 = vmatpush1.xpose.msra.mxu0 0.0
    %7192 = vmatprep.subr.mxu0 0.0
    %7193 = vmatpush1.xpose.msra.mxu0 0.0
    %7194 = vmatprep.subr.mxu0 0.0
    %7195 = vmatpush1.xpose.msra.mxu0 0.0
    %7196 = vmatprep.subr.mxu0 0.0
    %7197 = vmatpush1.xpose.msra.mxu0 %v7079
    %7198 = vmatprep.subr.mxu0 0.0
    %7199 = vmatpush1.xpose.msra.mxu0 %v7077
    %7200 = vmatprep.subr.mxu0 0.0
    %7201 = vmatpush1.xpose.msra.mxu0 %v7075
    %7202 = vmatprep.subr.mxu0 0.0
    %7203 = vmatpush1.xpose.msra.mxu0 %v7073
    %7204 = vmatprep.subr.mxu0 0.0
    %7205 = vmatpush1.xpose.msra.mxu0 %v7071
    %7206 = vmatprep.subr.mxu0 0.0
    %7207 = vmatpush1.xpose.msra.mxu0 %v7069
    %7208 = vmatprep.subr.mxu0 0.0
    %7209 = vmatpush2.xpose.msra.mxu0 0.0
    %7210 = vmatprep.subr.mxu0 0.0
    %7211 = vmatpush2.xpose.msra.mxu0 0.0
    %7212 = vmatprep.subr.mxu0 0.0
    %7213 = vmatpush2.xpose.msra.mxu0 0.0
    %7214 = vmatprep.subr.mxu0 0.0
    %7215 = vmatpush2.xpose.msra.mxu0 0.0
    %7216 = vmatprep.subr.mxu0 0.0
    %7217 = vmatpush2.xpose.msra.mxu0 0.0
    %7218 = vmatprep.subr.mxu0 0.0
    %7219 = vmatpush2.xpose.msra.mxu0 0.0
    %7220 = vmatprep.subr.mxu0 0.0
    %7221 = vmatpush2.xpose.msra.mxu0 0.0
    %7222 = vmatprep.subr.mxu0 0.0
    %7223 = vmatpush2.xpose.msra.mxu0 0.0
    %7224 = vmatprep.subr.mxu0 0.0
    %7225 = vmatpush2.xpose.msra.mxu0 0.0
    %7226 = vmatprep.subr.mxu0 0.0
    %7227 = vmatpush2.xpose.msra.mxu0 0.0
    %7228 = vmatprep.subr.mxu0 0.0
    %7229 = vmatpush2.xpose.msra.mxu0 0.0
    %7230 = vmatprep.subr.mxu0 0.0
    %7231 = vmatpush2.xpose.msra.mxu0 0.0
    %7232 = vmatprep.subr.mxu0 0.0
    %7233 = vmatpush2.xpose.msra.mxu0 0.0
    %7234 = vmatprep.subr.mxu0 0.0
    %7235 = vmatpush2.xpose.msra.mxu0 0.0
    %7236 = vmatprep.subr.mxu0 0.0
    %7237 = vmatpush2.xpose.msra.mxu0 0.0
    %7238 = vmatprep.subr.mxu0 0.0
    %7239 = vmatpush2.xpose.msra.mxu0 0.0
    %7240 = vmatprep.mubr.f32.mxu0 0.0
    %7241 = vmatmul.mubr.f32.gmra.mxu0 %v6914
    %v7242 = vpop.f32.mrf.mxu0
    %v7243 = vadd.f32 0.0, %v7242
    %v7244 = vpop.f32.mrf.mxu0
    %7245 = vmatprep.mubr.f32.mxu0 0.0
    %7246 = vmatmul.mubr.f32.gmra.mxu0 %v6916
    %v7247 = vpop.f32.mrf.mxu0
    %v7248 = vadd.f32 0.0, %v7247
    %v7249 = vpop.f32.mrf.mxu0
    %7250 = vmatprep.mubr.f32.mxu0 0.0
    %7251 = vmatmul.mubr.f32.gmra.mxu0 %v6918
    %v7252 = vpop.f32.mrf.mxu0
    %v7253 = vadd.f32 0.0, %v7252
    %v7254 = vpop.f32.mrf.mxu0
    %7255 = vmatprep.mubr.f32.mxu0 0.0
    %7256 = vmatmul.mubr.f32.gmra.mxu0 %v6920
    %v7257 = vpop.f32.mrf.mxu0
    %v7258 = vadd.f32 0.0, %v7257
    %v7259 = vpop.f32.mrf.mxu0
    %7260 = vmatprep.mubr.f32.mxu0 0.0
    %7261 = vmatmul.mubr.f32.gmra.mxu0 %v6922
    %v7262 = vpop.f32.mrf.mxu0
    %v7263 = vadd.f32 0.0, %v7262
    %v7264 = vpop.f32.mrf.mxu0
    %7265 = vmatprep.mubr.f32.mxu0 0.0
    %7266 = vmatmul.mubr.f32.gmra.mxu0 %v6924
    %v7267 = vpop.f32.mrf.mxu0
    %v7268 = vadd.f32 0.0, %v7267
    %v7269 = vpop.f32.mrf.mxu0
    %7270 = vdwg.mxu0
    %7271 = vmatprep.subr.mxu0 0.0
    %7272 = vmatpush1.xpose.msra.mxu0 0.0
    %7273 = vmatprep.subr.mxu0 0.0
    %7274 = vmatpush1.xpose.msra.mxu0 0.0
    %7275 = vmatprep.subr.mxu0 0.0
    %7276 = vmatpush1.xpose.msra.mxu0 0.0
    %7277 = vmatprep.subr.mxu0 0.0
    %7278 = vmatpush1.xpose.msra.mxu0 0.0
    %7279 = vmatprep.subr.mxu0 0.0
    %7280 = vmatpush1.xpose.msra.mxu0 0.0
    %7281 = vmatprep.subr.mxu0 0.0
    %7282 = vmatpush1.xpose.msra.mxu0 0.0
    %7283 = vmatprep.subr.mxu0 0.0
    %7284 = vmatpush1.xpose.msra.mxu0 0.0
    %7285 = vmatprep.subr.mxu0 0.0
    %7286 = vmatpush1.xpose.msra.mxu0 0.0
    %7287 = vmatprep.subr.mxu0 0.0
    %7288 = vmatpush1.xpose.msra.mxu0 0.0
    %7289 = vmatprep.subr.mxu0 0.0
    %7290 = vmatpush1.xpose.msra.mxu0 0.0
    %7291 = vmatprep.subr.mxu0 0.0
    %7292 = vmatpush1.xpose.msra.mxu0 %v6936
    %7293 = vmatprep.subr.mxu0 0.0
    %7294 = vmatpush1.xpose.msra.mxu0 %v6934
    %7295 = vmatprep.subr.mxu0 0.0
    %7296 = vmatpush1.xpose.msra.mxu0 %v6932
    %7297 = vmatprep.subr.mxu0 0.0
    %7298 = vmatpush1.xpose.msra.mxu0 %v6930
    %7299 = vmatprep.subr.mxu0 0.0
    %7300 = vmatpush1.xpose.msra.mxu0 %v6928
    %7301 = vmatprep.subr.mxu0 0.0
    %7302 = vmatpush1.xpose.msra.mxu0 %v6926
    %7303 = vmatprep.subr.mxu0 0.0
    %7304 = vmatpush2.xpose.msra.mxu0 0.0
    %7305 = vmatprep.subr.mxu0 0.0
    %7306 = vmatpush2.xpose.msra.mxu0 0.0
    %7307 = vmatprep.subr.mxu0 0.0
    %7308 = vmatpush2.xpose.msra.mxu0 0.0
    %7309 = vmatprep.subr.mxu0 0.0
    %7310 = vmatpush2.xpose.msra.mxu0 0.0
    %7311 = vmatprep.subr.mxu0 0.0
    %7312 = vmatpush2.xpose.msra.mxu0 0.0
    %7313 = vmatprep.subr.mxu0 0.0
    %7314 = vmatpush2.xpose.msra.mxu0 0.0
    %7315 = vmatprep.subr.mxu0 0.0
    %7316 = vmatpush2.xpose.msra.mxu0 0.0
    %7317 = vmatprep.subr.mxu0 0.0
    %7318 = vmatpush2.xpose.msra.mxu0 0.0
    %7319 = vmatprep.subr.mxu0 0.0
    %7320 = vmatpush2.xpose.msra.mxu0 0.0
    %7321 = vmatprep.subr.mxu0 0.0
    %7322 = vmatpush2.xpose.msra.mxu0 0.0
    %7323 = vmatprep.subr.mxu0 0.0
    %7324 = vmatpush2.xpose.msra.mxu0 0.0
    %7325 = vmatprep.subr.mxu0 0.0
    %7326 = vmatpush2.xpose.msra.mxu0 0.0
    %7327 = vmatprep.subr.mxu0 0.0
    %7328 = vmatpush2.xpose.msra.mxu0 0.0
    %7329 = vmatprep.subr.mxu0 0.0
    %7330 = vmatpush2.xpose.msra.mxu0 0.0
    %7331 = vmatprep.subr.mxu0 0.0
    %7332 = vmatpush2.xpose.msra.mxu0 0.0
    %7333 = vmatprep.subr.mxu0 0.0
    %7334 = vmatpush2.xpose.msra.mxu0 0.0
    %7335 = vmatprep.mubr.f32.mxu0 0.0
    %7336 = vmatmul.mubr.f32.gmra.mxu0 %v7057
    %v7337 = vpop.f32.mrf.mxu0
    %v7338 = vadd.f32 0.0, %v7337
    %v7339 = vpop.f32.mrf.mxu0
    %7340 = vmatprep.mubr.f32.mxu0 0.0
    %7341 = vmatmul.mubr.f32.gmra.mxu0 %v7059
    %v7342 = vpop.f32.mrf.mxu0
    %v7343 = vadd.f32 0.0, %v7342
    %v7344 = vpop.f32.mrf.mxu0
    %7345 = vmatprep.mubr.f32.mxu0 0.0
    %7346 = vmatmul.mubr.f32.gmra.mxu0 %v7061
    %v7347 = vpop.f32.mrf.mxu0
    %v7348 = vadd.f32 0.0, %v7347
    %v7349 = vpop.f32.mrf.mxu0
    %7350 = vmatprep.mubr.f32.mxu0 0.0
    %7351 = vmatmul.mubr.f32.gmra.mxu0 %v7063
    %v7352 = vpop.f32.mrf.mxu0
    %v7353 = vadd.f32 0.0, %v7352
    %v7354 = vpop.f32.mrf.mxu0
    %7355 = vmatprep.mubr.f32.mxu0 0.0
    %7356 = vmatmul.mubr.f32.gmra.mxu0 %v7065
    %v7357 = vpop.f32.mrf.mxu0
    %v7358 = vadd.f32 0.0, %v7357
    %v7359 = vpop.f32.mrf.mxu0
    %7360 = vmatprep.mubr.f32.mxu0 0.0
    %7361 = vmatmul.mubr.f32.gmra.mxu0 %v7067
    %v7362 = vpop.f32.mrf.mxu0
    %v7363 = vadd.f32 0.0, %v7362
    %v7364 = vpop.f32.mrf.mxu0
    %7365 = vdwg.mxu0
    %v7366 = vsub.f32 %v7243, %v7338
    %v7367 = vsub.f32 %v7248, %v7343
    %v7368 = vsub.f32 %v7253, %v7348
    %v7369 = vsub.f32 %v7258, %v7353
    %v7370 = vsub.f32 %v7263, %v7358
    %v7371 = vsub.f32 %v7268, %v7363
    %v7372 = vmul.f32 %v7148, %v7148
    %v7373 = vmul.f32 %v7153, %v7153
    %v7374 = vmul.f32 %v7158, %v7158
    %v7375 = vmul.f32 %v7163, %v7163
    %v7376 = vmul.f32 %v7168, %v7168
    %v7377 = vmul.f32 %v7173, %v7173
    %v7378 = vmul.f32 %v7366, %v7366
    %v7379 = vmul.f32 %v7367, %v7367
    %v7380 = vmul.f32 %v7368, %v7368
    %v7381 = vmul.f32 %v7369, %v7369
    %v7382 = vmul.f32 %v7370, %v7370
    %v7383 = vmul.f32 %v7371, %v7371
    %v7384 = vadd.f32 %v7372, %v7378
    %v7385 = vadd.f32 %v7373, %v7379
    %v7386 = vadd.f32 %v7374, %v7380
    %v7387 = vadd.f32 %v7375, %v7381
    %v7388 = vadd.f32 %v7376, %v7382
    %v7389 = vadd.f32 %v7377, %v7383
    %v7390 = vrsqrt.pop %v7384
    %v7391 = vmul.f32 %v7384, %v7390
    %vm7392 = vcmp.eq.f32.partialorder %v7384, inf
    %v7393 = vsel %vm7392, %v7384, %v7391
    %vm7394 = vcmp.eq.f32.partialorder %v7384, 0.0
    %v7395 = vand.u32 %v7384, 2147483648
    %v7396 = vsel %vm7394, %v7395, %v7393
    %v7397 = vrsqrt.pop %v7385
    %v7398 = vmul.f32 %v7385, %v7397
    %vm7399 = vcmp.eq.f32.partialorder %v7385, inf
    %v7400 = vsel %vm7399, %v7385, %v7398
    %vm7401 = vcmp.eq.f32.partialorder %v7385, 0.0
    %v7402 = vand.u32 %v7385, 2147483648
    %v7403 = vsel %vm7401, %v7402, %v7400
    %v7404 = vrsqrt.pop %v7386
    %v7405 = vmul.f32 %v7386, %v7404
    %vm7406 = vcmp.eq.f32.partialorder %v7386, inf
    %v7407 = vsel %vm7406, %v7386, %v7405
    %vm7408 = vcmp.eq.f32.partialorder %v7386, 0.0
    %v7409 = vand.u32 %v7386, 2147483648
    %v7410 = vsel %vm7408, %v7409, %v7407
    %v7411 = vrsqrt.pop %v7387
    %v7412 = vmul.f32 %v7387, %v7411
    %vm7413 = vcmp.eq.f32.partialorder %v7387, inf
    %v7414 = vsel %vm7413, %v7387, %v7412
    %vm7415 = vcmp.eq.f32.partialorder %v7387, 0.0
    %v7416 = vand.u32 %v7387, 2147483648
    %v7417 = vsel %vm7415, %v7416, %v7414
    %v7418 = vrsqrt.pop %v7388
    %v7419 = vmul.f32 %v7388, %v7418
    %vm7420 = vcmp.eq.f32.partialorder %v7388, inf
    %v7421 = vsel %vm7420, %v7388, %v7419
    %vm7422 = vcmp.eq.f32.partialorder %v7388, 0.0
    %v7423 = vand.u32 %v7388, 2147483648
    %v7424 = vsel %vm7422, %v7423, %v7421
    %v7425 = vrsqrt.pop %v7389
    %v7426 = vmul.f32 %v7389, %v7425
    %vm7427 = vcmp.eq.f32.partialorder %v7389, inf
    %v7428 = vsel %vm7427, %v7389, %v7426
    %vm7429 = vcmp.eq.f32.partialorder %v7389, 0.0
    %v7430 = vand.u32 %v7389, 2147483648
    %v7431 = vsel %vm7429, %v7430, %v7428
    %v7432 = vmul.f32 %v7396, 0.35355338
    %v7433 = vmul.f32 %v7403, 0.35355338
    %v7434 = vmul.f32 %v7410, 0.35355338
    %v7435 = vmul.f32 %v7417, 0.35355338
    %v7436 = vmul.f32 %v7424, 0.35355338
    %v7437 = vmul.f32 %v7431, 0.35355338
    %v7438 = vadd.f32 %v7432, %v260
    %v7439 = vadd.f32 %v7433, %v261
    %v7440 = vadd.f32 %v7434, %v262
    %v7441 = vadd.f32 %v7435, %v263
    %v7442 = vadd.f32 %v7436, %v264
    %v7443 = vadd.f32 %v7437, %v265
    %v7444 = vsel %vm1221, %v7438, -inf
    %7445 = vmax.xlane.f32.xlu0 %v7444
    %v7446 = vpop.xlane.xlu0 %7445
    %v7447 = vsel %vm1221, %v7439, -inf
    %7448 = vmax.xlane.f32.xlu0 %v7447
    %v7449 = vpop.xlane.xlu0 %7448
    %v7450 = vsel %vm1221, %v7440, -inf
    %7451 = vmax.xlane.f32.xlu0 %v7450
    %v7452 = vpop.xlane.xlu0 %7451
    %v7453 = vsel %vm1221, %v7441, -inf
    %7454 = vmax.xlane.f32.xlu0 %v7453
    %v7455 = vpop.xlane.xlu0 %7454
    %v7456 = vsel %vm1221, %v7442, -inf
    %7457 = vmax.xlane.f32.xlu0 %v7456
    %v7458 = vpop.xlane.xlu0 %7457
    %v7459 = vsel %vm1221, %v7443, -inf
    %7460 = vmax.xlane.f32.xlu0 %v7459
    %v7461 = vpop.xlane.xlu0 %7460
    %v7462 = vsub.f32 %v7438, %v7446
    %v7463 = vsub.f32 %v7439, %v7449
    %v7464 = vsub.f32 %v7440, %v7452
    %v7465 = vsub.f32 %v7441, %v7455
    %v7466 = vsub.f32 %v7442, %v7458
    %v7467 = vsub.f32 %v7443, %v7461
    %v7468 = vmul.f32 %v7462, 1.442695
    %v7469 = vpow.pop %v7468
    %v7470 = vmul.f32 %v7463, 1.442695
    %v7471 = vpow.pop %v7470
    %v7472 = vmul.f32 %v7464, 1.442695
    %v7473 = vpow.pop %v7472
    %v7474 = vmul.f32 %v7465, 1.442695
    %v7475 = vpow.pop %v7474
    %v7476 = vmul.f32 %v7466, 1.442695
    %v7477 = vpow.pop %v7476
    %v7478 = vmul.f32 %v7467, 1.442695
    %v7479 = vpow.pop %v7478
    %v7480 = vsel %vm1221, %v7469, 0.0
    %7481 = vadd.xlane.f32.xlu0 %v7480
    %v7482 = vpop.xlane.xlu0 %7481
    %v7483 = vsel %vm1221, %v7471, 0.0
    %7484 = vadd.xlane.f32.xlu0 %v7483
    %v7485 = vpop.xlane.xlu0 %7484
    %v7486 = vsel %vm1221, %v7473, 0.0
    %7487 = vadd.xlane.f32.xlu0 %v7486
    %v7488 = vpop.xlane.xlu0 %7487
    %v7489 = vsel %vm1221, %v7475, 0.0
    %7490 = vadd.xlane.f32.xlu0 %v7489
    %v7491 = vpop.xlane.xlu0 %7490
    %v7492 = vsel %vm1221, %v7477, 0.0
    %7493 = vadd.xlane.f32.xlu0 %v7492
    %v7494 = vpop.xlane.xlu0 %7493
    %v7495 = vsel %vm1221, %v7479, 0.0
    %7496 = vadd.xlane.f32.xlu0 %v7495
    %v7497 = vpop.xlane.xlu0 %7496
    %v7498 = vrcp.pop %v7482
    %v7499 = vrcp.pop %v7485
    %v7500 = vrcp.pop %v7488
    %v7501 = vrcp.pop %v7491
    %v7502 = vrcp.pop %v7494
    %v7503 = vrcp.pop %v7497
    %v7504 = vmul.f32 %v7469, %v7498
    %v7505 = vmul.f32 %v7471, %v7499
    %v7506 = vmul.f32 %v7473, %v7500
    %v7507 = vmul.f32 %v7475, %v7501
    %v7508 = vmul.f32 %v7477, %v7502
    %v7509 = vmul.f32 %v7479, %v7503
    %7510 = vrot.lane.b32.xlu0 %v4852, 48
    %v7511 = vpop.permute.xlu0 %7510
    %7512 = vrot.lane.b32.xlu0 %v4858, 48
    %v7513 = vpop.permute.xlu0 %7512
    %7514 = vrot.lane.b32.xlu0 %v4864, 48
    %v7515 = vpop.permute.xlu0 %7514
    %7516 = vrot.lane.b32.xlu0 %v4870, 48
    %v7517 = vpop.permute.xlu0 %7516
    %7518 = vrot.lane.b32.xlu0 %v4876, 48
    %v7519 = vpop.permute.xlu0 %7518
    %7520 = vrot.lane.b32.xlu0 %v4882, 48
    %v7521 = vpop.permute.xlu0 %7520
    %v7529 = vsel %vm1221, %v7504, 0
    %v7532 = vsel %vm1221, %v7505, 0
    %v7535 = vsel %vm1221, %v7506, 0
    %v7538 = vsel %vm1221, %v7507, 0
    %v7541 = vsel %vm1221, %v7508, 0
    %v7544 = vsel %vm1221, %v7509, 0
    %7546 = vmatprep.subr.mxu0 0.0
    %7547 = vmatpush1.msra.mxu0 0.0
    %7548 = vmatprep.subr.mxu0 0.0
    %7549 = vmatpush1.msra.mxu0 0.0
    %7550 = vmatprep.subr.mxu0 0.0
    %7551 = vmatpush1.msra.mxu0 0.0
    %7552 = vmatprep.subr.mxu0 0.0
    %7553 = vmatpush1.msra.mxu0 0.0
    %7554 = vmatprep.subr.mxu0 0.0
    %7555 = vmatpush1.msra.mxu0 0.0
    %7556 = vmatprep.subr.mxu0 0.0
    %7557 = vmatpush1.msra.mxu0 0.0
    %7558 = vmatprep.subr.mxu0 0.0
    %7559 = vmatpush1.msra.mxu0 0.0
    %7560 = vmatprep.subr.mxu0 0.0
    %7561 = vmatpush1.msra.mxu0 0.0
    %7562 = vmatprep.subr.mxu0 0.0
    %7563 = vmatpush1.msra.mxu0 0.0
    %7564 = vmatprep.subr.mxu0 0.0
    %7565 = vmatpush1.msra.mxu0 0.0
    %7566 = vmatprep.subr.mxu0 0.0
    %7567 = vmatpush1.msra.mxu0 %v7521
    %7568 = vmatprep.subr.mxu0 0.0
    %7569 = vmatpush1.msra.mxu0 %v7519
    %7570 = vmatprep.subr.mxu0 0.0
    %7571 = vmatpush1.msra.mxu0 %v7517
    %7572 = vmatprep.subr.mxu0 0.0
    %7573 = vmatpush1.msra.mxu0 %v7515
    %7574 = vmatprep.subr.mxu0 0.0
    %7575 = vmatpush1.msra.mxu0 %v7513
    %7576 = vmatprep.subr.mxu0 0.0
    %7577 = vmatpush1.msra.mxu0 %v7511
    %7578 = vmatprep.subr.mxu0 0.0
    %7579 = vmatpush2.msra.mxu0 0.0
    %7580 = vmatprep.subr.mxu0 0.0
    %7581 = vmatpush2.msra.mxu0 0.0
    %7582 = vmatprep.subr.mxu0 0.0
    %7583 = vmatpush2.msra.mxu0 0.0
    %7584 = vmatprep.subr.mxu0 0.0
    %7585 = vmatpush2.msra.mxu0 0.0
    %7586 = vmatprep.subr.mxu0 0.0
    %7587 = vmatpush2.msra.mxu0 0.0
    %7588 = vmatprep.subr.mxu0 0.0
    %7589 = vmatpush2.msra.mxu0 0.0
    %7590 = vmatprep.subr.mxu0 0.0
    %7591 = vmatpush2.msra.mxu0 0.0
    %7592 = vmatprep.subr.mxu0 0.0
    %7593 = vmatpush2.msra.mxu0 0.0
    %7594 = vmatprep.subr.mxu0 0.0
    %7595 = vmatpush2.msra.mxu0 0.0
    %7596 = vmatprep.subr.mxu0 0.0
    %7597 = vmatpush2.msra.mxu0 0.0
    %7598 = vmatprep.subr.mxu0 0.0
    %7599 = vmatpush2.msra.mxu0 0.0
    %7600 = vmatprep.subr.mxu0 0.0
    %7601 = vmatpush2.msra.mxu0 0.0
    %7602 = vmatprep.subr.mxu0 0.0
    %7603 = vmatpush2.msra.mxu0 0.0
    %7604 = vmatprep.subr.mxu0 0.0
    %7605 = vmatpush2.msra.mxu0 0.0
    %7606 = vmatprep.subr.mxu0 0.0
    %7607 = vmatpush2.msra.mxu0 0.0
    %7608 = vmatprep.subr.mxu0 0.0
    %7609 = vmatpush2.msra.mxu0 0.0
    %7610 = vmatprep.mubr.f32.mxu0 0.0
    %7611 = vmatmul.mubr.f32.gmra.mxu0 %v7529
    %v7612 = vpop.f32.mrf.mxu0
    %v7613 = vadd.f32 0.0, %v7612
    %v7614 = vpop.f32.mrf.mxu0
    %7615 = vmatprep.mubr.f32.mxu0 0.0
    %7616 = vmatmul.mubr.f32.gmra.mxu0 %v7532
    %v7617 = vpop.f32.mrf.mxu0
    %v7618 = vadd.f32 0.0, %v7617
    %v7619 = vpop.f32.mrf.mxu0
    %7620 = vmatprep.mubr.f32.mxu0 0.0
    %7621 = vmatmul.mubr.f32.gmra.mxu0 %v7535
    %v7622 = vpop.f32.mrf.mxu0
    %v7623 = vadd.f32 0.0, %v7622
    %v7624 = vpop.f32.mrf.mxu0
    %7625 = vmatprep.mubr.f32.mxu0 0.0
    %7626 = vmatmul.mubr.f32.gmra.mxu0 %v7538
    %v7627 = vpop.f32.mrf.mxu0
    %v7628 = vadd.f32 0.0, %v7627
    %v7629 = vpop.f32.mrf.mxu0
    %7630 = vmatprep.mubr.f32.mxu0 0.0
    %7631 = vmatmul.mubr.f32.gmra.mxu0 %v7541
    %v7632 = vpop.f32.mrf.mxu0
    %v7633 = vadd.f32 0.0, %v7632
    %v7634 = vpop.f32.mrf.mxu0
    %7635 = vmatprep.mubr.f32.mxu0 0.0
    %7636 = vmatmul.mubr.f32.gmra.mxu0 %v7544
    %v7637 = vpop.f32.mrf.mxu0
    %v7638 = vadd.f32 0.0, %v7637
    %v7639 = vpop.f32.mrf.mxu0
    %7640 = vdwg.mxu0
    %7647 = vrot.lane.b32.xlu0 %v7613, 16
    %v7648 = vpop.permute.xlu0 %7647
    %7649 = vrot.lane.b32.xlu0 %v7618, 16
    %v7650 = vpop.permute.xlu0 %7649
    %7651 = vrot.lane.b32.xlu0 %v7623, 16
    %v7652 = vpop.permute.xlu0 %7651
    %7653 = vrot.lane.b32.xlu0 %v7628, 16
    %v7654 = vpop.permute.xlu0 %7653
    %7655 = vrot.lane.b32.xlu0 %v7633, 16
    %v7656 = vpop.permute.xlu0 %7655
    %7657 = vrot.lane.b32.xlu0 %v7638, 16
    %v7658 = vpop.permute.xlu0 %7657
    %7665 = vst.msk [vmem:[#allocation2] sm:$0xff] %vm3282, %v7648
    %7666 = vst.msk [vmem:[#allocation2 + $0x8] sm:$0xff] %vm3282, %v7650
    %7667 = vst.msk [vmem:[#allocation2 + $0x10] sm:$0xff] %vm3282, %v7652
    %7668 = vst.msk [vmem:[#allocation2 + $0x18] sm:$0xff] %vm3282, %v7654
    %7669 = vst.msk [vmem:[#allocation2 + $0x20] sm:$0xff] %vm3282, %v7656
    %7670 = vst.msk [vmem:[#allocation2 + $0x28] sm:$0xff] %vm3282, %v7658
    %7671 = vrot.lane.b32.xlu0 %v4854, 80
    %v7672 = vpop.permute.xlu0 %7671
    %7673 = vrot.lane.b32.xlu0 %v4860, 80
    %v7674 = vpop.permute.xlu0 %7673
    %7675 = vrot.lane.b32.xlu0 %v4866, 80
    %v7676 = vpop.permute.xlu0 %7675
    %7677 = vrot.lane.b32.xlu0 %v4872, 80
    %v7678 = vpop.permute.xlu0 %7677
    %7679 = vrot.lane.b32.xlu0 %v4878, 80
    %v7680 = vpop.permute.xlu0 %7679
    %7681 = vrot.lane.b32.xlu0 %v4884, 80
    %v7682 = vpop.permute.xlu0 %7681
    %7689 = vmatprep.subr.mxu0 0.0
    %7690 = vmatpush1.msra.mxu0 0.0
    %7691 = vmatprep.subr.mxu0 0.0
    %7692 = vmatpush1.msra.mxu0 0.0
    %7693 = vmatprep.subr.mxu0 0.0
    %7694 = vmatpush1.msra.mxu0 0.0
    %7695 = vmatprep.subr.mxu0 0.0
    %7696 = vmatpush1.msra.mxu0 0.0
    %7697 = vmatprep.subr.mxu0 0.0
    %7698 = vmatpush1.msra.mxu0 0.0
    %7699 = vmatprep.subr.mxu0 0.0
    %7700 = vmatpush1.msra.mxu0 0.0
    %7701 = vmatprep.subr.mxu0 0.0
    %7702 = vmatpush1.msra.mxu0 0.0
    %7703 = vmatprep.subr.mxu0 0.0
    %7704 = vmatpush1.msra.mxu0 0.0
    %7705 = vmatprep.subr.mxu0 0.0
    %7706 = vmatpush1.msra.mxu0 0.0
    %7707 = vmatprep.subr.mxu0 0.0
    %7708 = vmatpush1.msra.mxu0 0.0
    %7709 = vmatprep.subr.mxu0 0.0
    %7710 = vmatpush1.msra.mxu0 %v7682
    %7711 = vmatprep.subr.mxu0 0.0
    %7712 = vmatpush1.msra.mxu0 %v7680
    %7713 = vmatprep.subr.mxu0 0.0
    %7714 = vmatpush1.msra.mxu0 %v7678
    %7715 = vmatprep.subr.mxu0 0.0
    %7716 = vmatpush1.msra.mxu0 %v7676
    %7717 = vmatprep.subr.mxu0 0.0
    %7718 = vmatpush1.msra.mxu0 %v7674
    %7719 = vmatprep.subr.mxu0 0.0
    %7720 = vmatpush1.msra.mxu0 %v7672
    %7721 = vmatprep.subr.mxu0 0.0
    %7722 = vmatpush2.msra.mxu0 0.0
    %7723 = vmatprep.subr.mxu0 0.0
    %7724 = vmatpush2.msra.mxu0 0.0
    %7725 = vmatprep.subr.mxu0 0.0
    %7726 = vmatpush2.msra.mxu0 0.0
    %7727 = vmatprep.subr.mxu0 0.0
    %7728 = vmatpush2.msra.mxu0 0.0
    %7729 = vmatprep.subr.mxu0 0.0
    %7730 = vmatpush2.msra.mxu0 0.0
    %7731 = vmatprep.subr.mxu0 0.0
    %7732 = vmatpush2.msra.mxu0 0.0
    %7733 = vmatprep.subr.mxu0 0.0
    %7734 = vmatpush2.msra.mxu0 0.0
    %7735 = vmatprep.subr.mxu0 0.0
    %7736 = vmatpush2.msra.mxu0 0.0
    %7737 = vmatprep.subr.mxu0 0.0
    %7738 = vmatpush2.msra.mxu0 0.0
    %7739 = vmatprep.subr.mxu0 0.0
    %7740 = vmatpush2.msra.mxu0 0.0
    %7741 = vmatprep.subr.mxu0 0.0
    %7742 = vmatpush2.msra.mxu0 0.0
    %7743 = vmatprep.subr.mxu0 0.0
    %7744 = vmatpush2.msra.mxu0 0.0
    %7745 = vmatprep.subr.mxu0 0.0
    %7746 = vmatpush2.msra.mxu0 0.0
    %7747 = vmatprep.subr.mxu0 0.0
    %7748 = vmatpush2.msra.mxu0 0.0
    %7749 = vmatprep.subr.mxu0 0.0
    %7750 = vmatpush2.msra.mxu0 0.0
    %7751 = vmatprep.subr.mxu0 0.0
    %7752 = vmatpush2.msra.mxu0 0.0
    %7753 = vmatprep.mubr.f32.mxu0 0.0
    %7754 = vmatmul.mubr.f32.gmra.mxu0 %v7529
    %v7755 = vpop.f32.mrf.mxu0
    %v7756 = vadd.f32 0.0, %v7755
    %v7757 = vpop.f32.mrf.mxu0
    %7758 = vmatprep.mubr.f32.mxu0 0.0
    %7759 = vmatmul.mubr.f32.gmra.mxu0 %v7532
    %v7760 = vpop.f32.mrf.mxu0
    %v7761 = vadd.f32 0.0, %v7760
    %v7762 = vpop.f32.mrf.mxu0
    %7763 = vmatprep.mubr.f32.mxu0 0.0
    %7764 = vmatmul.mubr.f32.gmra.mxu0 %v7535
    %v7765 = vpop.f32.mrf.mxu0
    %v7766 = vadd.f32 0.0, %v7765
    %v7767 = vpop.f32.mrf.mxu0
    %7768 = vmatprep.mubr.f32.mxu0 0.0
    %7769 = vmatmul.mubr.f32.gmra.mxu0 %v7538
    %v7770 = vpop.f32.mrf.mxu0
    %v7771 = vadd.f32 0.0, %v7770
    %v7772 = vpop.f32.mrf.mxu0
    %7773 = vmatprep.mubr.f32.mxu0 0.0
    %7774 = vmatmul.mubr.f32.gmra.mxu0 %v7541
    %v7775 = vpop.f32.mrf.mxu0
    %v7776 = vadd.f32 0.0, %v7775
    %v7777 = vpop.f32.mrf.mxu0
    %7778 = vmatprep.mubr.f32.mxu0 0.0
    %7779 = vmatmul.mubr.f32.gmra.mxu0 %v7544
    %v7780 = vpop.f32.mrf.mxu0
    %v7781 = vadd.f32 0.0, %v7780
    %v7782 = vpop.f32.mrf.mxu0
    %7783 = vdwg.mxu0
    %7790 = vrot.lane.b32.xlu0 %v7756, 48
    %v7791 = vpop.permute.xlu0 %7790
    %7792 = vrot.lane.b32.xlu0 %v7761, 48
    %v7793 = vpop.permute.xlu0 %7792
    %7794 = vrot.lane.b32.xlu0 %v7766, 48
    %v7795 = vpop.permute.xlu0 %7794
    %7796 = vrot.lane.b32.xlu0 %v7771, 48
    %v7797 = vpop.permute.xlu0 %7796
    %7798 = vrot.lane.b32.xlu0 %v7776, 48
    %v7799 = vpop.permute.xlu0 %7798
    %7800 = vrot.lane.b32.xlu0 %v7781, 48
    %v7801 = vpop.permute.xlu0 %7800
    %7808 = vst.msk [vmem:[#allocation2] sm:$0xff] %vm3426, %v7791
    %7809 = vst.msk [vmem:[#allocation2 + $0x8] sm:$0xff] %vm3426, %v7793
    %7810 = vst.msk [vmem:[#allocation2 + $0x10] sm:$0xff] %vm3426, %v7795
    %7811 = vst.msk [vmem:[#allocation2 + $0x18] sm:$0xff] %vm3426, %v7797
    %7812 = vst.msk [vmem:[#allocation2 + $0x20] sm:$0xff] %vm3426, %v7799
    %7813 = vst.msk [vmem:[#allocation2 + $0x28] sm:$0xff] %vm3426, %v7801
    %7814 = vrot.lane.b32.xlu0 %v4964, 104
    %v7815 = vpop.permute.xlu0 %7814
    %7816 = vrot.lane.b32.xlu0 %v4965, 104
    %v7817 = vpop.permute.xlu0 %7816
    %7818 = vrot.lane.b32.xlu0 %v4966, 104
    %v7819 = vpop.permute.xlu0 %7818
    %7820 = vrot.lane.b32.xlu0 %v4967, 104
    %v7821 = vpop.permute.xlu0 %7820
    %7822 = vrot.lane.b32.xlu0 %v4968, 104
    %v7823 = vpop.permute.xlu0 %7822
    %7824 = vrot.lane.b32.xlu0 %v4969, 104
    %v7825 = vpop.permute.xlu0 %7824
    %7826 = vrot.lane.b32.xlu0 %v5048, 72
    %v7827 = vpop.permute.xlu0 %7826
    %7828 = vrot.lane.b32.xlu0 %v5049, 72
    %v7829 = vpop.permute.xlu0 %7828
    %7830 = vrot.lane.b32.xlu0 %v5050, 72
    %v7831 = vpop.permute.xlu0 %7830
    %7832 = vrot.lane.b32.xlu0 %v5051, 72
    %v7833 = vpop.permute.xlu0 %7832
    %7834 = vrot.lane.b32.xlu0 %v5052, 72
    %v7835 = vpop.permute.xlu0 %7834
    %7836 = vrot.lane.b32.xlu0 %v5053, 72
    %v7837 = vpop.permute.xlu0 %7836
    %v7838 = vsel %vm684, %v7815, 0
    %v7840 = vsel %vm684, %v7817, 0
    %v7842 = vsel %vm684, %v7819, 0
    %v7844 = vsel %vm684, %v7821, 0
    %v7846 = vsel %vm684, %v7823, 0
    %v7848 = vsel %vm684, %v7825, 0
    %v7850 = vsel %vm684, %v7827, 0
    %v7852 = vsel %vm684, %v7829, 0
    %v7854 = vsel %vm684, %v7831, 0
    %v7856 = vsel %vm684, %v7833, 0
    %v7858 = vsel %vm684, %v7835, 0
    %v7860 = vsel %vm684, %v7837, 0
    %7862 = vmatprep.subr.mxu0 0.0
    %7863 = vmatpush1.xpose.msra.mxu0 0.0
    %7864 = vmatprep.subr.mxu0 0.0
    %7865 = vmatpush1.xpose.msra.mxu0 0.0
    %7866 = vmatprep.subr.mxu0 0.0
    %7867 = vmatpush1.xpose.msra.mxu0 0.0
    %7868 = vmatprep.subr.mxu0 0.0
    %7869 = vmatpush1.xpose.msra.mxu0 0.0
    %7870 = vmatprep.subr.mxu0 0.0
    %7871 = vmatpush1.xpose.msra.mxu0 0.0
    %7872 = vmatprep.subr.mxu0 0.0
    %7873 = vmatpush1.xpose.msra.mxu0 0.0
    %7874 = vmatprep.subr.mxu0 0.0
    %7875 = vmatpush1.xpose.msra.mxu0 0.0
    %7876 = vmatprep.subr.mxu0 0.0
    %7877 = vmatpush1.xpose.msra.mxu0 0.0
    %7878 = vmatprep.subr.mxu0 0.0
    %7879 = vmatpush1.xpose.msra.mxu0 0.0
    %7880 = vmatprep.subr.mxu0 0.0
    %7881 = vmatpush1.xpose.msra.mxu0 0.0
    %7882 = vmatprep.subr.mxu0 0.0
    %7883 = vmatpush1.xpose.msra.mxu0 %v7860
    %7884 = vmatprep.subr.mxu0 0.0
    %7885 = vmatpush1.xpose.msra.mxu0 %v7858
    %7886 = vmatprep.subr.mxu0 0.0
    %7887 = vmatpush1.xpose.msra.mxu0 %v7856
    %7888 = vmatprep.subr.mxu0 0.0
    %7889 = vmatpush1.xpose.msra.mxu0 %v7854
    %7890 = vmatprep.subr.mxu0 0.0
    %7891 = vmatpush1.xpose.msra.mxu0 %v7852
    %7892 = vmatprep.subr.mxu0 0.0
    %7893 = vmatpush1.xpose.msra.mxu0 %v7850
    %7894 = vmatprep.subr.mxu0 0.0
    %7895 = vmatpush2.xpose.msra.mxu0 0.0
    %7896 = vmatprep.subr.mxu0 0.0
    %7897 = vmatpush2.xpose.msra.mxu0 0.0
    %7898 = vmatprep.subr.mxu0 0.0
    %7899 = vmatpush2.xpose.msra.mxu0 0.0
    %7900 = vmatprep.subr.mxu0 0.0
    %7901 = vmatpush2.xpose.msra.mxu0 0.0
    %7902 = vmatprep.subr.mxu0 0.0
    %7903 = vmatpush2.xpose.msra.mxu0 0.0
    %7904 = vmatprep.subr.mxu0 0.0
    %7905 = vmatpush2.xpose.msra.mxu0 0.0
    %7906 = vmatprep.subr.mxu0 0.0
    %7907 = vmatpush2.xpose.msra.mxu0 0.0
    %7908 = vmatprep.subr.mxu0 0.0
    %7909 = vmatpush2.xpose.msra.mxu0 0.0
    %7910 = vmatprep.subr.mxu0 0.0
    %7911 = vmatpush2.xpose.msra.mxu0 0.0
    %7912 = vmatprep.subr.mxu0 0.0
    %7913 = vmatpush2.xpose.msra.mxu0 0.0
    %7914 = vmatprep.subr.mxu0 0.0
    %7915 = vmatpush2.xpose.msra.mxu0 0.0
    %7916 = vmatprep.subr.mxu0 0.0
    %7917 = vmatpush2.xpose.msra.mxu0 0.0
    %7918 = vmatprep.subr.mxu0 0.0
    %7919 = vmatpush2.xpose.msra.mxu0 0.0
    %7920 = vmatprep.subr.mxu0 0.0
    %7921 = vmatpush2.xpose.msra.mxu0 0.0
    %7922 = vmatprep.subr.mxu0 0.0
    %7923 = vmatpush2.xpose.msra.mxu0 0.0
    %7924 = vmatprep.subr.mxu0 0.0
    %7925 = vmatpush2.xpose.msra.mxu0 0.0
    %7926 = vmatprep.mubr.f32.mxu0 0.0
    %7927 = vmatmul.mubr.f32.gmra.mxu0 %v7838
    %v7928 = vpop.f32.mrf.mxu0
    %v7929 = vadd.f32 0.0, %v7928
    %v7930 = vpop.f32.mrf.mxu0
    %7931 = vmatprep.mubr.f32.mxu0 0.0
    %7932 = vmatmul.mubr.f32.gmra.mxu0 %v7840
    %v7933 = vpop.f32.mrf.mxu0
    %v7934 = vadd.f32 0.0, %v7933
    %v7935 = vpop.f32.mrf.mxu0
    %7936 = vmatprep.mubr.f32.mxu0 0.0
    %7937 = vmatmul.mubr.f32.gmra.mxu0 %v7842
    %v7938 = vpop.f32.mrf.mxu0
    %v7939 = vadd.f32 0.0, %v7938
    %v7940 = vpop.f32.mrf.mxu0
    %7941 = vmatprep.mubr.f32.mxu0 0.0
    %7942 = vmatmul.mubr.f32.gmra.mxu0 %v7844
    %v7943 = vpop.f32.mrf.mxu0
    %v7944 = vadd.f32 0.0, %v7943
    %v7945 = vpop.f32.mrf.mxu0
    %7946 = vmatprep.mubr.f32.mxu0 0.0
    %7947 = vmatmul.mubr.f32.gmra.mxu0 %v7846
    %v7948 = vpop.f32.mrf.mxu0
    %v7949 = vadd.f32 0.0, %v7948
    %v7950 = vpop.f32.mrf.mxu0
    %7951 = vmatprep.mubr.f32.mxu0 0.0
    %7952 = vmatmul.mubr.f32.gmra.mxu0 %v7848
    %v7953 = vpop.f32.mrf.mxu0
    %v7954 = vadd.f32 0.0, %v7953
    %v7955 = vpop.f32.mrf.mxu0
    %7956 = vdwg.mxu0
    %7957 = vrot.lane.b32.xlu0 %v4922, 104
    %v7958 = vpop.permute.xlu0 %7957
    %7959 = vrot.lane.b32.xlu0 %v4923, 104
    %v7960 = vpop.permute.xlu0 %7959
    %7961 = vrot.lane.b32.xlu0 %v4924, 104
    %v7962 = vpop.permute.xlu0 %7961
    %7963 = vrot.lane.b32.xlu0 %v4925, 104
    %v7964 = vpop.permute.xlu0 %7963
    %7965 = vrot.lane.b32.xlu0 %v4926, 104
    %v7966 = vpop.permute.xlu0 %7965
    %7967 = vrot.lane.b32.xlu0 %v4927, 104
    %v7968 = vpop.permute.xlu0 %7967
    %7969 = vrot.lane.b32.xlu0 %v5006, 72
    %v7970 = vpop.permute.xlu0 %7969
    %7971 = vrot.lane.b32.xlu0 %v5007, 72
    %v7972 = vpop.permute.xlu0 %7971
    %7973 = vrot.lane.b32.xlu0 %v5008, 72
    %v7974 = vpop.permute.xlu0 %7973
    %7975 = vrot.lane.b32.xlu0 %v5009, 72
    %v7976 = vpop.permute.xlu0 %7975
    %7977 = vrot.lane.b32.xlu0 %v5010, 72
    %v7978 = vpop.permute.xlu0 %7977
    %7979 = vrot.lane.b32.xlu0 %v5011, 72
    %v7980 = vpop.permute.xlu0 %7979
    %v7981 = vsel %vm684, %v7958, 0
    %v7983 = vsel %vm684, %v7960, 0
    %v7985 = vsel %vm684, %v7962, 0
    %v7987 = vsel %vm684, %v7964, 0
    %v7989 = vsel %vm684, %v7966, 0
    %v7991 = vsel %vm684, %v7968, 0
    %v7993 = vsel %vm684, %v7970, 0
    %v7995 = vsel %vm684, %v7972, 0
    %v7997 = vsel %vm684, %v7974, 0
    %v7999 = vsel %vm684, %v7976, 0
    %v8001 = vsel %vm684, %v7978, 0
    %v8003 = vsel %vm684, %v7980, 0
    %8005 = vmatprep.subr.mxu0 0.0
    %8006 = vmatpush1.xpose.msra.mxu0 0.0
    %8007 = vmatprep.subr.mxu0 0.0
    %8008 = vmatpush1.xpose.msra.mxu0 0.0
    %8009 = vmatprep.subr.mxu0 0.0
    %8010 = vmatpush1.xpose.msra.mxu0 0.0
    %8011 = vmatprep.subr.mxu0 0.0
    %8012 = vmatpush1.xpose.msra.mxu0 0.0
    %8013 = vmatprep.subr.mxu0 0.0
    %8014 = vmatpush1.xpose.msra.mxu0 0.0
    %8015 = vmatprep.subr.mxu0 0.0
    %8016 = vmatpush1.xpose.msra.mxu0 0.0
    %8017 = vmatprep.subr.mxu0 0.0
    %8018 = vmatpush1.xpose.msra.mxu0 0.0
    %8019 = vmatprep.subr.mxu0 0.0
    %8020 = vmatpush1.xpose.msra.mxu0 0.0
    %8021 = vmatprep.subr.mxu0 0.0
    %8022 = vmatpush1.xpose.msra.mxu0 0.0
    %8023 = vmatprep.subr.mxu0 0.0
    %8024 = vmatpush1.xpose.msra.mxu0 0.0
    %8025 = vmatprep.subr.mxu0 0.0
    %8026 = vmatpush1.xpose.msra.mxu0 %v8003
    %8027 = vmatprep.subr.mxu0 0.0
    %8028 = vmatpush1.xpose.msra.mxu0 %v8001
    %8029 = vmatprep.subr.mxu0 0.0
    %8030 = vmatpush1.xpose.msra.mxu0 %v7999
    %8031 = vmatprep.subr.mxu0 0.0
    %8032 = vmatpush1.xpose.msra.mxu0 %v7997
    %8033 = vmatprep.subr.mxu0 0.0
    %8034 = vmatpush1.xpose.msra.mxu0 %v7995
    %8035 = vmatprep.subr.mxu0 0.0
    %8036 = vmatpush1.xpose.msra.mxu0 %v7993
    %8037 = vmatprep.subr.mxu0 0.0
    %8038 = vmatpush2.xpose.msra.mxu0 0.0
    %8039 = vmatprep.subr.mxu0 0.0
    %8040 = vmatpush2.xpose.msra.mxu0 0.0
    %8041 = vmatprep.subr.mxu0 0.0
    %8042 = vmatpush2.xpose.msra.mxu0 0.0
    %8043 = vmatprep.subr.mxu0 0.0
    %8044 = vmatpush2.xpose.msra.mxu0 0.0
    %8045 = vmatprep.subr.mxu0 0.0
    %8046 = vmatpush2.xpose.msra.mxu0 0.0
    %8047 = vmatprep.subr.mxu0 0.0
    %8048 = vmatpush2.xpose.msra.mxu0 0.0
    %8049 = vmatprep.subr.mxu0 0.0
    %8050 = vmatpush2.xpose.msra.mxu0 0.0
    %8051 = vmatprep.subr.mxu0 0.0
    %8052 = vmatpush2.xpose.msra.mxu0 0.0
    %8053 = vmatprep.subr.mxu0 0.0
    %8054 = vmatpush2.xpose.msra.mxu0 0.0
    %8055 = vmatprep.subr.mxu0 0.0
    %8056 = vmatpush2.xpose.msra.mxu0 0.0
    %8057 = vmatprep.subr.mxu0 0.0
    %8058 = vmatpush2.xpose.msra.mxu0 0.0
    %8059 = vmatprep.subr.mxu0 0.0
    %8060 = vmatpush2.xpose.msra.mxu0 0.0
    %8061 = vmatprep.subr.mxu0 0.0
    %8062 = vmatpush2.xpose.msra.mxu0 0.0
    %8063 = vmatprep.subr.mxu0 0.0
    %8064 = vmatpush2.xpose.msra.mxu0 0.0
    %8065 = vmatprep.subr.mxu0 0.0
    %8066 = vmatpush2.xpose.msra.mxu0 0.0
    %8067 = vmatprep.subr.mxu0 0.0
    %8068 = vmatpush2.xpose.msra.mxu0 0.0
    %8069 = vmatprep.mubr.f32.mxu0 0.0
    %8070 = vmatmul.mubr.f32.gmra.mxu0 %v7981
    %v8071 = vpop.f32.mrf.mxu0
    %v8072 = vadd.f32 %v7929, %v8071
    %v8073 = vpop.f32.mrf.mxu0
    %8074 = vmatprep.mubr.f32.mxu0 0.0
    %8075 = vmatmul.mubr.f32.gmra.mxu0 %v7983
    %v8076 = vpop.f32.mrf.mxu0
    %v8077 = vadd.f32 %v7934, %v8076
    %v8078 = vpop.f32.mrf.mxu0
    %8079 = vmatprep.mubr.f32.mxu0 0.0
    %8080 = vmatmul.mubr.f32.gmra.mxu0 %v7985
    %v8081 = vpop.f32.mrf.mxu0
    %v8082 = vadd.f32 %v7939, %v8081
    %v8083 = vpop.f32.mrf.mxu0
    %8084 = vmatprep.mubr.f32.mxu0 0.0
    %8085 = vmatmul.mubr.f32.gmra.mxu0 %v7987
    %v8086 = vpop.f32.mrf.mxu0
    %v8087 = vadd.f32 %v7944, %v8086
    %v8088 = vpop.f32.mrf.mxu0
    %8089 = vmatprep.mubr.f32.mxu0 0.0
    %8090 = vmatmul.mubr.f32.gmra.mxu0 %v7989
    %v8091 = vpop.f32.mrf.mxu0
    %v8092 = vadd.f32 %v7949, %v8091
    %v8093 = vpop.f32.mrf.mxu0
    %8094 = vmatprep.mubr.f32.mxu0 0.0
    %8095 = vmatmul.mubr.f32.gmra.mxu0 %v7991
    %v8096 = vpop.f32.mrf.mxu0
    %v8097 = vadd.f32 %v7954, %v8096
    %v8098 = vpop.f32.mrf.mxu0
    %8099 = vdwg.mxu0
    %8100 = vmatprep.subr.mxu0 0.0
    %8101 = vmatpush1.xpose.msra.mxu0 0.0
    %8102 = vmatprep.subr.mxu0 0.0
    %8103 = vmatpush1.xpose.msra.mxu0 0.0
    %8104 = vmatprep.subr.mxu0 0.0
    %8105 = vmatpush1.xpose.msra.mxu0 0.0
    %8106 = vmatprep.subr.mxu0 0.0
    %8107 = vmatpush1.xpose.msra.mxu0 0.0
    %8108 = vmatprep.subr.mxu0 0.0
    %8109 = vmatpush1.xpose.msra.mxu0 0.0
    %8110 = vmatprep.subr.mxu0 0.0
    %8111 = vmatpush1.xpose.msra.mxu0 0.0
    %8112 = vmatprep.subr.mxu0 0.0
    %8113 = vmatpush1.xpose.msra.mxu0 0.0
    %8114 = vmatprep.subr.mxu0 0.0
    %8115 = vmatpush1.xpose.msra.mxu0 0.0
    %8116 = vmatprep.subr.mxu0 0.0
    %8117 = vmatpush1.xpose.msra.mxu0 0.0
    %8118 = vmatprep.subr.mxu0 0.0
    %8119 = vmatpush1.xpose.msra.mxu0 0.0
    %8120 = vmatprep.subr.mxu0 0.0
    %8121 = vmatpush1.xpose.msra.mxu0 %v8003
    %8122 = vmatprep.subr.mxu0 0.0
    %8123 = vmatpush1.xpose.msra.mxu0 %v8001
    %8124 = vmatprep.subr.mxu0 0.0
    %8125 = vmatpush1.xpose.msra.mxu0 %v7999
    %8126 = vmatprep.subr.mxu0 0.0
    %8127 = vmatpush1.xpose.msra.mxu0 %v7997
    %8128 = vmatprep.subr.mxu0 0.0
    %8129 = vmatpush1.xpose.msra.mxu0 %v7995
    %8130 = vmatprep.subr.mxu0 0.0
    %8131 = vmatpush1.xpose.msra.mxu0 %v7993
    %8132 = vmatprep.subr.mxu0 0.0
    %8133 = vmatpush2.xpose.msra.mxu0 0.0
    %8134 = vmatprep.subr.mxu0 0.0
    %8135 = vmatpush2.xpose.msra.mxu0 0.0
    %8136 = vmatprep.subr.mxu0 0.0
    %8137 = vmatpush2.xpose.msra.mxu0 0.0
    %8138 = vmatprep.subr.mxu0 0.0
    %8139 = vmatpush2.xpose.msra.mxu0 0.0
    %8140 = vmatprep.subr.mxu0 0.0
    %8141 = vmatpush2.xpose.msra.mxu0 0.0
    %8142 = vmatprep.subr.mxu0 0.0
    %8143 = vmatpush2.xpose.msra.mxu0 0.0
    %8144 = vmatprep.subr.mxu0 0.0
    %8145 = vmatpush2.xpose.msra.mxu0 0.0
    %8146 = vmatprep.subr.mxu0 0.0
    %8147 = vmatpush2.xpose.msra.mxu0 0.0
    %8148 = vmatprep.subr.mxu0 0.0
    %8149 = vmatpush2.xpose.msra.mxu0 0.0
    %8150 = vmatprep.subr.mxu0 0.0
    %8151 = vmatpush2.xpose.msra.mxu0 0.0
    %8152 = vmatprep.subr.mxu0 0.0
    %8153 = vmatpush2.xpose.msra.mxu0 0.0
    %8154 = vmatprep.subr.mxu0 0.0
    %8155 = vmatpush2.xpose.msra.mxu0 0.0
    %8156 = vmatprep.subr.mxu0 0.0
    %8157 = vmatpush2.xpose.msra.mxu0 0.0
    %8158 = vmatprep.subr.mxu0 0.0
    %8159 = vmatpush2.xpose.msra.mxu0 0.0
    %8160 = vmatprep.subr.mxu0 0.0
    %8161 = vmatpush2.xpose.msra.mxu0 0.0
    %8162 = vmatprep.subr.mxu0 0.0
    %8163 = vmatpush2.xpose.msra.mxu0 0.0
    %8164 = vmatprep.mubr.f32.mxu0 0.0
    %8165 = vmatmul.mubr.f32.gmra.mxu0 %v7838
    %v8166 = vpop.f32.mrf.mxu0
    %v8167 = vadd.f32 0.0, %v8166
    %v8168 = vpop.f32.mrf.mxu0
    %8169 = vmatprep.mubr.f32.mxu0 0.0
    %8170 = vmatmul.mubr.f32.gmra.mxu0 %v7840
    %v8171 = vpop.f32.mrf.mxu0
    %v8172 = vadd.f32 0.0, %v8171
    %v8173 = vpop.f32.mrf.mxu0
    %8174 = vmatprep.mubr.f32.mxu0 0.0
    %8175 = vmatmul.mubr.f32.gmra.mxu0 %v7842
    %v8176 = vpop.f32.mrf.mxu0
    %v8177 = vadd.f32 0.0, %v8176
    %v8178 = vpop.f32.mrf.mxu0
    %8179 = vmatprep.mubr.f32.mxu0 0.0
    %8180 = vmatmul.mubr.f32.gmra.mxu0 %v7844
    %v8181 = vpop.f32.mrf.mxu0
    %v8182 = vadd.f32 0.0, %v8181
    %v8183 = vpop.f32.mrf.mxu0
    %8184 = vmatprep.mubr.f32.mxu0 0.0
    %8185 = vmatmul.mubr.f32.gmra.mxu0 %v7846
    %v8186 = vpop.f32.mrf.mxu0
    %v8187 = vadd.f32 0.0, %v8186
    %v8188 = vpop.f32.mrf.mxu0
    %8189 = vmatprep.mubr.f32.mxu0 0.0
    %8190 = vmatmul.mubr.f32.gmra.mxu0 %v7848
    %v8191 = vpop.f32.mrf.mxu0
    %v8192 = vadd.f32 0.0, %v8191
    %v8193 = vpop.f32.mrf.mxu0
    %8194 = vdwg.mxu0
    %8195 = vmatprep.subr.mxu0 0.0
    %8196 = vmatpush1.xpose.msra.mxu0 0.0
    %8197 = vmatprep.subr.mxu0 0.0
    %8198 = vmatpush1.xpose.msra.mxu0 0.0
    %8199 = vmatprep.subr.mxu0 0.0
    %8200 = vmatpush1.xpose.msra.mxu0 0.0
    %8201 = vmatprep.subr.mxu0 0.0
    %8202 = vmatpush1.xpose.msra.mxu0 0.0
    %8203 = vmatprep.subr.mxu0 0.0
    %8204 = vmatpush1.xpose.msra.mxu0 0.0
    %8205 = vmatprep.subr.mxu0 0.0
    %8206 = vmatpush1.xpose.msra.mxu0 0.0
    %8207 = vmatprep.subr.mxu0 0.0
    %8208 = vmatpush1.xpose.msra.mxu0 0.0
    %8209 = vmatprep.subr.mxu0 0.0
    %8210 = vmatpush1.xpose.msra.mxu0 0.0
    %8211 = vmatprep.subr.mxu0 0.0
    %8212 = vmatpush1.xpose.msra.mxu0 0.0
    %8213 = vmatprep.subr.mxu0 0.0
    %8214 = vmatpush1.xpose.msra.mxu0 0.0
    %8215 = vmatprep.subr.mxu0 0.0
    %8216 = vmatpush1.xpose.msra.mxu0 %v7860
    %8217 = vmatprep.subr.mxu0 0.0
    %8218 = vmatpush1.xpose.msra.mxu0 %v7858
    %8219 = vmatprep.subr.mxu0 0.0
    %8220 = vmatpush1.xpose.msra.mxu0 %v7856
    %8221 = vmatprep.subr.mxu0 0.0
    %8222 = vmatpush1.xpose.msra.mxu0 %v7854
    %8223 = vmatprep.subr.mxu0 0.0
    %8224 = vmatpush1.xpose.msra.mxu0 %v7852
    %8225 = vmatprep.subr.mxu0 0.0
    %8226 = vmatpush1.xpose.msra.mxu0 %v7850
    %8227 = vmatprep.subr.mxu0 0.0
    %8228 = vmatpush2.xpose.msra.mxu0 0.0
    %8229 = vmatprep.subr.mxu0 0.0
    %8230 = vmatpush2.xpose.msra.mxu0 0.0
    %8231 = vmatprep.subr.mxu0 0.0
    %8232 = vmatpush2.xpose.msra.mxu0 0.0
    %8233 = vmatprep.subr.mxu0 0.0
    %8234 = vmatpush2.xpose.msra.mxu0 0.0
    %8235 = vmatprep.subr.mxu0 0.0
    %8236 = vmatpush2.xpose.msra.mxu0 0.0
    %8237 = vmatprep.subr.mxu0 0.0
    %8238 = vmatpush2.xpose.msra.mxu0 0.0
    %8239 = vmatprep.subr.mxu0 0.0
    %8240 = vmatpush2.xpose.msra.mxu0 0.0
    %8241 = vmatprep.subr.mxu0 0.0
    %8242 = vmatpush2.xpose.msra.mxu0 0.0
    %8243 = vmatprep.subr.mxu0 0.0
    %8244 = vmatpush2.xpose.msra.mxu0 0.0
    %8245 = vmatprep.subr.mxu0 0.0
    %8246 = vmatpush2.xpose.msra.mxu0 0.0
    %8247 = vmatprep.subr.mxu0 0.0
    %8248 = vmatpush2.xpose.msra.mxu0 0.0
    %8249 = vmatprep.subr.mxu0 0.0
    %8250 = vmatpush2.xpose.msra.mxu0 0.0
    %8251 = vmatprep.subr.mxu0 0.0
    %8252 = vmatpush2.xpose.msra.mxu0 0.0
    %8253 = vmatprep.subr.mxu0 0.0
    %8254 = vmatpush2.xpose.msra.mxu0 0.0
    %8255 = vmatprep.subr.mxu0 0.0
    %8256 = vmatpush2.xpose.msra.mxu0 0.0
    %8257 = vmatprep.subr.mxu0 0.0
    %8258 = vmatpush2.xpose.msra.mxu0 0.0
    %8259 = vmatprep.mubr.f32.mxu0 0.0
    %8260 = vmatmul.mubr.f32.gmra.mxu0 %v7981
    %v8261 = vpop.f32.mrf.mxu0
    %v8262 = vadd.f32 0.0, %v8261
    %v8263 = vpop.f32.mrf.mxu0
    %8264 = vmatprep.mubr.f32.mxu0 0.0
    %8265 = vmatmul.mubr.f32.gmra.mxu0 %v7983
    %v8266 = vpop.f32.mrf.mxu0
    %v8267 = vadd.f32 0.0, %v8266
    %v8268 = vpop.f32.mrf.mxu0
    %8269 = vmatprep.mubr.f32.mxu0 0.0
    %8270 = vmatmul.mubr.f32.gmra.mxu0 %v7985
    %v8271 = vpop.f32.mrf.mxu0
    %v8272 = vadd.f32 0.0, %v8271
    %v8273 = vpop.f32.mrf.mxu0
    %8274 = vmatprep.mubr.f32.mxu0 0.0
    %8275 = vmatmul.mubr.f32.gmra.mxu0 %v7987
    %v8276 = vpop.f32.mrf.mxu0
    %v8277 = vadd.f32 0.0, %v8276
    %v8278 = vpop.f32.mrf.mxu0
    %8279 = vmatprep.mubr.f32.mxu0 0.0
    %8280 = vmatmul.mubr.f32.gmra.mxu0 %v7989
    %v8281 = vpop.f32.mrf.mxu0
    %v8282 = vadd.f32 0.0, %v8281
    %v8283 = vpop.f32.mrf.mxu0
    %8284 = vmatprep.mubr.f32.mxu0 0.0
    %8285 = vmatmul.mubr.f32.gmra.mxu0 %v7991
    %v8286 = vpop.f32.mrf.mxu0
    %v8287 = vadd.f32 0.0, %v8286
    %v8288 = vpop.f32.mrf.mxu0
    %8289 = vdwg.mxu0
    %v8290 = vsub.f32 %v8167, %v8262
    %v8291 = vsub.f32 %v8172, %v8267
    %v8292 = vsub.f32 %v8177, %v8272
    %v8293 = vsub.f32 %v8182, %v8277
    %v8294 = vsub.f32 %v8187, %v8282
    %v8295 = vsub.f32 %v8192, %v8287
    %v8296 = vmul.f32 %v8072, %v8072
    %v8297 = vmul.f32 %v8077, %v8077
    %v8298 = vmul.f32 %v8082, %v8082
    %v8299 = vmul.f32 %v8087, %v8087
    %v8300 = vmul.f32 %v8092, %v8092
    %v8301 = vmul.f32 %v8097, %v8097
    %v8302 = vmul.f32 %v8290, %v8290
    %v8303 = vmul.f32 %v8291, %v8291
    %v8304 = vmul.f32 %v8292, %v8292
    %v8305 = vmul.f32 %v8293, %v8293
    %v8306 = vmul.f32 %v8294, %v8294
    %v8307 = vmul.f32 %v8295, %v8295
    %v8308 = vadd.f32 %v8296, %v8302
    %v8309 = vadd.f32 %v8297, %v8303
    %v8310 = vadd.f32 %v8298, %v8304
    %v8311 = vadd.f32 %v8299, %v8305
    %v8312 = vadd.f32 %v8300, %v8306
    %v8313 = vadd.f32 %v8301, %v8307
    %v8314 = vrsqrt.pop %v8308
    %v8315 = vmul.f32 %v8308, %v8314
    %vm8316 = vcmp.eq.f32.partialorder %v8308, inf
    %v8317 = vsel %vm8316, %v8308, %v8315
    %vm8318 = vcmp.eq.f32.partialorder %v8308, 0.0
    %v8319 = vand.u32 %v8308, 2147483648
    %v8320 = vsel %vm8318, %v8319, %v8317
    %v8321 = vrsqrt.pop %v8309
    %v8322 = vmul.f32 %v8309, %v8321
    %vm8323 = vcmp.eq.f32.partialorder %v8309, inf
    %v8324 = vsel %vm8323, %v8309, %v8322
    %vm8325 = vcmp.eq.f32.partialorder %v8309, 0.0
    %v8326 = vand.u32 %v8309, 2147483648
    %v8327 = vsel %vm8325, %v8326, %v8324
    %v8328 = vrsqrt.pop %v8310
    %v8329 = vmul.f32 %v8310, %v8328
    %vm8330 = vcmp.eq.f32.partialorder %v8310, inf
    %v8331 = vsel %vm8330, %v8310, %v8329
    %vm8332 = vcmp.eq.f32.partialorder %v8310, 0.0
    %v8333 = vand.u32 %v8310, 2147483648
    %v8334 = vsel %vm8332, %v8333, %v8331
    %v8335 = vrsqrt.pop %v8311
    %v8336 = vmul.f32 %v8311, %v8335
    %vm8337 = vcmp.eq.f32.partialorder %v8311, inf
    %v8338 = vsel %vm8337, %v8311, %v8336
    %vm8339 = vcmp.eq.f32.partialorder %v8311, 0.0
    %v8340 = vand.u32 %v8311, 2147483648
    %v8341 = vsel %vm8339, %v8340, %v8338
    %v8342 = vrsqrt.pop %v8312
    %v8343 = vmul.f32 %v8312, %v8342
    %vm8344 = vcmp.eq.f32.partialorder %v8312, inf
    %v8345 = vsel %vm8344, %v8312, %v8343
    %vm8346 = vcmp.eq.f32.partialorder %v8312, 0.0
    %v8347 = vand.u32 %v8312, 2147483648
    %v8348 = vsel %vm8346, %v8347, %v8345
    %v8349 = vrsqrt.pop %v8313
    %v8350 = vmul.f32 %v8313, %v8349
    %vm8351 = vcmp.eq.f32.partialorder %v8313, inf
    %v8352 = vsel %vm8351, %v8313, %v8350
    %vm8353 = vcmp.eq.f32.partialorder %v8313, 0.0
    %v8354 = vand.u32 %v8313, 2147483648
    %v8355 = vsel %vm8353, %v8354, %v8352
    %v8356 = vmul.f32 %v8320, 0.35355338
    %v8357 = vmul.f32 %v8327, 0.35355338
    %v8358 = vmul.f32 %v8334, 0.35355338
    %v8359 = vmul.f32 %v8341, 0.35355338
    %v8360 = vmul.f32 %v8348, 0.35355338
    %v8361 = vmul.f32 %v8355, 0.35355338
    %v8362 = vadd.f32 %v8356, %v260
    %v8363 = vadd.f32 %v8357, %v261
    %v8364 = vadd.f32 %v8358, %v262
    %v8365 = vadd.f32 %v8359, %v263
    %v8366 = vadd.f32 %v8360, %v264
    %v8367 = vadd.f32 %v8361, %v265
    %v8368 = vsel %vm1221, %v8362, -inf
    %8369 = vmax.xlane.f32.xlu0 %v8368
    %v8370 = vpop.xlane.xlu0 %8369
    %v8371 = vsel %vm1221, %v8363, -inf
    %8372 = vmax.xlane.f32.xlu0 %v8371
    %v8373 = vpop.xlane.xlu0 %8372
    %v8374 = vsel %vm1221, %v8364, -inf
    %8375 = vmax.xlane.f32.xlu0 %v8374
    %v8376 = vpop.xlane.xlu0 %8375
    %v8377 = vsel %vm1221, %v8365, -inf
    %8378 = vmax.xlane.f32.xlu0 %v8377
    %v8379 = vpop.xlane.xlu0 %8378
    %v8380 = vsel %vm1221, %v8366, -inf
    %8381 = vmax.xlane.f32.xlu0 %v8380
    %v8382 = vpop.xlane.xlu0 %8381
    %v8383 = vsel %vm1221, %v8367, -inf
    %8384 = vmax.xlane.f32.xlu0 %v8383
    %v8385 = vpop.xlane.xlu0 %8384
    %v8386 = vsub.f32 %v8362, %v8370
    %v8387 = vsub.f32 %v8363, %v8373
    %v8388 = vsub.f32 %v8364, %v8376
    %v8389 = vsub.f32 %v8365, %v8379
    %v8390 = vsub.f32 %v8366, %v8382
    %v8391 = vsub.f32 %v8367, %v8385
    %v8392 = vmul.f32 %v8386, 1.442695
    %v8393 = vpow.pop %v8392
    %v8394 = vmul.f32 %v8387, 1.442695
    %v8395 = vpow.pop %v8394
    %v8396 = vmul.f32 %v8388, 1.442695
    %v8397 = vpow.pop %v8396
    %v8398 = vmul.f32 %v8389, 1.442695
    %v8399 = vpow.pop %v8398
    %v8400 = vmul.f32 %v8390, 1.442695
    %v8401 = vpow.pop %v8400
    %v8402 = vmul.f32 %v8391, 1.442695
    %v8403 = vpow.pop %v8402
    %v8404 = vsel %vm1221, %v8393, 0.0
    %8405 = vadd.xlane.f32.xlu0 %v8404
    %v8406 = vpop.xlane.xlu0 %8405
    %v8407 = vsel %vm1221, %v8395, 0.0
    %8408 = vadd.xlane.f32.xlu0 %v8407
    %v8409 = vpop.xlane.xlu0 %8408
    %v8410 = vsel %vm1221, %v8397, 0.0
    %8411 = vadd.xlane.f32.xlu0 %v8410
    %v8412 = vpop.xlane.xlu0 %8411
    %v8413 = vsel %vm1221, %v8399, 0.0
    %8414 = vadd.xlane.f32.xlu0 %v8413
    %v8415 = vpop.xlane.xlu0 %8414
    %v8416 = vsel %vm1221, %v8401, 0.0
    %8417 = vadd.xlane.f32.xlu0 %v8416
    %v8418 = vpop.xlane.xlu0 %8417
    %v8419 = vsel %vm1221, %v8403, 0.0
    %8420 = vadd.xlane.f32.xlu0 %v8419
    %v8421 = vpop.xlane.xlu0 %8420
    %v8422 = vrcp.pop %v8406
    %v8423 = vrcp.pop %v8409
    %v8424 = vrcp.pop %v8412
    %v8425 = vrcp.pop %v8415
    %v8426 = vrcp.pop %v8418
    %v8427 = vrcp.pop %v8421
    %v8428 = vmul.f32 %v8393, %v8422
    %v8429 = vmul.f32 %v8395, %v8423
    %v8430 = vmul.f32 %v8397, %v8424
    %v8431 = vmul.f32 %v8399, %v8425
    %v8432 = vmul.f32 %v8401, %v8426
    %v8433 = vmul.f32 %v8403, %v8427
    %8434 = vrot.lane.b32.xlu0 %v4852, 40
    %v8435 = vpop.permute.xlu0 %8434
    %8436 = vrot.lane.b32.xlu0 %v4858, 40
    %v8437 = vpop.permute.xlu0 %8436
    %8438 = vrot.lane.b32.xlu0 %v4864, 40
    %v8439 = vpop.permute.xlu0 %8438
    %8440 = vrot.lane.b32.xlu0 %v4870, 40
    %v8441 = vpop.permute.xlu0 %8440
    %8442 = vrot.lane.b32.xlu0 %v4876, 40
    %v8443 = vpop.permute.xlu0 %8442
    %8444 = vrot.lane.b32.xlu0 %v4882, 40
    %v8445 = vpop.permute.xlu0 %8444
    %v8453 = vsel %vm1221, %v8428, 0
    %v8456 = vsel %vm1221, %v8429, 0
    %v8459 = vsel %vm1221, %v8430, 0
    %v8462 = vsel %vm1221, %v8431, 0
    %v8465 = vsel %vm1221, %v8432, 0
    %v8468 = vsel %vm1221, %v8433, 0
    %8470 = vmatprep.subr.mxu0 0.0
    %8471 = vmatpush1.msra.mxu0 0.0
    %8472 = vmatprep.subr.mxu0 0.0
    %8473 = vmatpush1.msra.mxu0 0.0
    %8474 = vmatprep.subr.mxu0 0.0
    %8475 = vmatpush1.msra.mxu0 0.0
    %8476 = vmatprep.subr.mxu0 0.0
    %8477 = vmatpush1.msra.mxu0 0.0
    %8478 = vmatprep.subr.mxu0 0.0
    %8479 = vmatpush1.msra.mxu0 0.0
    %8480 = vmatprep.subr.mxu0 0.0
    %8481 = vmatpush1.msra.mxu0 0.0
    %8482 = vmatprep.subr.mxu0 0.0
    %8483 = vmatpush1.msra.mxu0 0.0
    %8484 = vmatprep.subr.mxu0 0.0
    %8485 = vmatpush1.msra.mxu0 0.0
    %8486 = vmatprep.subr.mxu0 0.0
    %8487 = vmatpush1.msra.mxu0 0.0
    %8488 = vmatprep.subr.mxu0 0.0
    %8489 = vmatpush1.msra.mxu0 0.0
    %8490 = vmatprep.subr.mxu0 0.0
    %8491 = vmatpush1.msra.mxu0 %v8445
    %8492 = vmatprep.subr.mxu0 0.0
    %8493 = vmatpush1.msra.mxu0 %v8443
    %8494 = vmatprep.subr.mxu0 0.0
    %8495 = vmatpush1.msra.mxu0 %v8441
    %8496 = vmatprep.subr.mxu0 0.0
    %8497 = vmatpush1.msra.mxu0 %v8439
    %8498 = vmatprep.subr.mxu0 0.0
    %8499 = vmatpush1.msra.mxu0 %v8437
    %8500 = vmatprep.subr.mxu0 0.0
    %8501 = vmatpush1.msra.mxu0 %v8435
    %8502 = vmatprep.subr.mxu0 0.0
    %8503 = vmatpush2.msra.mxu0 0.0
    %8504 = vmatprep.subr.mxu0 0.0
    %8505 = vmatpush2.msra.mxu0 0.0
    %8506 = vmatprep.subr.mxu0 0.0
    %8507 = vmatpush2.msra.mxu0 0.0
    %8508 = vmatprep.subr.mxu0 0.0
    %8509 = vmatpush2.msra.mxu0 0.0
    %8510 = vmatprep.subr.mxu0 0.0
    %8511 = vmatpush2.msra.mxu0 0.0
    %8512 = vmatprep.subr.mxu0 0.0
    %8513 = vmatpush2.msra.mxu0 0.0
    %8514 = vmatprep.subr.mxu0 0.0
    %8515 = vmatpush2.msra.mxu0 0.0
    %8516 = vmatprep.subr.mxu0 0.0
    %8517 = vmatpush2.msra.mxu0 0.0
    %8518 = vmatprep.subr.mxu0 0.0
    %8519 = vmatpush2.msra.mxu0 0.0
    %8520 = vmatprep.subr.mxu0 0.0
    %8521 = vmatpush2.msra.mxu0 0.0
    %8522 = vmatprep.subr.mxu0 0.0
    %8523 = vmatpush2.msra.mxu0 0.0
    %8524 = vmatprep.subr.mxu0 0.0
    %8525 = vmatpush2.msra.mxu0 0.0
    %8526 = vmatprep.subr.mxu0 0.0
    %8527 = vmatpush2.msra.mxu0 0.0
    %8528 = vmatprep.subr.mxu0 0.0
    %8529 = vmatpush2.msra.mxu0 0.0
    %8530 = vmatprep.subr.mxu0 0.0
    %8531 = vmatpush2.msra.mxu0 0.0
    %8532 = vmatprep.subr.mxu0 0.0
    %8533 = vmatpush2.msra.mxu0 0.0
    %8534 = vmatprep.mubr.f32.mxu0 0.0
    %8535 = vmatmul.mubr.f32.gmra.mxu0 %v8453
    %v8536 = vpop.f32.mrf.mxu0
    %v8537 = vadd.f32 0.0, %v8536
    %v8538 = vpop.f32.mrf.mxu0
    %8539 = vmatprep.mubr.f32.mxu0 0.0
    %8540 = vmatmul.mubr.f32.gmra.mxu0 %v8456
    %v8541 = vpop.f32.mrf.mxu0
    %v8542 = vadd.f32 0.0, %v8541
    %v8543 = vpop.f32.mrf.mxu0
    %8544 = vmatprep.mubr.f32.mxu0 0.0
    %8545 = vmatmul.mubr.f32.gmra.mxu0 %v8459
    %v8546 = vpop.f32.mrf.mxu0
    %v8547 = vadd.f32 0.0, %v8546
    %v8548 = vpop.f32.mrf.mxu0
    %8549 = vmatprep.mubr.f32.mxu0 0.0
    %8550 = vmatmul.mubr.f32.gmra.mxu0 %v8462
    %v8551 = vpop.f32.mrf.mxu0
    %v8552 = vadd.f32 0.0, %v8551
    %v8553 = vpop.f32.mrf.mxu0
    %8554 = vmatprep.mubr.f32.mxu0 0.0
    %8555 = vmatmul.mubr.f32.gmra.mxu0 %v8465
    %v8556 = vpop.f32.mrf.mxu0
    %v8557 = vadd.f32 0.0, %v8556
    %v8558 = vpop.f32.mrf.mxu0
    %8559 = vmatprep.mubr.f32.mxu0 0.0
    %8560 = vmatmul.mubr.f32.gmra.mxu0 %v8468
    %v8561 = vpop.f32.mrf.mxu0
    %v8562 = vadd.f32 0.0, %v8561
    %v8563 = vpop.f32.mrf.mxu0
    %8564 = vdwg.mxu0
    %8571 = vrot.lane.b32.xlu0 %v8537, 24
    %v8572 = vpop.permute.xlu0 %8571
    %8573 = vrot.lane.b32.xlu0 %v8542, 24
    %v8574 = vpop.permute.xlu0 %8573
    %8575 = vrot.lane.b32.xlu0 %v8547, 24
    %v8576 = vpop.permute.xlu0 %8575
    %8577 = vrot.lane.b32.xlu0 %v8552, 24
    %v8578 = vpop.permute.xlu0 %8577
    %8579 = vrot.lane.b32.xlu0 %v8557, 24
    %v8580 = vpop.permute.xlu0 %8579
    %8581 = vrot.lane.b32.xlu0 %v8562, 24
    %v8582 = vpop.permute.xlu0 %8581
    %8589 = vst.msk [vmem:[#allocation2] sm:$0xff] %vm4208, %v8572
    %8590 = vst.msk [vmem:[#allocation2 + $0x8] sm:$0xff] %vm4208, %v8574
    %8591 = vst.msk [vmem:[#allocation2 + $0x10] sm:$0xff] %vm4208, %v8576
    %8592 = vst.msk [vmem:[#allocation2 + $0x18] sm:$0xff] %vm4208, %v8578
    %8593 = vst.msk [vmem:[#allocation2 + $0x20] sm:$0xff] %vm4208, %v8580
    %8594 = vst.msk [vmem:[#allocation2 + $0x28] sm:$0xff] %vm4208, %v8582
    %8595 = vrot.lane.b32.xlu0 %v4854, 72
    %v8596 = vpop.permute.xlu0 %8595
    %8597 = vrot.lane.b32.xlu0 %v4860, 72
    %v8598 = vpop.permute.xlu0 %8597
    %8599 = vrot.lane.b32.xlu0 %v4866, 72
    %v8600 = vpop.permute.xlu0 %8599
    %8601 = vrot.lane.b32.xlu0 %v4872, 72
    %v8602 = vpop.permute.xlu0 %8601
    %8603 = vrot.lane.b32.xlu0 %v4878, 72
    %v8604 = vpop.permute.xlu0 %8603
    %8605 = vrot.lane.b32.xlu0 %v4884, 72
    %v8606 = vpop.permute.xlu0 %8605
    %8613 = vmatprep.subr.mxu0 0.0
    %8614 = vmatpush1.msra.mxu0 0.0
    %8615 = vmatprep.subr.mxu0 0.0
    %8616 = vmatpush1.msra.mxu0 0.0
    %8617 = vmatprep.subr.mxu0 0.0
    %8618 = vmatpush1.msra.mxu0 0.0
    %8619 = vmatprep.subr.mxu0 0.0
    %8620 = vmatpush1.msra.mxu0 0.0
    %8621 = vmatprep.subr.mxu0 0.0
    %8622 = vmatpush1.msra.mxu0 0.0
    %8623 = vmatprep.subr.mxu0 0.0
    %8624 = vmatpush1.msra.mxu0 0.0
    %8625 = vmatprep.subr.mxu0 0.0
    %8626 = vmatpush1.msra.mxu0 0.0
    %8627 = vmatprep.subr.mxu0 0.0
    %8628 = vmatpush1.msra.mxu0 0.0
    %8629 = vmatprep.subr.mxu0 0.0
    %8630 = vmatpush1.msra.mxu0 0.0
    %8631 = vmatprep.subr.mxu0 0.0
    %8632 = vmatpush1.msra.mxu0 0.0
    %8633 = vmatprep.subr.mxu0 0.0
    %8634 = vmatpush1.msra.mxu0 %v8606
    %8635 = vmatprep.subr.mxu0 0.0
    %8636 = vmatpush1.msra.mxu0 %v8604
    %8637 = vmatprep.subr.mxu0 0.0
    %8638 = vmatpush1.msra.mxu0 %v8602
    %8639 = vmatprep.subr.mxu0 0.0
    %8640 = vmatpush1.msra.mxu0 %v8600
    %8641 = vmatprep.subr.mxu0 0.0
    %8642 = vmatpush1.msra.mxu0 %v8598
    %8643 = vmatprep.subr.mxu0 0.0
    %8644 = vmatpush1.msra.mxu0 %v8596
    %8645 = vmatprep.subr.mxu0 0.0
    %8646 = vmatpush2.msra.mxu0 0.0
    %8647 = vmatprep.subr.mxu0 0.0
    %8648 = vmatpush2.msra.mxu0 0.0
    %8649 = vmatprep.subr.mxu0 0.0
    %8650 = vmatpush2.msra.mxu0 0.0
    %8651 = vmatprep.subr.mxu0 0.0
    %8652 = vmatpush2.msra.mxu0 0.0
    %8653 = vmatprep.subr.mxu0 0.0
    %8654 = vmatpush2.msra.mxu0 0.0
    %8655 = vmatprep.subr.mxu0 0.0
    %8656 = vmatpush2.msra.mxu0 0.0
    %8657 = vmatprep.subr.mxu0 0.0
    %8658 = vmatpush2.msra.mxu0 0.0
    %8659 = vmatprep.subr.mxu0 0.0
    %8660 = vmatpush2.msra.mxu0 0.0
    %8661 = vmatprep.subr.mxu0 0.0
    %8662 = vmatpush2.msra.mxu0 0.0
    %8663 = vmatprep.subr.mxu0 0.0
    %8664 = vmatpush2.msra.mxu0 0.0
    %8665 = vmatprep.subr.mxu0 0.0
    %8666 = vmatpush2.msra.mxu0 0.0
    %8667 = vmatprep.subr.mxu0 0.0
    %8668 = vmatpush2.msra.mxu0 0.0
    %8669 = vmatprep.subr.mxu0 0.0
    %8670 = vmatpush2.msra.mxu0 0.0
    %8671 = vmatprep.subr.mxu0 0.0
    %8672 = vmatpush2.msra.mxu0 0.0
    %8673 = vmatprep.subr.mxu0 0.0
    %8674 = vmatpush2.msra.mxu0 0.0
    %8675 = vmatprep.subr.mxu0 0.0
    %8676 = vmatpush2.msra.mxu0 0.0
    %8677 = vmatprep.mubr.f32.mxu0 0.0
    %8678 = vmatmul.mubr.f32.gmra.mxu0 %v8453
    %v8679 = vpop.f32.mrf.mxu0
    %v8680 = vadd.f32 0.0, %v8679
    %v8681 = vpop.f32.mrf.mxu0
    %8682 = vmatprep.mubr.f32.mxu0 0.0
    %8683 = vmatmul.mubr.f32.gmra.mxu0 %v8456
    %v8684 = vpop.f32.mrf.mxu0
    %v8685 = vadd.f32 0.0, %v8684
    %v8686 = vpop.f32.mrf.mxu0
    %8687 = vmatprep.mubr.f32.mxu0 0.0
    %8688 = vmatmul.mubr.f32.gmra.mxu0 %v8459
    %v8689 = vpop.f32.mrf.mxu0
    %v8690 = vadd.f32 0.0, %v8689
    %v8691 = vpop.f32.mrf.mxu0
    %8692 = vmatprep.mubr.f32.mxu0 0.0
    %8693 = vmatmul.mubr.f32.gmra.mxu0 %v8462
    %v8694 = vpop.f32.mrf.mxu0
    %v8695 = vadd.f32 0.0, %v8694
    %v8696 = vpop.f32.mrf.mxu0
    %8697 = vmatprep.mubr.f32.mxu0 0.0
    %8698 = vmatmul.mubr.f32.gmra.mxu0 %v8465
    %v8699 = vpop.f32.mrf.mxu0
    %v8700 = vadd.f32 0.0, %v8699
    %v8701 = vpop.f32.mrf.mxu0
    %8702 = vmatprep.mubr.f32.mxu0 0.0
    %8703 = vmatmul.mubr.f32.gmra.mxu0 %v8468
    %v8704 = vpop.f32.mrf.mxu0
    %v8705 = vadd.f32 0.0, %v8704
    %v8706 = vpop.f32.mrf.mxu0
    %8707 = vdwg.mxu0
    %8714 = vrot.lane.b32.xlu0 %v8680, 56
    %v8715 = vpop.permute.xlu0 %8714
    %8716 = vrot.lane.b32.xlu0 %v8685, 56
    %v8717 = vpop.permute.xlu0 %8716
    %8718 = vrot.lane.b32.xlu0 %v8690, 56
    %v8719 = vpop.permute.xlu0 %8718
    %8720 = vrot.lane.b32.xlu0 %v8695, 56
    %v8721 = vpop.permute.xlu0 %8720
    %8722 = vrot.lane.b32.xlu0 %v8700, 56
    %v8723 = vpop.permute.xlu0 %8722
    %8724 = vrot.lane.b32.xlu0 %v8705, 56
    %v8725 = vpop.permute.xlu0 %8724
    %8732 = vst.msk [vmem:[#allocation2] sm:$0xff] %vm4352, %v8715
    %8733 = vst.msk [vmem:[#allocation2 + $0x8] sm:$0xff] %vm4352, %v8717
    %8734 = vst.msk [vmem:[#allocation2 + $0x10] sm:$0xff] %vm4352, %v8719
    %8735 = vst.msk [vmem:[#allocation2 + $0x18] sm:$0xff] %vm4352, %v8721
    %8736 = vst.msk [vmem:[#allocation2 + $0x20] sm:$0xff] %vm4352, %v8723
    %8737 = vst.msk [vmem:[#allocation2 + $0x28] sm:$0xff] %vm4352, %v8725
    %v8738 = vld [vmem:[#allocation2] sm:$0xff]
    %v8739 = vld [vmem:[#allocation2 + $0x8] sm:$0xff]
    %v8740 = vld [vmem:[#allocation2 + $0x10] sm:$0xff]
    %v8741 = vld [vmem:[#allocation2 + $0x18] sm:$0xff]
    %v8742 = vld [vmem:[#allocation2 + $0x20] sm:$0xff]
    %v8743 = vld [vmem:[#allocation2 + $0x28] sm:$0xff]
    %v8744 = vld [vmem:[%s17] sm:$0xff]
    %v8745 = vld [vmem:[%s17 + $0x8] sm:$0xff]
    %v8746 = vld [vmem:[%s17 + $0x10] sm:$0xff]
    %v8747 = vld [vmem:[%s17 + $0x18] sm:$0xff]
    %v8748 = vld [vmem:[%s17 + $0x20] sm:$0xff]
    %v8749 = vld [vmem:[%s17 + $0x28] sm:$0xff]
    %v8750 = vld [vmem:[%s17 + $0x30] sm:$0xff]
    %v8751 = vld [vmem:[%s17 + $0x38] sm:$0xff]
    %v8752 = vld [vmem:[%s18] sm:$0x1]
    %v8754 = vlaneseq
    %v8755 = vshrl.u32 %v8754, 7
    %v8756 = vsub.s32 0, %v8755
    %v8757 = vrot.slane %v8752, %v8756
    %v8760 = vsel %vm294, %v8738, 0
    %v8763 = vsel %vm294, %v8739, 0
    %v8766 = vsel %vm294, %v8740, 0
    %v8769 = vsel %vm294, %v8741, 0
    %v8772 = vsel %vm294, %v8742, 0
    %v8775 = vsel %vm294, %v8743, 0
    %8777 = vmatprep.subr.mxu0 0.0
    %8778 = vmatpush1.msra.mxu0 0.0
    %8779 = vmatprep.subr.mxu0 0.0
    %8780 = vmatpush1.msra.mxu0 0.0
    %8781 = vmatprep.subr.mxu0 0.0
    %8782 = vmatpush1.msra.mxu0 0.0
    %8783 = vmatprep.subr.mxu0 0.0
    %8784 = vmatpush1.msra.mxu0 0.0
    %8785 = vmatprep.subr.mxu0 0.0
    %8786 = vmatpush1.msra.mxu0 0.0
    %8787 = vmatprep.subr.mxu0 0.0
    %8788 = vmatpush1.msra.mxu0 0.0
    %8789 = vmatprep.subr.mxu0 0.0
    %8790 = vmatpush1.msra.mxu0 0.0
    %8791 = vmatprep.subr.mxu0 0.0
    %8792 = vmatpush1.msra.mxu0 0.0
    %8793 = vmatprep.subr.mxu0 0.0
    %8794 = vmatpush1.msra.mxu0 %v8751
    %8795 = vmatprep.subr.mxu0 0.0
    %8796 = vmatpush1.msra.mxu0 %v8750
    %8797 = vmatprep.subr.mxu0 0.0
    %8798 = vmatpush1.msra.mxu0 %v8749
    %8799 = vmatprep.subr.mxu0 0.0
    %8800 = vmatpush1.msra.mxu0 %v8748
    %8801 = vmatprep.subr.mxu0 0.0
    %8802 = vmatpush1.msra.mxu0 %v8747
    %8803 = vmatprep.subr.mxu0 0.0
    %8804 = vmatpush1.msra.mxu0 %v8746
    %8805 = vmatprep.subr.mxu0 0.0
    %8806 = vmatpush1.msra.mxu0 %v8745
    %8807 = vmatprep.subr.mxu0 0.0
    %8808 = vmatpush1.msra.mxu0 %v8744
    %8809 = vmatprep.subr.mxu0 0.0
    %8810 = vmatpush2.msra.mxu0 0.0
    %8811 = vmatprep.subr.mxu0 0.0
    %8812 = vmatpush2.msra.mxu0 0.0
    %8813 = vmatprep.subr.mxu0 0.0
    %8814 = vmatpush2.msra.mxu0 0.0
    %8815 = vmatprep.subr.mxu0 0.0
    %8816 = vmatpush2.msra.mxu0 0.0
    %8817 = vmatprep.subr.mxu0 0.0
    %8818 = vmatpush2.msra.mxu0 0.0
    %8819 = vmatprep.subr.mxu0 0.0
    %8820 = vmatpush2.msra.mxu0 0.0
    %8821 = vmatprep.subr.mxu0 0.0
    %8822 = vmatpush2.msra.mxu0 0.0
    %8823 = vmatprep.subr.mxu0 0.0
    %8824 = vmatpush2.msra.mxu0 0.0
    %8825 = vmatprep.subr.mxu0 0.0
    %8826 = vmatpush2.msra.mxu0 0.0
    %8827 = vmatprep.subr.mxu0 0.0
    %8828 = vmatpush2.msra.mxu0 0.0
    %8829 = vmatprep.subr.mxu0 0.0
    %8830 = vmatpush2.msra.mxu0 0.0
    %8831 = vmatprep.subr.mxu0 0.0
    %8832 = vmatpush2.msra.mxu0 0.0
    %8833 = vmatprep.subr.mxu0 0.0
    %8834 = vmatpush2.msra.mxu0 0.0
    %8835 = vmatprep.subr.mxu0 0.0
    %8836 = vmatpush2.msra.mxu0 0.0
    %8837 = vmatprep.subr.mxu0 0.0
    %8838 = vmatpush2.msra.mxu0 0.0
    %8839 = vmatprep.subr.mxu0 0.0
    %8840 = vmatpush2.msra.mxu0 0.0
    %8841 = vmatprep.mubr.f32.mxu0 0.0
    %8842 = vmatmul.mubr.f32.gmra.mxu0 %v8760
    %v8843 = vpop.f32.mrf.mxu0
    %v8844 = vadd.f32 %v8757, %v8843
    %v8845 = vpop.f32.mrf.mxu0
    %8846 = vmatprep.mubr.f32.mxu0 0.0
    %8847 = vmatmul.mubr.f32.gmra.mxu0 %v8763
    %v8848 = vpop.f32.mrf.mxu0
    %v8849 = vadd.f32 %v8757, %v8848
    %v8850 = vpop.f32.mrf.mxu0
    %8851 = vmatprep.mubr.f32.mxu0 0.0
    %8852 = vmatmul.mubr.f32.gmra.mxu0 %v8766
    %v8853 = vpop.f32.mrf.mxu0
    %v8854 = vadd.f32 %v8757, %v8853
    %v8855 = vpop.f32.mrf.mxu0
    %8856 = vmatprep.mubr.f32.mxu0 0.0
    %8857 = vmatmul.mubr.f32.gmra.mxu0 %v8769
    %v8858 = vpop.f32.mrf.mxu0
    %v8859 = vadd.f32 %v8757, %v8858
    %v8860 = vpop.f32.mrf.mxu0
    %8861 = vmatprep.mubr.f32.mxu0 0.0
    %8862 = vmatmul.mubr.f32.gmra.mxu0 %v8772
    %v8863 = vpop.f32.mrf.mxu0
    %v8864 = vadd.f32 %v8757, %v8863
    %v8865 = vpop.f32.mrf.mxu0
    %8866 = vmatprep.mubr.f32.mxu0 0.0
    %8867 = vmatmul.mubr.f32.gmra.mxu0 %v8775
    %v8868 = vpop.f32.mrf.mxu0
    %v8869 = vadd.f32 %v8757, %v8868
    %v8870 = vpop.f32.mrf.mxu0
    %8871 = vdwg.mxu0
    %v8872 = vld [vmem:[%s19] sm:$0xff]
    %v8873 = vld [vmem:[%s19 + $0x8] sm:$0xff]
    %v8874 = vld [vmem:[%s19 + $0x10] sm:$0xff]
    %v8875 = vld [vmem:[%s19 + $0x18] sm:$0xff]
    %v8876 = vld [vmem:[%s19 + $0x20] sm:$0xff]
    %v8877 = vld [vmem:[%s19 + $0x28] sm:$0xff]
    %v8878 = vld [vmem:[%s19 + $0x30] sm:$0xff]
    %v8879 = vld [vmem:[%s19 + $0x38] sm:$0xff]
    %v8880 = vld [vmem:[%s20] sm:$0x1]
    %v8882 = vlaneseq
    %v8883 = vshrl.u32 %v8882, 7
    %v8884 = vsub.s32 0, %v8883
    %v8885 = vrot.slane %v8880, %v8884
    %v8888 = vsel %vm294, %v8844, 0
    %v8891 = vsel %vm294, %v8849, 0
    %v8894 = vsel %vm294, %v8854, 0
    %v8897 = vsel %vm294, %v8859, 0
    %v8900 = vsel %vm294, %v8864, 0
    %v8903 = vsel %vm294, %v8869, 0
    %8905 = vmatprep.subr.mxu0 0.0
    %8906 = vmatpush1.msra.mxu0 0.0
    %8907 = vmatprep.subr.mxu0 0.0
    %8908 = vmatpush1.msra.mxu0 0.0
    %8909 = vmatprep.subr.mxu0 0.0
    %8910 = vmatpush1.msra.mxu0 0.0
    %8911 = vmatprep.subr.mxu0 0.0
    %8912 = vmatpush1.msra.mxu0 0.0
    %8913 = vmatprep.subr.mxu0 0.0
    %8914 = vmatpush1.msra.mxu0 0.0
    %8915 = vmatprep.subr.mxu0 0.0
    %8916 = vmatpush1.msra.mxu0 0.0
    %8917 = vmatprep.subr.mxu0 0.0
    %8918 = vmatpush1.msra.mxu0 0.0
    %8919 = vmatprep.subr.mxu0 0.0
    %8920 = vmatpush1.msra.mxu0 0.0
    %8921 = vmatprep.subr.mxu0 0.0
    %8922 = vmatpush1.msra.mxu0 %v8879
    %8923 = vmatprep.subr.mxu0 0.0
    %8924 = vmatpush1.msra.mxu0 %v8878
    %8925 = vmatprep.subr.mxu0 0.0
    %8926 = vmatpush1.msra.mxu0 %v8877
    %8927 = vmatprep.subr.mxu0 0.0
    %8928 = vmatpush1.msra.mxu0 %v8876
    %8929 = vmatprep.subr.mxu0 0.0
    %8930 = vmatpush1.msra.mxu0 %v8875
    %8931 = vmatprep.subr.mxu0 0.0
    %8932 = vmatpush1.msra.mxu0 %v8874
    %8933 = vmatprep.subr.mxu0 0.0
    %8934 = vmatpush1.msra.mxu0 %v8873
    %8935 = vmatprep.subr.mxu0 0.0
    %8936 = vmatpush1.msra.mxu0 %v8872
    %8937 = vmatprep.subr.mxu0 0.0
    %8938 = vmatpush2.msra.mxu0 0.0
    %8939 = vmatprep.subr.mxu0 0.0
    %8940 = vmatpush2.msra.mxu0 0.0
    %8941 = vmatprep.subr.mxu0 0.0
    %8942 = vmatpush2.msra.mxu0 0.0
    %8943 = vmatprep.subr.mxu0 0.0
    %8944 = vmatpush2.msra.mxu0 0.0
    %8945 = vmatprep.subr.mxu0 0.0
    %8946 = vmatpush2.msra.mxu0 0.0
    %8947 = vmatprep.subr.mxu0 0.0
    %8948 = vmatpush2.msra.mxu0 0.0
    %8949 = vmatprep.subr.mxu0 0.0
    %8950 = vmatpush2.msra.mxu0 0.0
    %8951 = vmatprep.subr.mxu0 0.0
    %8952 = vmatpush2.msra.mxu0 0.0
    %8953 = vmatprep.subr.mxu0 0.0
    %8954 = vmatpush2.msra.mxu0 0.0
    %8955 = vmatprep.subr.mxu0 0.0
    %8956 = vmatpush2.msra.mxu0 0.0
    %8957 = vmatprep.subr.mxu0 0.0
    %8958 = vmatpush2.msra.mxu0 0.0
    %8959 = vmatprep.subr.mxu0 0.0
    %8960 = vmatpush2.msra.mxu0 0.0
    %8961 = vmatprep.subr.mxu0 0.0
    %8962 = vmatpush2.msra.mxu0 0.0
    %8963 = vmatprep.subr.mxu0 0.0
    %8964 = vmatpush2.msra.mxu0 0.0
    %8965 = vmatprep.subr.mxu0 0.0
    %8966 = vmatpush2.msra.mxu0 0.0
    %8967 = vmatprep.subr.mxu0 0.0
    %8968 = vmatpush2.msra.mxu0 0.0
    %8969 = vmatprep.mubr.f32.mxu0 0.0
    %8970 = vmatmul.mubr.f32.gmra.mxu0 %v8888
    %v8971 = vpop.f32.mrf.mxu0
    %v8972 = vadd.f32 %v8885, %v8971
    %v8973 = vpop.f32.mrf.mxu0
    %8974 = vmatprep.mubr.f32.mxu0 0.0
    %8975 = vmatmul.mubr.f32.gmra.mxu0 %v8891
    %v8976 = vpop.f32.mrf.mxu0
    %v8977 = vadd.f32 %v8885, %v8976
    %v8978 = vpop.f32.mrf.mxu0
    %8979 = vmatprep.mubr.f32.mxu0 0.0
    %8980 = vmatmul.mubr.f32.gmra.mxu0 %v8894
    %v8981 = vpop.f32.mrf.mxu0
    %v8982 = vadd.f32 %v8885, %v8981
    %v8983 = vpop.f32.mrf.mxu0
    %8984 = vmatprep.mubr.f32.mxu0 0.0
    %8985 = vmatmul.mubr.f32.gmra.mxu0 %v8897
    %v8986 = vpop.f32.mrf.mxu0
    %v8987 = vadd.f32 %v8885, %v8986
    %v8988 = vpop.f32.mrf.mxu0
    %8989 = vmatprep.mubr.f32.mxu0 0.0
    %8990 = vmatmul.mubr.f32.gmra.mxu0 %v8900
    %v8991 = vpop.f32.mrf.mxu0
    %v8992 = vadd.f32 %v8885, %v8991
    %v8993 = vpop.f32.mrf.mxu0
    %8994 = vmatprep.mubr.f32.mxu0 0.0
    %8995 = vmatmul.mubr.f32.gmra.mxu0 %v8903
    %v8996 = vpop.f32.mrf.mxu0
    %v8997 = vadd.f32 %v8885, %v8996
    %v8998 = vpop.f32.mrf.mxu0
    %8999 = vdwg.mxu0
    %v9000 = vld [vmem:[%s21] sm:$0xff]
    %v9001 = vld [vmem:[%s21 + $0x8] sm:$0xff]
    %v9002 = vld [vmem:[%s21 + $0x10] sm:$0xff]
    %v9003 = vld [vmem:[%s21 + $0x18] sm:$0xff]
    %v9004 = vld [vmem:[%s21 + $0x20] sm:$0xff]
    %v9005 = vld [vmem:[%s21 + $0x28] sm:$0xff]
    %v9006 = vld [vmem:[%s21 + $0x30] sm:$0xff]
    %v9007 = vld [vmem:[%s21 + $0x38] sm:$0xff]
    %v9008 = vld [vmem:[%s21 + $0x40] sm:$0xff]
    %v9009 = vld [vmem:[%s21 + $0x48] sm:$0xff]
    %v9010 = vld [vmem:[%s21 + $0x50] sm:$0xff]
    %v9011 = vld [vmem:[%s21 + $0x58] sm:$0xff]
    %v9012 = vld [vmem:[%s21 + $0x60] sm:$0xff]
    %v9013 = vld [vmem:[%s21 + $0x68] sm:$0xff]
    %v9014 = vld [vmem:[%s21 + $0x70] sm:$0xff]
    %v9015 = vld [vmem:[%s21 + $0x78] sm:$0xff]
    %v9016 = vld [vmem:[%s22] sm:$0x1]
    %v9018 = vlaneseq
    %v9019 = vshrl.u32 %v9018, 7
    %v9020 = vsub.s32 0, %v9019
    %v9021 = vrot.slane %v9016, %v9020
    %9023 = vmatprep.subr.mxu0 0.0
    %9024 = vmatpush1.msra.mxu0 %v9015
    %9025 = vmatprep.subr.mxu0 0.0
    %9026 = vmatpush1.msra.mxu0 %v9014
    %9027 = vmatprep.subr.mxu0 0.0
    %9028 = vmatpush1.msra.mxu0 %v9013
    %9029 = vmatprep.subr.mxu0 0.0
    %9030 = vmatpush1.msra.mxu0 %v9012
    %9031 = vmatprep.subr.mxu0 0.0
    %9032 = vmatpush1.msra.mxu0 %v9011
    %9033 = vmatprep.subr.mxu0 0.0
    %9034 = vmatpush1.msra.mxu0 %v9010
    %9035 = vmatprep.subr.mxu0 0.0
    %9036 = vmatpush1.msra.mxu0 %v9009
    %9037 = vmatprep.subr.mxu0 0.0
    %9038 = vmatpush1.msra.mxu0 %v9008
    %9039 = vmatprep.subr.mxu0 0.0
    %9040 = vmatpush1.msra.mxu0 %v9007
    %9041 = vmatprep.subr.mxu0 0.0
    %9042 = vmatpush1.msra.mxu0 %v9006
    %9043 = vmatprep.subr.mxu0 0.0
    %9044 = vmatpush1.msra.mxu0 %v9005
    %9045 = vmatprep.subr.mxu0 0.0
    %9046 = vmatpush1.msra.mxu0 %v9004
    %9047 = vmatprep.subr.mxu0 0.0
    %9048 = vmatpush1.msra.mxu0 %v9003
    %9049 = vmatprep.subr.mxu0 0.0
    %9050 = vmatpush1.msra.mxu0 %v9002
    %9051 = vmatprep.subr.mxu0 0.0
    %9052 = vmatpush1.msra.mxu0 %v9001
    %9053 = vmatprep.subr.mxu0 0.0
    %9054 = vmatpush1.msra.mxu0 %v9000
    %9055 = vmatprep.subr.mxu0 0.0
    %9056 = vmatpush2.msra.mxu0 0.0
    %9057 = vmatprep.subr.mxu0 0.0
    %9058 = vmatpush2.msra.mxu0 0.0
    %9059 = vmatprep.subr.mxu0 0.0
    %9060 = vmatpush2.msra.mxu0 0.0
    %9061 = vmatprep.subr.mxu0 0.0
    %9062 = vmatpush2.msra.mxu0 0.0
    %9063 = vmatprep.subr.mxu0 0.0
    %9064 = vmatpush2.msra.mxu0 0.0
    %9065 = vmatprep.subr.mxu0 0.0
    %9066 = vmatpush2.msra.mxu0 0.0
    %9067 = vmatprep.subr.mxu0 0.0
    %9068 = vmatpush2.msra.mxu0 0.0
    %9069 = vmatprep.subr.mxu0 0.0
    %9070 = vmatpush2.msra.mxu0 0.0
    %9071 = vmatprep.subr.mxu0 0.0
    %9072 = vmatpush2.msra.mxu0 0.0
    %9073 = vmatprep.subr.mxu0 0.0
    %9074 = vmatpush2.msra.mxu0 0.0
    %9075 = vmatprep.subr.mxu0 0.0
    %9076 = vmatpush2.msra.mxu0 0.0
    %9077 = vmatprep.subr.mxu0 0.0
    %9078 = vmatpush2.msra.mxu0 0.0
    %9079 = vmatprep.subr.mxu0 0.0
    %9080 = vmatpush2.msra.mxu0 0.0
    %9081 = vmatprep.subr.mxu0 0.0
    %9082 = vmatpush2.msra.mxu0 0.0
    %9083 = vmatprep.subr.mxu0 0.0
    %9084 = vmatpush2.msra.mxu0 0.0
    %9085 = vmatprep.subr.mxu0 0.0
    %9086 = vmatpush2.msra.mxu0 0.0
    %9087 = vmatprep.mubr.f32.mxu0 0.0
    %9088 = vmatmul.mubr.f32.gmra.mxu0 %v8972
    %v9089 = vpop.f32.mrf.mxu0
    %v9090 = vadd.f32 %v9021, %v9089
    %v9091 = vpop.f32.mrf.mxu0
    %9092 = vmatprep.mubr.f32.mxu0 0.0
    %9093 = vmatmul.mubr.f32.gmra.mxu0 %v8977
    %v9094 = vpop.f32.mrf.mxu0
    %v9095 = vadd.f32 %v9021, %v9094
    %v9096 = vpop.f32.mrf.mxu0
    %9097 = vmatprep.mubr.f32.mxu0 0.0
    %9098 = vmatmul.mubr.f32.gmra.mxu0 %v8982
    %v9099 = vpop.f32.mrf.mxu0
    %v9100 = vadd.f32 %v9021, %v9099
    %v9101 = vpop.f32.mrf.mxu0
    %9102 = vmatprep.mubr.f32.mxu0 0.0
    %9103 = vmatmul.mubr.f32.gmra.mxu0 %v8987
    %v9104 = vpop.f32.mrf.mxu0
    %v9105 = vadd.f32 %v9021, %v9104
    %v9106 = vpop.f32.mrf.mxu0
    %9107 = vmatprep.mubr.f32.mxu0 0.0
    %9108 = vmatmul.mubr.f32.gmra.mxu0 %v8992
    %v9109 = vpop.f32.mrf.mxu0
    %v9110 = vadd.f32 %v9021, %v9109
    %v9111 = vpop.f32.mrf.mxu0
    %9112 = vmatprep.mubr.f32.mxu0 0.0
    %9113 = vmatmul.mubr.f32.gmra.mxu0 %v8997
    %v9114 = vpop.f32.mrf.mxu0
    %v9115 = vadd.f32 %v9021, %v9114
    %v9116 = vpop.f32.mrf.mxu0
    %9117 = vdwg.mxu0
    %v9118 = vld [vmem:[%s23] sm:$0xff]
    %v9119 = vld [vmem:[%s23 + $0x8] sm:$0xff]
    %v9120 = vld [vmem:[%s23 + $0x10] sm:$0xff]
    %v9121 = vld [vmem:[%s23 + $0x18] sm:$0xff]
    %v9122 = vld [vmem:[%s23 + $0x20] sm:$0xff]
    %v9123 = vld [vmem:[%s23 + $0x28] sm:$0xff]
    %v9124 = vld [vmem:[%s23 + $0x30] sm:$0xff]
    %v9125 = vld [vmem:[%s23 + $0x38] sm:$0xff]
    %v9126 = vld [vmem:[%s24] sm:$0x1]
    %v9128 = vlaneseq
    %v9129 = vshrl.u32 %v9128, 7
    %v9130 = vsub.s32 0, %v9129
    %v9131 = vrot.slane %v9126, %v9130
    %v9134 = vsel %vm294, %v9090, 0
    %v9137 = vsel %vm294, %v9095, 0
    %v9140 = vsel %vm294, %v9100, 0
    %v9143 = vsel %vm294, %v9105, 0
    %v9146 = vsel %vm294, %v9110, 0
    %v9149 = vsel %vm294, %v9115, 0
    %9151 = vmatprep.subr.mxu0 0.0
    %9152 = vmatpush1.msra.mxu0 0.0
    %9153 = vmatprep.subr.mxu0 0.0
    %9154 = vmatpush1.msra.mxu0 0.0
    %9155 = vmatprep.subr.mxu0 0.0
    %9156 = vmatpush1.msra.mxu0 0.0
    %9157 = vmatprep.subr.mxu0 0.0
    %9158 = vmatpush1.msra.mxu0 0.0
    %9159 = vmatprep.subr.mxu0 0.0
    %9160 = vmatpush1.msra.mxu0 0.0
    %9161 = vmatprep.subr.mxu0 0.0
    %9162 = vmatpush1.msra.mxu0 0.0
    %9163 = vmatprep.subr.mxu0 0.0
    %9164 = vmatpush1.msra.mxu0 0.0
    %9165 = vmatprep.subr.mxu0 0.0
    %9166 = vmatpush1.msra.mxu0 0.0
    %9167 = vmatprep.subr.mxu0 0.0
    %9168 = vmatpush1.msra.mxu0 %v9125
    %9169 = vmatprep.subr.mxu0 0.0
    %9170 = vmatpush1.msra.mxu0 %v9124
    %9171 = vmatprep.subr.mxu0 0.0
    %9172 = vmatpush1.msra.mxu0 %v9123
    %9173 = vmatprep.subr.mxu0 0.0
    %9174 = vmatpush1.msra.mxu0 %v9122
    %9175 = vmatprep.subr.mxu0 0.0
    %9176 = vmatpush1.msra.mxu0 %v9121
    %9177 = vmatprep.subr.mxu0 0.0
    %9178 = vmatpush1.msra.mxu0 %v9120
    %9179 = vmatprep.subr.mxu0 0.0
    %9180 = vmatpush1.msra.mxu0 %v9119
    %9181 = vmatprep.subr.mxu0 0.0
    %9182 = vmatpush1.msra.mxu0 %v9118
    %9183 = vmatprep.subr.mxu0 0.0
    %9184 = vmatpush2.msra.mxu0 0.0
    %9185 = vmatprep.subr.mxu0 0.0
    %9186 = vmatpush2.msra.mxu0 0.0
    %9187 = vmatprep.subr.mxu0 0.0
    %9188 = vmatpush2.msra.mxu0 0.0
    %9189 = vmatprep.subr.mxu0 0.0
    %9190 = vmatpush2.msra.mxu0 0.0
    %9191 = vmatprep.subr.mxu0 0.0
    %9192 = vmatpush2.msra.mxu0 0.0
    %9193 = vmatprep.subr.mxu0 0.0
    %9194 = vmatpush2.msra.mxu0 0.0
    %9195 = vmatprep.subr.mxu0 0.0
    %9196 = vmatpush2.msra.mxu0 0.0
    %9197 = vmatprep.subr.mxu0 0.0
    %9198 = vmatpush2.msra.mxu0 0.0
    %9199 = vmatprep.subr.mxu0 0.0
    %9200 = vmatpush2.msra.mxu0 0.0
    %9201 = vmatprep.subr.mxu0 0.0
    %9202 = vmatpush2.msra.mxu0 0.0
    %9203 = vmatprep.subr.mxu0 0.0
    %9204 = vmatpush2.msra.mxu0 0.0
    %9205 = vmatprep.subr.mxu0 0.0
    %9206 = vmatpush2.msra.mxu0 0.0
    %9207 = vmatprep.subr.mxu0 0.0
    %9208 = vmatpush2.msra.mxu0 0.0
    %9209 = vmatprep.subr.mxu0 0.0
    %9210 = vmatpush2.msra.mxu0 0.0
    %9211 = vmatprep.subr.mxu0 0.0
    %9212 = vmatpush2.msra.mxu0 0.0
    %9213 = vmatprep.subr.mxu0 0.0
    %9214 = vmatpush2.msra.mxu0 0.0
    %9215 = vmatprep.mubr.f32.mxu0 0.0
    %9216 = vmatmul.mubr.f32.gmra.mxu0 %v9134
    %v9217 = vpop.f32.mrf.mxu0
    %v9218 = vadd.f32 %v9131, %v9217
    %v9219 = vpop.f32.mrf.mxu0
    %9220 = vmatprep.mubr.f32.mxu0 0.0
    %9221 = vmatmul.mubr.f32.gmra.mxu0 %v9137
    %v9222 = vpop.f32.mrf.mxu0
    %v9223 = vpop.f32.mrf.mxu0
    %9224 = vmatprep.mubr.f32.mxu0 0.0
    %9225 = vmatmul.mubr.f32.gmra.mxu0 %v9140
    %v9226 = vpop.f32.mrf.mxu0
    %v9227 = vpop.f32.mrf.mxu0
    %9228 = vmatprep.mubr.f32.mxu0 0.0
    %9229 = vmatmul.mubr.f32.gmra.mxu0 %v9143
    %v9230 = vpop.f32.mrf.mxu0
    %v9231 = vadd.f32 %v9131, %v9230
    %v9232 = vpop.f32.mrf.mxu0
    %9233 = vmatprep.mubr.f32.mxu0 0.0
    %9234 = vmatmul.mubr.f32.gmra.mxu0 %v9146
    %v9235 = vpop.f32.mrf.mxu0
    %v9236 = vpop.f32.mrf.mxu0
    %9237 = vmatprep.mubr.f32.mxu0 0.0
    %9238 = vmatmul.mubr.f32.gmra.mxu0 %v9149
    %v9239 = vpop.f32.mrf.mxu0
    %v9240 = vpop.f32.mrf.mxu0
    %9241 = vdwg.mxu0
    %vm9242 = vcmask 73728
    %9243 = vst.msk [vmem:[#allocation3] sm:$0x1] %vm9242, %v9218
    %9244 = vst.msk [vmem:[#allocation3 + $0x1] sm:$0x1] %vm9242, %v9231
    // Predicated region
    $region102: #{vit_forward.1} parent=1 // pred_check
      _
    $region103: #{vit_forward.1} parent=1 // pred_check_branch
      %9246 = sbr.rel (0) target = $region105
    $region104: #{vit_forward.1} parent=1 // pred_region
      %s9248 = ssub.s32 32, 32
      %9249 = vsyncadd [#allocation4], %s9248
      %s9251 = sshll.u32 [#allocation3], 4
      %s9252 = int_to_ptr.vmem [resolvable:$true] %s9251
      %9254 = dma.vmem_to_hbm [thread:$0]  %s9252, 32, %s25, [#allocation4]
    $region105: #{vit_forward.1} parent=1 // pred_fallthru
      _
    // Predicated region
    $region106: #{vit_forward.1} parent=1 // pred_check
      _
    $region107: #{vit_forward.1} parent=1 // pred_check_branch
      %9256 = sbr.rel (0) target = $region109
    $region108: #{vit_forward.1} parent=1 // pred_region
      %9257 = dma.done [#allocation4], 32
    $region109: #{vit_forward.1} parent=1 // pred_fallthru
      _
    %9258 = vsyncpa [#allocation4], 1

</llo_original>
